<compile_context>
chip_gen: v5e
topology: v5e:2x2
jax: 0.10.0
libtpu: 0.0.40
codegen_flags: <defaults>
</compile_context>

<pallas_src>
import numpy as np

import jax
import jax.numpy as jnp
from jax.experimental import pallas as pl
from jax.experimental.pallas import tpu as pltpu


# ----------------------------- static tile sizes ----------------------------

B_TILE = 8                  # images per grid step -> conv matmul M ~= 256
NR = 32 * B_TILE            # 256 activation rows per step (32 rows / image)
NR_IN = NR + 8              # input rows incl. 8 zero rows so kh-shifts stay in bounds
M2 = NR - 8                 # 248 rows carried through the conv2 / pool2 stage
NROW_FC = 5 * B_TILE        # 40 gathered rows feeding fc1 (row = p2*B_TILE + b)


# ------------------------------ Pallas kernel -------------------------------

def _lenet_kernel(x_ref, b1_ref, bias1_ref, csel0_ref, csel1_ref,
                  b2_ref, bias2_ref, dsel0_ref, dsel1_ref, g0_ref, g2_ref,
                  w1e_ref, fb1_ref, w2_ref, fb2_ref, w3_ref, fb3_ref,
                  out_ref, p1_ref):
    """One block of B_TILE images per grid step; everything stays in VMEM.

    Activation layout: per image a 32-row band (rows b*32 + r); only rows with
    r < 28 (conv1) / even r < 28 (pool1) / even r < 20 (conv2) are meaningful,
    the rest is finite garbage that the 0/1 selection matmuls never pick up.
    """
    f32 = jnp.float32

    # ---- conv1 (3->6, k=5) + bias + ReLU: 5 matmuls (256,128)@(128,168) ----
    acc = jnp.zeros((NR, 168), f32)
    for kh in range(5):
        acc = acc + jnp.dot(x_ref[0, kh:kh + NR, :], b1_ref[kh],
                            preferred_element_type=f32)
    c1 = jnp.maximum(acc + bias1_ref[...], 0.0)                  # (256, 168)

    # ---- maxpool1 2x2/2: column pairs via 0/1 selection matmuls, ----------
    # ---- row pairs via a shifted VPU max (valid rows stay at b*32 + 2p). --
    cp = jnp.maximum(
        jnp.dot(c1, csel0_ref[...], preferred_element_type=f32),
        jnp.dot(c1, csel1_ref[...], preferred_element_type=f32))  # (256, 84)
    p1_ref[...] = cp                                   # keep every row finite
    p1_ref[0:NR - 1, :] = jnp.maximum(cp[0:NR - 1, :], cp[1:NR, :])

    # ---- conv2 (6->16, k=5) + bias + ReLU: ci bands merged along K ---------
    # ---- -> 5 matmuls (248,84)@(84,160); valid out rows at b*32 + 2*ho2. ---
    acc2 = jnp.zeros((M2, 160), f32)
    for kh in range(5):
        acc2 = acc2 + jnp.dot(p1_ref[2 * kh:2 * kh + M2, :], b2_ref[kh],
                              preferred_element_type=f32)
    c2 = jnp.maximum(acc2 + bias2_ref[...], 0.0)                 # (248, 160)

    # ---- maxpool2 2x2/2 + (image, row) gather ------------------------------
    cq = jnp.maximum(
        jnp.dot(c2, dsel0_ref[...], preferred_element_type=f32),
        jnp.dot(c2, dsel1_ref[...], preferred_element_type=f32))  # (248, 80)
    g = jnp.maximum(
        jnp.dot(g0_ref[...], cq, preferred_element_type=f32),
        jnp.dot(g2_ref[...], cq, preferred_element_type=f32))     # (40, 80)

    # ---- fc1 (400 -> 120, lanes padded to 128); pool2 layout + PyTorch -----
    # ---- channel-major flatten are folded into w1e host-side. --------------
    h = jnp.zeros((B_TILE, 128), f32) + fb1_ref[...]
    for p2 in range(5):
        h = h + jnp.dot(g[p2 * B_TILE:(p2 + 1) * B_TILE, :], w1e_ref[p2],
                        preferred_element_type=f32)
    h = jnp.maximum(h, 0.0)

    # ---- fc2 (120 -> 84), padded to one unmasked 128x128 tile --------------
    h = jnp.maximum(
        jnp.dot(h, w2_ref[...], preferred_element_type=f32) + fb2_ref[...],
        0.0)

    # ---- fc3 (84 -> 10, padded to 128 lanes) + log_softmax -----------------
    # Padded columns carry a -1e30 bias so exp() of them is 0 and they never
    # win the max -> the softmax sum only sees the 10 real classes.
    z = jnp.dot(h, w3_ref[...], preferred_element_type=f32) + fb3_ref[...]
    m = jnp.max(z, axis=-1, keepdims=True)
    s = z - m
    lse = jnp.log(jnp.sum(jnp.exp(s), axis=-1, keepdims=True))
    out_ref[...] = (s - lse).astype(out_ref.dtype)


# ------------------------- host-side weight repacking ------------------------

def prepare_params(params):
    """One-time repack (outside the jitted hot path) into MXU/lane-friendly
    operands.  Total ~1.5 MB of f32 weights -> trivially fits in VMEM."""
    c1w = np.asarray(params["conv1_w"], np.float32)   # (6, 3, 5, 5)
    c1b = np.asarray(params["conv1_b"], np.float32)
    c2w = np.asarray(params["conv2_w"], np.float32)   # (16, 6, 5, 5)
    c2b = np.asarray(params["conv2_b"], np.float32)
    f1w = np.asarray(params["fc1_w"], np.float32)     # (120, 400)
    f1b = np.asarray(params["fc1_b"], np.float32)
    f2w = np.asarray(params["fc2_w"], np.float32)     # (84, 120)
    f2b = np.asarray(params["fc2_b"], np.float32)
    f3w = np.asarray(params["fc3_w"], np.float32)     # (10, 84)
    f3b = np.asarray(params["fc3_b"], np.float32)

    # conv1 banded weights, all 3 input channels stacked along K.
    # b1[kh, ci*32 + wo + kw, co*28 + wo] = c1w[co, ci, kh, kw]
    b1 = np.zeros((5, 128, 168), np.float32)
    cos1 = np.arange(6) * 28
    for kh in range(5):
        for ci in range(3):
            for kw in range(5):
                for wo in range(28):
                    b1[kh, ci * 32 + wo + kw, cos1 + wo] = c1w[:, ci, kh, kw]
    bias1 = np.repeat(c1b, 28)[None, :]               # (1, 168)

    # pool1 even/odd column selectors: lane co*28 + 2q (+1) -> co*14 + q.
    csel0 = np.zeros((168, 84), np.float32)
    csel1 = np.zeros((168, 84), np.float32)
    for co in range(6):
        for q in range(14):
            csel0[co * 28 + 2 * q, co * 14 + q] = 1.0
            csel1[co * 28 + 2 * q + 1, co * 14 + q] = 1.0

    # conv2 banded weights, all 6 input channels stacked along K.
    # b2[kh, ci*14 + wo + kw, co*10 + wo] = c2w[co, ci, kh, kw]
    b2 = np.zeros((5, 84, 160), np.float32)
    cos2 = np.arange(16) * 10
    for kh in range(5):
        for ci in range(6):
            for kw in range(5):
                for wo in range(10):
                    b2[kh, ci * 14 + wo + kw, cos2 + wo] = c2w[:, ci, kh, kw]
    bias2 = np.repeat(c2b, 10)[None, :]               # (1, 160)

    # pool2 even/odd column selectors: lane co*10 + 2q (+1) -> co*5 + q.
    dsel0 = np.zeros((160, 80), np.float32)
    dsel1 = np.zeros((160, 80), np.float32)
    for co in range(16):
        for q in range(5):
            dsel0[co * 10 + 2 * q, co * 5 + q] = 1.0
            dsel1[co * 10 + 2 * q + 1, co * 5 + q] = 1.0

    # pool2 row gathers: conv2 rows b*32 + 4*p2 (+2) -> gathered row p2*B + b.
    g0 = np.zeros((NROW_FC, M2), np.float32)
    g2 = np.zeros((NROW_FC, M2), np.float32)
    for p2 in range(5):
        for b in range(B_TILE):
            g0[p2 * B_TILE + b, b * 32 + 4 * p2] = 1.0
            g2[p2 * B_TILE + b, b * 32 + 4 * p2 + 2] = 1.0

    # fc1 with the PyTorch channel-major .view(-1, 400) flatten folded in:
    # w1e[p2, co*5 + q2, j] = fc1_w[j, co*25 + p2*5 + q2]; columns padded to 128.
    w1e = np.zeros((5, 80, 128), np.float32)
    for p2 in range(5):
        for co in range(16):
            for q2 in range(5):
                w1e[p2, co * 5 + q2, :120] = f1w[:, co * 25 + p2 * 5 + q2]
    fb1 = np.zeros((1, 128), np.float32)
    fb1[0, :120] = f1b

    w2 = np.zeros((128, 128), np.float32)             # fc2, one unmasked tile
    w2[:120, :84] = f2w.T
    fb2 = np.zeros((1, 128), np.float32)
    fb2[0, :84] = f2b

    w3 = np.zeros((128, 128), np.float32)             # fc3, lane-dense
    w3[:84, :10] = f3w.T
    fb3 = np.full((1, 128), -1e30, np.float32)        # pad cols excluded from
    fb3[0, :10] = f3b                                 # the softmax sum

    packed = {
        "b1": b1, "bias1": bias1, "csel0": csel0, "csel1": csel1,
        "b2": b2, "bias2": bias2, "dsel0": dsel0, "dsel1": dsel1,
        "g0": g0, "g2": g2, "w1e": w1e, "fb1": fb1,
        "w2": w2, "fb2": fb2, "w3": w3, "fb3": fb3,
    }
    return {k: jnp.asarray(v) for k, v in packed.items()}


# --------------------------------- forward ----------------------------------

def lenet_forward(prep, x):
    """x: (N, 3, 32, 32) float32 NCHW -> (N, 10) log-probabilities."""
    n = x.shape[0]
    npad = ((n + B_TILE - 1) // B_TILE) * B_TILE
    nblk = npad // B_TILE

    # NCHW -> rows b*32 + h, lanes ci*32 + w (zero-padded to 128 lanes), grouped
    # into blocks of B_TILE images with 8 trailing zero rows per block so the
    # in-kernel kh-shifted row slices stay in bounds.
    xr = jnp.transpose(x, (0, 2, 1, 3)).reshape(n, 32, 96)
    xr = jnp.pad(xr, ((0, npad - n), (0, 0), (0, 128 - 96)))
    xr = xr.reshape(nblk, NR, 128)
    xr = jnp.pad(xr, ((0, 0), (0, NR_IN - NR), (0, 0)))

    def full(shape):
        return pl.BlockSpec(shape, lambda i, _nd=len(shape): (0,) * _nd)

    out = pl.pallas_call(
        _lenet_kernel,
        out_shape=jax.ShapeDtypeStruct((npad, 128), jnp.float32),
        grid=(nblk,),
        in_specs=[
            pl.BlockSpec((1, NR_IN, 128), lambda i: (i, 0, 0)),
            full((5, 128, 168)), full((1, 168)),
            full((168, 84)), full((168, 84)),
            full((5, 84, 160)), full((1, 160)),
            full((160, 80)), full((160, 80)),
            full((NROW_FC, M2)), full((NROW_FC, M2)),
            full((5, 80, 128)), full((1, 128)),
            full((128, 128)), full((1, 128)),
            full((128, 128)), full((1, 128)),
        ],
        out_specs=pl.BlockSpec((B_TILE, 128), lambda i: (i, 0)),
        scratch_shapes=[pltpu.VMEM((NR, 84), jnp.float32)],   # pool1 buffer
        compiler_params=pltpu.CompilerParams(
            dimension_semantics=("parallel",),    # feed both TCs on v7x
            vmem_limit_bytes=32 * 1024 * 1024),
    )(xr, prep["b1"], prep["bias1"], prep["csel0"], prep["csel1"],
      prep["b2"], prep["bias2"], prep["dsel0"], prep["dsel1"],
      prep["g0"], prep["g2"], prep["w1e"], prep["fb1"],
      prep["w2"], prep["fb2"], prep["w3"], prep["fb3"])

    return out[:n, :10]


# ---------------------------- params & reference ----------------------------

def init_params(key):
    """Deterministic PyTorch-style (uniform +/- 1/sqrt(fan_in)) init."""
    ks = jax.random.split(key, 10)

    def u(k, shape, fan_in):
        bound = 1.0 / float(fan_in) ** 0.5
        return jax.random.uniform(k, shape, jnp.float32, -bound, bound)

    return {
        "conv1_w": u(ks[0], (6, 3, 5, 5), 3 * 25),
        "conv1_b": u(ks[1], (6,), 3 * 25),
        "conv2_w": u(ks[2], (16, 6, 5, 5), 6 * 25),
        "conv2_b": u(ks[3], (16,), 6 * 25),
        "fc1_w": u(ks[4], (120, 400), 400),
        "fc1_b": u(ks[5], (120,), 400),
        "fc2_w": u(ks[6], (84, 120), 120),
        "fc2_b": u(ks[7], (84,), 120),
        "fc3_w": u(ks[8], (10, 84), 84),
        "fc3_b": u(ks[9], (10,), 84),
    }


def lenet_reference(params, x):
    """Plain-JAX reference (matches the PyTorch module)."""
    hp = jax.lax.Precision.HIGHEST
    dn = ("NCHW", "OIHW", "NCHW")

    y = jax.lax.conv_general_dilated(x, params["conv1_w"], (1, 1), "VALID",
                                     dimension_numbers=dn, precision=hp)
    y = jax.nn.relu(y + params["conv1_b"][None, :, None, None])
    n, c, h, w = y.shape
    y = y.reshape(n, c, h // 2, 2, w // 2, 2).max(axis=(3, 5))

    y = jax.lax.conv_general_dilated(y, params["conv2_w"], (1, 1), "VALID",
                                     dimension_numbers=dn, precision=hp)
    y = jax.nn.relu(y + params["conv2_b"][None, :, None, None])
    n, c, h, w = y.shape
    y = y.reshape(n, c, h // 2, 2, w // 2, 2).max(axis=(3, 5))

    y = y.reshape(n, -1)
    y = jax.nn.relu(jnp.dot(y, params["fc1_w"].T, precision=hp) + params["fc1_b"])
    y = jax.nn.relu(jnp.dot(y, params["fc2_w"].T, precision=hp) + params["fc2_b"])
    z = jnp.dot(y, params["fc3_w"].T, precision=hp) + params["fc3_b"]
    return jax.nn.log_softmax(z, axis=-1)


if __name__ == "__main__":
    key = jax.random.PRNGKey(0)
    pkey, xkey = jax.random.split(key)
    params = init_params(pkey)
    prep = prepare_params(params)            # one-time host-side repack

    # LeNet's 16*5*5 flatten requires 32x32 spatial input; batch = 16 gives
    # 2 grid steps (even, so both v7x TensorCores are used).
    x = jax.random.normal(xkey, (16, 3, 32, 32), jnp.float32)

    out = jax.jit(lenet_forward)(prep, x)
    jax.block_until_ready(out)
    assert out.shape == (16, 10)

    ref = lenet_reference(params, x)
    err = float(jnp.max(jnp.abs(out - ref)))
    assert err < 2e-2, f"kernel/reference mismatch: max abs err = {err}"

    print("KERNEL_OK")
</pallas_src>

<mosaic_0001>
module attributes {stable_mosaic.version = 11 : i64} {
  func.func @_lenet_kernel(%arg0: i32, %arg1: memref<1x264x128xf32, #tpu.memory_space<vmem>>, %arg2: memref<5x128x168xf32, #tpu.memory_space<vmem>>, %arg3: memref<1x168xf32, #tpu.memory_space<vmem>>, %arg4: memref<168x84xf32, #tpu.memory_space<vmem>>, %arg5: memref<168x84xf32, #tpu.memory_space<vmem>>, %arg6: memref<5x84x160xf32, #tpu.memory_space<vmem>>, %arg7: memref<1x160xf32, #tpu.memory_space<vmem>>, %arg8: memref<160x80xf32, #tpu.memory_space<vmem>>, %arg9: memref<160x80xf32, #tpu.memory_space<vmem>>, %arg10: memref<40x248xf32, #tpu.memory_space<vmem>>, %arg11: memref<40x248xf32, #tpu.memory_space<vmem>>, %arg12: memref<5x80x128xf32, #tpu.memory_space<vmem>>, %arg13: memref<1x128xf32, #tpu.memory_space<vmem>>, %arg14: memref<128x128xf32, #tpu.memory_space<vmem>>, %arg15: memref<1x128xf32, #tpu.memory_space<vmem>>, %arg16: memref<128x128xf32, #tpu.memory_space<vmem>>, %arg17: memref<1x128xf32, #tpu.memory_space<vmem>>, %arg18: memref<8x128xf32, #tpu.memory_space<vmem>>, %arg19: memref<256x84xf32, #tpu.memory_space<vmem>>) attributes {dimension_semantics = [#tpu.dimension_semantics<parallel>], iteration_bounds = array<i64: 2>, scalar_prefetch = 0 : i64, scratch_operands = 1 : i64, tpu.core_type = #tpu.core_type<tc>, window_params = [{transform_indices = @transform_0, window_bounds = array<i64: 1, 264, 128>}, {pipeline_mode = #tpu.pipeline_mode<synchronous>, transform_indices = @transform_1, window_bounds = array<i64: 5, 128, 168>}, {pipeline_mode = #tpu.pipeline_mode<synchronous>, transform_indices = @transform_2, window_bounds = array<i64: 1, 168>}, {pipeline_mode = #tpu.pipeline_mode<synchronous>, transform_indices = @transform_3, window_bounds = array<i64: 168, 84>}, {pipeline_mode = #tpu.pipeline_mode<synchronous>, transform_indices = @transform_4, window_bounds = array<i64: 168, 84>}, {pipeline_mode = #tpu.pipeline_mode<synchronous>, transform_indices = @transform_5, window_bounds = array<i64: 5, 84, 160>}, {pipeline_mode = #tpu.pipeline_mode<synchronous>, transform_indices = @transform_6, window_bounds = array<i64: 1, 160>}, {pipeline_mode = #tpu.pipeline_mode<synchronous>, transform_indices = @transform_7, window_bounds = array<i64: 160, 80>}, {pipeline_mode = #tpu.pipeline_mode<synchronous>, transform_indices = @transform_8, window_bounds = array<i64: 160, 80>}, {pipeline_mode = #tpu.pipeline_mode<synchronous>, transform_indices = @transform_9, window_bounds = array<i64: 40, 248>}, {pipeline_mode = #tpu.pipeline_mode<synchronous>, transform_indices = @transform_10, window_bounds = array<i64: 40, 248>}, {pipeline_mode = #tpu.pipeline_mode<synchronous>, transform_indices = @transform_11, window_bounds = array<i64: 5, 80, 128>}, {pipeline_mode = #tpu.pipeline_mode<synchronous>, transform_indices = @transform_12, window_bounds = array<i64: 1, 128>}, {pipeline_mode = #tpu.pipeline_mode<synchronous>, transform_indices = @transform_13, window_bounds = array<i64: 128, 128>}, {pipeline_mode = #tpu.pipeline_mode<synchronous>, transform_indices = @transform_14, window_bounds = array<i64: 1, 128>}, {pipeline_mode = #tpu.pipeline_mode<synchronous>, transform_indices = @transform_15, window_bounds = array<i64: 128, 128>}, {pipeline_mode = #tpu.pipeline_mode<synchronous>, transform_indices = @transform_16, window_bounds = array<i64: 1, 128>}, {transform_indices = @transform_17, window_bounds = array<i64: 8, 128>}]} {
    %cst = arith.constant 0.000000e+00 : f32
    %0 = vector.broadcast %cst : f32 to vector<256x168xf32>
    %c0 = arith.constant 0 : index
    %c0_0 = arith.constant 0 : index
    %c0_1 = arith.constant 0 : index
    %1 = vector.load %arg1[%c0, %c0_0, %c0_1] : memref<1x264x128xf32, #tpu.memory_space<vmem>>, vector<1x256x128xf32>
    %2 = vector.shape_cast %1 : vector<1x256x128xf32> to vector<256x128xf32>
    %c0_2 = arith.constant 0 : index
    %c0_3 = arith.constant 0 : index
    %c0_4 = arith.constant 0 : index
    %3 = vector.load %arg2[%c0_2, %c0_3, %c0_4] : memref<5x128x168xf32, #tpu.memory_space<vmem>>, vector<1x128x168xf32>
    %4 = vector.shape_cast %3 : vector<1x128x168xf32> to vector<128x168xf32>
    %cst_5 = arith.constant dense<0.000000e+00> : vector<256x168xf32>
    %5 = tpu.matmul %2, %4, %cst_5 {dimension_numbers = #tpu.dot_dimension_numbers<[1], [0], [0], [1], [0, 0, 1, 1], [], []>} : vector<256x128xf32>, vector<128x168xf32>, vector<256x168xf32> -> vector<256x168xf32>
    %6 = arith.addf %0, %5 : vector<256x168xf32>
    %c0_6 = arith.constant 0 : index
    %c1 = arith.constant 1 : index
    %c0_7 = arith.constant 0 : index
    %7 = vector.load %arg1[%c0_6, %c1, %c0_7] : memref<1x264x128xf32, #tpu.memory_space<vmem>>, vector<1x256x128xf32>
    %8 = vector.shape_cast %7 : vector<1x256x128xf32> to vector<256x128xf32>
    %c1_8 = arith.constant 1 : index
    %c0_9 = arith.constant 0 : index
    %c0_10 = arith.constant 0 : index
    %9 = vector.load %arg2[%c1_8, %c0_9, %c0_10] : memref<5x128x168xf32, #tpu.memory_space<vmem>>, vector<1x128x168xf32>
    %10 = vector.shape_cast %9 : vector<1x128x168xf32> to vector<128x168xf32>
    %cst_11 = arith.constant dense<0.000000e+00> : vector<256x168xf32>
    %11 = tpu.matmul %8, %10, %cst_11 {dimension_numbers = #tpu.dot_dimension_numbers<[1], [0], [0], [1], [0, 0, 1, 1], [], []>} : vector<256x128xf32>, vector<128x168xf32>, vector<256x168xf32> -> vector<256x168xf32>
    %12 = arith.addf %6, %11 : vector<256x168xf32>
    %c0_12 = arith.constant 0 : index
    %c2 = arith.constant 2 : index
    %c0_13 = arith.constant 0 : index
    %13 = vector.load %arg1[%c0_12, %c2, %c0_13] : memref<1x264x128xf32, #tpu.memory_space<vmem>>, vector<1x256x128xf32>
    %14 = vector.shape_cast %13 : vector<1x256x128xf32> to vector<256x128xf32>
    %c2_14 = arith.constant 2 : index
    %c0_15 = arith.constant 0 : index
    %c0_16 = arith.constant 0 : index
    %15 = vector.load %arg2[%c2_14, %c0_15, %c0_16] : memref<5x128x168xf32, #tpu.memory_space<vmem>>, vector<1x128x168xf32>
    %16 = vector.shape_cast %15 : vector<1x128x168xf32> to vector<128x168xf32>
    %cst_17 = arith.constant dense<0.000000e+00> : vector<256x168xf32>
    %17 = tpu.matmul %14, %16, %cst_17 {dimension_numbers = #tpu.dot_dimension_numbers<[1], [0], [0], [1], [0, 0, 1, 1], [], []>} : vector<256x128xf32>, vector<128x168xf32>, vector<256x168xf32> -> vector<256x168xf32>
    %18 = arith.addf %12, %17 : vector<256x168xf32>
    %c0_18 = arith.constant 0 : index
    %c3 = arith.constant 3 : index
    %c0_19 = arith.constant 0 : index
    %19 = vector.load %arg1[%c0_18, %c3, %c0_19] : memref<1x264x128xf32, #tpu.memory_space<vmem>>, vector<1x256x128xf32>
    %20 = vector.shape_cast %19 : vector<1x256x128xf32> to vector<256x128xf32>
    %c3_20 = arith.constant 3 : index
    %c0_21 = arith.constant 0 : index
    %c0_22 = arith.constant 0 : index
    %21 = vector.load %arg2[%c3_20, %c0_21, %c0_22] : memref<5x128x168xf32, #tpu.memory_space<vmem>>, vector<1x128x168xf32>
    %22 = vector.shape_cast %21 : vector<1x128x168xf32> to vector<128x168xf32>
    %cst_23 = arith.constant dense<0.000000e+00> : vector<256x168xf32>
    %23 = tpu.matmul %20, %22, %cst_23 {dimension_numbers = #tpu.dot_dimension_numbers<[1], [0], [0], [1], [0, 0, 1, 1], [], []>} : vector<256x128xf32>, vector<128x168xf32>, vector<256x168xf32> -> vector<256x168xf32>
    %24 = arith.addf %18, %23 : vector<256x168xf32>
    %c0_24 = arith.constant 0 : index
    %c4 = arith.constant 4 : index
    %c0_25 = arith.constant 0 : index
    %25 = vector.load %arg1[%c0_24, %c4, %c0_25] : memref<1x264x128xf32, #tpu.memory_space<vmem>>, vector<1x256x128xf32>
    %26 = vector.shape_cast %25 : vector<1x256x128xf32> to vector<256x128xf32>
    %c4_26 = arith.constant 4 : index
    %c0_27 = arith.constant 0 : index
    %c0_28 = arith.constant 0 : index
    %27 = vector.load %arg2[%c4_26, %c0_27, %c0_28] : memref<5x128x168xf32, #tpu.memory_space<vmem>>, vector<1x128x168xf32>
    %28 = vector.shape_cast %27 : vector<1x128x168xf32> to vector<128x168xf32>
    %cst_29 = arith.constant dense<0.000000e+00> : vector<256x168xf32>
    %29 = tpu.matmul %26, %28, %cst_29 {dimension_numbers = #tpu.dot_dimension_numbers<[1], [0], [0], [1], [0, 0, 1, 1], [], []>} : vector<256x128xf32>, vector<128x168xf32>, vector<256x168xf32> -> vector<256x168xf32>
    %30 = arith.addf %24, %29 : vector<256x168xf32>
    %c0_30 = arith.constant 0 : index
    %c0_31 = arith.constant 0 : index
    %31 = vector.load %arg3[%c0_30, %c0_31] : memref<1x168xf32, #tpu.memory_space<vmem>>, vector<1x168xf32>
    %32 = vector.broadcast %31 : vector<1x168xf32> to vector<256x168xf32>
    %33 = arith.addf %30, %32 : vector<256x168xf32>
    %cst_32 = arith.constant 0.000000e+00 : f32
    %34 = vector.broadcast %cst_32 : f32 to vector<256x168xf32>
    %35 = arith.maximumf %33, %34 : vector<256x168xf32>
    %c0_33 = arith.constant 0 : index
    %c0_34 = arith.constant 0 : index
    %36 = vector.load %arg4[%c0_33, %c0_34] : memref<168x84xf32, #tpu.memory_space<vmem>>, vector<168x84xf32>
    %cst_35 = arith.constant dense<0.000000e+00> : vector<256x84xf32>
    %37 = tpu.matmul %35, %36, %cst_35 {dimension_numbers = #tpu.dot_dimension_numbers<[1], [0], [0], [1], [0, 0, 1, 1], [], []>} : vector<256x168xf32>, vector<168x84xf32>, vector<256x84xf32> -> vector<256x84xf32>
    %c0_36 = arith.constant 0 : index
    %c0_37 = arith.constant 0 : index
    %38 = vector.load %arg5[%c0_36, %c0_37] : memref<168x84xf32, #tpu.memory_space<vmem>>, vector<168x84xf32>
    %cst_38 = arith.constant dense<0.000000e+00> : vector<256x84xf32>
    %39 = tpu.matmul %35, %38, %cst_38 {dimension_numbers = #tpu.dot_dimension_numbers<[1], [0], [0], [1], [0, 0, 1, 1], [], []>} : vector<256x168xf32>, vector<168x84xf32>, vector<256x84xf32> -> vector<256x84xf32>
    %40 = arith.maximumf %37, %39 : vector<256x84xf32>
    %c0_39 = arith.constant 0 : index
    %c0_40 = arith.constant 0 : index
    %41 = vector.load %arg19[%c0_39, %c0_40] : memref<256x84xf32, #tpu.memory_space<vmem>>, vector<256x84xf32>
    tpu.vector_store %arg19[%c0_39, %c0_40], %40 {strides = array<i32>} : memref<256x84xf32, #tpu.memory_space<vmem>>, vector<256x84xf32>,
    %42 = vector.extract_strided_slice %40 {offsets = [0, 0], sizes = [255, 84], strides = [1, 1]} : vector<256x84xf32> to vector<255x84xf32>
    %43 = vector.extract_strided_slice %40 {offsets = [1, 0], sizes = [255, 84], strides = [1, 1]} : vector<256x84xf32> to vector<255x84xf32>
    %44 = arith.maximumf %42, %43 : vector<255x84xf32>
    %c0_41 = arith.constant 0 : index
    %c0_42 = arith.constant 0 : index
    %45 = vector.load %arg19[%c0_41, %c0_42] : memref<256x84xf32, #tpu.memory_space<vmem>>, vector<255x84xf32>
    tpu.vector_store %arg19[%c0_41, %c0_42], %44 {strides = array<i32>} : memref<256x84xf32, #tpu.memory_space<vmem>>, vector<255x84xf32>,
    %cst_43 = arith.constant 0.000000e+00 : f32
    %46 = vector.broadcast %cst_43 : f32 to vector<248x160xf32>
    %c0_44 = arith.constant 0 : index
    %c0_45 = arith.constant 0 : index
    %47 = vector.load %arg19[%c0_44, %c0_45] : memref<256x84xf32, #tpu.memory_space<vmem>>, vector<248x84xf32>
    %c0_46 = arith.constant 0 : index
    %c0_47 = arith.constant 0 : index
    %c0_48 = arith.constant 0 : index
    %48 = vector.load %arg6[%c0_46, %c0_47, %c0_48] : memref<5x84x160xf32, #tpu.memory_space<vmem>>, vector<1x84x160xf32>
    %49 = vector.shape_cast %48 : vector<1x84x160xf32> to vector<84x160xf32>
    %cst_49 = arith.constant dense<0.000000e+00> : vector<248x160xf32>
    %50 = tpu.matmul %47, %49, %cst_49 {dimension_numbers = #tpu.dot_dimension_numbers<[1], [0], [0], [1], [0, 0, 1, 1], [], []>} : vector<248x84xf32>, vector<84x160xf32>, vector<248x160xf32> -> vector<248x160xf32>
    %51 = arith.addf %46, %50 : vector<248x160xf32>
    %c2_50 = arith.constant 2 : index
    %c0_51 = arith.constant 0 : index
    %52 = vector.load %arg19[%c2_50, %c0_51] : memref<256x84xf32, #tpu.memory_space<vmem>>, vector<248x84xf32>
    %c1_52 = arith.constant 1 : index
    %c0_53 = arith.constant 0 : index
    %c0_54 = arith.constant 0 : index
    %53 = vector.load %arg6[%c1_52, %c0_53, %c0_54] : memref<5x84x160xf32, #tpu.memory_space<vmem>>, vector<1x84x160xf32>
    %54 = vector.shape_cast %53 : vector<1x84x160xf32> to vector<84x160xf32>
    %cst_55 = arith.constant dense<0.000000e+00> : vector<248x160xf32>
    %55 = tpu.matmul %52, %54, %cst_55 {dimension_numbers = #tpu.dot_dimension_numbers<[1], [0], [0], [1], [0, 0, 1, 1], [], []>} : vector<248x84xf32>, vector<84x160xf32>, vector<248x160xf32> -> vector<248x160xf32>
    %56 = arith.addf %51, %55 : vector<248x160xf32>
    %c4_56 = arith.constant 4 : index
    %c0_57 = arith.constant 0 : index
    %57 = vector.load %arg19[%c4_56, %c0_57] : memref<256x84xf32, #tpu.memory_space<vmem>>, vector<248x84xf32>
    %c2_58 = arith.constant 2 : index
    %c0_59 = arith.constant 0 : index
    %c0_60 = arith.constant 0 : index
    %58 = vector.load %arg6[%c2_58, %c0_59, %c0_60] : memref<5x84x160xf32, #tpu.memory_space<vmem>>, vector<1x84x160xf32>
    %59 = vector.shape_cast %58 : vector<1x84x160xf32> to vector<84x160xf32>
    %cst_61 = arith.constant dense<0.000000e+00> : vector<248x160xf32>
    %60 = tpu.matmul %57, %59, %cst_61 {dimension_numbers = #tpu.dot_dimension_numbers<[1], [0], [0], [1], [0, 0, 1, 1], [], []>} : vector<248x84xf32>, vector<84x160xf32>, vector<248x160xf32> -> vector<248x160xf32>
    %61 = arith.addf %56, %60 : vector<248x160xf32>
    %c6 = arith.constant 6 : index
    %c0_62 = arith.constant 0 : index
    %62 = vector.load %arg19[%c6, %c0_62] : memref<256x84xf32, #tpu.memory_space<vmem>>, vector<248x84xf32>
    %c3_63 = arith.constant 3 : index
    %c0_64 = arith.constant 0 : index
    %c0_65 = arith.constant 0 : index
    %63 = vector.load %arg6[%c3_63, %c0_64, %c0_65] : memref<5x84x160xf32, #tpu.memory_space<vmem>>, vector<1x84x160xf32>
    %64 = vector.shape_cast %63 : vector<1x84x160xf32> to vector<84x160xf32>
    %cst_66 = arith.constant dense<0.000000e+00> : vector<248x160xf32>
    %65 = tpu.matmul %62, %64, %cst_66 {dimension_numbers = #tpu.dot_dimension_numbers<[1], [0], [0], [1], [0, 0, 1, 1], [], []>} : vector<248x84xf32>, vector<84x160xf32>, vector<248x160xf32> -> vector<248x160xf32>
    %66 = arith.addf %61, %65 : vector<248x160xf32>
    %c8 = arith.constant 8 : index
    %c0_67 = arith.constant 0 : index
    %67 = vector.load %arg19[%c8, %c0_67] : memref<256x84xf32, #tpu.memory_space<vmem>>, vector<248x84xf32>
    %c4_68 = arith.constant 4 : index
    %c0_69 = arith.constant 0 : index
    %c0_70 = arith.constant 0 : index
    %68 = vector.load %arg6[%c4_68, %c0_69, %c0_70] : memref<5x84x160xf32, #tpu.memory_space<vmem>>, vector<1x84x160xf32>
    %69 = vector.shape_cast %68 : vector<1x84x160xf32> to vector<84x160xf32>
    %cst_71 = arith.constant dense<0.000000e+00> : vector<248x160xf32>
    %70 = tpu.matmul %67, %69, %cst_71 {dimension_numbers = #tpu.dot_dimension_numbers<[1], [0], [0], [1], [0, 0, 1, 1], [], []>} : vector<248x84xf32>, vector<84x160xf32>, vector<248x160xf32> -> vector<248x160xf32>
    %71 = arith.addf %66, %70 : vector<248x160xf32>
    %c0_72 = arith.constant 0 : index
    %c0_73 = arith.constant 0 : index
    %72 = vector.load %arg7[%c0_72, %c0_73] : memref<1x160xf32, #tpu.memory_space<vmem>>, vector<1x160xf32>
    %73 = vector.broadcast %72 : vector<1x160xf32> to vector<248x160xf32>
    %74 = arith.addf %71, %73 : vector<248x160xf32>
    %cst_74 = arith.constant 0.000000e+00 : f32
    %75 = vector.broadcast %cst_74 : f32 to vector<248x160xf32>
    %76 = arith.maximumf %74, %75 : vector<248x160xf32>
    %c0_75 = arith.constant 0 : index
    %c0_76 = arith.constant 0 : index
    %77 = vector.load %arg8[%c0_75, %c0_76] : memref<160x80xf32, #tpu.memory_space<vmem>>, vector<160x80xf32>
    %cst_77 = arith.constant dense<0.000000e+00> : vector<248x80xf32>
    %78 = tpu.matmul %76, %77, %cst_77 {dimension_numbers = #tpu.dot_dimension_numbers<[1], [0], [0], [1], [0, 0, 1, 1], [], []>} : vector<248x160xf32>, vector<160x80xf32>, vector<248x80xf32> -> vector<248x80xf32>
    %c0_78 = arith.constant 0 : index
    %c0_79 = arith.constant 0 : index
    %79 = vector.load %arg9[%c0_78, %c0_79] : memref<160x80xf32, #tpu.memory_space<vmem>>, vector<160x80xf32>
    %cst_80 = arith.constant dense<0.000000e+00> : vector<248x80xf32>
    %80 = tpu.matmul %76, %79, %cst_80 {dimension_numbers = #tpu.dot_dimension_numbers<[1], [0], [0], [1], [0, 0, 1, 1], [], []>} : vector<248x160xf32>, vector<160x80xf32>, vector<248x80xf32> -> vector<248x80xf32>
    %81 = arith.maximumf %78, %80 : vector<248x80xf32>
    %c0_81 = arith.constant 0 : index
    %c0_82 = arith.constant 0 : index
    %82 = vector.load %arg10[%c0_81, %c0_82] : memref<40x248xf32, #tpu.memory_space<vmem>>, vector<40x248xf32>
    %cst_83 = arith.constant dense<0.000000e+00> : vector<40x80xf32>
    %83 = tpu.matmul %82, %81, %cst_83 {dimension_numbers = #tpu.dot_dimension_numbers<[1], [0], [0], [1], [0, 0, 1, 1], [], []>} : vector<40x248xf32>, vector<248x80xf32>, vector<40x80xf32> -> vector<40x80xf32>
    %c0_84 = arith.constant 0 : index
    %c0_85 = arith.constant 0 : index
    %84 = vector.load %arg11[%c0_84, %c0_85] : memref<40x248xf32, #tpu.memory_space<vmem>>, vector<40x248xf32>
    %cst_86 = arith.constant dense<0.000000e+00> : vector<40x80xf32>
    %85 = tpu.matmul %84, %81, %cst_86 {dimension_numbers = #tpu.dot_dimension_numbers<[1], [0], [0], [1], [0, 0, 1, 1], [], []>} : vector<40x248xf32>, vector<248x80xf32>, vector<40x80xf32> -> vector<40x80xf32>
    %86 = arith.maximumf %83, %85 : vector<40x80xf32>
    %cst_87 = arith.constant 0.000000e+00 : f32
    %87 = vector.broadcast %cst_87 : f32 to vector<8x128xf32>
    %c0_88 = arith.constant 0 : index
    %c0_89 = arith.constant 0 : index
    %88 = vector.load %arg13[%c0_88, %c0_89] : memref<1x128xf32, #tpu.memory_space<vmem>>, vector<1x128xf32>
    %89 = vector.broadcast %88 : vector<1x128xf32> to vector<8x128xf32>
    %90 = arith.addf %87, %89 : vector<8x128xf32>
    %91 = vector.extract_strided_slice %86 {offsets = [0, 0], sizes = [8, 80], strides = [1, 1]} : vector<40x80xf32> to vector<8x80xf32>
    %c0_90 = arith.constant 0 : index
    %c0_91 = arith.constant 0 : index
    %c0_92 = arith.constant 0 : index
    %92 = vector.load %arg12[%c0_90, %c0_91, %c0_92] : memref<5x80x128xf32, #tpu.memory_space<vmem>>, vector<1x80x128xf32>
    %93 = vector.shape_cast %92 : vector<1x80x128xf32> to vector<80x128xf32>
    %cst_93 = arith.constant dense<0.000000e+00> : vector<8x128xf32>
    %94 = tpu.matmul %91, %93, %cst_93 {dimension_numbers = #tpu.dot_dimension_numbers<[1], [0], [0], [1], [0, 0, 1, 1], [], []>} : vector<8x80xf32>, vector<80x128xf32>, vector<8x128xf32> -> vector<8x128xf32>
    %95 = arith.addf %90, %94 : vector<8x128xf32>
    %96 = vector.extract_strided_slice %86 {offsets = [8, 0], sizes = [8, 80], strides = [1, 1]} : vector<40x80xf32> to vector<8x80xf32>
    %c1_94 = arith.constant 1 : index
    %c0_95 = arith.constant 0 : index
    %c0_96 = arith.constant 0 : index
    %97 = vector.load %arg12[%c1_94, %c0_95, %c0_96] : memref<5x80x128xf32, #tpu.memory_space<vmem>>, vector<1x80x128xf32>
    %98 = vector.shape_cast %97 : vector<1x80x128xf32> to vector<80x128xf32>
    %cst_97 = arith.constant dense<0.000000e+00> : vector<8x128xf32>
    %99 = tpu.matmul %96, %98, %cst_97 {dimension_numbers = #tpu.dot_dimension_numbers<[1], [0], [0], [1], [0, 0, 1, 1], [], []>} : vector<8x80xf32>, vector<80x128xf32>, vector<8x128xf32> -> vector<8x128xf32>
    %100 = arith.addf %95, %99 : vector<8x128xf32>
    %101 = vector.extract_strided_slice %86 {offsets = [16, 0], sizes = [8, 80], strides = [1, 1]} : vector<40x80xf32> to vector<8x80xf32>
    %c2_98 = arith.constant 2 : index
    %c0_99 = arith.constant 0 : index
    %c0_100 = arith.constant 0 : index
    %102 = vector.load %arg12[%c2_98, %c0_99, %c0_100] : memref<5x80x128xf32, #tpu.memory_space<vmem>>, vector<1x80x128xf32>
    %103 = vector.shape_cast %102 : vector<1x80x128xf32> to vector<80x128xf32>
    %cst_101 = arith.constant dense<0.000000e+00> : vector<8x128xf32>
    %104 = tpu.matmul %101, %103, %cst_101 {dimension_numbers = #tpu.dot_dimension_numbers<[1], [0], [0], [1], [0, 0, 1, 1], [], []>} : vector<8x80xf32>, vector<80x128xf32>, vector<8x128xf32> -> vector<8x128xf32>
    %105 = arith.addf %100, %104 : vector<8x128xf32>
    %106 = vector.extract_strided_slice %86 {offsets = [24, 0], sizes = [8, 80], strides = [1, 1]} : vector<40x80xf32> to vector<8x80xf32>
    %c3_102 = arith.constant 3 : index
    %c0_103 = arith.constant 0 : index
    %c0_104 = arith.constant 0 : index
    %107 = vector.load %arg12[%c3_102, %c0_103, %c0_104] : memref<5x80x128xf32, #tpu.memory_space<vmem>>, vector<1x80x128xf32>
    %108 = vector.shape_cast %107 : vector<1x80x128xf32> to vector<80x128xf32>
    %cst_105 = arith.constant dense<0.000000e+00> : vector<8x128xf32>
    %109 = tpu.matmul %106, %108, %cst_105 {dimension_numbers = #tpu.dot_dimension_numbers<[1], [0], [0], [1], [0, 0, 1, 1], [], []>} : vector<8x80xf32>, vector<80x128xf32>, vector<8x128xf32> -> vector<8x128xf32>
    %110 = arith.addf %105, %109 : vector<8x128xf32>
    %111 = vector.extract_strided_slice %86 {offsets = [32, 0], sizes = [8, 80], strides = [1, 1]} : vector<40x80xf32> to vector<8x80xf32>
    %c4_106 = arith.constant 4 : index
    %c0_107 = arith.constant 0 : index
    %c0_108 = arith.constant 0 : index
    %112 = vector.load %arg12[%c4_106, %c0_107, %c0_108] : memref<5x80x128xf32, #tpu.memory_space<vmem>>, vector<1x80x128xf32>
    %113 = vector.shape_cast %112 : vector<1x80x128xf32> to vector<80x128xf32>
    %cst_109 = arith.constant dense<0.000000e+00> : vector<8x128xf32>
    %114 = tpu.matmul %111, %113, %cst_109 {dimension_numbers = #tpu.dot_dimension_numbers<[1], [0], [0], [1], [0, 0, 1, 1], [], []>} : vector<8x80xf32>, vector<80x128xf32>, vector<8x128xf32> -> vector<8x128xf32>
    %115 = arith.addf %110, %114 : vector<8x128xf32>
    %cst_110 = arith.constant 0.000000e+00 : f32
    %116 = vector.broadcast %cst_110 : f32 to vector<8x128xf32>
    %117 = arith.maximumf %115, %116 : vector<8x128xf32>
    %c0_111 = arith.constant 0 : index
    %c0_112 = arith.constant 0 : index
    %118 = vector.load %arg14[%c0_111, %c0_112] : memref<128x128xf32, #tpu.memory_space<vmem>>, vector<128x128xf32>
    %cst_113 = arith.constant dense<0.000000e+00> : vector<8x128xf32>
    %119 = tpu.matmul %117, %118, %cst_113 {dimension_numbers = #tpu.dot_dimension_numbers<[1], [0], [0], [1], [0, 0, 1, 1], [], []>} : vector<8x128xf32>, vector<128x128xf32>, vector<8x128xf32> -> vector<8x128xf32>
    %c0_114 = arith.constant 0 : index
    %c0_115 = arith.constant 0 : index
    %120 = vector.load %arg15[%c0_114, %c0_115] : memref<1x128xf32, #tpu.memory_space<vmem>>, vector<1x128xf32>
    %121 = vector.broadcast %120 : vector<1x128xf32> to vector<8x128xf32>
    %122 = arith.addf %119, %121 : vector<8x128xf32>
    %cst_116 = arith.constant 0.000000e+00 : f32
    %123 = vector.broadcast %cst_116 : f32 to vector<8x128xf32>
    %124 = arith.maximumf %122, %123 : vector<8x128xf32>
    %c0_117 = arith.constant 0 : index
    %c0_118 = arith.constant 0 : index
    %125 = vector.load %arg16[%c0_117, %c0_118] : memref<128x128xf32, #tpu.memory_space<vmem>>, vector<128x128xf32>
    %cst_119 = arith.constant dense<0.000000e+00> : vector<8x128xf32>
    %126 = tpu.matmul %124, %125, %cst_119 {dimension_numbers = #tpu.dot_dimension_numbers<[1], [0], [0], [1], [0, 0, 1, 1], [], []>} : vector<8x128xf32>, vector<128x128xf32>, vector<8x128xf32> -> vector<8x128xf32>
    %c0_120 = arith.constant 0 : index
    %c0_121 = arith.constant 0 : index
    %127 = vector.load %arg17[%c0_120, %c0_121] : memref<1x128xf32, #tpu.memory_space<vmem>>, vector<1x128xf32>
    %128 = vector.broadcast %127 : vector<1x128xf32> to vector<8x128xf32>
    %129 = arith.addf %126, %128 : vector<8x128xf32>
    %cst_122 = arith.constant dense<0xFF800000> : vector<8xf32>
    %130 = vector.multi_reduction <maximumf>, %129, %cst_122 [1] : vector<8x128xf32> to vector<8xf32>
    %131 = vector.shape_cast %130 : vector<8xf32> to vector<8x1xf32>
    %132 = vector.broadcast %131 : vector<8x1xf32> to vector<8x128xf32>
    %133 = arith.subf %129, %132 : vector<8x128xf32>
    %134 = math.exp %133 : vector<8x128xf32>
    %cst_123 = arith.constant dense<0.000000e+00> : vector<8xf32>
    %135 = vector.multi_reduction <add>, %134, %cst_123 [1] : vector<8x128xf32> to vector<8xf32>
    %136 = vector.shape_cast %135 : vector<8xf32> to vector<8x1xf32>
    %137 = math.log %136 : vector<8x1xf32>
    %138 = vector.broadcast %137 : vector<8x1xf32> to vector<8x128xf32>
    %139 = arith.subf %133, %138 : vector<8x128xf32>
    %c0_124 = arith.constant 0 : index
    %c0_125 = arith.constant 0 : index
    %140 = vector.load %arg18[%c0_124, %c0_125] : memref<8x128xf32, #tpu.memory_space<vmem>>, vector<8x128xf32>
    tpu.vector_store %arg18[%c0_124, %c0_125], %139 {strides = array<i32>} : memref<8x128xf32, #tpu.memory_space<vmem>>, vector<8x128xf32>,
    return
  }
  func.func @transform_0(%arg0: i32) -> (i32, i32, i32) {
    %c0_i32 = arith.constant 0 : i32
    %c0_i32_0 = arith.constant 0 : i32
    %c0_i32_1 = arith.constant 0 : i32
    return %arg0, %c0_i32, %c0_i32_0 : i32, i32, i32
  }
  func.func @transform_1(%arg0: i32) -> (i32, i32, i32) {
    %c0_i32 = arith.constant 0 : i32
    %c0_i32_0 = arith.constant 0 : i32
    %c0_i32_1 = arith.constant 0 : i32
    %c0_i32_2 = arith.constant 0 : i32
    return %c0_i32, %c0_i32_0, %c0_i32_1 : i32, i32, i32
  }
  func.func @transform_2(%arg0: i32) -> (i32, i32) {
    %c0_i32 = arith.constant 0 : i32
    %c0_i32_0 = arith.constant 0 : i32
    %c0_i32_1 = arith.constant 0 : i32
    return %c0_i32, %c0_i32_0 : i32, i32
  }
  func.func @transform_3(%arg0: i32) -> (i32, i32) {
    %c0_i32 = arith.constant 0 : i32
    %c0_i32_0 = arith.constant 0 : i32
    %c0_i32_1 = arith.constant 0 : i32
    return %c0_i32, %c0_i32_0 : i32, i32
  }
  func.func @transform_4(%arg0: i32) -> (i32, i32) {
    %c0_i32 = arith.constant 0 : i32
    %c0_i32_0 = arith.constant 0 : i32
    %c0_i32_1 = arith.constant 0 : i32
    return %c0_i32, %c0_i32_0 : i32, i32
  }
  func.func @transform_5(%arg0: i32) -> (i32, i32, i32) {
    %c0_i32 = arith.constant 0 : i32
    %c0_i32_0 = arith.constant 0 : i32
    %c0_i32_1 = arith.constant 0 : i32
    %c0_i32_2 = arith.constant 0 : i32
    return %c0_i32, %c0_i32_0, %c0_i32_1 : i32, i32, i32
  }
  func.func @transform_6(%arg0: i32) -> (i32, i32) {
    %c0_i32 = arith.constant 0 : i32
    %c0_i32_0 = arith.constant 0 : i32
    %c0_i32_1 = arith.constant 0 : i32
    return %c0_i32, %c0_i32_0 : i32, i32
  }
  func.func @transform_7(%arg0: i32) -> (i32, i32) {
    %c0_i32 = arith.constant 0 : i32
    %c0_i32_0 = arith.constant 0 : i32
    %c0_i32_1 = arith.constant 0 : i32
    return %c0_i32, %c0_i32_0 : i32, i32
  }
  func.func @transform_8(%arg0: i32) -> (i32, i32) {
    %c0_i32 = arith.constant 0 : i32
    %c0_i32_0 = arith.constant 0 : i32
    %c0_i32_1 = arith.constant 0 : i32
    return %c0_i32, %c0_i32_0 : i32, i32
  }
  func.func @transform_9(%arg0: i32) -> (i32, i32) {
    %c0_i32 = arith.constant 0 : i32
    %c0_i32_0 = arith.constant 0 : i32
    %c0_i32_1 = arith.constant 0 : i32
    return %c0_i32, %c0_i32_0 : i32, i32
  }
  func.func @transform_10(%arg0: i32) -> (i32, i32) {
    %c0_i32 = arith.constant 0 : i32
    %c0_i32_0 = arith.constant 0 : i32
    %c0_i32_1 = arith.constant 0 : i32
    return %c0_i32, %c0_i32_0 : i32, i32
  }
  func.func @transform_11(%arg0: i32) -> (i32, i32, i32) {
    %c0_i32 = arith.constant 0 : i32
    %c0_i32_0 = arith.constant 0 : i32
    %c0_i32_1 = arith.constant 0 : i32
    %c0_i32_2 = arith.constant 0 : i32
    return %c0_i32, %c0_i32_0, %c0_i32_1 : i32, i32, i32
  }
  func.func @transform_12(%arg0: i32) -> (i32, i32) {
    %c0_i32 = arith.constant 0 : i32
    %c0_i32_0 = arith.constant 0 : i32
    %c0_i32_1 = arith.constant 0 : i32
    return %c0_i32, %c0_i32_0 : i32, i32
  }
  func.func @transform_13(%arg0: i32) -> (i32, i32) {
    %c0_i32 = arith.constant 0 : i32
    %c0_i32_0 = arith.constant 0 : i32
    %c0_i32_1 = arith.constant 0 : i32
    return %c0_i32, %c0_i32_0 : i32, i32
  }
  func.func @transform_14(%arg0: i32) -> (i32, i32) {
    %c0_i32 = arith.constant 0 : i32
    %c0_i32_0 = arith.constant 0 : i32
    %c0_i32_1 = arith.constant 0 : i32
    return %c0_i32, %c0_i32_0 : i32, i32
  }
  func.func @transform_15(%arg0: i32) -> (i32, i32) {
    %c0_i32 = arith.constant 0 : i32
    %c0_i32_0 = arith.constant 0 : i32
    %c0_i32_1 = arith.constant 0 : i32
    return %c0_i32, %c0_i32_0 : i32, i32
  }
  func.func @transform_16(%arg0: i32) -> (i32, i32) {
    %c0_i32 = arith.constant 0 : i32
    %c0_i32_0 = arith.constant 0 : i32
    %c0_i32_1 = arith.constant 0 : i32
    return %c0_i32, %c0_i32_0 : i32, i32
  }
  func.func @transform_17(%arg0: i32) -> (i32, i32) {
    %c0_i32 = arith.constant 0 : i32
    %c0_i32_0 = arith.constant 0 : i32
    return %arg0, %c0_i32 : i32, i32
  }
}

</mosaic_0001>

<llo_original>
// kernel: lenet_forward.1
$region0: #{lenet_forward.1}
  #allocation0 [shape = 'u32[]', space=smem, size = 0x4, offset = 0x4, fixed_abs, tag = 'smem constant byte address 0x4 - core index']
  #allocation1 [shape = 'u32[72,128]{1,0:T(1,128)}', space=vmem, size = 0x9000, scoped, tag = 'internal scratch']
  #allocation2 [shape = 'f32[256,84]{1,0:T(8,128)}', space=vmem, size = 0x20000, scoped, tag = 'scratch operand']
  %s0 = inlined_call_operand.vmem [shape: f32[2,264,128], index: 0, kind: input, shape index: {}]
  %s1 = inlined_call_operand.vmem [shape: f32[5,128,168], index: 1, kind: input, shape index: {}]
  %s2 = inlined_call_operand.vmem [shape: f32[1,168], index: 2, kind: input, shape index: {}]
  %s3 = inlined_call_operand.vmem [shape: f32[168,84], index: 3, kind: input, shape index: {}]
  %s4 = inlined_call_operand.vmem [shape: f32[168,84], index: 4, kind: input, shape index: {}]
  %s5 = inlined_call_operand.vmem [shape: f32[5,84,160], index: 5, kind: input, shape index: {}]
  %s6 = inlined_call_operand.vmem [shape: f32[1,160], index: 6, kind: input, shape index: {}]
  %s7 = inlined_call_operand.vmem [shape: f32[160,80], index: 7, kind: input, shape index: {}]
  %s8 = inlined_call_operand.vmem [shape: f32[160,80], index: 8, kind: input, shape index: {}]
  %s9 = inlined_call_operand.vmem [shape: f32[40,248], index: 9, kind: input, shape index: {}]
  %s10 = inlined_call_operand.vmem [shape: f32[40,248], index: 10, kind: input, shape index: {}]
  %s11 = inlined_call_operand.vmem [shape: f32[5,80,128], index: 11, kind: input, shape index: {}]
  %s12 = inlined_call_operand.vmem [shape: f32[1,128], index: 12, kind: input, shape index: {}]
  %s13 = inlined_call_operand.vmem [shape: f32[128,128], index: 13, kind: input, shape index: {}]
  %s14 = inlined_call_operand.vmem [shape: f32[1,128], index: 14, kind: input, shape index: {}]
  %s15 = inlined_call_operand.vmem [shape: f32[128,128], index: 15, kind: input, shape index: {}]
  %s16 = inlined_call_operand.vmem [shape: f32[1,128], index: 16, kind: input, shape index: {}]
  %s17 = inlined_call_operand.hbm [shape: f32[16,128], index: 17, kind: output, shape index: {}]
  %s18 = sld [smem:[#allocation0]]
  $region101: #{lenet_forward.1} parent=0
    _
  %s20 = ssub.s32 1, %s18
  %s21 = scalar_select 0, %s20, %s18
  $region1: #{lenet_forward.1} parent=0
    #allocation3 [shape = 'u8[8192]{0}', space=vmem, size = 0x2000, scoped, tag = 'output window, operand 0']
    #allocation4 [shape = 's32[2]{0}', space=sflag, size = 0x8, scoped, tag = 'scoped memory for lenet_forward.1']
    %22 = vsyncpa [#allocation4], 0
    %s23 = scalar_lea.sflag [#allocation4], 1
    %24 = vsyncpa %s23, 0
    loop: start=0, step=1, limit=4
    $region2: #{lenet_forward.1} parent=1 // loop_pre_header
      _
    $region3: #{lenet_forward.1} parent=1 // loop_header
      %s26 = sphi 0, %s30
      %p27 = scmp.ge.s32.totalorder %s26, 4
      %s36 = sphi 0, %s38
      %s39 = sphi 0, %s36
      %s40 = sphi 0, %s39
      %s56 = sphi 0, %s40
      %s60 = sphi 0, %s60
      %s62 = sphi 0, %s60
      %s63 = sphi 0, %s62
      %s77 = sphi 0, %s63
      %s81 = sphi 0, %s81
      %s83 = sphi 0, %s81
      %s84 = sphi 0, %s83
      %s98 = sphi 0, %s84
      %s102 = sphi 0, %s102
      %s104 = sphi 0, %s102
      %s105 = sphi 0, %s104
      %s119 = sphi 0, %s105
      %s123 = sphi 0, %s123
      %s125 = sphi 0, %s123
      %s126 = sphi 0, %s125
      %s140 = sphi 0, %s126
      %s144 = sphi 0, %s144
      %s146 = sphi 0, %s144
      %s147 = sphi 0, %s146
      %s161 = sphi 0, %s147
      %s165 = sphi 0, %s165
      %s167 = sphi 0, %s165
      %s168 = sphi 0, %s167
      %s182 = sphi 0, %s168
      %s186 = sphi 0, %s186
      %s188 = sphi 0, %s186
      %s189 = sphi 0, %s188
      %s203 = sphi 0, %s189
      %s207 = sphi 0, %s207
      %s209 = sphi 0, %s207
      %s210 = sphi 0, %s209
      %s224 = sphi 0, %s210
      %s228 = sphi 0, %s228
      %s230 = sphi 0, %s228
      %s231 = sphi 0, %s230
      %s245 = sphi 0, %s231
      %s249 = sphi 0, %s249
      %s251 = sphi 0, %s249
      %s252 = sphi 0, %s251
      %s266 = sphi 0, %s252
      %s270 = sphi 0, %s270
      %s272 = sphi 0, %s270
      %s273 = sphi 0, %s272
      %s287 = sphi 0, %s273
      %s291 = sphi 0, %s291
      %s293 = sphi 0, %s291
      %s294 = sphi 0, %s293
      %s308 = sphi 0, %s294
      %s312 = sphi 0, %s312
      %s314 = sphi 0, %s312
      %s315 = sphi 0, %s314
      %s329 = sphi 0, %s315
      %s333 = sphi 0, %s333
      %s335 = sphi 0, %s333
      %s336 = sphi 0, %s335
      %s350 = sphi 0, %s336
      %s354 = sphi 0, %s354
      %s356 = sphi 0, %s354
      %s357 = sphi 0, %s356
      %s371 = sphi 0, %s357
      %s375 = sphi 0, %s375
      %s377 = sphi 0, %s375
      %s378 = sphi 0, %s377
      %s392 = sphi 0, %s378
      %s398 = sphi 0, %s400
      %s401 = sphi 0, %s398
      %s402 = sphi 0, %s401
      %s418 = sphi 0, %s402
    $region4: #{lenet_forward.1} parent=1 // loop_header_branch
      %29 = sbr.rel (%p27) target = $region8
    $region5: #{lenet_forward.1} parent=1 // loop_body
      %s31 = ssub.s32 %s26, 1
      %s32 = ssub.s32 %s26, 2
      %s33 = sadd.s32 %s26, 1
      %s34 = ssub.s32 %s26, %s33
      %p35 = scmp.eq.s32.totalorder %s34, 0
      %s37 = sadd.s32 %s36, 1
      %s38 = scalar_select %p35, %s36, %s37
      %p41 = pneg %p35
      %p42 = scmp.eq.s32.totalorder %s26, 1
      %p43 = por %p41, %p42
      %p44 = scmp.ne.s32.totalorder %s36, %s39
      %p45 = scmp.eq.s32.totalorder %s26, 0
      %p46 = por %p44, %p45
      %p47 = scmp.ne.s32.totalorder %s36, %s39
      %p48 = scmp.eq.s32.totalorder %s31, 1
      %p49 = por %p47, %p48
      %p50 = scmp.ne.s32.totalorder %s39, %s40
      %p51 = scmp.eq.s32.totalorder %s31, 0
      %p52 = por %p50, %p51
      %p53 = scmp.ne.s32.totalorder %s39, %s40
      %p54 = scmp.eq.s32.totalorder %s32, 1
      %p55 = por %p53, %p54
      %p57 = scmp.ne.s32.totalorder %s40, %s56
      %p58 = scmp.eq.s32.totalorder %s32, 0
      %p59 = por %p57, %p58
      %s61 = sadd.s32 %s60, 1
      %p64 = scmp.eq.s32.totalorder %s26, 1
      %p65 = scmp.ne.s32.totalorder %s60, %s62
      %p66 = scmp.eq.s32.totalorder %s26, 0
      %p67 = por %p65, %p66
      %p68 = scmp.ne.s32.totalorder %s60, %s62
      %p69 = scmp.eq.s32.totalorder %s31, 1
      %p70 = por %p68, %p69
      %p71 = scmp.ne.s32.totalorder %s62, %s63
      %p72 = scmp.eq.s32.totalorder %s31, 0
      %p73 = por %p71, %p72
      %p74 = scmp.ne.s32.totalorder %s62, %s63
      %p75 = scmp.eq.s32.totalorder %s32, 1
      %p76 = por %p74, %p75
      %p78 = scmp.ne.s32.totalorder %s63, %s77
      %p79 = scmp.eq.s32.totalorder %s32, 0
      %p80 = por %p78, %p79
      %s82 = sadd.s32 %s81, 1
      %p85 = scmp.eq.s32.totalorder %s26, 1
      %p86 = scmp.ne.s32.totalorder %s81, %s83
      %p87 = scmp.eq.s32.totalorder %s26, 0
      %p88 = por %p86, %p87
      %p89 = scmp.ne.s32.totalorder %s81, %s83
      %p90 = scmp.eq.s32.totalorder %s31, 1
      %p91 = por %p89, %p90
      %p92 = scmp.ne.s32.totalorder %s83, %s84
      %p93 = scmp.eq.s32.totalorder %s31, 0
      %p94 = por %p92, %p93
      %p95 = scmp.ne.s32.totalorder %s83, %s84
      %p96 = scmp.eq.s32.totalorder %s32, 1
      %p97 = por %p95, %p96
      %p99 = scmp.ne.s32.totalorder %s84, %s98
      %p100 = scmp.eq.s32.totalorder %s32, 0
      %p101 = por %p99, %p100
      %s103 = sadd.s32 %s102, 1
      %p106 = scmp.eq.s32.totalorder %s26, 1
      %p107 = scmp.ne.s32.totalorder %s102, %s104
      %p108 = scmp.eq.s32.totalorder %s26, 0
      %p109 = por %p107, %p108
      %p110 = scmp.ne.s32.totalorder %s102, %s104
      %p111 = scmp.eq.s32.totalorder %s31, 1
      %p112 = por %p110, %p111
      %p113 = scmp.ne.s32.totalorder %s104, %s105
      %p114 = scmp.eq.s32.totalorder %s31, 0
      %p115 = por %p113, %p114
      %p116 = scmp.ne.s32.totalorder %s104, %s105
      %p117 = scmp.eq.s32.totalorder %s32, 1
      %p118 = por %p116, %p117
      %p120 = scmp.ne.s32.totalorder %s105, %s119
      %p121 = scmp.eq.s32.totalorder %s32, 0
      %p122 = por %p120, %p121
      %s124 = sadd.s32 %s123, 1
      %p127 = scmp.eq.s32.totalorder %s26, 1
      %p128 = scmp.ne.s32.totalorder %s123, %s125
      %p129 = scmp.eq.s32.totalorder %s26, 0
      %p130 = por %p128, %p129
      %p131 = scmp.ne.s32.totalorder %s123, %s125
      %p132 = scmp.eq.s32.totalorder %s31, 1
      %p133 = por %p131, %p132
      %p134 = scmp.ne.s32.totalorder %s125, %s126
      %p135 = scmp.eq.s32.totalorder %s31, 0
      %p136 = por %p134, %p135
      %p137 = scmp.ne.s32.totalorder %s125, %s126
      %p138 = scmp.eq.s32.totalorder %s32, 1
      %p139 = por %p137, %p138
      %p141 = scmp.ne.s32.totalorder %s126, %s140
      %p142 = scmp.eq.s32.totalorder %s32, 0
      %p143 = por %p141, %p142
      %s145 = sadd.s32 %s144, 1
      %p148 = scmp.eq.s32.totalorder %s26, 1
      %p149 = scmp.ne.s32.totalorder %s144, %s146
      %p150 = scmp.eq.s32.totalorder %s26, 0
      %p151 = por %p149, %p150
      %p152 = scmp.ne.s32.totalorder %s144, %s146
      %p153 = scmp.eq.s32.totalorder %s31, 1
      %p154 = por %p152, %p153
      %p155 = scmp.ne.s32.totalorder %s146, %s147
      %p156 = scmp.eq.s32.totalorder %s31, 0
      %p157 = por %p155, %p156
      %p158 = scmp.ne.s32.totalorder %s146, %s147
      %p159 = scmp.eq.s32.totalorder %s32, 1
      %p160 = por %p158, %p159
      %p162 = scmp.ne.s32.totalorder %s147, %s161
      %p163 = scmp.eq.s32.totalorder %s32, 0
      %p164 = por %p162, %p163
      %s166 = sadd.s32 %s165, 1
      %p169 = scmp.eq.s32.totalorder %s26, 1
      %p170 = scmp.ne.s32.totalorder %s165, %s167
      %p171 = scmp.eq.s32.totalorder %s26, 0
      %p172 = por %p170, %p171
      %p173 = scmp.ne.s32.totalorder %s165, %s167
      %p174 = scmp.eq.s32.totalorder %s31, 1
      %p175 = por %p173, %p174
      %p176 = scmp.ne.s32.totalorder %s167, %s168
      %p177 = scmp.eq.s32.totalorder %s31, 0
      %p178 = por %p176, %p177
      %p179 = scmp.ne.s32.totalorder %s167, %s168
      %p180 = scmp.eq.s32.totalorder %s32, 1
      %p181 = por %p179, %p180
      %p183 = scmp.ne.s32.totalorder %s168, %s182
      %p184 = scmp.eq.s32.totalorder %s32, 0
      %p185 = por %p183, %p184
      %s187 = sadd.s32 %s186, 1
      %p190 = scmp.eq.s32.totalorder %s26, 1
      %p191 = scmp.ne.s32.totalorder %s186, %s188
      %p192 = scmp.eq.s32.totalorder %s26, 0
      %p193 = por %p191, %p192
      %p194 = scmp.ne.s32.totalorder %s186, %s188
      %p195 = scmp.eq.s32.totalorder %s31, 1
      %p196 = por %p194, %p195
      %p197 = scmp.ne.s32.totalorder %s188, %s189
      %p198 = scmp.eq.s32.totalorder %s31, 0
      %p199 = por %p197, %p198
      %p200 = scmp.ne.s32.totalorder %s188, %s189
      %p201 = scmp.eq.s32.totalorder %s32, 1
      %p202 = por %p200, %p201
      %p204 = scmp.ne.s32.totalorder %s189, %s203
      %p205 = scmp.eq.s32.totalorder %s32, 0
      %p206 = por %p204, %p205
      %s208 = sadd.s32 %s207, 1
      %p211 = scmp.eq.s32.totalorder %s26, 1
      %p212 = scmp.ne.s32.totalorder %s207, %s209
      %p213 = scmp.eq.s32.totalorder %s26, 0
      %p214 = por %p212, %p213
      %p215 = scmp.ne.s32.totalorder %s207, %s209
      %p216 = scmp.eq.s32.totalorder %s31, 1
      %p217 = por %p215, %p216
      %p218 = scmp.ne.s32.totalorder %s209, %s210
      %p219 = scmp.eq.s32.totalorder %s31, 0
      %p220 = por %p218, %p219
      %p221 = scmp.ne.s32.totalorder %s209, %s210
      %p222 = scmp.eq.s32.totalorder %s32, 1
      %p223 = por %p221, %p222
      %p225 = scmp.ne.s32.totalorder %s210, %s224
      %p226 = scmp.eq.s32.totalorder %s32, 0
      %p227 = por %p225, %p226
      %s229 = sadd.s32 %s228, 1
      %p232 = scmp.eq.s32.totalorder %s26, 1
      %p233 = scmp.ne.s32.totalorder %s228, %s230
      %p234 = scmp.eq.s32.totalorder %s26, 0
      %p235 = por %p233, %p234
      %p236 = scmp.ne.s32.totalorder %s228, %s230
      %p237 = scmp.eq.s32.totalorder %s31, 1
      %p238 = por %p236, %p237
      %p239 = scmp.ne.s32.totalorder %s230, %s231
      %p240 = scmp.eq.s32.totalorder %s31, 0
      %p241 = por %p239, %p240
      %p242 = scmp.ne.s32.totalorder %s230, %s231
      %p243 = scmp.eq.s32.totalorder %s32, 1
      %p244 = por %p242, %p243
      %p246 = scmp.ne.s32.totalorder %s231, %s245
      %p247 = scmp.eq.s32.totalorder %s32, 0
      %p248 = por %p246, %p247
      %s250 = sadd.s32 %s249, 1
      %p253 = scmp.eq.s32.totalorder %s26, 1
      %p254 = scmp.ne.s32.totalorder %s249, %s251
      %p255 = scmp.eq.s32.totalorder %s26, 0
      %p256 = por %p254, %p255
      %p257 = scmp.ne.s32.totalorder %s249, %s251
      %p258 = scmp.eq.s32.totalorder %s31, 1
      %p259 = por %p257, %p258
      %p260 = scmp.ne.s32.totalorder %s251, %s252
      %p261 = scmp.eq.s32.totalorder %s31, 0
      %p262 = por %p260, %p261
      %p263 = scmp.ne.s32.totalorder %s251, %s252
      %p264 = scmp.eq.s32.totalorder %s32, 1
      %p265 = por %p263, %p264
      %p267 = scmp.ne.s32.totalorder %s252, %s266
      %p268 = scmp.eq.s32.totalorder %s32, 0
      %p269 = por %p267, %p268
      %s271 = sadd.s32 %s270, 1
      %p274 = scmp.eq.s32.totalorder %s26, 1
      %p275 = scmp.ne.s32.totalorder %s270, %s272
      %p276 = scmp.eq.s32.totalorder %s26, 0
      %p277 = por %p275, %p276
      %p278 = scmp.ne.s32.totalorder %s270, %s272
      %p279 = scmp.eq.s32.totalorder %s31, 1
      %p280 = por %p278, %p279
      %p281 = scmp.ne.s32.totalorder %s272, %s273
      %p282 = scmp.eq.s32.totalorder %s31, 0
      %p283 = por %p281, %p282
      %p284 = scmp.ne.s32.totalorder %s272, %s273
      %p285 = scmp.eq.s32.totalorder %s32, 1
      %p286 = por %p284, %p285
      %p288 = scmp.ne.s32.totalorder %s273, %s287
      %p289 = scmp.eq.s32.totalorder %s32, 0
      %p290 = por %p288, %p289
      %s292 = sadd.s32 %s291, 1
      %p295 = scmp.eq.s32.totalorder %s26, 1
      %p296 = scmp.ne.s32.totalorder %s291, %s293
      %p297 = scmp.eq.s32.totalorder %s26, 0
      %p298 = por %p296, %p297
      %p299 = scmp.ne.s32.totalorder %s291, %s293
      %p300 = scmp.eq.s32.totalorder %s31, 1
      %p301 = por %p299, %p300
      %p302 = scmp.ne.s32.totalorder %s293, %s294
      %p303 = scmp.eq.s32.totalorder %s31, 0
      %p304 = por %p302, %p303
      %p305 = scmp.ne.s32.totalorder %s293, %s294
      %p306 = scmp.eq.s32.totalorder %s32, 1
      %p307 = por %p305, %p306
      %p309 = scmp.ne.s32.totalorder %s294, %s308
      %p310 = scmp.eq.s32.totalorder %s32, 0
      %p311 = por %p309, %p310
      %s313 = sadd.s32 %s312, 1
      %p316 = scmp.eq.s32.totalorder %s26, 1
      %p317 = scmp.ne.s32.totalorder %s312, %s314
      %p318 = scmp.eq.s32.totalorder %s26, 0
      %p319 = por %p317, %p318
      %p320 = scmp.ne.s32.totalorder %s312, %s314
      %p321 = scmp.eq.s32.totalorder %s31, 1
      %p322 = por %p320, %p321
      %p323 = scmp.ne.s32.totalorder %s314, %s315
      %p324 = scmp.eq.s32.totalorder %s31, 0
      %p325 = por %p323, %p324
      %p326 = scmp.ne.s32.totalorder %s314, %s315
      %p327 = scmp.eq.s32.totalorder %s32, 1
      %p328 = por %p326, %p327
      %p330 = scmp.ne.s32.totalorder %s315, %s329
      %p331 = scmp.eq.s32.totalorder %s32, 0
      %p332 = por %p330, %p331
      %s334 = sadd.s32 %s333, 1
      %p337 = scmp.eq.s32.totalorder %s26, 1
      %p338 = scmp.ne.s32.totalorder %s333, %s335
      %p339 = scmp.eq.s32.totalorder %s26, 0
      %p340 = por %p338, %p339
      %p341 = scmp.ne.s32.totalorder %s333, %s335
      %p342 = scmp.eq.s32.totalorder %s31, 1
      %p343 = por %p341, %p342
      %p344 = scmp.ne.s32.totalorder %s335, %s336
      %p345 = scmp.eq.s32.totalorder %s31, 0
      %p346 = por %p344, %p345
      %p347 = scmp.ne.s32.totalorder %s335, %s336
      %p348 = scmp.eq.s32.totalorder %s32, 1
      %p349 = por %p347, %p348
      %p351 = scmp.ne.s32.totalorder %s336, %s350
      %p352 = scmp.eq.s32.totalorder %s32, 0
      %p353 = por %p351, %p352
      %s355 = sadd.s32 %s354, 1
      %p358 = scmp.eq.s32.totalorder %s26, 1
      %p359 = scmp.ne.s32.totalorder %s354, %s356
      %p360 = scmp.eq.s32.totalorder %s26, 0
      %p361 = por %p359, %p360
      %p362 = scmp.ne.s32.totalorder %s354, %s356
      %p363 = scmp.eq.s32.totalorder %s31, 1
      %p364 = por %p362, %p363
      %p365 = scmp.ne.s32.totalorder %s356, %s357
      %p366 = scmp.eq.s32.totalorder %s31, 0
      %p367 = por %p365, %p366
      %p368 = scmp.ne.s32.totalorder %s356, %s357
      %p369 = scmp.eq.s32.totalorder %s32, 1
      %p370 = por %p368, %p369
      %p372 = scmp.ne.s32.totalorder %s357, %s371
      %p373 = scmp.eq.s32.totalorder %s32, 0
      %p374 = por %p372, %p373
      %s376 = sadd.s32 %s375, 1
      %p379 = scmp.eq.s32.totalorder %s26, 1
      %p380 = scmp.ne.s32.totalorder %s375, %s377
      %p381 = scmp.eq.s32.totalorder %s26, 0
      %p382 = por %p380, %p381
      %p383 = scmp.ne.s32.totalorder %s375, %s377
      %p384 = scmp.eq.s32.totalorder %s31, 1
      %p385 = por %p383, %p384
      %p386 = scmp.ne.s32.totalorder %s377, %s378
      %p387 = scmp.eq.s32.totalorder %s31, 0
      %p388 = por %p386, %p387
      %p389 = scmp.ne.s32.totalorder %s377, %s378
      %p390 = scmp.eq.s32.totalorder %s32, 1
      %p391 = por %p389, %p390
      %p393 = scmp.ne.s32.totalorder %s378, %s392
      %p394 = scmp.eq.s32.totalorder %s32, 0
      %p395 = por %p393, %p394
      %s396 = ssub.s32 %s26, %s33
      %p397 = scmp.eq.s32.totalorder %s396, 0
      %s399 = sadd.s32 %s398, 1
      %s400 = scalar_select %p397, %s398, %s399
      %p403 = pneg %p397
      %p404 = scmp.eq.s32.totalorder %s26, 1
      %p405 = por %p403, %p404
      %p406 = scmp.ne.s32.totalorder %s398, %s401
      %p407 = scmp.eq.s32.totalorder %s26, 0
      %p408 = por %p406, %p407
      %p409 = scmp.ne.s32.totalorder %s398, %s401
      %p410 = scmp.eq.s32.totalorder %s31, 1
      %p411 = por %p409, %p410
      %p412 = scmp.ne.s32.totalorder %s401, %s402
      %p413 = scmp.eq.s32.totalorder %s31, 0
      %p414 = por %p412, %p413
      %p415 = scmp.ne.s32.totalorder %s401, %s402
      %p416 = scmp.eq.s32.totalorder %s32, 1
      %p417 = por %p415, %p416
      %p419 = scmp.ne.s32.totalorder %s402, %s418
      %p420 = scmp.eq.s32.totalorder %s32, 0
      %p421 = por %p419, %p420
      %p422 = scmp.le.s32.totalorder 1, %s26
      %p423 = scmp.lt.s32.totalorder %s26, 3
      %p424 = pnand %p422, %p423
      %p425 = pneg %p424
      // Predicated region
      $region9: #{lenet_forward.1} parent=5 // pred_check
        _
      $region10: #{lenet_forward.1} parent=5 // pred_check_branch
        %427 = sbr.rel (%p424) target = $region12
      $region11: #{lenet_forward.1} parent=5 // pred_region
        %s428 = ssub.s32 %s26, 1
        // Predicated region
        $region13: #{lenet_forward.1} parent=11 // pred_check
          %p429 = pneg %p73
        $region14: #{lenet_forward.1} parent=11 // pred_check_branch
          %431 = sbr.rel (%p429) target = $region16
        $region15: #{lenet_forward.1} parent=11 // pred_region
          _
        $region16: #{lenet_forward.1} parent=11 // pred_fallthru
          _
        // Predicated region
        $region17: #{lenet_forward.1} parent=11 // pred_check
          %p432 = pneg %p94
        $region18: #{lenet_forward.1} parent=11 // pred_check_branch
          %434 = sbr.rel (%p432) target = $region20
        $region19: #{lenet_forward.1} parent=11 // pred_region
          _
        $region20: #{lenet_forward.1} parent=11 // pred_fallthru
          _
        // Predicated region
        $region21: #{lenet_forward.1} parent=11 // pred_check
          %p435 = pneg %p115
        $region22: #{lenet_forward.1} parent=11 // pred_check_branch
          %437 = sbr.rel (%p435) target = $region24
        $region23: #{lenet_forward.1} parent=11 // pred_region
          _
        $region24: #{lenet_forward.1} parent=11 // pred_fallthru
          _
        // Predicated region
        $region25: #{lenet_forward.1} parent=11 // pred_check
          %p438 = pneg %p136
        $region26: #{lenet_forward.1} parent=11 // pred_check_branch
          %440 = sbr.rel (%p438) target = $region28
        $region27: #{lenet_forward.1} parent=11 // pred_region
          _
        $region28: #{lenet_forward.1} parent=11 // pred_fallthru
          _
        // Predicated region
        $region29: #{lenet_forward.1} parent=11 // pred_check
          %p441 = pneg %p157
        $region30: #{lenet_forward.1} parent=11 // pred_check_branch
          %443 = sbr.rel (%p441) target = $region32
        $region31: #{lenet_forward.1} parent=11 // pred_region
          _
        $region32: #{lenet_forward.1} parent=11 // pred_fallthru
          _
        // Predicated region
        $region33: #{lenet_forward.1} parent=11 // pred_check
          %p444 = pneg %p178
        $region34: #{lenet_forward.1} parent=11 // pred_check_branch
          %446 = sbr.rel (%p444) target = $region36
        $region35: #{lenet_forward.1} parent=11 // pred_region
          _
        $region36: #{lenet_forward.1} parent=11 // pred_fallthru
          _
        // Predicated region
        $region37: #{lenet_forward.1} parent=11 // pred_check
          %p447 = pneg %p199
        $region38: #{lenet_forward.1} parent=11 // pred_check_branch
          %449 = sbr.rel (%p447) target = $region40
        $region39: #{lenet_forward.1} parent=11 // pred_region
          _
        $region40: #{lenet_forward.1} parent=11 // pred_fallthru
          _
        // Predicated region
        $region41: #{lenet_forward.1} parent=11 // pred_check
          %p450 = pneg %p220
        $region42: #{lenet_forward.1} parent=11 // pred_check_branch
          %452 = sbr.rel (%p450) target = $region44
        $region43: #{lenet_forward.1} parent=11 // pred_region
          _
        $region44: #{lenet_forward.1} parent=11 // pred_fallthru
          _
        // Predicated region
        $region45: #{lenet_forward.1} parent=11 // pred_check
          %p453 = pneg %p241
        $region46: #{lenet_forward.1} parent=11 // pred_check_branch
          %455 = sbr.rel (%p453) target = $region48
        $region47: #{lenet_forward.1} parent=11 // pred_region
          _
        $region48: #{lenet_forward.1} parent=11 // pred_fallthru
          _
        // Predicated region
        $region49: #{lenet_forward.1} parent=11 // pred_check
          %p456 = pneg %p262
        $region50: #{lenet_forward.1} parent=11 // pred_check_branch
          %458 = sbr.rel (%p456) target = $region52
        $region51: #{lenet_forward.1} parent=11 // pred_region
          _
        $region52: #{lenet_forward.1} parent=11 // pred_fallthru
          _
        // Predicated region
        $region53: #{lenet_forward.1} parent=11 // pred_check
          %p459 = pneg %p283
        $region54: #{lenet_forward.1} parent=11 // pred_check_branch
          %461 = sbr.rel (%p459) target = $region56
        $region55: #{lenet_forward.1} parent=11 // pred_region
          _
        $region56: #{lenet_forward.1} parent=11 // pred_fallthru
          _
        // Predicated region
        $region57: #{lenet_forward.1} parent=11 // pred_check
          %p462 = pneg %p304
        $region58: #{lenet_forward.1} parent=11 // pred_check_branch
          %464 = sbr.rel (%p462) target = $region60
        $region59: #{lenet_forward.1} parent=11 // pred_region
          _
        $region60: #{lenet_forward.1} parent=11 // pred_fallthru
          _
        // Predicated region
        $region61: #{lenet_forward.1} parent=11 // pred_check
          %p465 = pneg %p325
        $region62: #{lenet_forward.1} parent=11 // pred_check_branch
          %467 = sbr.rel (%p465) target = $region64
        $region63: #{lenet_forward.1} parent=11 // pred_region
          _
        $region64: #{lenet_forward.1} parent=11 // pred_fallthru
          _
        // Predicated region
        $region65: #{lenet_forward.1} parent=11 // pred_check
          %p468 = pneg %p346
        $region66: #{lenet_forward.1} parent=11 // pred_check_branch
          %470 = sbr.rel (%p468) target = $region68
        $region67: #{lenet_forward.1} parent=11 // pred_region
          _
        $region68: #{lenet_forward.1} parent=11 // pred_fallthru
          _
        // Predicated region
        $region69: #{lenet_forward.1} parent=11 // pred_check
          %p471 = pneg %p367
        $region70: #{lenet_forward.1} parent=11 // pred_check_branch
          %473 = sbr.rel (%p471) target = $region72
        $region71: #{lenet_forward.1} parent=11 // pred_region
          _
        $region72: #{lenet_forward.1} parent=11 // pred_fallthru
          _
        // Predicated region
        $region73: #{lenet_forward.1} parent=11 // pred_check
          %p474 = pneg %p388
        $region74: #{lenet_forward.1} parent=11 // pred_check_branch
          %476 = sbr.rel (%p474) target = $region76
        $region75: #{lenet_forward.1} parent=11 // pred_region
          _
        $region76: #{lenet_forward.1} parent=11 // pred_fallthru
          _
      $region12: #{lenet_forward.1} parent=5 // pred_fallthru
        _
      %p477 = scmp.lt.s32.totalorder %s26, 2
      // Predicated region
      $region77: #{lenet_forward.1} parent=5 // pred_check
        %p478 = pneg %p477
      $region78: #{lenet_forward.1} parent=5 // pred_check_branch
        %480 = sbr.rel (%p478) target = $region80
      $region79: #{lenet_forward.1} parent=5 // pred_region
        // Predicated region
        $region81: #{lenet_forward.1} parent=79 // pred_check
          %p481 = pneg %p46
        $region82: #{lenet_forward.1} parent=79 // pred_check_branch
          %483 = sbr.rel (%p481) target = $region84
        $region83: #{lenet_forward.1} parent=79 // pred_region
          %p484 = scmp.lt.s32.totalorder %s26, 1
          %s485 = scalar_select %p484, %s26, 1
          %s486 = smul.addr %s485, 33
          %s487 = smul.addr %s486, 8
          %s488 = scalar_lea.vmem %s0, %s487
        $region84: #{lenet_forward.1} parent=79 // pred_fallthru
          _
      $region80: #{lenet_forward.1} parent=5 // pred_fallthru
        _
      %p489 = scmp.le.s32.totalorder 1, %s26
      %p490 = scmp.lt.s32.totalorder %s26, 3
      %p491 = pnand %p489, %p490
      %p492 = pneg %p491
      // Predicated region
      $region85: #{lenet_forward.1} parent=5 // pred_check
        _
      $region86: #{lenet_forward.1} parent=5 // pred_check_branch
        %494 = sbr.rel (%p491) target = $region88
      $region87: #{lenet_forward.1} parent=5 // pred_region
        %s495 = ssub.s32 %s26, 1
        %p496 = scmp.lt.s32.totalorder %s31, 1
        %s497 = scalar_select %p496, %s31, 1
        %s498 = smul.addr %s497, 33
        %s499 = smul.addr %s498, 8
        %s500 = scalar_lea.vmem %s0, %s499
        %p501 = pneg %p52
        %p502 = pneg %p49
        %p503 = pneg %p73
        %p504 = pneg %p70
        %p505 = pneg %p94
        %p506 = pneg %p91
        %p507 = pneg %p115
        %p508 = pneg %p112
        %p509 = pneg %p136
        %p510 = pneg %p133
        %p511 = pneg %p157
        %p512 = pneg %p154
        %p513 = pneg %p178
        %p514 = pneg %p175
        %p515 = pneg %p199
        %p516 = pneg %p196
        %p517 = pneg %p220
        %p518 = pneg %p217
        %p519 = pneg %p241
        %p520 = pneg %p238
        %p521 = pneg %p262
        %p522 = pneg %p259
        %p523 = pneg %p283
        %p524 = pneg %p280
        %p525 = pneg %p304
        %p526 = pneg %p301
        %p527 = pneg %p325
        %p528 = pneg %p322
        %p529 = pneg %p346
        %p530 = pneg %p343
        %p531 = pneg %p367
        %p532 = pneg %p364
        %p533 = pneg %p388
        %p534 = pneg %p385
        %p535 = pneg %p414
        %p536 = pneg %p411
        %s537 = sand.u32 %s401, 1
        %s538 = scalar_lea.sflag [#allocation4], %s537
        %s539 = sand.u32 %s401, 1
        %s540 = smul.addr %s539, 8
        %s541 = scalar_lea.vmem [#allocation3], %s540
        %p542 = scmp.lt.s32.totalorder %s31, 1
        %s543 = scalar_select %p542, %s31, 1
        %s544 = smul.addr %s543, 33
        %s545 = smul.addr %s544, 8
        %s546 = scalar_lea.vmem %s0, %s545
        %v547 = vld [vmem:[%s546] sm:$0xff]
        %v548 = vld [vmem:[%s546 + $0x8] sm:$0xff]
        %v549 = vld [vmem:[%s546 + $0x10] sm:$0xff]
        %v550 = vld [vmem:[%s546 + $0x18] sm:$0xff]
        %v551 = vld [vmem:[%s546 + $0x20] sm:$0xff]
        %v552 = vld [vmem:[%s546 + $0x28] sm:$0xff]
        %v553 = vld [vmem:[%s546 + $0x30] sm:$0xff]
        %v554 = vld [vmem:[%s546 + $0x38] sm:$0xff]
        %v555 = vld [vmem:[%s546 + $0x40] sm:$0xff]
        %v556 = vld [vmem:[%s546 + $0x48] sm:$0xff]
        %v557 = vld [vmem:[%s546 + $0x50] sm:$0xff]
        %v558 = vld [vmem:[%s546 + $0x58] sm:$0xff]
        %v559 = vld [vmem:[%s546 + $0x60] sm:$0xff]
        %v560 = vld [vmem:[%s546 + $0x68] sm:$0xff]
        %v561 = vld [vmem:[%s546 + $0x70] sm:$0xff]
        %v562 = vld [vmem:[%s546 + $0x78] sm:$0xff]
        %v563 = vld [vmem:[%s546 + $0x80] sm:$0xff]
        %v564 = vld [vmem:[%s546 + $0x88] sm:$0xff]
        %v565 = vld [vmem:[%s546 + $0x90] sm:$0xff]
        %v566 = vld [vmem:[%s546 + $0x98] sm:$0xff]
        %v567 = vld [vmem:[%s546 + $0xa0] sm:$0xff]
        %v568 = vld [vmem:[%s546 + $0xa8] sm:$0xff]
        %v569 = vld [vmem:[%s546 + $0xb0] sm:$0xff]
        %v570 = vld [vmem:[%s546 + $0xb8] sm:$0xff]
        %v571 = vld [vmem:[%s546 + $0xc0] sm:$0xff]
        %v572 = vld [vmem:[%s546 + $0xc8] sm:$0xff]
        %v573 = vld [vmem:[%s546 + $0xd0] sm:$0xff]
        %v574 = vld [vmem:[%s546 + $0xd8] sm:$0xff]
        %v575 = vld [vmem:[%s546 + $0xe0] sm:$0xff]
        %v576 = vld [vmem:[%s546 + $0xe8] sm:$0xff]
        %v577 = vld [vmem:[%s546 + $0xf0] sm:$0xff]
        %v578 = vld [vmem:[%s546 + $0xf8] sm:$0xff]
        %v579 = vld [vmem:[%s1] sm:$0xff]
        %v580 = vld [vmem:[%s1 + $0x8] sm:$0xff]
        %v581 = vld [vmem:[%s1 + $0x10] sm:$0xff]
        %v582 = vld [vmem:[%s1 + $0x18] sm:$0xff]
        %v583 = vld [vmem:[%s1 + $0x20] sm:$0xff]
        %v584 = vld [vmem:[%s1 + $0x28] sm:$0xff]
        %v585 = vld [vmem:[%s1 + $0x30] sm:$0xff]
        %v586 = vld [vmem:[%s1 + $0x38] sm:$0xff]
        %v587 = vld [vmem:[%s1 + $0x40] sm:$0xff]
        %v588 = vld [vmem:[%s1 + $0x48] sm:$0xff]
        %v589 = vld [vmem:[%s1 + $0x50] sm:$0xff]
        %v590 = vld [vmem:[%s1 + $0x58] sm:$0xff]
        %v591 = vld [vmem:[%s1 + $0x60] sm:$0xff]
        %v592 = vld [vmem:[%s1 + $0x68] sm:$0xff]
        %v593 = vld [vmem:[%s1 + $0x70] sm:$0xff]
        %v594 = vld [vmem:[%s1 + $0x78] sm:$0xff]
        %v595 = vld [vmem:[%s1 + $0x80] sm:$0xff]
        %v596 = vld [vmem:[%s1 + $0x88] sm:$0xff]
        %v597 = vld [vmem:[%s1 + $0x90] sm:$0xff]
        %v598 = vld [vmem:[%s1 + $0x98] sm:$0xff]
        %v599 = vld [vmem:[%s1 + $0xa0] sm:$0xff]
        %v600 = vld [vmem:[%s1 + $0xa8] sm:$0xff]
        %v601 = vld [vmem:[%s1 + $0xb0] sm:$0xff]
        %v602 = vld [vmem:[%s1 + $0xb8] sm:$0xff]
        %v603 = vld [vmem:[%s1 + $0xc0] sm:$0xff]
        %v604 = vld [vmem:[%s1 + $0xc8] sm:$0xff]
        %v605 = vld [vmem:[%s1 + $0xd0] sm:$0xff]
        %v606 = vld [vmem:[%s1 + $0xd8] sm:$0xff]
        %v607 = vld [vmem:[%s1 + $0xe0] sm:$0xff]
        %v608 = vld [vmem:[%s1 + $0xe8] sm:$0xff]
        %v609 = vld [vmem:[%s1 + $0xf0] sm:$0xff]
        %v610 = vld [vmem:[%s1 + $0xf8] sm:$0xff]
        %v611 = vld [vmem:[%s546 + $0x1] sm:$0xff]
        %v612 = vld [vmem:[%s546 + $0x9] sm:$0xff]
        %v613 = vld [vmem:[%s546 + $0x11] sm:$0xff]
        %v614 = vld [vmem:[%s546 + $0x19] sm:$0xff]
        %v615 = vld [vmem:[%s546 + $0x21] sm:$0xff]
        %v616 = vld [vmem:[%s546 + $0x29] sm:$0xff]
        %v617 = vld [vmem:[%s546 + $0x31] sm:$0xff]
        %v618 = vld [vmem:[%s546 + $0x39] sm:$0xff]
        %v619 = vld [vmem:[%s546 + $0x41] sm:$0xff]
        %v620 = vld [vmem:[%s546 + $0x49] sm:$0xff]
        %v621 = vld [vmem:[%s546 + $0x51] sm:$0xff]
        %v622 = vld [vmem:[%s546 + $0x59] sm:$0xff]
        %v623 = vld [vmem:[%s546 + $0x61] sm:$0xff]
        %v624 = vld [vmem:[%s546 + $0x69] sm:$0xff]
        %v625 = vld [vmem:[%s546 + $0x71] sm:$0xff]
        %v626 = vld [vmem:[%s546 + $0x79] sm:$0xff]
        %v627 = vld [vmem:[%s546 + $0x81] sm:$0xff]
        %v628 = vld [vmem:[%s546 + $0x89] sm:$0xff]
        %v629 = vld [vmem:[%s546 + $0x91] sm:$0xff]
        %v630 = vld [vmem:[%s546 + $0x99] sm:$0xff]
        %v631 = vld [vmem:[%s546 + $0xa1] sm:$0xff]
        %v632 = vld [vmem:[%s546 + $0xa9] sm:$0xff]
        %v633 = vld [vmem:[%s546 + $0xb1] sm:$0xff]
        %v634 = vld [vmem:[%s546 + $0xb9] sm:$0xff]
        %v635 = vld [vmem:[%s546 + $0xc1] sm:$0xff]
        %v636 = vld [vmem:[%s546 + $0xc9] sm:$0xff]
        %v637 = vld [vmem:[%s546 + $0xd1] sm:$0xff]
        %v638 = vld [vmem:[%s546 + $0xd9] sm:$0xff]
        %v639 = vld [vmem:[%s546 + $0xe1] sm:$0xff]
        %v640 = vld [vmem:[%s546 + $0xe9] sm:$0xff]
        %v641 = vld [vmem:[%s546 + $0xf1] sm:$0xff]
        %v642 = vld [vmem:[%s546 + $0xf9] sm:$0xff]
        %s643 = scalar_lea.vmem %s1, 256
        %v644 = vld [vmem:[%s643] sm:$0xff]
        %v645 = vld [vmem:[%s643 + $0x8] sm:$0xff]
        %v646 = vld [vmem:[%s643 + $0x10] sm:$0xff]
        %v647 = vld [vmem:[%s643 + $0x18] sm:$0xff]
        %v648 = vld [vmem:[%s643 + $0x20] sm:$0xff]
        %v649 = vld [vmem:[%s643 + $0x28] sm:$0xff]
        %v650 = vld [vmem:[%s643 + $0x30] sm:$0xff]
        %v651 = vld [vmem:[%s643 + $0x38] sm:$0xff]
        %v652 = vld [vmem:[%s643 + $0x40] sm:$0xff]
        %v653 = vld [vmem:[%s643 + $0x48] sm:$0xff]
        %v654 = vld [vmem:[%s643 + $0x50] sm:$0xff]
        %v655 = vld [vmem:[%s643 + $0x58] sm:$0xff]
        %v656 = vld [vmem:[%s643 + $0x60] sm:$0xff]
        %v657 = vld [vmem:[%s643 + $0x68] sm:$0xff]
        %v658 = vld [vmem:[%s643 + $0x70] sm:$0xff]
        %v659 = vld [vmem:[%s643 + $0x78] sm:$0xff]
        %v660 = vld [vmem:[%s643 + $0x80] sm:$0xff]
        %v661 = vld [vmem:[%s643 + $0x88] sm:$0xff]
        %v662 = vld [vmem:[%s643 + $0x90] sm:$0xff]
        %v663 = vld [vmem:[%s643 + $0x98] sm:$0xff]
        %v664 = vld [vmem:[%s643 + $0xa0] sm:$0xff]
        %v665 = vld [vmem:[%s643 + $0xa8] sm:$0xff]
        %v666 = vld [vmem:[%s643 + $0xb0] sm:$0xff]
        %v667 = vld [vmem:[%s643 + $0xb8] sm:$0xff]
        %v668 = vld [vmem:[%s643 + $0xc0] sm:$0xff]
        %v669 = vld [vmem:[%s643 + $0xc8] sm:$0xff]
        %v670 = vld [vmem:[%s643 + $0xd0] sm:$0xff]
        %v671 = vld [vmem:[%s643 + $0xd8] sm:$0xff]
        %v672 = vld [vmem:[%s643 + $0xe0] sm:$0xff]
        %v673 = vld [vmem:[%s643 + $0xe8] sm:$0xff]
        %v674 = vld [vmem:[%s643 + $0xf0] sm:$0xff]
        %v675 = vld [vmem:[%s643 + $0xf8] sm:$0xff]
        %676 = vmatpush.msra.mxu0 %v674
        %677 = vmatpush.msra.mxu0 %v672
        %678 = vmatpush.msra.mxu0 %v670
        %679 = vmatpush.msra.mxu0 %v668
        %680 = vmatpush.msra.mxu0 %v666
        %681 = vmatpush.msra.mxu0 %v664
        %682 = vmatpush.msra.mxu0 %v662
        %683 = vmatpush.msra.mxu0 %v660
        %684 = vmatpush.msra.mxu0 %v658
        %685 = vmatpush.msra.mxu0 %v656
        %686 = vmatpush.msra.mxu0 %v654
        %687 = vmatpush.msra.mxu0 %v652
        %688 = vmatpush.msra.mxu0 %v650
        %689 = vmatpush.msra.mxu0 %v648
        %690 = vmatpush.msra.mxu0 %v646
        %691 = vmatpush.msra.mxu0 %v644
        %692 = vmatmul.f32.gmra.mxu0 %v611
        %v693 = vpop.f32.mrf.mxu0
        %v694 = vadd.f32 0.0, %v693
        %695 = vmatmul.f32.gmra.mxu0 %v612
        %v696 = vpop.f32.mrf.mxu0
        %v697 = vadd.f32 0.0, %v696
        %698 = vmatmul.f32.gmra.mxu0 %v613
        %v699 = vpop.f32.mrf.mxu0
        %v700 = vadd.f32 0.0, %v699
        %701 = vmatmul.f32.gmra.mxu0 %v614
        %v702 = vpop.f32.mrf.mxu0
        %v703 = vadd.f32 0.0, %v702
        %704 = vmatmul.f32.gmra.mxu0 %v615
        %v705 = vpop.f32.mrf.mxu0
        %v706 = vadd.f32 0.0, %v705
        %707 = vmatmul.f32.gmra.mxu0 %v616
        %v708 = vpop.f32.mrf.mxu0
        %v709 = vadd.f32 0.0, %v708
        %710 = vmatmul.f32.gmra.mxu0 %v617
        %v711 = vpop.f32.mrf.mxu0
        %v712 = vadd.f32 0.0, %v711
        %713 = vmatmul.f32.gmra.mxu0 %v618
        %v714 = vpop.f32.mrf.mxu0
        %v715 = vadd.f32 0.0, %v714
        %716 = vmatmul.f32.gmra.mxu0 %v619
        %v717 = vpop.f32.mrf.mxu0
        %v718 = vadd.f32 0.0, %v717
        %719 = vmatmul.f32.gmra.mxu0 %v620
        %v720 = vpop.f32.mrf.mxu0
        %v721 = vadd.f32 0.0, %v720
        %722 = vmatmul.f32.gmra.mxu0 %v621
        %v723 = vpop.f32.mrf.mxu0
        %v724 = vadd.f32 0.0, %v723
        %725 = vmatmul.f32.gmra.mxu0 %v622
        %v726 = vpop.f32.mrf.mxu0
        %v727 = vadd.f32 0.0, %v726
        %728 = vmatmul.f32.gmra.mxu0 %v623
        %v729 = vpop.f32.mrf.mxu0
        %v730 = vadd.f32 0.0, %v729
        %731 = vmatmul.f32.gmra.mxu0 %v624
        %v732 = vpop.f32.mrf.mxu0
        %v733 = vadd.f32 0.0, %v732
        %734 = vmatmul.f32.gmra.mxu0 %v625
        %v735 = vpop.f32.mrf.mxu0
        %v736 = vadd.f32 0.0, %v735
        %737 = vmatmul.f32.gmra.mxu0 %v626
        %v738 = vpop.f32.mrf.mxu0
        %v739 = vadd.f32 0.0, %v738
        %740 = vmatmul.f32.gmra.mxu0 %v627
        %v741 = vpop.f32.mrf.mxu0
        %v742 = vadd.f32 0.0, %v741
        %743 = vmatmul.f32.gmra.mxu0 %v628
        %v744 = vpop.f32.mrf.mxu0
        %v745 = vadd.f32 0.0, %v744
        %746 = vmatmul.f32.gmra.mxu0 %v629
        %v747 = vpop.f32.mrf.mxu0
        %v748 = vadd.f32 0.0, %v747
        %749 = vmatmul.f32.gmra.mxu0 %v630
        %v750 = vpop.f32.mrf.mxu0
        %v751 = vadd.f32 0.0, %v750
        %752 = vmatmul.f32.gmra.mxu0 %v631
        %v753 = vpop.f32.mrf.mxu0
        %v754 = vadd.f32 0.0, %v753
        %755 = vmatmul.f32.gmra.mxu0 %v632
        %v756 = vpop.f32.mrf.mxu0
        %v757 = vadd.f32 0.0, %v756
        %758 = vmatmul.f32.gmra.mxu0 %v633
        %v759 = vpop.f32.mrf.mxu0
        %v760 = vadd.f32 0.0, %v759
        %761 = vmatmul.f32.gmra.mxu0 %v634
        %v762 = vpop.f32.mrf.mxu0
        %v763 = vadd.f32 0.0, %v762
        %764 = vmatmul.f32.gmra.mxu0 %v635
        %v765 = vpop.f32.mrf.mxu0
        %v766 = vadd.f32 0.0, %v765
        %767 = vmatmul.f32.gmra.mxu0 %v636
        %v768 = vpop.f32.mrf.mxu0
        %v769 = vadd.f32 0.0, %v768
        %770 = vmatmul.f32.gmra.mxu0 %v637
        %v771 = vpop.f32.mrf.mxu0
        %v772 = vadd.f32 0.0, %v771
        %773 = vmatmul.f32.gmra.mxu0 %v638
        %v774 = vpop.f32.mrf.mxu0
        %v775 = vadd.f32 0.0, %v774
        %776 = vmatmul.f32.gmra.mxu0 %v639
        %v777 = vpop.f32.mrf.mxu0
        %v778 = vadd.f32 0.0, %v777
        %779 = vmatmul.f32.gmra.mxu0 %v640
        %v780 = vpop.f32.mrf.mxu0
        %v781 = vadd.f32 0.0, %v780
        %782 = vmatmul.f32.gmra.mxu0 %v641
        %v783 = vpop.f32.mrf.mxu0
        %v784 = vadd.f32 0.0, %v783
        %785 = vmatmul.f32.gmra.mxu0 %v642
        %v786 = vpop.f32.mrf.mxu0
        %v787 = vadd.f32 0.0, %v786
        %788 = vdwg.mxu0
        %789 = vmatpush.msra.mxu0 %v675
        %790 = vmatpush.msra.mxu0 %v673
        %791 = vmatpush.msra.mxu0 %v671
        %792 = vmatpush.msra.mxu0 %v669
        %793 = vmatpush.msra.mxu0 %v667
        %794 = vmatpush.msra.mxu0 %v665
        %795 = vmatpush.msra.mxu0 %v663
        %796 = vmatpush.msra.mxu0 %v661
        %797 = vmatpush.msra.mxu0 %v659
        %798 = vmatpush.msra.mxu0 %v657
        %799 = vmatpush.msra.mxu0 %v655
        %800 = vmatpush.msra.mxu0 %v653
        %801 = vmatpush.msra.mxu0 %v651
        %802 = vmatpush.msra.mxu0 %v649
        %803 = vmatpush.msra.mxu0 %v647
        %804 = vmatpush.msra.mxu0 %v645
        %805 = vmatmul.f32.gmra.mxu0 %v611
        %v806 = vpop.f32.mrf.mxu0
        %v807 = vadd.f32 0.0, %v806
        %808 = vmatmul.f32.gmra.mxu0 %v612
        %v809 = vpop.f32.mrf.mxu0
        %v810 = vadd.f32 0.0, %v809
        %811 = vmatmul.f32.gmra.mxu0 %v613
        %v812 = vpop.f32.mrf.mxu0
        %v813 = vadd.f32 0.0, %v812
        %814 = vmatmul.f32.gmra.mxu0 %v614
        %v815 = vpop.f32.mrf.mxu0
        %v816 = vadd.f32 0.0, %v815
        %817 = vmatmul.f32.gmra.mxu0 %v615
        %v818 = vpop.f32.mrf.mxu0
        %v819 = vadd.f32 0.0, %v818
        %820 = vmatmul.f32.gmra.mxu0 %v616
        %v821 = vpop.f32.mrf.mxu0
        %v822 = vadd.f32 0.0, %v821
        %823 = vmatmul.f32.gmra.mxu0 %v617
        %v824 = vpop.f32.mrf.mxu0
        %v825 = vadd.f32 0.0, %v824
        %826 = vmatmul.f32.gmra.mxu0 %v618
        %v827 = vpop.f32.mrf.mxu0
        %v828 = vadd.f32 0.0, %v827
        %829 = vmatmul.f32.gmra.mxu0 %v619
        %v830 = vpop.f32.mrf.mxu0
        %v831 = vadd.f32 0.0, %v830
        %832 = vmatmul.f32.gmra.mxu0 %v620
        %v833 = vpop.f32.mrf.mxu0
        %v834 = vadd.f32 0.0, %v833
        %835 = vmatmul.f32.gmra.mxu0 %v621
        %v836 = vpop.f32.mrf.mxu0
        %v837 = vadd.f32 0.0, %v836
        %838 = vmatmul.f32.gmra.mxu0 %v622
        %v839 = vpop.f32.mrf.mxu0
        %v840 = vadd.f32 0.0, %v839
        %841 = vmatmul.f32.gmra.mxu0 %v623
        %v842 = vpop.f32.mrf.mxu0
        %v843 = vadd.f32 0.0, %v842
        %844 = vmatmul.f32.gmra.mxu0 %v624
        %v845 = vpop.f32.mrf.mxu0
        %v846 = vadd.f32 0.0, %v845
        %847 = vmatmul.f32.gmra.mxu0 %v625
        %v848 = vpop.f32.mrf.mxu0
        %v849 = vadd.f32 0.0, %v848
        %850 = vmatmul.f32.gmra.mxu0 %v626
        %v851 = vpop.f32.mrf.mxu0
        %v852 = vadd.f32 0.0, %v851
        %853 = vmatmul.f32.gmra.mxu0 %v627
        %v854 = vpop.f32.mrf.mxu0
        %v855 = vadd.f32 0.0, %v854
        %856 = vmatmul.f32.gmra.mxu0 %v628
        %v857 = vpop.f32.mrf.mxu0
        %v858 = vadd.f32 0.0, %v857
        %859 = vmatmul.f32.gmra.mxu0 %v629
        %v860 = vpop.f32.mrf.mxu0
        %v861 = vadd.f32 0.0, %v860
        %862 = vmatmul.f32.gmra.mxu0 %v630
        %v863 = vpop.f32.mrf.mxu0
        %v864 = vadd.f32 0.0, %v863
        %865 = vmatmul.f32.gmra.mxu0 %v631
        %v866 = vpop.f32.mrf.mxu0
        %v867 = vadd.f32 0.0, %v866
        %868 = vmatmul.f32.gmra.mxu0 %v632
        %v869 = vpop.f32.mrf.mxu0
        %v870 = vadd.f32 0.0, %v869
        %871 = vmatmul.f32.gmra.mxu0 %v633
        %v872 = vpop.f32.mrf.mxu0
        %v873 = vadd.f32 0.0, %v872
        %874 = vmatmul.f32.gmra.mxu0 %v634
        %v875 = vpop.f32.mrf.mxu0
        %v876 = vadd.f32 0.0, %v875
        %877 = vmatmul.f32.gmra.mxu0 %v635
        %v878 = vpop.f32.mrf.mxu0
        %v879 = vadd.f32 0.0, %v878
        %880 = vmatmul.f32.gmra.mxu0 %v636
        %v881 = vpop.f32.mrf.mxu0
        %v882 = vadd.f32 0.0, %v881
        %883 = vmatmul.f32.gmra.mxu0 %v637
        %v884 = vpop.f32.mrf.mxu0
        %v885 = vadd.f32 0.0, %v884
        %886 = vmatmul.f32.gmra.mxu0 %v638
        %v887 = vpop.f32.mrf.mxu0
        %v888 = vadd.f32 0.0, %v887
        %889 = vmatmul.f32.gmra.mxu0 %v639
        %v890 = vpop.f32.mrf.mxu0
        %v891 = vadd.f32 0.0, %v890
        %892 = vmatmul.f32.gmra.mxu0 %v640
        %v893 = vpop.f32.mrf.mxu0
        %v894 = vadd.f32 0.0, %v893
        %895 = vmatmul.f32.gmra.mxu0 %v641
        %v896 = vpop.f32.mrf.mxu0
        %v897 = vadd.f32 0.0, %v896
        %898 = vmatmul.f32.gmra.mxu0 %v642
        %v899 = vpop.f32.mrf.mxu0
        %v900 = vadd.f32 0.0, %v899
        %901 = vdwg.mxu0
        %902 = vmatpush.msra.mxu0 %v609
        %903 = vmatpush.msra.mxu0 %v607
        %904 = vmatpush.msra.mxu0 %v605
        %905 = vmatpush.msra.mxu0 %v603
        %906 = vmatpush.msra.mxu0 %v601
        %907 = vmatpush.msra.mxu0 %v599
        %908 = vmatpush.msra.mxu0 %v597
        %909 = vmatpush.msra.mxu0 %v595
        %910 = vmatpush.msra.mxu0 %v593
        %911 = vmatpush.msra.mxu0 %v591
        %912 = vmatpush.msra.mxu0 %v589
        %913 = vmatpush.msra.mxu0 %v587
        %914 = vmatpush.msra.mxu0 %v585
        %915 = vmatpush.msra.mxu0 %v583
        %916 = vmatpush.msra.mxu0 %v581
        %917 = vmatpush.msra.mxu0 %v579
        %918 = vmatmul.f32.gmra.mxu0 %v547
        %v919 = vpop.f32.mrf.mxu0
        %v920 = vadd.f32 %v694, %v919
        %921 = vmatmul.f32.gmra.mxu0 %v548
        %v922 = vpop.f32.mrf.mxu0
        %v923 = vadd.f32 %v697, %v922
        %924 = vmatmul.f32.gmra.mxu0 %v549
        %v925 = vpop.f32.mrf.mxu0
        %v926 = vadd.f32 %v700, %v925
        %927 = vmatmul.f32.gmra.mxu0 %v550
        %v928 = vpop.f32.mrf.mxu0
        %v929 = vadd.f32 %v703, %v928
        %930 = vmatmul.f32.gmra.mxu0 %v551
        %v931 = vpop.f32.mrf.mxu0
        %v932 = vadd.f32 %v706, %v931
        %933 = vmatmul.f32.gmra.mxu0 %v552
        %v934 = vpop.f32.mrf.mxu0
        %v935 = vadd.f32 %v709, %v934
        %936 = vmatmul.f32.gmra.mxu0 %v553
        %v937 = vpop.f32.mrf.mxu0
        %v938 = vadd.f32 %v712, %v937
        %939 = vmatmul.f32.gmra.mxu0 %v554
        %v940 = vpop.f32.mrf.mxu0
        %v941 = vadd.f32 %v715, %v940
        %942 = vmatmul.f32.gmra.mxu0 %v555
        %v943 = vpop.f32.mrf.mxu0
        %v944 = vadd.f32 %v718, %v943
        %945 = vmatmul.f32.gmra.mxu0 %v556
        %v946 = vpop.f32.mrf.mxu0
        %v947 = vadd.f32 %v721, %v946
        %948 = vmatmul.f32.gmra.mxu0 %v557
        %v949 = vpop.f32.mrf.mxu0
        %v950 = vadd.f32 %v724, %v949
        %951 = vmatmul.f32.gmra.mxu0 %v558
        %v952 = vpop.f32.mrf.mxu0
        %v953 = vadd.f32 %v727, %v952
        %954 = vmatmul.f32.gmra.mxu0 %v559
        %v955 = vpop.f32.mrf.mxu0
        %v956 = vadd.f32 %v730, %v955
        %957 = vmatmul.f32.gmra.mxu0 %v560
        %v958 = vpop.f32.mrf.mxu0
        %v959 = vadd.f32 %v733, %v958
        %960 = vmatmul.f32.gmra.mxu0 %v561
        %v961 = vpop.f32.mrf.mxu0
        %v962 = vadd.f32 %v736, %v961
        %963 = vmatmul.f32.gmra.mxu0 %v562
        %v964 = vpop.f32.mrf.mxu0
        %v965 = vadd.f32 %v739, %v964
        %966 = vmatmul.f32.gmra.mxu0 %v563
        %v967 = vpop.f32.mrf.mxu0
        %v968 = vadd.f32 %v742, %v967
        %969 = vmatmul.f32.gmra.mxu0 %v564
        %v970 = vpop.f32.mrf.mxu0
        %v971 = vadd.f32 %v745, %v970
        %972 = vmatmul.f32.gmra.mxu0 %v565
        %v973 = vpop.f32.mrf.mxu0
        %v974 = vadd.f32 %v748, %v973
        %975 = vmatmul.f32.gmra.mxu0 %v566
        %v976 = vpop.f32.mrf.mxu0
        %v977 = vadd.f32 %v751, %v976
        %978 = vmatmul.f32.gmra.mxu0 %v567
        %v979 = vpop.f32.mrf.mxu0
        %v980 = vadd.f32 %v754, %v979
        %981 = vmatmul.f32.gmra.mxu0 %v568
        %v982 = vpop.f32.mrf.mxu0
        %v983 = vadd.f32 %v757, %v982
        %984 = vmatmul.f32.gmra.mxu0 %v569
        %v985 = vpop.f32.mrf.mxu0
        %v986 = vadd.f32 %v760, %v985
        %987 = vmatmul.f32.gmra.mxu0 %v570
        %v988 = vpop.f32.mrf.mxu0
        %v989 = vadd.f32 %v763, %v988
        %990 = vmatmul.f32.gmra.mxu0 %v571
        %v991 = vpop.f32.mrf.mxu0
        %v992 = vadd.f32 %v766, %v991
        %993 = vmatmul.f32.gmra.mxu0 %v572
        %v994 = vpop.f32.mrf.mxu0
        %v995 = vadd.f32 %v769, %v994
        %996 = vmatmul.f32.gmra.mxu0 %v573
        %v997 = vpop.f32.mrf.mxu0
        %v998 = vadd.f32 %v772, %v997
        %999 = vmatmul.f32.gmra.mxu0 %v574
        %v1000 = vpop.f32.mrf.mxu0
        %v1001 = vadd.f32 %v775, %v1000
        %1002 = vmatmul.f32.gmra.mxu0 %v575
        %v1003 = vpop.f32.mrf.mxu0
        %v1004 = vadd.f32 %v778, %v1003
        %1005 = vmatmul.f32.gmra.mxu0 %v576
        %v1006 = vpop.f32.mrf.mxu0
        %v1007 = vadd.f32 %v781, %v1006
        %1008 = vmatmul.f32.gmra.mxu0 %v577
        %v1009 = vpop.f32.mrf.mxu0
        %v1010 = vadd.f32 %v784, %v1009
        %1011 = vmatmul.f32.gmra.mxu0 %v578
        %v1012 = vpop.f32.mrf.mxu0
        %v1013 = vadd.f32 %v787, %v1012
        %1014 = vdwg.mxu0
        %1015 = vmatpush.msra.mxu0 %v610
        %1016 = vmatpush.msra.mxu0 %v608
        %1017 = vmatpush.msra.mxu0 %v606
        %1018 = vmatpush.msra.mxu0 %v604
        %1019 = vmatpush.msra.mxu0 %v602
        %1020 = vmatpush.msra.mxu0 %v600
        %1021 = vmatpush.msra.mxu0 %v598
        %1022 = vmatpush.msra.mxu0 %v596
        %1023 = vmatpush.msra.mxu0 %v594
        %1024 = vmatpush.msra.mxu0 %v592
        %1025 = vmatpush.msra.mxu0 %v590
        %1026 = vmatpush.msra.mxu0 %v588
        %1027 = vmatpush.msra.mxu0 %v586
        %1028 = vmatpush.msra.mxu0 %v584
        %1029 = vmatpush.msra.mxu0 %v582
        %1030 = vmatpush.msra.mxu0 %v580
        %1031 = vmatmul.f32.gmra.mxu0 %v547
        %v1032 = vpop.f32.mrf.mxu0
        %v1033 = vadd.f32 %v807, %v1032
        %1034 = vmatmul.f32.gmra.mxu0 %v548
        %v1035 = vpop.f32.mrf.mxu0
        %v1036 = vadd.f32 %v810, %v1035
        %1037 = vmatmul.f32.gmra.mxu0 %v549
        %v1038 = vpop.f32.mrf.mxu0
        %v1039 = vadd.f32 %v813, %v1038
        %1040 = vmatmul.f32.gmra.mxu0 %v550
        %v1041 = vpop.f32.mrf.mxu0
        %v1042 = vadd.f32 %v816, %v1041
        %1043 = vmatmul.f32.gmra.mxu0 %v551
        %v1044 = vpop.f32.mrf.mxu0
        %v1045 = vadd.f32 %v819, %v1044
        %1046 = vmatmul.f32.gmra.mxu0 %v552
        %v1047 = vpop.f32.mrf.mxu0
        %v1048 = vadd.f32 %v822, %v1047
        %1049 = vmatmul.f32.gmra.mxu0 %v553
        %v1050 = vpop.f32.mrf.mxu0
        %v1051 = vadd.f32 %v825, %v1050
        %1052 = vmatmul.f32.gmra.mxu0 %v554
        %v1053 = vpop.f32.mrf.mxu0
        %v1054 = vadd.f32 %v828, %v1053
        %1055 = vmatmul.f32.gmra.mxu0 %v555
        %v1056 = vpop.f32.mrf.mxu0
        %v1057 = vadd.f32 %v831, %v1056
        %1058 = vmatmul.f32.gmra.mxu0 %v556
        %v1059 = vpop.f32.mrf.mxu0
        %v1060 = vadd.f32 %v834, %v1059
        %1061 = vmatmul.f32.gmra.mxu0 %v557
        %v1062 = vpop.f32.mrf.mxu0
        %v1063 = vadd.f32 %v837, %v1062
        %1064 = vmatmul.f32.gmra.mxu0 %v558
        %v1065 = vpop.f32.mrf.mxu0
        %v1066 = vadd.f32 %v840, %v1065
        %1067 = vmatmul.f32.gmra.mxu0 %v559
        %v1068 = vpop.f32.mrf.mxu0
        %v1069 = vadd.f32 %v843, %v1068
        %1070 = vmatmul.f32.gmra.mxu0 %v560
        %v1071 = vpop.f32.mrf.mxu0
        %v1072 = vadd.f32 %v846, %v1071
        %1073 = vmatmul.f32.gmra.mxu0 %v561
        %v1074 = vpop.f32.mrf.mxu0
        %v1075 = vadd.f32 %v849, %v1074
        %1076 = vmatmul.f32.gmra.mxu0 %v562
        %v1077 = vpop.f32.mrf.mxu0
        %v1078 = vadd.f32 %v852, %v1077
        %1079 = vmatmul.f32.gmra.mxu0 %v563
        %v1080 = vpop.f32.mrf.mxu0
        %v1081 = vadd.f32 %v855, %v1080
        %1082 = vmatmul.f32.gmra.mxu0 %v564
        %v1083 = vpop.f32.mrf.mxu0
        %v1084 = vadd.f32 %v858, %v1083
        %1085 = vmatmul.f32.gmra.mxu0 %v565
        %v1086 = vpop.f32.mrf.mxu0
        %v1087 = vadd.f32 %v861, %v1086
        %1088 = vmatmul.f32.gmra.mxu0 %v566
        %v1089 = vpop.f32.mrf.mxu0
        %v1090 = vadd.f32 %v864, %v1089
        %1091 = vmatmul.f32.gmra.mxu0 %v567
        %v1092 = vpop.f32.mrf.mxu0
        %v1093 = vadd.f32 %v867, %v1092
        %1094 = vmatmul.f32.gmra.mxu0 %v568
        %v1095 = vpop.f32.mrf.mxu0
        %v1096 = vadd.f32 %v870, %v1095
        %1097 = vmatmul.f32.gmra.mxu0 %v569
        %v1098 = vpop.f32.mrf.mxu0
        %v1099 = vadd.f32 %v873, %v1098
        %1100 = vmatmul.f32.gmra.mxu0 %v570
        %v1101 = vpop.f32.mrf.mxu0
        %v1102 = vadd.f32 %v876, %v1101
        %1103 = vmatmul.f32.gmra.mxu0 %v571
        %v1104 = vpop.f32.mrf.mxu0
        %v1105 = vadd.f32 %v879, %v1104
        %1106 = vmatmul.f32.gmra.mxu0 %v572
        %v1107 = vpop.f32.mrf.mxu0
        %v1108 = vadd.f32 %v882, %v1107
        %1109 = vmatmul.f32.gmra.mxu0 %v573
        %v1110 = vpop.f32.mrf.mxu0
        %v1111 = vadd.f32 %v885, %v1110
        %1112 = vmatmul.f32.gmra.mxu0 %v574
        %v1113 = vpop.f32.mrf.mxu0
        %v1114 = vadd.f32 %v888, %v1113
        %1115 = vmatmul.f32.gmra.mxu0 %v575
        %v1116 = vpop.f32.mrf.mxu0
        %v1117 = vadd.f32 %v891, %v1116
        %1118 = vmatmul.f32.gmra.mxu0 %v576
        %v1119 = vpop.f32.mrf.mxu0
        %v1120 = vadd.f32 %v894, %v1119
        %1121 = vmatmul.f32.gmra.mxu0 %v577
        %v1122 = vpop.f32.mrf.mxu0
        %v1123 = vadd.f32 %v897, %v1122
        %1124 = vmatmul.f32.gmra.mxu0 %v578
        %v1125 = vpop.f32.mrf.mxu0
        %v1126 = vadd.f32 %v900, %v1125
        %1127 = vdwg.mxu0
        %v1128 = vld [vmem:[%s546 + $0x2] sm:$0xff]
        %v1129 = vld [vmem:[%s546 + $0xa] sm:$0xff]
        %v1130 = vld [vmem:[%s546 + $0x12] sm:$0xff]
        %v1131 = vld [vmem:[%s546 + $0x1a] sm:$0xff]
        %v1132 = vld [vmem:[%s546 + $0x22] sm:$0xff]
        %v1133 = vld [vmem:[%s546 + $0x2a] sm:$0xff]
        %v1134 = vld [vmem:[%s546 + $0x32] sm:$0xff]
        %v1135 = vld [vmem:[%s546 + $0x3a] sm:$0xff]
        %v1136 = vld [vmem:[%s546 + $0x42] sm:$0xff]
        %v1137 = vld [vmem:[%s546 + $0x4a] sm:$0xff]
        %v1138 = vld [vmem:[%s546 + $0x52] sm:$0xff]
        %v1139 = vld [vmem:[%s546 + $0x5a] sm:$0xff]
        %v1140 = vld [vmem:[%s546 + $0x62] sm:$0xff]
        %v1141 = vld [vmem:[%s546 + $0x6a] sm:$0xff]
        %v1142 = vld [vmem:[%s546 + $0x72] sm:$0xff]
        %v1143 = vld [vmem:[%s546 + $0x7a] sm:$0xff]
        %v1144 = vld [vmem:[%s546 + $0x82] sm:$0xff]
        %v1145 = vld [vmem:[%s546 + $0x8a] sm:$0xff]
        %v1146 = vld [vmem:[%s546 + $0x92] sm:$0xff]
        %v1147 = vld [vmem:[%s546 + $0x9a] sm:$0xff]
        %v1148 = vld [vmem:[%s546 + $0xa2] sm:$0xff]
        %v1149 = vld [vmem:[%s546 + $0xaa] sm:$0xff]
        %v1150 = vld [vmem:[%s546 + $0xb2] sm:$0xff]
        %v1151 = vld [vmem:[%s546 + $0xba] sm:$0xff]
        %v1152 = vld [vmem:[%s546 + $0xc2] sm:$0xff]
        %v1153 = vld [vmem:[%s546 + $0xca] sm:$0xff]
        %v1154 = vld [vmem:[%s546 + $0xd2] sm:$0xff]
        %v1155 = vld [vmem:[%s546 + $0xda] sm:$0xff]
        %v1156 = vld [vmem:[%s546 + $0xe2] sm:$0xff]
        %v1157 = vld [vmem:[%s546 + $0xea] sm:$0xff]
        %v1158 = vld [vmem:[%s546 + $0xf2] sm:$0xff]
        %v1159 = vld [vmem:[%s546 + $0xfa] sm:$0xff]
        %s1160 = scalar_lea.vmem %s1, 512
        %v1161 = vld [vmem:[%s1160] sm:$0xff]
        %v1162 = vld [vmem:[%s1160 + $0x8] sm:$0xff]
        %v1163 = vld [vmem:[%s1160 + $0x10] sm:$0xff]
        %v1164 = vld [vmem:[%s1160 + $0x18] sm:$0xff]
        %v1165 = vld [vmem:[%s1160 + $0x20] sm:$0xff]
        %v1166 = vld [vmem:[%s1160 + $0x28] sm:$0xff]
        %v1167 = vld [vmem:[%s1160 + $0x30] sm:$0xff]
        %v1168 = vld [vmem:[%s1160 + $0x38] sm:$0xff]
        %v1169 = vld [vmem:[%s1160 + $0x40] sm:$0xff]
        %v1170 = vld [vmem:[%s1160 + $0x48] sm:$0xff]
        %v1171 = vld [vmem:[%s1160 + $0x50] sm:$0xff]
        %v1172 = vld [vmem:[%s1160 + $0x58] sm:$0xff]
        %v1173 = vld [vmem:[%s1160 + $0x60] sm:$0xff]
        %v1174 = vld [vmem:[%s1160 + $0x68] sm:$0xff]
        %v1175 = vld [vmem:[%s1160 + $0x70] sm:$0xff]
        %v1176 = vld [vmem:[%s1160 + $0x78] sm:$0xff]
        %v1177 = vld [vmem:[%s1160 + $0x80] sm:$0xff]
        %v1178 = vld [vmem:[%s1160 + $0x88] sm:$0xff]
        %v1179 = vld [vmem:[%s1160 + $0x90] sm:$0xff]
        %v1180 = vld [vmem:[%s1160 + $0x98] sm:$0xff]
        %v1181 = vld [vmem:[%s1160 + $0xa0] sm:$0xff]
        %v1182 = vld [vmem:[%s1160 + $0xa8] sm:$0xff]
        %v1183 = vld [vmem:[%s1160 + $0xb0] sm:$0xff]
        %v1184 = vld [vmem:[%s1160 + $0xb8] sm:$0xff]
        %v1185 = vld [vmem:[%s1160 + $0xc0] sm:$0xff]
        %v1186 = vld [vmem:[%s1160 + $0xc8] sm:$0xff]
        %v1187 = vld [vmem:[%s1160 + $0xd0] sm:$0xff]
        %v1188 = vld [vmem:[%s1160 + $0xd8] sm:$0xff]
        %v1189 = vld [vmem:[%s1160 + $0xe0] sm:$0xff]
        %v1190 = vld [vmem:[%s1160 + $0xe8] sm:$0xff]
        %v1191 = vld [vmem:[%s1160 + $0xf0] sm:$0xff]
        %v1192 = vld [vmem:[%s1160 + $0xf8] sm:$0xff]
        %1193 = vmatpush.msra.mxu0 %v1191
        %1194 = vmatpush.msra.mxu0 %v1189
        %1195 = vmatpush.msra.mxu0 %v1187
        %1196 = vmatpush.msra.mxu0 %v1185
        %1197 = vmatpush.msra.mxu0 %v1183
        %1198 = vmatpush.msra.mxu0 %v1181
        %1199 = vmatpush.msra.mxu0 %v1179
        %1200 = vmatpush.msra.mxu0 %v1177
        %1201 = vmatpush.msra.mxu0 %v1175
        %1202 = vmatpush.msra.mxu0 %v1173
        %1203 = vmatpush.msra.mxu0 %v1171
        %1204 = vmatpush.msra.mxu0 %v1169
        %1205 = vmatpush.msra.mxu0 %v1167
        %1206 = vmatpush.msra.mxu0 %v1165
        %1207 = vmatpush.msra.mxu0 %v1163
        %1208 = vmatpush.msra.mxu0 %v1161
        %1209 = vmatmul.f32.gmra.mxu0 %v1128
        %v1210 = vpop.f32.mrf.mxu0
        %v1211 = vadd.f32 0.0, %v1210
        %1212 = vmatmul.f32.gmra.mxu0 %v1129
        %v1213 = vpop.f32.mrf.mxu0
        %v1214 = vadd.f32 0.0, %v1213
        %1215 = vmatmul.f32.gmra.mxu0 %v1130
        %v1216 = vpop.f32.mrf.mxu0
        %v1217 = vadd.f32 0.0, %v1216
        %1218 = vmatmul.f32.gmra.mxu0 %v1131
        %v1219 = vpop.f32.mrf.mxu0
        %v1220 = vadd.f32 0.0, %v1219
        %1221 = vmatmul.f32.gmra.mxu0 %v1132
        %v1222 = vpop.f32.mrf.mxu0
        %v1223 = vadd.f32 0.0, %v1222
        %1224 = vmatmul.f32.gmra.mxu0 %v1133
        %v1225 = vpop.f32.mrf.mxu0
        %v1226 = vadd.f32 0.0, %v1225
        %1227 = vmatmul.f32.gmra.mxu0 %v1134
        %v1228 = vpop.f32.mrf.mxu0
        %v1229 = vadd.f32 0.0, %v1228
        %1230 = vmatmul.f32.gmra.mxu0 %v1135
        %v1231 = vpop.f32.mrf.mxu0
        %v1232 = vadd.f32 0.0, %v1231
        %1233 = vmatmul.f32.gmra.mxu0 %v1136
        %v1234 = vpop.f32.mrf.mxu0
        %v1235 = vadd.f32 0.0, %v1234
        %1236 = vmatmul.f32.gmra.mxu0 %v1137
        %v1237 = vpop.f32.mrf.mxu0
        %v1238 = vadd.f32 0.0, %v1237
        %1239 = vmatmul.f32.gmra.mxu0 %v1138
        %v1240 = vpop.f32.mrf.mxu0
        %v1241 = vadd.f32 0.0, %v1240
        %1242 = vmatmul.f32.gmra.mxu0 %v1139
        %v1243 = vpop.f32.mrf.mxu0
        %v1244 = vadd.f32 0.0, %v1243
        %1245 = vmatmul.f32.gmra.mxu0 %v1140
        %v1246 = vpop.f32.mrf.mxu0
        %v1247 = vadd.f32 0.0, %v1246
        %1248 = vmatmul.f32.gmra.mxu0 %v1141
        %v1249 = vpop.f32.mrf.mxu0
        %v1250 = vadd.f32 0.0, %v1249
        %1251 = vmatmul.f32.gmra.mxu0 %v1142
        %v1252 = vpop.f32.mrf.mxu0
        %v1253 = vadd.f32 0.0, %v1252
        %1254 = vmatmul.f32.gmra.mxu0 %v1143
        %v1255 = vpop.f32.mrf.mxu0
        %v1256 = vadd.f32 0.0, %v1255
        %1257 = vmatmul.f32.gmra.mxu0 %v1144
        %v1258 = vpop.f32.mrf.mxu0
        %v1259 = vadd.f32 0.0, %v1258
        %1260 = vmatmul.f32.gmra.mxu0 %v1145
        %v1261 = vpop.f32.mrf.mxu0
        %v1262 = vadd.f32 0.0, %v1261
        %1263 = vmatmul.f32.gmra.mxu0 %v1146
        %v1264 = vpop.f32.mrf.mxu0
        %v1265 = vadd.f32 0.0, %v1264
        %1266 = vmatmul.f32.gmra.mxu0 %v1147
        %v1267 = vpop.f32.mrf.mxu0
        %v1268 = vadd.f32 0.0, %v1267
        %1269 = vmatmul.f32.gmra.mxu0 %v1148
        %v1270 = vpop.f32.mrf.mxu0
        %v1271 = vadd.f32 0.0, %v1270
        %1272 = vmatmul.f32.gmra.mxu0 %v1149
        %v1273 = vpop.f32.mrf.mxu0
        %v1274 = vadd.f32 0.0, %v1273
        %1275 = vmatmul.f32.gmra.mxu0 %v1150
        %v1276 = vpop.f32.mrf.mxu0
        %v1277 = vadd.f32 0.0, %v1276
        %1278 = vmatmul.f32.gmra.mxu0 %v1151
        %v1279 = vpop.f32.mrf.mxu0
        %v1280 = vadd.f32 0.0, %v1279
        %1281 = vmatmul.f32.gmra.mxu0 %v1152
        %v1282 = vpop.f32.mrf.mxu0
        %v1283 = vadd.f32 0.0, %v1282
        %1284 = vmatmul.f32.gmra.mxu0 %v1153
        %v1285 = vpop.f32.mrf.mxu0
        %v1286 = vadd.f32 0.0, %v1285
        %1287 = vmatmul.f32.gmra.mxu0 %v1154
        %v1288 = vpop.f32.mrf.mxu0
        %v1289 = vadd.f32 0.0, %v1288
        %1290 = vmatmul.f32.gmra.mxu0 %v1155
        %v1291 = vpop.f32.mrf.mxu0
        %v1292 = vadd.f32 0.0, %v1291
        %1293 = vmatmul.f32.gmra.mxu0 %v1156
        %v1294 = vpop.f32.mrf.mxu0
        %v1295 = vadd.f32 0.0, %v1294
        %1296 = vmatmul.f32.gmra.mxu0 %v1157
        %v1297 = vpop.f32.mrf.mxu0
        %v1298 = vadd.f32 0.0, %v1297
        %1299 = vmatmul.f32.gmra.mxu0 %v1158
        %v1300 = vpop.f32.mrf.mxu0
        %v1301 = vadd.f32 0.0, %v1300
        %1302 = vmatmul.f32.gmra.mxu0 %v1159
        %v1303 = vpop.f32.mrf.mxu0
        %v1304 = vadd.f32 0.0, %v1303
        %1305 = vdwg.mxu0
        %1306 = vmatpush.msra.mxu0 %v1192
        %1307 = vmatpush.msra.mxu0 %v1190
        %1308 = vmatpush.msra.mxu0 %v1188
        %1309 = vmatpush.msra.mxu0 %v1186
        %1310 = vmatpush.msra.mxu0 %v1184
        %1311 = vmatpush.msra.mxu0 %v1182
        %1312 = vmatpush.msra.mxu0 %v1180
        %1313 = vmatpush.msra.mxu0 %v1178
        %1314 = vmatpush.msra.mxu0 %v1176
        %1315 = vmatpush.msra.mxu0 %v1174
        %1316 = vmatpush.msra.mxu0 %v1172
        %1317 = vmatpush.msra.mxu0 %v1170
        %1318 = vmatpush.msra.mxu0 %v1168
        %1319 = vmatpush.msra.mxu0 %v1166
        %1320 = vmatpush.msra.mxu0 %v1164
        %1321 = vmatpush.msra.mxu0 %v1162
        %1322 = vmatmul.f32.gmra.mxu0 %v1128
        %v1323 = vpop.f32.mrf.mxu0
        %v1324 = vadd.f32 0.0, %v1323
        %1325 = vmatmul.f32.gmra.mxu0 %v1129
        %v1326 = vpop.f32.mrf.mxu0
        %v1327 = vadd.f32 0.0, %v1326
        %1328 = vmatmul.f32.gmra.mxu0 %v1130
        %v1329 = vpop.f32.mrf.mxu0
        %v1330 = vadd.f32 0.0, %v1329
        %1331 = vmatmul.f32.gmra.mxu0 %v1131
        %v1332 = vpop.f32.mrf.mxu0
        %v1333 = vadd.f32 0.0, %v1332
        %1334 = vmatmul.f32.gmra.mxu0 %v1132
        %v1335 = vpop.f32.mrf.mxu0
        %v1336 = vadd.f32 0.0, %v1335
        %1337 = vmatmul.f32.gmra.mxu0 %v1133
        %v1338 = vpop.f32.mrf.mxu0
        %v1339 = vadd.f32 0.0, %v1338
        %1340 = vmatmul.f32.gmra.mxu0 %v1134
        %v1341 = vpop.f32.mrf.mxu0
        %v1342 = vadd.f32 0.0, %v1341
        %1343 = vmatmul.f32.gmra.mxu0 %v1135
        %v1344 = vpop.f32.mrf.mxu0
        %v1345 = vadd.f32 0.0, %v1344
        %1346 = vmatmul.f32.gmra.mxu0 %v1136
        %v1347 = vpop.f32.mrf.mxu0
        %v1348 = vadd.f32 0.0, %v1347
        %1349 = vmatmul.f32.gmra.mxu0 %v1137
        %v1350 = vpop.f32.mrf.mxu0
        %v1351 = vadd.f32 0.0, %v1350
        %1352 = vmatmul.f32.gmra.mxu0 %v1138
        %v1353 = vpop.f32.mrf.mxu0
        %v1354 = vadd.f32 0.0, %v1353
        %1355 = vmatmul.f32.gmra.mxu0 %v1139
        %v1356 = vpop.f32.mrf.mxu0
        %v1357 = vadd.f32 0.0, %v1356
        %1358 = vmatmul.f32.gmra.mxu0 %v1140
        %v1359 = vpop.f32.mrf.mxu0
        %v1360 = vadd.f32 0.0, %v1359
        %1361 = vmatmul.f32.gmra.mxu0 %v1141
        %v1362 = vpop.f32.mrf.mxu0
        %v1363 = vadd.f32 0.0, %v1362
        %1364 = vmatmul.f32.gmra.mxu0 %v1142
        %v1365 = vpop.f32.mrf.mxu0
        %v1366 = vadd.f32 0.0, %v1365
        %1367 = vmatmul.f32.gmra.mxu0 %v1143
        %v1368 = vpop.f32.mrf.mxu0
        %v1369 = vadd.f32 0.0, %v1368
        %1370 = vmatmul.f32.gmra.mxu0 %v1144
        %v1371 = vpop.f32.mrf.mxu0
        %v1372 = vadd.f32 0.0, %v1371
        %1373 = vmatmul.f32.gmra.mxu0 %v1145
        %v1374 = vpop.f32.mrf.mxu0
        %v1375 = vadd.f32 0.0, %v1374
        %1376 = vmatmul.f32.gmra.mxu0 %v1146
        %v1377 = vpop.f32.mrf.mxu0
        %v1378 = vadd.f32 0.0, %v1377
        %1379 = vmatmul.f32.gmra.mxu0 %v1147
        %v1380 = vpop.f32.mrf.mxu0
        %v1381 = vadd.f32 0.0, %v1380
        %1382 = vmatmul.f32.gmra.mxu0 %v1148
        %v1383 = vpop.f32.mrf.mxu0
        %v1384 = vadd.f32 0.0, %v1383
        %1385 = vmatmul.f32.gmra.mxu0 %v1149
        %v1386 = vpop.f32.mrf.mxu0
        %v1387 = vadd.f32 0.0, %v1386
        %1388 = vmatmul.f32.gmra.mxu0 %v1150
        %v1389 = vpop.f32.mrf.mxu0
        %v1390 = vadd.f32 0.0, %v1389
        %1391 = vmatmul.f32.gmra.mxu0 %v1151
        %v1392 = vpop.f32.mrf.mxu0
        %v1393 = vadd.f32 0.0, %v1392
        %1394 = vmatmul.f32.gmra.mxu0 %v1152
        %v1395 = vpop.f32.mrf.mxu0
        %v1396 = vadd.f32 0.0, %v1395
        %1397 = vmatmul.f32.gmra.mxu0 %v1153
        %v1398 = vpop.f32.mrf.mxu0
        %v1399 = vadd.f32 0.0, %v1398
        %1400 = vmatmul.f32.gmra.mxu0 %v1154
        %v1401 = vpop.f32.mrf.mxu0
        %v1402 = vadd.f32 0.0, %v1401
        %1403 = vmatmul.f32.gmra.mxu0 %v1155
        %v1404 = vpop.f32.mrf.mxu0
        %v1405 = vadd.f32 0.0, %v1404
        %1406 = vmatmul.f32.gmra.mxu0 %v1156
        %v1407 = vpop.f32.mrf.mxu0
        %v1408 = vadd.f32 0.0, %v1407
        %1409 = vmatmul.f32.gmra.mxu0 %v1157
        %v1410 = vpop.f32.mrf.mxu0
        %v1411 = vadd.f32 0.0, %v1410
        %1412 = vmatmul.f32.gmra.mxu0 %v1158
        %v1413 = vpop.f32.mrf.mxu0
        %v1414 = vadd.f32 0.0, %v1413
        %1415 = vmatmul.f32.gmra.mxu0 %v1159
        %v1416 = vpop.f32.mrf.mxu0
        %v1417 = vadd.f32 0.0, %v1416
        %1418 = vdwg.mxu0
        %v1419 = vadd.f32 %v920, %v1211
        %v1420 = vadd.f32 %v1033, %v1324
        %v1421 = vadd.f32 %v923, %v1214
        %v1422 = vadd.f32 %v1036, %v1327
        %v1423 = vadd.f32 %v926, %v1217
        %v1424 = vadd.f32 %v1039, %v1330
        %v1425 = vadd.f32 %v929, %v1220
        %v1426 = vadd.f32 %v1042, %v1333
        %v1427 = vadd.f32 %v932, %v1223
        %v1428 = vadd.f32 %v1045, %v1336
        %v1429 = vadd.f32 %v935, %v1226
        %v1430 = vadd.f32 %v1048, %v1339
        %v1431 = vadd.f32 %v938, %v1229
        %v1432 = vadd.f32 %v1051, %v1342
        %v1433 = vadd.f32 %v941, %v1232
        %v1434 = vadd.f32 %v1054, %v1345
        %v1435 = vadd.f32 %v944, %v1235
        %v1436 = vadd.f32 %v1057, %v1348
        %v1437 = vadd.f32 %v947, %v1238
        %v1438 = vadd.f32 %v1060, %v1351
        %v1439 = vadd.f32 %v950, %v1241
        %v1440 = vadd.f32 %v1063, %v1354
        %v1441 = vadd.f32 %v953, %v1244
        %v1442 = vadd.f32 %v1066, %v1357
        %v1443 = vadd.f32 %v956, %v1247
        %v1444 = vadd.f32 %v1069, %v1360
        %v1445 = vadd.f32 %v959, %v1250
        %v1446 = vadd.f32 %v1072, %v1363
        %v1447 = vadd.f32 %v962, %v1253
        %v1448 = vadd.f32 %v1075, %v1366
        %v1449 = vadd.f32 %v965, %v1256
        %v1450 = vadd.f32 %v1078, %v1369
        %v1451 = vadd.f32 %v968, %v1259
        %v1452 = vadd.f32 %v1081, %v1372
        %v1453 = vadd.f32 %v971, %v1262
        %v1454 = vadd.f32 %v1084, %v1375
        %v1455 = vadd.f32 %v974, %v1265
        %v1456 = vadd.f32 %v1087, %v1378
        %v1457 = vadd.f32 %v977, %v1268
        %v1458 = vadd.f32 %v1090, %v1381
        %v1459 = vadd.f32 %v980, %v1271
        %v1460 = vadd.f32 %v1093, %v1384
        %v1461 = vadd.f32 %v983, %v1274
        %v1462 = vadd.f32 %v1096, %v1387
        %v1463 = vadd.f32 %v986, %v1277
        %v1464 = vadd.f32 %v1099, %v1390
        %v1465 = vadd.f32 %v989, %v1280
        %v1466 = vadd.f32 %v1102, %v1393
        %v1467 = vadd.f32 %v992, %v1283
        %v1468 = vadd.f32 %v1105, %v1396
        %v1469 = vadd.f32 %v995, %v1286
        %v1470 = vadd.f32 %v1108, %v1399
        %v1471 = vadd.f32 %v998, %v1289
        %v1472 = vadd.f32 %v1111, %v1402
        %v1473 = vadd.f32 %v1001, %v1292
        %v1474 = vadd.f32 %v1114, %v1405
        %v1475 = vadd.f32 %v1004, %v1295
        %v1476 = vadd.f32 %v1117, %v1408
        %v1477 = vadd.f32 %v1007, %v1298
        %v1478 = vadd.f32 %v1120, %v1411
        %v1479 = vadd.f32 %v1010, %v1301
        %v1480 = vadd.f32 %v1123, %v1414
        %v1481 = vadd.f32 %v1013, %v1304
        %v1482 = vadd.f32 %v1126, %v1417
        %v1483 = vld [vmem:[%s546 + $0x3] sm:$0xff]
        %v1484 = vld [vmem:[%s546 + $0xb] sm:$0xff]
        %v1485 = vld [vmem:[%s546 + $0x13] sm:$0xff]
        %v1486 = vld [vmem:[%s546 + $0x1b] sm:$0xff]
        %v1487 = vld [vmem:[%s546 + $0x23] sm:$0xff]
        %v1488 = vld [vmem:[%s546 + $0x2b] sm:$0xff]
        %v1489 = vld [vmem:[%s546 + $0x33] sm:$0xff]
        %v1490 = vld [vmem:[%s546 + $0x3b] sm:$0xff]
        %v1491 = vld [vmem:[%s546 + $0x43] sm:$0xff]
        %v1492 = vld [vmem:[%s546 + $0x4b] sm:$0xff]
        %v1493 = vld [vmem:[%s546 + $0x53] sm:$0xff]
        %v1494 = vld [vmem:[%s546 + $0x5b] sm:$0xff]
        %v1495 = vld [vmem:[%s546 + $0x63] sm:$0xff]
        %v1496 = vld [vmem:[%s546 + $0x6b] sm:$0xff]
        %v1497 = vld [vmem:[%s546 + $0x73] sm:$0xff]
        %v1498 = vld [vmem:[%s546 + $0x7b] sm:$0xff]
        %v1499 = vld [vmem:[%s546 + $0x83] sm:$0xff]
        %v1500 = vld [vmem:[%s546 + $0x8b] sm:$0xff]
        %v1501 = vld [vmem:[%s546 + $0x93] sm:$0xff]
        %v1502 = vld [vmem:[%s546 + $0x9b] sm:$0xff]
        %v1503 = vld [vmem:[%s546 + $0xa3] sm:$0xff]
        %v1504 = vld [vmem:[%s546 + $0xab] sm:$0xff]
        %v1505 = vld [vmem:[%s546 + $0xb3] sm:$0xff]
        %v1506 = vld [vmem:[%s546 + $0xbb] sm:$0xff]
        %v1507 = vld [vmem:[%s546 + $0xc3] sm:$0xff]
        %v1508 = vld [vmem:[%s546 + $0xcb] sm:$0xff]
        %v1509 = vld [vmem:[%s546 + $0xd3] sm:$0xff]
        %v1510 = vld [vmem:[%s546 + $0xdb] sm:$0xff]
        %v1511 = vld [vmem:[%s546 + $0xe3] sm:$0xff]
        %v1512 = vld [vmem:[%s546 + $0xeb] sm:$0xff]
        %v1513 = vld [vmem:[%s546 + $0xf3] sm:$0xff]
        %v1514 = vld [vmem:[%s546 + $0xfb] sm:$0xff]
        %s1515 = scalar_lea.vmem %s1, 768
        %v1516 = vld [vmem:[%s1515] sm:$0xff]
        %v1517 = vld [vmem:[%s1515 + $0x8] sm:$0xff]
        %v1518 = vld [vmem:[%s1515 + $0x10] sm:$0xff]
        %v1519 = vld [vmem:[%s1515 + $0x18] sm:$0xff]
        %v1520 = vld [vmem:[%s1515 + $0x20] sm:$0xff]
        %v1521 = vld [vmem:[%s1515 + $0x28] sm:$0xff]
        %v1522 = vld [vmem:[%s1515 + $0x30] sm:$0xff]
        %v1523 = vld [vmem:[%s1515 + $0x38] sm:$0xff]
        %v1524 = vld [vmem:[%s1515 + $0x40] sm:$0xff]
        %v1525 = vld [vmem:[%s1515 + $0x48] sm:$0xff]
        %v1526 = vld [vmem:[%s1515 + $0x50] sm:$0xff]
        %v1527 = vld [vmem:[%s1515 + $0x58] sm:$0xff]
        %v1528 = vld [vmem:[%s1515 + $0x60] sm:$0xff]
        %v1529 = vld [vmem:[%s1515 + $0x68] sm:$0xff]
        %v1530 = vld [vmem:[%s1515 + $0x70] sm:$0xff]
        %v1531 = vld [vmem:[%s1515 + $0x78] sm:$0xff]
        %v1532 = vld [vmem:[%s1515 + $0x80] sm:$0xff]
        %v1533 = vld [vmem:[%s1515 + $0x88] sm:$0xff]
        %v1534 = vld [vmem:[%s1515 + $0x90] sm:$0xff]
        %v1535 = vld [vmem:[%s1515 + $0x98] sm:$0xff]
        %v1536 = vld [vmem:[%s1515 + $0xa0] sm:$0xff]
        %v1537 = vld [vmem:[%s1515 + $0xa8] sm:$0xff]
        %v1538 = vld [vmem:[%s1515 + $0xb0] sm:$0xff]
        %v1539 = vld [vmem:[%s1515 + $0xb8] sm:$0xff]
        %v1540 = vld [vmem:[%s1515 + $0xc0] sm:$0xff]
        %v1541 = vld [vmem:[%s1515 + $0xc8] sm:$0xff]
        %v1542 = vld [vmem:[%s1515 + $0xd0] sm:$0xff]
        %v1543 = vld [vmem:[%s1515 + $0xd8] sm:$0xff]
        %v1544 = vld [vmem:[%s1515 + $0xe0] sm:$0xff]
        %v1545 = vld [vmem:[%s1515 + $0xe8] sm:$0xff]
        %v1546 = vld [vmem:[%s1515 + $0xf0] sm:$0xff]
        %v1547 = vld [vmem:[%s1515 + $0xf8] sm:$0xff]
        %1548 = vmatpush.msra.mxu0 %v1546
        %1549 = vmatpush.msra.mxu0 %v1544
        %1550 = vmatpush.msra.mxu0 %v1542
        %1551 = vmatpush.msra.mxu0 %v1540
        %1552 = vmatpush.msra.mxu0 %v1538
        %1553 = vmatpush.msra.mxu0 %v1536
        %1554 = vmatpush.msra.mxu0 %v1534
        %1555 = vmatpush.msra.mxu0 %v1532
        %1556 = vmatpush.msra.mxu0 %v1530
        %1557 = vmatpush.msra.mxu0 %v1528
        %1558 = vmatpush.msra.mxu0 %v1526
        %1559 = vmatpush.msra.mxu0 %v1524
        %1560 = vmatpush.msra.mxu0 %v1522
        %1561 = vmatpush.msra.mxu0 %v1520
        %1562 = vmatpush.msra.mxu0 %v1518
        %1563 = vmatpush.msra.mxu0 %v1516
        %1564 = vmatmul.f32.gmra.mxu0 %v1483
        %v1565 = vpop.f32.mrf.mxu0
        %v1566 = vadd.f32 0.0, %v1565
        %1567 = vmatmul.f32.gmra.mxu0 %v1484
        %v1568 = vpop.f32.mrf.mxu0
        %v1569 = vadd.f32 0.0, %v1568
        %1570 = vmatmul.f32.gmra.mxu0 %v1485
        %v1571 = vpop.f32.mrf.mxu0
        %v1572 = vadd.f32 0.0, %v1571
        %1573 = vmatmul.f32.gmra.mxu0 %v1486
        %v1574 = vpop.f32.mrf.mxu0
        %v1575 = vadd.f32 0.0, %v1574
        %1576 = vmatmul.f32.gmra.mxu0 %v1487
        %v1577 = vpop.f32.mrf.mxu0
        %v1578 = vadd.f32 0.0, %v1577
        %1579 = vmatmul.f32.gmra.mxu0 %v1488
        %v1580 = vpop.f32.mrf.mxu0
        %v1581 = vadd.f32 0.0, %v1580
        %1582 = vmatmul.f32.gmra.mxu0 %v1489
        %v1583 = vpop.f32.mrf.mxu0
        %v1584 = vadd.f32 0.0, %v1583
        %1585 = vmatmul.f32.gmra.mxu0 %v1490
        %v1586 = vpop.f32.mrf.mxu0
        %v1587 = vadd.f32 0.0, %v1586
        %1588 = vmatmul.f32.gmra.mxu0 %v1491
        %v1589 = vpop.f32.mrf.mxu0
        %v1590 = vadd.f32 0.0, %v1589
        %1591 = vmatmul.f32.gmra.mxu0 %v1492
        %v1592 = vpop.f32.mrf.mxu0
        %v1593 = vadd.f32 0.0, %v1592
        %1594 = vmatmul.f32.gmra.mxu0 %v1493
        %v1595 = vpop.f32.mrf.mxu0
        %v1596 = vadd.f32 0.0, %v1595
        %1597 = vmatmul.f32.gmra.mxu0 %v1494
        %v1598 = vpop.f32.mrf.mxu0
        %v1599 = vadd.f32 0.0, %v1598
        %1600 = vmatmul.f32.gmra.mxu0 %v1495
        %v1601 = vpop.f32.mrf.mxu0
        %v1602 = vadd.f32 0.0, %v1601
        %1603 = vmatmul.f32.gmra.mxu0 %v1496
        %v1604 = vpop.f32.mrf.mxu0
        %v1605 = vadd.f32 0.0, %v1604
        %1606 = vmatmul.f32.gmra.mxu0 %v1497
        %v1607 = vpop.f32.mrf.mxu0
        %v1608 = vadd.f32 0.0, %v1607
        %1609 = vmatmul.f32.gmra.mxu0 %v1498
        %v1610 = vpop.f32.mrf.mxu0
        %v1611 = vadd.f32 0.0, %v1610
        %1612 = vmatmul.f32.gmra.mxu0 %v1499
        %v1613 = vpop.f32.mrf.mxu0
        %v1614 = vadd.f32 0.0, %v1613
        %1615 = vmatmul.f32.gmra.mxu0 %v1500
        %v1616 = vpop.f32.mrf.mxu0
        %v1617 = vadd.f32 0.0, %v1616
        %1618 = vmatmul.f32.gmra.mxu0 %v1501
        %v1619 = vpop.f32.mrf.mxu0
        %v1620 = vadd.f32 0.0, %v1619
        %1621 = vmatmul.f32.gmra.mxu0 %v1502
        %v1622 = vpop.f32.mrf.mxu0
        %v1623 = vadd.f32 0.0, %v1622
        %1624 = vmatmul.f32.gmra.mxu0 %v1503
        %v1625 = vpop.f32.mrf.mxu0
        %v1626 = vadd.f32 0.0, %v1625
        %1627 = vmatmul.f32.gmra.mxu0 %v1504
        %v1628 = vpop.f32.mrf.mxu0
        %v1629 = vadd.f32 0.0, %v1628
        %1630 = vmatmul.f32.gmra.mxu0 %v1505
        %v1631 = vpop.f32.mrf.mxu0
        %v1632 = vadd.f32 0.0, %v1631
        %1633 = vmatmul.f32.gmra.mxu0 %v1506
        %v1634 = vpop.f32.mrf.mxu0
        %v1635 = vadd.f32 0.0, %v1634
        %1636 = vmatmul.f32.gmra.mxu0 %v1507
        %v1637 = vpop.f32.mrf.mxu0
        %v1638 = vadd.f32 0.0, %v1637
        %1639 = vmatmul.f32.gmra.mxu0 %v1508
        %v1640 = vpop.f32.mrf.mxu0
        %v1641 = vadd.f32 0.0, %v1640
        %1642 = vmatmul.f32.gmra.mxu0 %v1509
        %v1643 = vpop.f32.mrf.mxu0
        %v1644 = vadd.f32 0.0, %v1643
        %1645 = vmatmul.f32.gmra.mxu0 %v1510
        %v1646 = vpop.f32.mrf.mxu0
        %v1647 = vadd.f32 0.0, %v1646
        %1648 = vmatmul.f32.gmra.mxu0 %v1511
        %v1649 = vpop.f32.mrf.mxu0
        %v1650 = vadd.f32 0.0, %v1649
        %1651 = vmatmul.f32.gmra.mxu0 %v1512
        %v1652 = vpop.f32.mrf.mxu0
        %v1653 = vadd.f32 0.0, %v1652
        %1654 = vmatmul.f32.gmra.mxu0 %v1513
        %v1655 = vpop.f32.mrf.mxu0
        %v1656 = vadd.f32 0.0, %v1655
        %1657 = vmatmul.f32.gmra.mxu0 %v1514
        %v1658 = vpop.f32.mrf.mxu0
        %v1659 = vadd.f32 0.0, %v1658
        %1660 = vdwg.mxu0
        %1661 = vmatpush.msra.mxu0 %v1547
        %1662 = vmatpush.msra.mxu0 %v1545
        %1663 = vmatpush.msra.mxu0 %v1543
        %1664 = vmatpush.msra.mxu0 %v1541
        %1665 = vmatpush.msra.mxu0 %v1539
        %1666 = vmatpush.msra.mxu0 %v1537
        %1667 = vmatpush.msra.mxu0 %v1535
        %1668 = vmatpush.msra.mxu0 %v1533
        %1669 = vmatpush.msra.mxu0 %v1531
        %1670 = vmatpush.msra.mxu0 %v1529
        %1671 = vmatpush.msra.mxu0 %v1527
        %1672 = vmatpush.msra.mxu0 %v1525
        %1673 = vmatpush.msra.mxu0 %v1523
        %1674 = vmatpush.msra.mxu0 %v1521
        %1675 = vmatpush.msra.mxu0 %v1519
        %1676 = vmatpush.msra.mxu0 %v1517
        %1677 = vmatmul.f32.gmra.mxu0 %v1483
        %v1678 = vpop.f32.mrf.mxu0
        %v1679 = vadd.f32 0.0, %v1678
        %1680 = vmatmul.f32.gmra.mxu0 %v1484
        %v1681 = vpop.f32.mrf.mxu0
        %v1682 = vadd.f32 0.0, %v1681
        %1683 = vmatmul.f32.gmra.mxu0 %v1485
        %v1684 = vpop.f32.mrf.mxu0
        %v1685 = vadd.f32 0.0, %v1684
        %1686 = vmatmul.f32.gmra.mxu0 %v1486
        %v1687 = vpop.f32.mrf.mxu0
        %v1688 = vadd.f32 0.0, %v1687
        %1689 = vmatmul.f32.gmra.mxu0 %v1487
        %v1690 = vpop.f32.mrf.mxu0
        %v1691 = vadd.f32 0.0, %v1690
        %1692 = vmatmul.f32.gmra.mxu0 %v1488
        %v1693 = vpop.f32.mrf.mxu0
        %v1694 = vadd.f32 0.0, %v1693
        %1695 = vmatmul.f32.gmra.mxu0 %v1489
        %v1696 = vpop.f32.mrf.mxu0
        %v1697 = vadd.f32 0.0, %v1696
        %1698 = vmatmul.f32.gmra.mxu0 %v1490
        %v1699 = vpop.f32.mrf.mxu0
        %v1700 = vadd.f32 0.0, %v1699
        %1701 = vmatmul.f32.gmra.mxu0 %v1491
        %v1702 = vpop.f32.mrf.mxu0
        %v1703 = vadd.f32 0.0, %v1702
        %1704 = vmatmul.f32.gmra.mxu0 %v1492
        %v1705 = vpop.f32.mrf.mxu0
        %v1706 = vadd.f32 0.0, %v1705
        %1707 = vmatmul.f32.gmra.mxu0 %v1493
        %v1708 = vpop.f32.mrf.mxu0
        %v1709 = vadd.f32 0.0, %v1708
        %1710 = vmatmul.f32.gmra.mxu0 %v1494
        %v1711 = vpop.f32.mrf.mxu0
        %v1712 = vadd.f32 0.0, %v1711
        %1713 = vmatmul.f32.gmra.mxu0 %v1495
        %v1714 = vpop.f32.mrf.mxu0
        %v1715 = vadd.f32 0.0, %v1714
        %1716 = vmatmul.f32.gmra.mxu0 %v1496
        %v1717 = vpop.f32.mrf.mxu0
        %v1718 = vadd.f32 0.0, %v1717
        %1719 = vmatmul.f32.gmra.mxu0 %v1497
        %v1720 = vpop.f32.mrf.mxu0
        %v1721 = vadd.f32 0.0, %v1720
        %1722 = vmatmul.f32.gmra.mxu0 %v1498
        %v1723 = vpop.f32.mrf.mxu0
        %v1724 = vadd.f32 0.0, %v1723
        %1725 = vmatmul.f32.gmra.mxu0 %v1499
        %v1726 = vpop.f32.mrf.mxu0
        %v1727 = vadd.f32 0.0, %v1726
        %1728 = vmatmul.f32.gmra.mxu0 %v1500
        %v1729 = vpop.f32.mrf.mxu0
        %v1730 = vadd.f32 0.0, %v1729
        %1731 = vmatmul.f32.gmra.mxu0 %v1501
        %v1732 = vpop.f32.mrf.mxu0
        %v1733 = vadd.f32 0.0, %v1732
        %1734 = vmatmul.f32.gmra.mxu0 %v1502
        %v1735 = vpop.f32.mrf.mxu0
        %v1736 = vadd.f32 0.0, %v1735
        %1737 = vmatmul.f32.gmra.mxu0 %v1503
        %v1738 = vpop.f32.mrf.mxu0
        %v1739 = vadd.f32 0.0, %v1738
        %1740 = vmatmul.f32.gmra.mxu0 %v1504
        %v1741 = vpop.f32.mrf.mxu0
        %v1742 = vadd.f32 0.0, %v1741
        %1743 = vmatmul.f32.gmra.mxu0 %v1505
        %v1744 = vpop.f32.mrf.mxu0
        %v1745 = vadd.f32 0.0, %v1744
        %1746 = vmatmul.f32.gmra.mxu0 %v1506
        %v1747 = vpop.f32.mrf.mxu0
        %v1748 = vadd.f32 0.0, %v1747
        %1749 = vmatmul.f32.gmra.mxu0 %v1507
        %v1750 = vpop.f32.mrf.mxu0
        %v1751 = vadd.f32 0.0, %v1750
        %1752 = vmatmul.f32.gmra.mxu0 %v1508
        %v1753 = vpop.f32.mrf.mxu0
        %v1754 = vadd.f32 0.0, %v1753
        %1755 = vmatmul.f32.gmra.mxu0 %v1509
        %v1756 = vpop.f32.mrf.mxu0
        %v1757 = vadd.f32 0.0, %v1756
        %1758 = vmatmul.f32.gmra.mxu0 %v1510
        %v1759 = vpop.f32.mrf.mxu0
        %v1760 = vadd.f32 0.0, %v1759
        %1761 = vmatmul.f32.gmra.mxu0 %v1511
        %v1762 = vpop.f32.mrf.mxu0
        %v1763 = vadd.f32 0.0, %v1762
        %1764 = vmatmul.f32.gmra.mxu0 %v1512
        %v1765 = vpop.f32.mrf.mxu0
        %v1766 = vadd.f32 0.0, %v1765
        %1767 = vmatmul.f32.gmra.mxu0 %v1513
        %v1768 = vpop.f32.mrf.mxu0
        %v1769 = vadd.f32 0.0, %v1768
        %1770 = vmatmul.f32.gmra.mxu0 %v1514
        %v1771 = vpop.f32.mrf.mxu0
        %v1772 = vadd.f32 0.0, %v1771
        %1773 = vdwg.mxu0
        %v1774 = vadd.f32 %v1419, %v1566
        %v1775 = vadd.f32 %v1420, %v1679
        %v1776 = vadd.f32 %v1421, %v1569
        %v1777 = vadd.f32 %v1422, %v1682
        %v1778 = vadd.f32 %v1423, %v1572
        %v1779 = vadd.f32 %v1424, %v1685
        %v1780 = vadd.f32 %v1425, %v1575
        %v1781 = vadd.f32 %v1426, %v1688
        %v1782 = vadd.f32 %v1427, %v1578
        %v1783 = vadd.f32 %v1428, %v1691
        %v1784 = vadd.f32 %v1429, %v1581
        %v1785 = vadd.f32 %v1430, %v1694
        %v1786 = vadd.f32 %v1431, %v1584
        %v1787 = vadd.f32 %v1432, %v1697
        %v1788 = vadd.f32 %v1433, %v1587
        %v1789 = vadd.f32 %v1434, %v1700
        %v1790 = vadd.f32 %v1435, %v1590
        %v1791 = vadd.f32 %v1436, %v1703
        %v1792 = vadd.f32 %v1437, %v1593
        %v1793 = vadd.f32 %v1438, %v1706
        %v1794 = vadd.f32 %v1439, %v1596
        %v1795 = vadd.f32 %v1440, %v1709
        %v1796 = vadd.f32 %v1441, %v1599
        %v1797 = vadd.f32 %v1442, %v1712
        %v1798 = vadd.f32 %v1443, %v1602
        %v1799 = vadd.f32 %v1444, %v1715
        %v1800 = vadd.f32 %v1445, %v1605
        %v1801 = vadd.f32 %v1446, %v1718
        %v1802 = vadd.f32 %v1447, %v1608
        %v1803 = vadd.f32 %v1448, %v1721
        %v1804 = vadd.f32 %v1449, %v1611
        %v1805 = vadd.f32 %v1450, %v1724
        %v1806 = vadd.f32 %v1451, %v1614
        %v1807 = vadd.f32 %v1452, %v1727
        %v1808 = vadd.f32 %v1453, %v1617
        %v1809 = vadd.f32 %v1454, %v1730
        %v1810 = vadd.f32 %v1455, %v1620
        %v1811 = vadd.f32 %v1456, %v1733
        %v1812 = vadd.f32 %v1457, %v1623
        %v1813 = vadd.f32 %v1458, %v1736
        %v1814 = vadd.f32 %v1459, %v1626
        %v1815 = vadd.f32 %v1460, %v1739
        %v1816 = vadd.f32 %v1461, %v1629
        %v1817 = vadd.f32 %v1462, %v1742
        %v1818 = vadd.f32 %v1463, %v1632
        %v1819 = vadd.f32 %v1464, %v1745
        %v1820 = vadd.f32 %v1465, %v1635
        %v1821 = vadd.f32 %v1466, %v1748
        %v1822 = vadd.f32 %v1467, %v1638
        %v1823 = vadd.f32 %v1468, %v1751
        %v1824 = vadd.f32 %v1469, %v1641
        %v1825 = vadd.f32 %v1470, %v1754
        %v1826 = vadd.f32 %v1471, %v1644
        %v1827 = vadd.f32 %v1472, %v1757
        %v1828 = vadd.f32 %v1473, %v1647
        %v1829 = vadd.f32 %v1474, %v1760
        %v1830 = vadd.f32 %v1475, %v1650
        %v1831 = vadd.f32 %v1476, %v1763
        %v1832 = vadd.f32 %v1477, %v1653
        %v1833 = vadd.f32 %v1478, %v1766
        %v1834 = vadd.f32 %v1479, %v1656
        %v1835 = vadd.f32 %v1480, %v1769
        %v1836 = vadd.f32 %v1481, %v1659
        %v1837 = vadd.f32 %v1482, %v1772
        %v1838 = vld [vmem:[%s546 + $0x4] sm:$0xff]
        %v1839 = vld [vmem:[%s546 + $0xc] sm:$0xff]
        %v1840 = vld [vmem:[%s546 + $0x14] sm:$0xff]
        %v1841 = vld [vmem:[%s546 + $0x1c] sm:$0xff]
        %v1842 = vld [vmem:[%s546 + $0x24] sm:$0xff]
        %v1843 = vld [vmem:[%s546 + $0x2c] sm:$0xff]
        %v1844 = vld [vmem:[%s546 + $0x34] sm:$0xff]
        %v1845 = vld [vmem:[%s546 + $0x3c] sm:$0xff]
        %v1846 = vld [vmem:[%s546 + $0x44] sm:$0xff]
        %v1847 = vld [vmem:[%s546 + $0x4c] sm:$0xff]
        %v1848 = vld [vmem:[%s546 + $0x54] sm:$0xff]
        %v1849 = vld [vmem:[%s546 + $0x5c] sm:$0xff]
        %v1850 = vld [vmem:[%s546 + $0x64] sm:$0xff]
        %v1851 = vld [vmem:[%s546 + $0x6c] sm:$0xff]
        %v1852 = vld [vmem:[%s546 + $0x74] sm:$0xff]
        %v1853 = vld [vmem:[%s546 + $0x7c] sm:$0xff]
        %v1854 = vld [vmem:[%s546 + $0x84] sm:$0xff]
        %v1855 = vld [vmem:[%s546 + $0x8c] sm:$0xff]
        %v1856 = vld [vmem:[%s546 + $0x94] sm:$0xff]
        %v1857 = vld [vmem:[%s546 + $0x9c] sm:$0xff]
        %v1858 = vld [vmem:[%s546 + $0xa4] sm:$0xff]
        %v1859 = vld [vmem:[%s546 + $0xac] sm:$0xff]
        %v1860 = vld [vmem:[%s546 + $0xb4] sm:$0xff]
        %v1861 = vld [vmem:[%s546 + $0xbc] sm:$0xff]
        %v1862 = vld [vmem:[%s546 + $0xc4] sm:$0xff]
        %v1863 = vld [vmem:[%s546 + $0xcc] sm:$0xff]
        %v1864 = vld [vmem:[%s546 + $0xd4] sm:$0xff]
        %v1865 = vld [vmem:[%s546 + $0xdc] sm:$0xff]
        %v1866 = vld [vmem:[%s546 + $0xe4] sm:$0xff]
        %v1867 = vld [vmem:[%s546 + $0xec] sm:$0xff]
        %v1868 = vld [vmem:[%s546 + $0xf4] sm:$0xff]
        %v1869 = vld [vmem:[%s546 + $0xfc] sm:$0xff]
        %s1870 = scalar_lea.vmem %s1, 1024
        %v1871 = vld [vmem:[%s1870] sm:$0xff]
        %v1872 = vld [vmem:[%s1870 + $0x8] sm:$0xff]
        %v1873 = vld [vmem:[%s1870 + $0x10] sm:$0xff]
        %v1874 = vld [vmem:[%s1870 + $0x18] sm:$0xff]
        %v1875 = vld [vmem:[%s1870 + $0x20] sm:$0xff]
        %v1876 = vld [vmem:[%s1870 + $0x28] sm:$0xff]
        %v1877 = vld [vmem:[%s1870 + $0x30] sm:$0xff]
        %v1878 = vld [vmem:[%s1870 + $0x38] sm:$0xff]
        %v1879 = vld [vmem:[%s1870 + $0x40] sm:$0xff]
        %v1880 = vld [vmem:[%s1870 + $0x48] sm:$0xff]
        %v1881 = vld [vmem:[%s1870 + $0x50] sm:$0xff]
        %v1882 = vld [vmem:[%s1870 + $0x58] sm:$0xff]
        %v1883 = vld [vmem:[%s1870 + $0x60] sm:$0xff]
        %v1884 = vld [vmem:[%s1870 + $0x68] sm:$0xff]
        %v1885 = vld [vmem:[%s1870 + $0x70] sm:$0xff]
        %v1886 = vld [vmem:[%s1870 + $0x78] sm:$0xff]
        %v1887 = vld [vmem:[%s1870 + $0x80] sm:$0xff]
        %v1888 = vld [vmem:[%s1870 + $0x88] sm:$0xff]
        %v1889 = vld [vmem:[%s1870 + $0x90] sm:$0xff]
        %v1890 = vld [vmem:[%s1870 + $0x98] sm:$0xff]
        %v1891 = vld [vmem:[%s1870 + $0xa0] sm:$0xff]
        %v1892 = vld [vmem:[%s1870 + $0xa8] sm:$0xff]
        %v1893 = vld [vmem:[%s1870 + $0xb0] sm:$0xff]
        %v1894 = vld [vmem:[%s1870 + $0xb8] sm:$0xff]
        %v1895 = vld [vmem:[%s1870 + $0xc0] sm:$0xff]
        %v1896 = vld [vmem:[%s1870 + $0xc8] sm:$0xff]
        %v1897 = vld [vmem:[%s1870 + $0xd0] sm:$0xff]
        %v1898 = vld [vmem:[%s1870 + $0xd8] sm:$0xff]
        %v1899 = vld [vmem:[%s1870 + $0xe0] sm:$0xff]
        %v1900 = vld [vmem:[%s1870 + $0xe8] sm:$0xff]
        %v1901 = vld [vmem:[%s1870 + $0xf0] sm:$0xff]
        %v1902 = vld [vmem:[%s1870 + $0xf8] sm:$0xff]
        %1903 = vmatpush.msra.mxu0 %v1901
        %1904 = vmatpush.msra.mxu0 %v1899
        %1905 = vmatpush.msra.mxu0 %v1897
        %1906 = vmatpush.msra.mxu0 %v1895
        %1907 = vmatpush.msra.mxu0 %v1893
        %1908 = vmatpush.msra.mxu0 %v1891
        %1909 = vmatpush.msra.mxu0 %v1889
        %1910 = vmatpush.msra.mxu0 %v1887
        %1911 = vmatpush.msra.mxu0 %v1885
        %1912 = vmatpush.msra.mxu0 %v1883
        %1913 = vmatpush.msra.mxu0 %v1881
        %1914 = vmatpush.msra.mxu0 %v1879
        %1915 = vmatpush.msra.mxu0 %v1877
        %1916 = vmatpush.msra.mxu0 %v1875
        %1917 = vmatpush.msra.mxu0 %v1873
        %1918 = vmatpush.msra.mxu0 %v1871
        %1919 = vmatmul.f32.gmra.mxu0 %v1838
        %v1920 = vpop.f32.mrf.mxu0
        %v1921 = vadd.f32 0.0, %v1920
        %1922 = vmatmul.f32.gmra.mxu0 %v1839
        %v1923 = vpop.f32.mrf.mxu0
        %v1924 = vadd.f32 0.0, %v1923
        %1925 = vmatmul.f32.gmra.mxu0 %v1840
        %v1926 = vpop.f32.mrf.mxu0
        %v1927 = vadd.f32 0.0, %v1926
        %1928 = vmatmul.f32.gmra.mxu0 %v1841
        %v1929 = vpop.f32.mrf.mxu0
        %v1930 = vadd.f32 0.0, %v1929
        %1931 = vmatmul.f32.gmra.mxu0 %v1842
        %v1932 = vpop.f32.mrf.mxu0
        %v1933 = vadd.f32 0.0, %v1932
        %1934 = vmatmul.f32.gmra.mxu0 %v1843
        %v1935 = vpop.f32.mrf.mxu0
        %v1936 = vadd.f32 0.0, %v1935
        %1937 = vmatmul.f32.gmra.mxu0 %v1844
        %v1938 = vpop.f32.mrf.mxu0
        %v1939 = vadd.f32 0.0, %v1938
        %1940 = vmatmul.f32.gmra.mxu0 %v1845
        %v1941 = vpop.f32.mrf.mxu0
        %v1942 = vadd.f32 0.0, %v1941
        %1943 = vmatmul.f32.gmra.mxu0 %v1846
        %v1944 = vpop.f32.mrf.mxu0
        %v1945 = vadd.f32 0.0, %v1944
        %1946 = vmatmul.f32.gmra.mxu0 %v1847
        %v1947 = vpop.f32.mrf.mxu0
        %v1948 = vadd.f32 0.0, %v1947
        %1949 = vmatmul.f32.gmra.mxu0 %v1848
        %v1950 = vpop.f32.mrf.mxu0
        %v1951 = vadd.f32 0.0, %v1950
        %1952 = vmatmul.f32.gmra.mxu0 %v1849
        %v1953 = vpop.f32.mrf.mxu0
        %v1954 = vadd.f32 0.0, %v1953
        %1955 = vmatmul.f32.gmra.mxu0 %v1850
        %v1956 = vpop.f32.mrf.mxu0
        %v1957 = vadd.f32 0.0, %v1956
        %1958 = vmatmul.f32.gmra.mxu0 %v1851
        %v1959 = vpop.f32.mrf.mxu0
        %v1960 = vadd.f32 0.0, %v1959
        %1961 = vmatmul.f32.gmra.mxu0 %v1852
        %v1962 = vpop.f32.mrf.mxu0
        %v1963 = vadd.f32 0.0, %v1962
        %1964 = vmatmul.f32.gmra.mxu0 %v1853
        %v1965 = vpop.f32.mrf.mxu0
        %v1966 = vadd.f32 0.0, %v1965
        %1967 = vmatmul.f32.gmra.mxu0 %v1854
        %v1968 = vpop.f32.mrf.mxu0
        %v1969 = vadd.f32 0.0, %v1968
        %1970 = vmatmul.f32.gmra.mxu0 %v1855
        %v1971 = vpop.f32.mrf.mxu0
        %v1972 = vadd.f32 0.0, %v1971
        %1973 = vmatmul.f32.gmra.mxu0 %v1856
        %v1974 = vpop.f32.mrf.mxu0
        %v1975 = vadd.f32 0.0, %v1974
        %1976 = vmatmul.f32.gmra.mxu0 %v1857
        %v1977 = vpop.f32.mrf.mxu0
        %v1978 = vadd.f32 0.0, %v1977
        %1979 = vmatmul.f32.gmra.mxu0 %v1858
        %v1980 = vpop.f32.mrf.mxu0
        %v1981 = vadd.f32 0.0, %v1980
        %1982 = vmatmul.f32.gmra.mxu0 %v1859
        %v1983 = vpop.f32.mrf.mxu0
        %v1984 = vadd.f32 0.0, %v1983
        %1985 = vmatmul.f32.gmra.mxu0 %v1860
        %v1986 = vpop.f32.mrf.mxu0
        %v1987 = vadd.f32 0.0, %v1986
        %1988 = vmatmul.f32.gmra.mxu0 %v1861
        %v1989 = vpop.f32.mrf.mxu0
        %v1990 = vadd.f32 0.0, %v1989
        %1991 = vmatmul.f32.gmra.mxu0 %v1862
        %v1992 = vpop.f32.mrf.mxu0
        %v1993 = vadd.f32 0.0, %v1992
        %1994 = vmatmul.f32.gmra.mxu0 %v1863
        %v1995 = vpop.f32.mrf.mxu0
        %v1996 = vadd.f32 0.0, %v1995
        %1997 = vmatmul.f32.gmra.mxu0 %v1864
        %v1998 = vpop.f32.mrf.mxu0
        %v1999 = vadd.f32 0.0, %v1998
        %2000 = vmatmul.f32.gmra.mxu0 %v1865
        %v2001 = vpop.f32.mrf.mxu0
        %v2002 = vadd.f32 0.0, %v2001
        %2003 = vmatmul.f32.gmra.mxu0 %v1866
        %v2004 = vpop.f32.mrf.mxu0
        %v2005 = vadd.f32 0.0, %v2004
        %2006 = vmatmul.f32.gmra.mxu0 %v1867
        %v2007 = vpop.f32.mrf.mxu0
        %v2008 = vadd.f32 0.0, %v2007
        %2009 = vmatmul.f32.gmra.mxu0 %v1868
        %v2010 = vpop.f32.mrf.mxu0
        %v2011 = vadd.f32 0.0, %v2010
        %2012 = vmatmul.f32.gmra.mxu0 %v1869
        %v2013 = vpop.f32.mrf.mxu0
        %v2014 = vadd.f32 0.0, %v2013
        %2015 = vdwg.mxu0
        %2016 = vmatpush.msra.mxu0 %v1902
        %2017 = vmatpush.msra.mxu0 %v1900
        %2018 = vmatpush.msra.mxu0 %v1898
        %2019 = vmatpush.msra.mxu0 %v1896
        %2020 = vmatpush.msra.mxu0 %v1894
        %2021 = vmatpush.msra.mxu0 %v1892
        %2022 = vmatpush.msra.mxu0 %v1890
        %2023 = vmatpush.msra.mxu0 %v1888
        %2024 = vmatpush.msra.mxu0 %v1886
        %2025 = vmatpush.msra.mxu0 %v1884
        %2026 = vmatpush.msra.mxu0 %v1882
        %2027 = vmatpush.msra.mxu0 %v1880
        %2028 = vmatpush.msra.mxu0 %v1878
        %2029 = vmatpush.msra.mxu0 %v1876
        %2030 = vmatpush.msra.mxu0 %v1874
        %2031 = vmatpush.msra.mxu0 %v1872
        %2032 = vmatmul.f32.gmra.mxu0 %v1838
        %v2033 = vpop.f32.mrf.mxu0
        %v2034 = vadd.f32 0.0, %v2033
        %2035 = vmatmul.f32.gmra.mxu0 %v1839
        %v2036 = vpop.f32.mrf.mxu0
        %v2037 = vadd.f32 0.0, %v2036
        %2038 = vmatmul.f32.gmra.mxu0 %v1840
        %v2039 = vpop.f32.mrf.mxu0
        %v2040 = vadd.f32 0.0, %v2039
        %2041 = vmatmul.f32.gmra.mxu0 %v1841
        %v2042 = vpop.f32.mrf.mxu0
        %v2043 = vadd.f32 0.0, %v2042
        %2044 = vmatmul.f32.gmra.mxu0 %v1842
        %v2045 = vpop.f32.mrf.mxu0
        %v2046 = vadd.f32 0.0, %v2045
        %2047 = vmatmul.f32.gmra.mxu0 %v1843
        %v2048 = vpop.f32.mrf.mxu0
        %v2049 = vadd.f32 0.0, %v2048
        %2050 = vmatmul.f32.gmra.mxu0 %v1844
        %v2051 = vpop.f32.mrf.mxu0
        %v2052 = vadd.f32 0.0, %v2051
        %2053 = vmatmul.f32.gmra.mxu0 %v1845
        %v2054 = vpop.f32.mrf.mxu0
        %v2055 = vadd.f32 0.0, %v2054
        %2056 = vmatmul.f32.gmra.mxu0 %v1846
        %v2057 = vpop.f32.mrf.mxu0
        %v2058 = vadd.f32 0.0, %v2057
        %2059 = vmatmul.f32.gmra.mxu0 %v1847
        %v2060 = vpop.f32.mrf.mxu0
        %v2061 = vadd.f32 0.0, %v2060
        %2062 = vmatmul.f32.gmra.mxu0 %v1848
        %v2063 = vpop.f32.mrf.mxu0
        %v2064 = vadd.f32 0.0, %v2063
        %2065 = vmatmul.f32.gmra.mxu0 %v1849
        %v2066 = vpop.f32.mrf.mxu0
        %v2067 = vadd.f32 0.0, %v2066
        %2068 = vmatmul.f32.gmra.mxu0 %v1850
        %v2069 = vpop.f32.mrf.mxu0
        %v2070 = vadd.f32 0.0, %v2069
        %2071 = vmatmul.f32.gmra.mxu0 %v1851
        %v2072 = vpop.f32.mrf.mxu0
        %v2073 = vadd.f32 0.0, %v2072
        %2074 = vmatmul.f32.gmra.mxu0 %v1852
        %v2075 = vpop.f32.mrf.mxu0
        %v2076 = vadd.f32 0.0, %v2075
        %2077 = vmatmul.f32.gmra.mxu0 %v1853
        %v2078 = vpop.f32.mrf.mxu0
        %v2079 = vadd.f32 0.0, %v2078
        %2080 = vmatmul.f32.gmra.mxu0 %v1854
        %v2081 = vpop.f32.mrf.mxu0
        %v2082 = vadd.f32 0.0, %v2081
        %2083 = vmatmul.f32.gmra.mxu0 %v1855
        %v2084 = vpop.f32.mrf.mxu0
        %v2085 = vadd.f32 0.0, %v2084
        %2086 = vmatmul.f32.gmra.mxu0 %v1856
        %v2087 = vpop.f32.mrf.mxu0
        %v2088 = vadd.f32 0.0, %v2087
        %2089 = vmatmul.f32.gmra.mxu0 %v1857
        %v2090 = vpop.f32.mrf.mxu0
        %v2091 = vadd.f32 0.0, %v2090
        %2092 = vmatmul.f32.gmra.mxu0 %v1858
        %v2093 = vpop.f32.mrf.mxu0
        %v2094 = vadd.f32 0.0, %v2093
        %2095 = vmatmul.f32.gmra.mxu0 %v1859
        %v2096 = vpop.f32.mrf.mxu0
        %v2097 = vadd.f32 0.0, %v2096
        %2098 = vmatmul.f32.gmra.mxu0 %v1860
        %v2099 = vpop.f32.mrf.mxu0
        %v2100 = vadd.f32 0.0, %v2099
        %2101 = vmatmul.f32.gmra.mxu0 %v1861
        %v2102 = vpop.f32.mrf.mxu0
        %v2103 = vadd.f32 0.0, %v2102
        %2104 = vmatmul.f32.gmra.mxu0 %v1862
        %v2105 = vpop.f32.mrf.mxu0
        %v2106 = vadd.f32 0.0, %v2105
        %2107 = vmatmul.f32.gmra.mxu0 %v1863
        %v2108 = vpop.f32.mrf.mxu0
        %v2109 = vadd.f32 0.0, %v2108
        %2110 = vmatmul.f32.gmra.mxu0 %v1864
        %v2111 = vpop.f32.mrf.mxu0
        %v2112 = vadd.f32 0.0, %v2111
        %2113 = vmatmul.f32.gmra.mxu0 %v1865
        %v2114 = vpop.f32.mrf.mxu0
        %v2115 = vadd.f32 0.0, %v2114
        %2116 = vmatmul.f32.gmra.mxu0 %v1866
        %v2117 = vpop.f32.mrf.mxu0
        %v2118 = vadd.f32 0.0, %v2117
        %2119 = vmatmul.f32.gmra.mxu0 %v1867
        %v2120 = vpop.f32.mrf.mxu0
        %v2121 = vadd.f32 0.0, %v2120
        %2122 = vmatmul.f32.gmra.mxu0 %v1868
        %v2123 = vpop.f32.mrf.mxu0
        %v2124 = vadd.f32 0.0, %v2123
        %2125 = vmatmul.f32.gmra.mxu0 %v1869
        %v2126 = vpop.f32.mrf.mxu0
        %v2127 = vadd.f32 0.0, %v2126
        %2128 = vdwg.mxu0
        %v2129 = vadd.f32 %v1774, %v1921
        %v2130 = vadd.f32 %v1775, %v2034
        %v2131 = vadd.f32 %v1776, %v1924
        %v2132 = vadd.f32 %v1777, %v2037
        %v2133 = vadd.f32 %v1778, %v1927
        %v2134 = vadd.f32 %v1779, %v2040
        %v2135 = vadd.f32 %v1780, %v1930
        %v2136 = vadd.f32 %v1781, %v2043
        %v2137 = vadd.f32 %v1782, %v1933
        %v2138 = vadd.f32 %v1783, %v2046
        %v2139 = vadd.f32 %v1784, %v1936
        %v2140 = vadd.f32 %v1785, %v2049
        %v2141 = vadd.f32 %v1786, %v1939
        %v2142 = vadd.f32 %v1787, %v2052
        %v2143 = vadd.f32 %v1788, %v1942
        %v2144 = vadd.f32 %v1789, %v2055
        %v2145 = vadd.f32 %v1790, %v1945
        %v2146 = vadd.f32 %v1791, %v2058
        %v2147 = vadd.f32 %v1792, %v1948
        %v2148 = vadd.f32 %v1793, %v2061
        %v2149 = vadd.f32 %v1794, %v1951
        %v2150 = vadd.f32 %v1795, %v2064
        %v2151 = vadd.f32 %v1796, %v1954
        %v2152 = vadd.f32 %v1797, %v2067
        %v2153 = vadd.f32 %v1798, %v1957
        %v2154 = vadd.f32 %v1799, %v2070
        %v2155 = vadd.f32 %v1800, %v1960
        %v2156 = vadd.f32 %v1801, %v2073
        %v2157 = vadd.f32 %v1802, %v1963
        %v2158 = vadd.f32 %v1803, %v2076
        %v2159 = vadd.f32 %v1804, %v1966
        %v2160 = vadd.f32 %v1805, %v2079
        %v2161 = vadd.f32 %v1806, %v1969
        %v2162 = vadd.f32 %v1807, %v2082
        %v2163 = vadd.f32 %v1808, %v1972
        %v2164 = vadd.f32 %v1809, %v2085
        %v2165 = vadd.f32 %v1810, %v1975
        %v2166 = vadd.f32 %v1811, %v2088
        %v2167 = vadd.f32 %v1812, %v1978
        %v2168 = vadd.f32 %v1813, %v2091
        %v2169 = vadd.f32 %v1814, %v1981
        %v2170 = vadd.f32 %v1815, %v2094
        %v2171 = vadd.f32 %v1816, %v1984
        %v2172 = vadd.f32 %v1817, %v2097
        %v2173 = vadd.f32 %v1818, %v1987
        %v2174 = vadd.f32 %v1819, %v2100
        %v2175 = vadd.f32 %v1820, %v1990
        %v2176 = vadd.f32 %v1821, %v2103
        %v2177 = vadd.f32 %v1822, %v1993
        %v2178 = vadd.f32 %v1823, %v2106
        %v2179 = vadd.f32 %v1824, %v1996
        %v2180 = vadd.f32 %v1825, %v2109
        %v2181 = vadd.f32 %v1826, %v1999
        %v2182 = vadd.f32 %v1827, %v2112
        %v2183 = vadd.f32 %v1828, %v2002
        %v2184 = vadd.f32 %v1829, %v2115
        %v2185 = vadd.f32 %v1830, %v2005
        %v2186 = vadd.f32 %v1831, %v2118
        %v2187 = vadd.f32 %v1832, %v2008
        %v2188 = vadd.f32 %v1833, %v2121
        %v2189 = vadd.f32 %v1834, %v2011
        %v2190 = vadd.f32 %v1835, %v2124
        %v2191 = vadd.f32 %v1836, %v2014
        %v2192 = vadd.f32 %v1837, %v2127
        %v2193 = vld [vmem:[%s2] sm:$0x3]
        %v2195 = vperm.slane %v2193, 0
        %v2196 = vperm.slane %v2193, 1
        %v2199 = vadd.f32 %v2129, %v2195
        %v2200 = vadd.f32 %v2130, %v2196
        %v2201 = vadd.f32 %v2131, %v2195
        %v2202 = vadd.f32 %v2132, %v2196
        %v2203 = vadd.f32 %v2133, %v2195
        %v2204 = vadd.f32 %v2134, %v2196
        %v2205 = vadd.f32 %v2135, %v2195
        %v2206 = vadd.f32 %v2136, %v2196
        %v2207 = vadd.f32 %v2137, %v2195
        %v2208 = vadd.f32 %v2138, %v2196
        %v2209 = vadd.f32 %v2139, %v2195
        %v2210 = vadd.f32 %v2140, %v2196
        %v2211 = vadd.f32 %v2141, %v2195
        %v2212 = vadd.f32 %v2142, %v2196
        %v2213 = vadd.f32 %v2143, %v2195
        %v2214 = vadd.f32 %v2144, %v2196
        %v2215 = vadd.f32 %v2145, %v2195
        %v2216 = vadd.f32 %v2146, %v2196
        %v2217 = vadd.f32 %v2147, %v2195
        %v2218 = vadd.f32 %v2148, %v2196
        %v2219 = vadd.f32 %v2149, %v2195
        %v2220 = vadd.f32 %v2150, %v2196
        %v2221 = vadd.f32 %v2151, %v2195
        %v2222 = vadd.f32 %v2152, %v2196
        %v2223 = vadd.f32 %v2153, %v2195
        %v2224 = vadd.f32 %v2154, %v2196
        %v2225 = vadd.f32 %v2155, %v2195
        %v2226 = vadd.f32 %v2156, %v2196
        %v2227 = vadd.f32 %v2157, %v2195
        %v2228 = vadd.f32 %v2158, %v2196
        %v2229 = vadd.f32 %v2159, %v2195
        %v2230 = vadd.f32 %v2160, %v2196
        %v2231 = vadd.f32 %v2161, %v2195
        %v2232 = vadd.f32 %v2162, %v2196
        %v2233 = vadd.f32 %v2163, %v2195
        %v2234 = vadd.f32 %v2164, %v2196
        %v2235 = vadd.f32 %v2165, %v2195
        %v2236 = vadd.f32 %v2166, %v2196
        %v2237 = vadd.f32 %v2167, %v2195
        %v2238 = vadd.f32 %v2168, %v2196
        %v2239 = vadd.f32 %v2169, %v2195
        %v2240 = vadd.f32 %v2170, %v2196
        %v2241 = vadd.f32 %v2171, %v2195
        %v2242 = vadd.f32 %v2172, %v2196
        %v2243 = vadd.f32 %v2173, %v2195
        %v2244 = vadd.f32 %v2174, %v2196
        %v2245 = vadd.f32 %v2175, %v2195
        %v2246 = vadd.f32 %v2176, %v2196
        %v2247 = vadd.f32 %v2177, %v2195
        %v2248 = vadd.f32 %v2178, %v2196
        %v2249 = vadd.f32 %v2179, %v2195
        %v2250 = vadd.f32 %v2180, %v2196
        %v2251 = vadd.f32 %v2181, %v2195
        %v2252 = vadd.f32 %v2182, %v2196
        %v2253 = vadd.f32 %v2183, %v2195
        %v2254 = vadd.f32 %v2184, %v2196
        %v2255 = vadd.f32 %v2185, %v2195
        %v2256 = vadd.f32 %v2186, %v2196
        %v2257 = vadd.f32 %v2187, %v2195
        %v2258 = vadd.f32 %v2188, %v2196
        %v2259 = vadd.f32 %v2189, %v2195
        %v2260 = vadd.f32 %v2190, %v2196
        %v2261 = vadd.f32 %v2191, %v2195
        %v2262 = vadd.f32 %v2192, %v2196
        %v2263 = vmax.f32 %v2199, 0.0
        %v2264 = vmax.f32 %v2200, 0.0
        %v2265 = vmax.f32 %v2201, 0.0
        %v2266 = vmax.f32 %v2202, 0.0
        %v2267 = vmax.f32 %v2203, 0.0
        %v2268 = vmax.f32 %v2204, 0.0
        %v2269 = vmax.f32 %v2205, 0.0
        %v2270 = vmax.f32 %v2206, 0.0
        %v2271 = vmax.f32 %v2207, 0.0
        %v2272 = vmax.f32 %v2208, 0.0
        %v2273 = vmax.f32 %v2209, 0.0
        %v2274 = vmax.f32 %v2210, 0.0
        %v2275 = vmax.f32 %v2211, 0.0
        %v2276 = vmax.f32 %v2212, 0.0
        %v2277 = vmax.f32 %v2213, 0.0
        %v2278 = vmax.f32 %v2214, 0.0
        %v2279 = vmax.f32 %v2215, 0.0
        %v2280 = vmax.f32 %v2216, 0.0
        %v2281 = vmax.f32 %v2217, 0.0
        %v2282 = vmax.f32 %v2218, 0.0
        %v2283 = vmax.f32 %v2219, 0.0
        %v2284 = vmax.f32 %v2220, 0.0
        %v2285 = vmax.f32 %v2221, 0.0
        %v2286 = vmax.f32 %v2222, 0.0
        %v2287 = vmax.f32 %v2223, 0.0
        %v2288 = vmax.f32 %v2224, 0.0
        %v2289 = vmax.f32 %v2225, 0.0
        %v2290 = vmax.f32 %v2226, 0.0
        %v2291 = vmax.f32 %v2227, 0.0
        %v2292 = vmax.f32 %v2228, 0.0
        %v2293 = vmax.f32 %v2229, 0.0
        %v2294 = vmax.f32 %v2230, 0.0
        %v2295 = vmax.f32 %v2231, 0.0
        %v2296 = vmax.f32 %v2232, 0.0
        %v2297 = vmax.f32 %v2233, 0.0
        %v2298 = vmax.f32 %v2234, 0.0
        %v2299 = vmax.f32 %v2235, 0.0
        %v2300 = vmax.f32 %v2236, 0.0
        %v2301 = vmax.f32 %v2237, 0.0
        %v2302 = vmax.f32 %v2238, 0.0
        %v2303 = vmax.f32 %v2239, 0.0
        %v2304 = vmax.f32 %v2240, 0.0
        %v2305 = vmax.f32 %v2241, 0.0
        %v2306 = vmax.f32 %v2242, 0.0
        %v2307 = vmax.f32 %v2243, 0.0
        %v2308 = vmax.f32 %v2244, 0.0
        %v2309 = vmax.f32 %v2245, 0.0
        %v2310 = vmax.f32 %v2246, 0.0
        %v2311 = vmax.f32 %v2247, 0.0
        %v2312 = vmax.f32 %v2248, 0.0
        %v2313 = vmax.f32 %v2249, 0.0
        %v2314 = vmax.f32 %v2250, 0.0
        %v2315 = vmax.f32 %v2251, 0.0
        %v2316 = vmax.f32 %v2252, 0.0
        %v2317 = vmax.f32 %v2253, 0.0
        %v2318 = vmax.f32 %v2254, 0.0
        %v2319 = vmax.f32 %v2255, 0.0
        %v2320 = vmax.f32 %v2256, 0.0
        %v2321 = vmax.f32 %v2257, 0.0
        %v2322 = vmax.f32 %v2258, 0.0
        %v2323 = vmax.f32 %v2259, 0.0
        %v2324 = vmax.f32 %v2260, 0.0
        %v2325 = vmax.f32 %v2261, 0.0
        %v2326 = vmax.f32 %v2262, 0.0
        %v2327 = vld [vmem:[%s3] sm:$0xff]
        %v2328 = vld [vmem:[%s3 + $0x8] sm:$0xff]
        %v2329 = vld [vmem:[%s3 + $0x10] sm:$0xff]
        %v2330 = vld [vmem:[%s3 + $0x18] sm:$0xff]
        %v2331 = vld [vmem:[%s3 + $0x20] sm:$0xff]
        %v2332 = vld [vmem:[%s3 + $0x28] sm:$0xff]
        %v2333 = vld [vmem:[%s3 + $0x30] sm:$0xff]
        %v2334 = vld [vmem:[%s3 + $0x38] sm:$0xff]
        %v2335 = vld [vmem:[%s3 + $0x40] sm:$0xff]
        %v2336 = vld [vmem:[%s3 + $0x48] sm:$0xff]
        %v2337 = vld [vmem:[%s3 + $0x50] sm:$0xff]
        %v2338 = vld [vmem:[%s3 + $0x58] sm:$0xff]
        %v2339 = vld [vmem:[%s3 + $0x60] sm:$0xff]
        %v2340 = vld [vmem:[%s3 + $0x68] sm:$0xff]
        %v2341 = vld [vmem:[%s3 + $0x70] sm:$0xff]
        %v2342 = vld [vmem:[%s3 + $0x78] sm:$0xff]
        %v2343 = vld [vmem:[%s3 + $0x80] sm:$0xff]
        %v2344 = vld [vmem:[%s3 + $0x88] sm:$0xff]
        %v2345 = vld [vmem:[%s3 + $0x90] sm:$0xff]
        %v2346 = vld [vmem:[%s3 + $0x98] sm:$0xff]
        %v2347 = vld [vmem:[%s3 + $0xa0] sm:$0xff]
        %vm2348 = vcmask 326656
        %v2350 = vsel %vm2348, %v2264, 0
        %v2353 = vsel %vm2348, %v2266, 0
        %v2356 = vsel %vm2348, %v2268, 0
        %v2359 = vsel %vm2348, %v2270, 0
        %v2362 = vsel %vm2348, %v2272, 0
        %v2365 = vsel %vm2348, %v2274, 0
        %v2368 = vsel %vm2348, %v2276, 0
        %v2371 = vsel %vm2348, %v2278, 0
        %v2374 = vsel %vm2348, %v2280, 0
        %v2377 = vsel %vm2348, %v2282, 0
        %v2380 = vsel %vm2348, %v2284, 0
        %v2383 = vsel %vm2348, %v2286, 0
        %v2386 = vsel %vm2348, %v2288, 0
        %v2389 = vsel %vm2348, %v2290, 0
        %v2392 = vsel %vm2348, %v2292, 0
        %v2395 = vsel %vm2348, %v2294, 0
        %v2398 = vsel %vm2348, %v2296, 0
        %v2401 = vsel %vm2348, %v2298, 0
        %v2404 = vsel %vm2348, %v2300, 0
        %v2407 = vsel %vm2348, %v2302, 0
        %v2410 = vsel %vm2348, %v2304, 0
        %v2413 = vsel %vm2348, %v2306, 0
        %v2416 = vsel %vm2348, %v2308, 0
        %v2419 = vsel %vm2348, %v2310, 0
        %v2422 = vsel %vm2348, %v2312, 0
        %v2425 = vsel %vm2348, %v2314, 0
        %v2428 = vsel %vm2348, %v2316, 0
        %v2431 = vsel %vm2348, %v2318, 0
        %v2434 = vsel %vm2348, %v2320, 0
        %v2437 = vsel %vm2348, %v2322, 0
        %v2440 = vsel %vm2348, %v2324, 0
        %v2443 = vsel %vm2348, %v2326, 0
        %2445 = vmatpush.msra.mxu0 %v2342
        %2446 = vmatpush.msra.mxu0 %v2341
        %2447 = vmatpush.msra.mxu0 %v2340
        %2448 = vmatpush.msra.mxu0 %v2339
        %2449 = vmatpush.msra.mxu0 %v2338
        %2450 = vmatpush.msra.mxu0 %v2337
        %2451 = vmatpush.msra.mxu0 %v2336
        %2452 = vmatpush.msra.mxu0 %v2335
        %2453 = vmatpush.msra.mxu0 %v2334
        %2454 = vmatpush.msra.mxu0 %v2333
        %2455 = vmatpush.msra.mxu0 %v2332
        %2456 = vmatpush.msra.mxu0 %v2331
        %2457 = vmatpush.msra.mxu0 %v2330
        %2458 = vmatpush.msra.mxu0 %v2329
        %2459 = vmatpush.msra.mxu0 %v2328
        %2460 = vmatpush.msra.mxu0 %v2327
        %2461 = vmatmul.f32.gmra.mxu0 %v2263
        %v2462 = vpop.f32.mrf.mxu0
        %v2463 = vadd.f32 0.0, %v2462
        %2464 = vmatmul.f32.gmra.mxu0 %v2265
        %v2465 = vpop.f32.mrf.mxu0
        %v2466 = vadd.f32 0.0, %v2465
        %2467 = vmatmul.f32.gmra.mxu0 %v2267
        %v2468 = vpop.f32.mrf.mxu0
        %v2469 = vadd.f32 0.0, %v2468
        %2470 = vmatmul.f32.gmra.mxu0 %v2269
        %v2471 = vpop.f32.mrf.mxu0
        %v2472 = vadd.f32 0.0, %v2471
        %2473 = vmatmul.f32.gmra.mxu0 %v2271
        %v2474 = vpop.f32.mrf.mxu0
        %v2475 = vadd.f32 0.0, %v2474
        %2476 = vmatmul.f32.gmra.mxu0 %v2273
        %v2477 = vpop.f32.mrf.mxu0
        %v2478 = vadd.f32 0.0, %v2477
        %2479 = vmatmul.f32.gmra.mxu0 %v2275
        %v2480 = vpop.f32.mrf.mxu0
        %v2481 = vadd.f32 0.0, %v2480
        %2482 = vmatmul.f32.gmra.mxu0 %v2277
        %v2483 = vpop.f32.mrf.mxu0
        %v2484 = vadd.f32 0.0, %v2483
        %2485 = vmatmul.f32.gmra.mxu0 %v2279
        %v2486 = vpop.f32.mrf.mxu0
        %v2487 = vadd.f32 0.0, %v2486
        %2488 = vmatmul.f32.gmra.mxu0 %v2281
        %v2489 = vpop.f32.mrf.mxu0
        %v2490 = vadd.f32 0.0, %v2489
        %2491 = vmatmul.f32.gmra.mxu0 %v2283
        %v2492 = vpop.f32.mrf.mxu0
        %v2493 = vadd.f32 0.0, %v2492
        %2494 = vmatmul.f32.gmra.mxu0 %v2285
        %v2495 = vpop.f32.mrf.mxu0
        %v2496 = vadd.f32 0.0, %v2495
        %2497 = vmatmul.f32.gmra.mxu0 %v2287
        %v2498 = vpop.f32.mrf.mxu0
        %v2499 = vadd.f32 0.0, %v2498
        %2500 = vmatmul.f32.gmra.mxu0 %v2289
        %v2501 = vpop.f32.mrf.mxu0
        %v2502 = vadd.f32 0.0, %v2501
        %2503 = vmatmul.f32.gmra.mxu0 %v2291
        %v2504 = vpop.f32.mrf.mxu0
        %v2505 = vadd.f32 0.0, %v2504
        %2506 = vmatmul.f32.gmra.mxu0 %v2293
        %v2507 = vpop.f32.mrf.mxu0
        %v2508 = vadd.f32 0.0, %v2507
        %2509 = vmatmul.f32.gmra.mxu0 %v2295
        %v2510 = vpop.f32.mrf.mxu0
        %v2511 = vadd.f32 0.0, %v2510
        %2512 = vmatmul.f32.gmra.mxu0 %v2297
        %v2513 = vpop.f32.mrf.mxu0
        %v2514 = vadd.f32 0.0, %v2513
        %2515 = vmatmul.f32.gmra.mxu0 %v2299
        %v2516 = vpop.f32.mrf.mxu0
        %v2517 = vadd.f32 0.0, %v2516
        %2518 = vmatmul.f32.gmra.mxu0 %v2301
        %v2519 = vpop.f32.mrf.mxu0
        %v2520 = vadd.f32 0.0, %v2519
        %2521 = vmatmul.f32.gmra.mxu0 %v2303
        %v2522 = vpop.f32.mrf.mxu0
        %v2523 = vadd.f32 0.0, %v2522
        %2524 = vmatmul.f32.gmra.mxu0 %v2305
        %v2525 = vpop.f32.mrf.mxu0
        %v2526 = vadd.f32 0.0, %v2525
        %2527 = vmatmul.f32.gmra.mxu0 %v2307
        %v2528 = vpop.f32.mrf.mxu0
        %v2529 = vadd.f32 0.0, %v2528
        %2530 = vmatmul.f32.gmra.mxu0 %v2309
        %v2531 = vpop.f32.mrf.mxu0
        %v2532 = vadd.f32 0.0, %v2531
        %2533 = vmatmul.f32.gmra.mxu0 %v2311
        %v2534 = vpop.f32.mrf.mxu0
        %v2535 = vadd.f32 0.0, %v2534
        %2536 = vmatmul.f32.gmra.mxu0 %v2313
        %v2537 = vpop.f32.mrf.mxu0
        %v2538 = vadd.f32 0.0, %v2537
        %2539 = vmatmul.f32.gmra.mxu0 %v2315
        %v2540 = vpop.f32.mrf.mxu0
        %v2541 = vadd.f32 0.0, %v2540
        %2542 = vmatmul.f32.gmra.mxu0 %v2317
        %v2543 = vpop.f32.mrf.mxu0
        %v2544 = vadd.f32 0.0, %v2543
        %2545 = vmatmul.f32.gmra.mxu0 %v2319
        %v2546 = vpop.f32.mrf.mxu0
        %v2547 = vadd.f32 0.0, %v2546
        %2548 = vmatmul.f32.gmra.mxu0 %v2321
        %v2549 = vpop.f32.mrf.mxu0
        %v2550 = vadd.f32 0.0, %v2549
        %2551 = vmatmul.f32.gmra.mxu0 %v2323
        %v2552 = vpop.f32.mrf.mxu0
        %v2553 = vadd.f32 0.0, %v2552
        %2554 = vmatmul.f32.gmra.mxu0 %v2325
        %v2555 = vpop.f32.mrf.mxu0
        %v2556 = vadd.f32 0.0, %v2555
        %2557 = vdwg.mxu0
        %2558 = vmatpush.msra.mxu0 0.0
        %2559 = vmatpush.msra.mxu0 0.0
        %2560 = vmatpush.msra.mxu0 0.0
        %2561 = vmatpush.msra.mxu0 0.0
        %2562 = vmatpush.msra.mxu0 0.0
        %2563 = vmatpush.msra.mxu0 0.0
        %2564 = vmatpush.msra.mxu0 0.0
        %2565 = vmatpush.msra.mxu0 0.0
        %2566 = vmatpush.msra.mxu0 0.0
        %2567 = vmatpush.msra.mxu0 0.0
        %2568 = vmatpush.msra.mxu0 0.0
        %2569 = vmatpush.msra.mxu0 %v2347
        %2570 = vmatpush.msra.mxu0 %v2346
        %2571 = vmatpush.msra.mxu0 %v2345
        %2572 = vmatpush.msra.mxu0 %v2344
        %2573 = vmatpush.msra.mxu0 %v2343
        %2574 = vmatmul.f32.gmra.mxu0 %v2350
        %v2575 = vpop.f32.mrf.mxu0
        %v2576 = vadd.f32 %v2463, %v2575
        %2577 = vmatmul.f32.gmra.mxu0 %v2353
        %v2578 = vpop.f32.mrf.mxu0
        %v2579 = vadd.f32 %v2466, %v2578
        %2580 = vmatmul.f32.gmra.mxu0 %v2356
        %v2581 = vpop.f32.mrf.mxu0
        %v2582 = vadd.f32 %v2469, %v2581
        %2583 = vmatmul.f32.gmra.mxu0 %v2359
        %v2584 = vpop.f32.mrf.mxu0
        %v2585 = vadd.f32 %v2472, %v2584
        %2586 = vmatmul.f32.gmra.mxu0 %v2362
        %v2587 = vpop.f32.mrf.mxu0
        %v2588 = vadd.f32 %v2475, %v2587
        %2589 = vmatmul.f32.gmra.mxu0 %v2365
        %v2590 = vpop.f32.mrf.mxu0
        %v2591 = vadd.f32 %v2478, %v2590
        %2592 = vmatmul.f32.gmra.mxu0 %v2368
        %v2593 = vpop.f32.mrf.mxu0
        %v2594 = vadd.f32 %v2481, %v2593
        %2595 = vmatmul.f32.gmra.mxu0 %v2371
        %v2596 = vpop.f32.mrf.mxu0
        %v2597 = vadd.f32 %v2484, %v2596
        %2598 = vmatmul.f32.gmra.mxu0 %v2374
        %v2599 = vpop.f32.mrf.mxu0
        %v2600 = vadd.f32 %v2487, %v2599
        %2601 = vmatmul.f32.gmra.mxu0 %v2377
        %v2602 = vpop.f32.mrf.mxu0
        %v2603 = vadd.f32 %v2490, %v2602
        %2604 = vmatmul.f32.gmra.mxu0 %v2380
        %v2605 = vpop.f32.mrf.mxu0
        %v2606 = vadd.f32 %v2493, %v2605
        %2607 = vmatmul.f32.gmra.mxu0 %v2383
        %v2608 = vpop.f32.mrf.mxu0
        %v2609 = vadd.f32 %v2496, %v2608
        %2610 = vmatmul.f32.gmra.mxu0 %v2386
        %v2611 = vpop.f32.mrf.mxu0
        %v2612 = vadd.f32 %v2499, %v2611
        %2613 = vmatmul.f32.gmra.mxu0 %v2389
        %v2614 = vpop.f32.mrf.mxu0
        %v2615 = vadd.f32 %v2502, %v2614
        %2616 = vmatmul.f32.gmra.mxu0 %v2392
        %v2617 = vpop.f32.mrf.mxu0
        %v2618 = vadd.f32 %v2505, %v2617
        %2619 = vmatmul.f32.gmra.mxu0 %v2395
        %v2620 = vpop.f32.mrf.mxu0
        %v2621 = vadd.f32 %v2508, %v2620
        %2622 = vmatmul.f32.gmra.mxu0 %v2398
        %v2623 = vpop.f32.mrf.mxu0
        %v2624 = vadd.f32 %v2511, %v2623
        %2625 = vmatmul.f32.gmra.mxu0 %v2401
        %v2626 = vpop.f32.mrf.mxu0
        %v2627 = vadd.f32 %v2514, %v2626
        %2628 = vmatmul.f32.gmra.mxu0 %v2404
        %v2629 = vpop.f32.mrf.mxu0
        %v2630 = vadd.f32 %v2517, %v2629
        %2631 = vmatmul.f32.gmra.mxu0 %v2407
        %v2632 = vpop.f32.mrf.mxu0
        %v2633 = vadd.f32 %v2520, %v2632
        %2634 = vmatmul.f32.gmra.mxu0 %v2410
        %v2635 = vpop.f32.mrf.mxu0
        %v2636 = vadd.f32 %v2523, %v2635
        %2637 = vmatmul.f32.gmra.mxu0 %v2413
        %v2638 = vpop.f32.mrf.mxu0
        %v2639 = vadd.f32 %v2526, %v2638
        %2640 = vmatmul.f32.gmra.mxu0 %v2416
        %v2641 = vpop.f32.mrf.mxu0
        %v2642 = vadd.f32 %v2529, %v2641
        %2643 = vmatmul.f32.gmra.mxu0 %v2419
        %v2644 = vpop.f32.mrf.mxu0
        %v2645 = vadd.f32 %v2532, %v2644
        %2646 = vmatmul.f32.gmra.mxu0 %v2422
        %v2647 = vpop.f32.mrf.mxu0
        %v2648 = vadd.f32 %v2535, %v2647
        %2649 = vmatmul.f32.gmra.mxu0 %v2425
        %v2650 = vpop.f32.mrf.mxu0
        %v2651 = vadd.f32 %v2538, %v2650
        %2652 = vmatmul.f32.gmra.mxu0 %v2428
        %v2653 = vpop.f32.mrf.mxu0
        %v2654 = vadd.f32 %v2541, %v2653
        %2655 = vmatmul.f32.gmra.mxu0 %v2431
        %v2656 = vpop.f32.mrf.mxu0
        %v2657 = vadd.f32 %v2544, %v2656
        %2658 = vmatmul.f32.gmra.mxu0 %v2434
        %v2659 = vpop.f32.mrf.mxu0
        %v2660 = vadd.f32 %v2547, %v2659
        %2661 = vmatmul.f32.gmra.mxu0 %v2437
        %v2662 = vpop.f32.mrf.mxu0
        %v2663 = vadd.f32 %v2550, %v2662
        %2664 = vmatmul.f32.gmra.mxu0 %v2440
        %v2665 = vpop.f32.mrf.mxu0
        %v2666 = vadd.f32 %v2553, %v2665
        %2667 = vmatmul.f32.gmra.mxu0 %v2443
        %v2668 = vpop.f32.mrf.mxu0
        %v2669 = vadd.f32 %v2556, %v2668
        %2670 = vdwg.mxu0
        %v2671 = vld [vmem:[%s4] sm:$0xff]
        %v2672 = vld [vmem:[%s4 + $0x8] sm:$0xff]
        %v2673 = vld [vmem:[%s4 + $0x10] sm:$0xff]
        %v2674 = vld [vmem:[%s4 + $0x18] sm:$0xff]
        %v2675 = vld [vmem:[%s4 + $0x20] sm:$0xff]
        %v2676 = vld [vmem:[%s4 + $0x28] sm:$0xff]
        %v2677 = vld [vmem:[%s4 + $0x30] sm:$0xff]
        %v2678 = vld [vmem:[%s4 + $0x38] sm:$0xff]
        %v2679 = vld [vmem:[%s4 + $0x40] sm:$0xff]
        %v2680 = vld [vmem:[%s4 + $0x48] sm:$0xff]
        %v2681 = vld [vmem:[%s4 + $0x50] sm:$0xff]
        %v2682 = vld [vmem:[%s4 + $0x58] sm:$0xff]
        %v2683 = vld [vmem:[%s4 + $0x60] sm:$0xff]
        %v2684 = vld [vmem:[%s4 + $0x68] sm:$0xff]
        %v2685 = vld [vmem:[%s4 + $0x70] sm:$0xff]
        %v2686 = vld [vmem:[%s4 + $0x78] sm:$0xff]
        %v2687 = vld [vmem:[%s4 + $0x80] sm:$0xff]
        %v2688 = vld [vmem:[%s4 + $0x88] sm:$0xff]
        %v2689 = vld [vmem:[%s4 + $0x90] sm:$0xff]
        %v2690 = vld [vmem:[%s4 + $0x98] sm:$0xff]
        %v2691 = vld [vmem:[%s4 + $0xa0] sm:$0xff]
        %2692 = vmatpush.msra.mxu0 %v2686
        %2693 = vmatpush.msra.mxu0 %v2685
        %2694 = vmatpush.msra.mxu0 %v2684
        %2695 = vmatpush.msra.mxu0 %v2683
        %2696 = vmatpush.msra.mxu0 %v2682
        %2697 = vmatpush.msra.mxu0 %v2681
        %2698 = vmatpush.msra.mxu0 %v2680
        %2699 = vmatpush.msra.mxu0 %v2679
        %2700 = vmatpush.msra.mxu0 %v2678
        %2701 = vmatpush.msra.mxu0 %v2677
        %2702 = vmatpush.msra.mxu0 %v2676
        %2703 = vmatpush.msra.mxu0 %v2675
        %2704 = vmatpush.msra.mxu0 %v2674
        %2705 = vmatpush.msra.mxu0 %v2673
        %2706 = vmatpush.msra.mxu0 %v2672
        %2707 = vmatpush.msra.mxu0 %v2671
        %2708 = vmatmul.f32.gmra.mxu0 %v2263
        %v2709 = vpop.f32.mrf.mxu0
        %v2710 = vadd.f32 0.0, %v2709
        %2711 = vmatmul.f32.gmra.mxu0 %v2265
        %v2712 = vpop.f32.mrf.mxu0
        %v2713 = vadd.f32 0.0, %v2712
        %2714 = vmatmul.f32.gmra.mxu0 %v2267
        %v2715 = vpop.f32.mrf.mxu0
        %v2716 = vadd.f32 0.0, %v2715
        %2717 = vmatmul.f32.gmra.mxu0 %v2269
        %v2718 = vpop.f32.mrf.mxu0
        %v2719 = vadd.f32 0.0, %v2718
        %2720 = vmatmul.f32.gmra.mxu0 %v2271
        %v2721 = vpop.f32.mrf.mxu0
        %v2722 = vadd.f32 0.0, %v2721
        %2723 = vmatmul.f32.gmra.mxu0 %v2273
        %v2724 = vpop.f32.mrf.mxu0
        %v2725 = vadd.f32 0.0, %v2724
        %2726 = vmatmul.f32.gmra.mxu0 %v2275
        %v2727 = vpop.f32.mrf.mxu0
        %v2728 = vadd.f32 0.0, %v2727
        %2729 = vmatmul.f32.gmra.mxu0 %v2277
        %v2730 = vpop.f32.mrf.mxu0
        %v2731 = vadd.f32 0.0, %v2730
        %2732 = vmatmul.f32.gmra.mxu0 %v2279
        %v2733 = vpop.f32.mrf.mxu0
        %v2734 = vadd.f32 0.0, %v2733
        %2735 = vmatmul.f32.gmra.mxu0 %v2281
        %v2736 = vpop.f32.mrf.mxu0
        %v2737 = vadd.f32 0.0, %v2736
        %2738 = vmatmul.f32.gmra.mxu0 %v2283
        %v2739 = vpop.f32.mrf.mxu0
        %v2740 = vadd.f32 0.0, %v2739
        %2741 = vmatmul.f32.gmra.mxu0 %v2285
        %v2742 = vpop.f32.mrf.mxu0
        %v2743 = vadd.f32 0.0, %v2742
        %2744 = vmatmul.f32.gmra.mxu0 %v2287
        %v2745 = vpop.f32.mrf.mxu0
        %v2746 = vadd.f32 0.0, %v2745
        %2747 = vmatmul.f32.gmra.mxu0 %v2289
        %v2748 = vpop.f32.mrf.mxu0
        %v2749 = vadd.f32 0.0, %v2748
        %2750 = vmatmul.f32.gmra.mxu0 %v2291
        %v2751 = vpop.f32.mrf.mxu0
        %v2752 = vadd.f32 0.0, %v2751
        %2753 = vmatmul.f32.gmra.mxu0 %v2293
        %v2754 = vpop.f32.mrf.mxu0
        %v2755 = vadd.f32 0.0, %v2754
        %2756 = vmatmul.f32.gmra.mxu0 %v2295
        %v2757 = vpop.f32.mrf.mxu0
        %v2758 = vadd.f32 0.0, %v2757
        %2759 = vmatmul.f32.gmra.mxu0 %v2297
        %v2760 = vpop.f32.mrf.mxu0
        %v2761 = vadd.f32 0.0, %v2760
        %2762 = vmatmul.f32.gmra.mxu0 %v2299
        %v2763 = vpop.f32.mrf.mxu0
        %v2764 = vadd.f32 0.0, %v2763
        %2765 = vmatmul.f32.gmra.mxu0 %v2301
        %v2766 = vpop.f32.mrf.mxu0
        %v2767 = vadd.f32 0.0, %v2766
        %2768 = vmatmul.f32.gmra.mxu0 %v2303
        %v2769 = vpop.f32.mrf.mxu0
        %v2770 = vadd.f32 0.0, %v2769
        %2771 = vmatmul.f32.gmra.mxu0 %v2305
        %v2772 = vpop.f32.mrf.mxu0
        %v2773 = vadd.f32 0.0, %v2772
        %2774 = vmatmul.f32.gmra.mxu0 %v2307
        %v2775 = vpop.f32.mrf.mxu0
        %v2776 = vadd.f32 0.0, %v2775
        %2777 = vmatmul.f32.gmra.mxu0 %v2309
        %v2778 = vpop.f32.mrf.mxu0
        %v2779 = vadd.f32 0.0, %v2778
        %2780 = vmatmul.f32.gmra.mxu0 %v2311
        %v2781 = vpop.f32.mrf.mxu0
        %v2782 = vadd.f32 0.0, %v2781
        %2783 = vmatmul.f32.gmra.mxu0 %v2313
        %v2784 = vpop.f32.mrf.mxu0
        %v2785 = vadd.f32 0.0, %v2784
        %2786 = vmatmul.f32.gmra.mxu0 %v2315
        %v2787 = vpop.f32.mrf.mxu0
        %v2788 = vadd.f32 0.0, %v2787
        %2789 = vmatmul.f32.gmra.mxu0 %v2317
        %v2790 = vpop.f32.mrf.mxu0
        %v2791 = vadd.f32 0.0, %v2790
        %2792 = vmatmul.f32.gmra.mxu0 %v2319
        %v2793 = vpop.f32.mrf.mxu0
        %v2794 = vadd.f32 0.0, %v2793
        %2795 = vmatmul.f32.gmra.mxu0 %v2321
        %v2796 = vpop.f32.mrf.mxu0
        %v2797 = vadd.f32 0.0, %v2796
        %2798 = vmatmul.f32.gmra.mxu0 %v2323
        %v2799 = vpop.f32.mrf.mxu0
        %v2800 = vadd.f32 0.0, %v2799
        %2801 = vmatmul.f32.gmra.mxu0 %v2325
        %v2802 = vpop.f32.mrf.mxu0
        %v2803 = vadd.f32 0.0, %v2802
        %2804 = vdwg.mxu0
        %2805 = vmatpush.msra.mxu0 0.0
        %2806 = vmatpush.msra.mxu0 0.0
        %2807 = vmatpush.msra.mxu0 0.0
        %2808 = vmatpush.msra.mxu0 0.0
        %2809 = vmatpush.msra.mxu0 0.0
        %2810 = vmatpush.msra.mxu0 0.0
        %2811 = vmatpush.msra.mxu0 0.0
        %2812 = vmatpush.msra.mxu0 0.0
        %2813 = vmatpush.msra.mxu0 0.0
        %2814 = vmatpush.msra.mxu0 0.0
        %2815 = vmatpush.msra.mxu0 0.0
        %2816 = vmatpush.msra.mxu0 %v2691
        %2817 = vmatpush.msra.mxu0 %v2690
        %2818 = vmatpush.msra.mxu0 %v2689
        %2819 = vmatpush.msra.mxu0 %v2688
        %2820 = vmatpush.msra.mxu0 %v2687
        %2821 = vmatmul.f32.gmra.mxu0 %v2350
        %v2822 = vpop.f32.mrf.mxu0
        %v2823 = vadd.f32 %v2710, %v2822
        %2824 = vmatmul.f32.gmra.mxu0 %v2353
        %v2825 = vpop.f32.mrf.mxu0
        %v2826 = vadd.f32 %v2713, %v2825
        %2827 = vmatmul.f32.gmra.mxu0 %v2356
        %v2828 = vpop.f32.mrf.mxu0
        %v2829 = vadd.f32 %v2716, %v2828
        %2830 = vmatmul.f32.gmra.mxu0 %v2359
        %v2831 = vpop.f32.mrf.mxu0
        %v2832 = vadd.f32 %v2719, %v2831
        %2833 = vmatmul.f32.gmra.mxu0 %v2362
        %v2834 = vpop.f32.mrf.mxu0
        %v2835 = vadd.f32 %v2722, %v2834
        %2836 = vmatmul.f32.gmra.mxu0 %v2365
        %v2837 = vpop.f32.mrf.mxu0
        %v2838 = vadd.f32 %v2725, %v2837
        %2839 = vmatmul.f32.gmra.mxu0 %v2368
        %v2840 = vpop.f32.mrf.mxu0
        %v2841 = vadd.f32 %v2728, %v2840
        %2842 = vmatmul.f32.gmra.mxu0 %v2371
        %v2843 = vpop.f32.mrf.mxu0
        %v2844 = vadd.f32 %v2731, %v2843
        %2845 = vmatmul.f32.gmra.mxu0 %v2374
        %v2846 = vpop.f32.mrf.mxu0
        %v2847 = vadd.f32 %v2734, %v2846
        %2848 = vmatmul.f32.gmra.mxu0 %v2377
        %v2849 = vpop.f32.mrf.mxu0
        %v2850 = vadd.f32 %v2737, %v2849
        %2851 = vmatmul.f32.gmra.mxu0 %v2380
        %v2852 = vpop.f32.mrf.mxu0
        %v2853 = vadd.f32 %v2740, %v2852
        %2854 = vmatmul.f32.gmra.mxu0 %v2383
        %v2855 = vpop.f32.mrf.mxu0
        %v2856 = vadd.f32 %v2743, %v2855
        %2857 = vmatmul.f32.gmra.mxu0 %v2386
        %v2858 = vpop.f32.mrf.mxu0
        %v2859 = vadd.f32 %v2746, %v2858
        %2860 = vmatmul.f32.gmra.mxu0 %v2389
        %v2861 = vpop.f32.mrf.mxu0
        %v2862 = vadd.f32 %v2749, %v2861
        %2863 = vmatmul.f32.gmra.mxu0 %v2392
        %v2864 = vpop.f32.mrf.mxu0
        %v2865 = vadd.f32 %v2752, %v2864
        %2866 = vmatmul.f32.gmra.mxu0 %v2395
        %v2867 = vpop.f32.mrf.mxu0
        %v2868 = vadd.f32 %v2755, %v2867
        %2869 = vmatmul.f32.gmra.mxu0 %v2398
        %v2870 = vpop.f32.mrf.mxu0
        %v2871 = vadd.f32 %v2758, %v2870
        %2872 = vmatmul.f32.gmra.mxu0 %v2401
        %v2873 = vpop.f32.mrf.mxu0
        %v2874 = vadd.f32 %v2761, %v2873
        %2875 = vmatmul.f32.gmra.mxu0 %v2404
        %v2876 = vpop.f32.mrf.mxu0
        %v2877 = vadd.f32 %v2764, %v2876
        %2878 = vmatmul.f32.gmra.mxu0 %v2407
        %v2879 = vpop.f32.mrf.mxu0
        %v2880 = vadd.f32 %v2767, %v2879
        %2881 = vmatmul.f32.gmra.mxu0 %v2410
        %v2882 = vpop.f32.mrf.mxu0
        %v2883 = vadd.f32 %v2770, %v2882
        %2884 = vmatmul.f32.gmra.mxu0 %v2413
        %v2885 = vpop.f32.mrf.mxu0
        %v2886 = vadd.f32 %v2773, %v2885
        %2887 = vmatmul.f32.gmra.mxu0 %v2416
        %v2888 = vpop.f32.mrf.mxu0
        %v2889 = vadd.f32 %v2776, %v2888
        %2890 = vmatmul.f32.gmra.mxu0 %v2419
        %v2891 = vpop.f32.mrf.mxu0
        %v2892 = vadd.f32 %v2779, %v2891
        %2893 = vmatmul.f32.gmra.mxu0 %v2422
        %v2894 = vpop.f32.mrf.mxu0
        %v2895 = vadd.f32 %v2782, %v2894
        %2896 = vmatmul.f32.gmra.mxu0 %v2425
        %v2897 = vpop.f32.mrf.mxu0
        %v2898 = vadd.f32 %v2785, %v2897
        %2899 = vmatmul.f32.gmra.mxu0 %v2428
        %v2900 = vpop.f32.mrf.mxu0
        %v2901 = vadd.f32 %v2788, %v2900
        %2902 = vmatmul.f32.gmra.mxu0 %v2431
        %v2903 = vpop.f32.mrf.mxu0
        %v2904 = vadd.f32 %v2791, %v2903
        %2905 = vmatmul.f32.gmra.mxu0 %v2434
        %v2906 = vpop.f32.mrf.mxu0
        %v2907 = vadd.f32 %v2794, %v2906
        %2908 = vmatmul.f32.gmra.mxu0 %v2437
        %v2909 = vpop.f32.mrf.mxu0
        %v2910 = vadd.f32 %v2797, %v2909
        %2911 = vmatmul.f32.gmra.mxu0 %v2440
        %v2912 = vpop.f32.mrf.mxu0
        %v2913 = vadd.f32 %v2800, %v2912
        %2914 = vmatmul.f32.gmra.mxu0 %v2443
        %v2915 = vpop.f32.mrf.mxu0
        %v2916 = vadd.f32 %v2803, %v2915
        %2917 = vdwg.mxu0
        %v2918 = vmax.f32 %v2576, %v2823
        %v2919 = vmax.f32 %v2579, %v2826
        %v2920 = vmax.f32 %v2582, %v2829
        %v2921 = vmax.f32 %v2585, %v2832
        %v2922 = vmax.f32 %v2588, %v2835
        %v2923 = vmax.f32 %v2591, %v2838
        %v2924 = vmax.f32 %v2594, %v2841
        %v2925 = vmax.f32 %v2597, %v2844
        %v2926 = vmax.f32 %v2600, %v2847
        %v2927 = vmax.f32 %v2603, %v2850
        %v2928 = vmax.f32 %v2606, %v2853
        %v2929 = vmax.f32 %v2609, %v2856
        %v2930 = vmax.f32 %v2612, %v2859
        %v2931 = vmax.f32 %v2615, %v2862
        %v2932 = vmax.f32 %v2618, %v2865
        %v2933 = vmax.f32 %v2621, %v2868
        %v2934 = vmax.f32 %v2624, %v2871
        %v2935 = vmax.f32 %v2627, %v2874
        %v2936 = vmax.f32 %v2630, %v2877
        %v2937 = vmax.f32 %v2633, %v2880
        %v2938 = vmax.f32 %v2636, %v2883
        %v2939 = vmax.f32 %v2639, %v2886
        %v2940 = vmax.f32 %v2642, %v2889
        %v2941 = vmax.f32 %v2645, %v2892
        %v2942 = vmax.f32 %v2648, %v2895
        %v2943 = vmax.f32 %v2651, %v2898
        %v2944 = vmax.f32 %v2654, %v2901
        %v2945 = vmax.f32 %v2657, %v2904
        %v2946 = vmax.f32 %v2660, %v2907
        %v2947 = vmax.f32 %v2663, %v2910
        %v2948 = vmax.f32 %v2666, %v2913
        %v2949 = vmax.f32 %v2669, %v2916
        %vm2950 = vcmask 687104
        %2951 = vst.msk [vmem:[#allocation2] sm:$0xff] %vm2950, %v2918
        %2952 = vst.msk [vmem:[#allocation2 + $0x8] sm:$0xff] %vm2950, %v2919
        %2953 = vst.msk [vmem:[#allocation2 + $0x10] sm:$0xff] %vm2950, %v2920
        %2954 = vst.msk [vmem:[#allocation2 + $0x18] sm:$0xff] %vm2950, %v2921
        %2955 = vst.msk [vmem:[#allocation2 + $0x20] sm:$0xff] %vm2950, %v2922
        %2956 = vst.msk [vmem:[#allocation2 + $0x28] sm:$0xff] %vm2950, %v2923
        %2957 = vst.msk [vmem:[#allocation2 + $0x30] sm:$0xff] %vm2950, %v2924
        %2958 = vst.msk [vmem:[#allocation2 + $0x38] sm:$0xff] %vm2950, %v2925
        %2959 = vst.msk [vmem:[#allocation2 + $0x40] sm:$0xff] %vm2950, %v2926
        %2960 = vst.msk [vmem:[#allocation2 + $0x48] sm:$0xff] %vm2950, %v2927
        %2961 = vst.msk [vmem:[#allocation2 + $0x50] sm:$0xff] %vm2950, %v2928
        %2962 = vst.msk [vmem:[#allocation2 + $0x58] sm:$0xff] %vm2950, %v2929
        %2963 = vst.msk [vmem:[#allocation2 + $0x60] sm:$0xff] %vm2950, %v2930
        %2964 = vst.msk [vmem:[#allocation2 + $0x68] sm:$0xff] %vm2950, %v2931
        %2965 = vst.msk [vmem:[#allocation2 + $0x70] sm:$0xff] %vm2950, %v2932
        %2966 = vst.msk [vmem:[#allocation2 + $0x78] sm:$0xff] %vm2950, %v2933
        %2967 = vst.msk [vmem:[#allocation2 + $0x80] sm:$0xff] %vm2950, %v2934
        %2968 = vst.msk [vmem:[#allocation2 + $0x88] sm:$0xff] %vm2950, %v2935
        %2969 = vst.msk [vmem:[#allocation2 + $0x90] sm:$0xff] %vm2950, %v2936
        %2970 = vst.msk [vmem:[#allocation2 + $0x98] sm:$0xff] %vm2950, %v2937
        %2971 = vst.msk [vmem:[#allocation2 + $0xa0] sm:$0xff] %vm2950, %v2938
        %2972 = vst.msk [vmem:[#allocation2 + $0xa8] sm:$0xff] %vm2950, %v2939
        %2973 = vst.msk [vmem:[#allocation2 + $0xb0] sm:$0xff] %vm2950, %v2940
        %2974 = vst.msk [vmem:[#allocation2 + $0xb8] sm:$0xff] %vm2950, %v2941
        %2975 = vst.msk [vmem:[#allocation2 + $0xc0] sm:$0xff] %vm2950, %v2942
        %2976 = vst.msk [vmem:[#allocation2 + $0xc8] sm:$0xff] %vm2950, %v2943
        %2977 = vst.msk [vmem:[#allocation2 + $0xd0] sm:$0xff] %vm2950, %v2944
        %2978 = vst.msk [vmem:[#allocation2 + $0xd8] sm:$0xff] %vm2950, %v2945
        %2979 = vst.msk [vmem:[#allocation2 + $0xe0] sm:$0xff] %vm2950, %v2946
        %2980 = vst.msk [vmem:[#allocation2 + $0xe8] sm:$0xff] %vm2950, %v2947
        %2981 = vst.msk [vmem:[#allocation2 + $0xf0] sm:$0xff] %vm2950, %v2948
        %2982 = vst.msk [vmem:[#allocation2 + $0xf8] sm:$0xff] %vm2950, %v2949
        %vm3015 = vcmask 1046528
        %v3016 = vrot.slane %v2918, 1
        %v3017 = vrot.slane %v2919, 1
        %v3018 = vsel %vm3015, %v3016, %v3017
        %v3019 = vrot.slane %v2920, 1
        %v3020 = vsel %vm3015, %v3017, %v3019
        %v3021 = vrot.slane %v2921, 1
        %v3022 = vsel %vm3015, %v3019, %v3021
        %v3023 = vrot.slane %v2922, 1
        %v3024 = vsel %vm3015, %v3021, %v3023
        %v3025 = vrot.slane %v2923, 1
        %v3026 = vsel %vm3015, %v3023, %v3025
        %v3027 = vrot.slane %v2924, 1
        %v3028 = vsel %vm3015, %v3025, %v3027
        %v3029 = vrot.slane %v2925, 1
        %v3030 = vsel %vm3015, %v3027, %v3029
        %v3031 = vrot.slane %v2926, 1
        %v3032 = vsel %vm3015, %v3029, %v3031
        %v3033 = vrot.slane %v2927, 1
        %v3034 = vsel %vm3015, %v3031, %v3033
        %v3035 = vrot.slane %v2928, 1
        %v3036 = vsel %vm3015, %v3033, %v3035
        %v3037 = vrot.slane %v2929, 1
        %v3038 = vsel %vm3015, %v3035, %v3037
        %v3039 = vrot.slane %v2930, 1
        %v3040 = vsel %vm3015, %v3037, %v3039
        %v3041 = vrot.slane %v2931, 1
        %v3042 = vsel %vm3015, %v3039, %v3041
        %v3043 = vrot.slane %v2932, 1
        %v3044 = vsel %vm3015, %v3041, %v3043
        %v3045 = vrot.slane %v2933, 1
        %v3046 = vsel %vm3015, %v3043, %v3045
        %v3047 = vrot.slane %v2934, 1
        %v3048 = vsel %vm3015, %v3045, %v3047
        %v3049 = vrot.slane %v2935, 1
        %v3050 = vsel %vm3015, %v3047, %v3049
        %v3051 = vrot.slane %v2936, 1
        %v3052 = vsel %vm3015, %v3049, %v3051
        %v3053 = vrot.slane %v2937, 1
        %v3054 = vsel %vm3015, %v3051, %v3053
        %v3055 = vrot.slane %v2938, 1
        %v3056 = vsel %vm3015, %v3053, %v3055
        %v3057 = vrot.slane %v2939, 1
        %v3058 = vsel %vm3015, %v3055, %v3057
        %v3059 = vrot.slane %v2940, 1
        %v3060 = vsel %vm3015, %v3057, %v3059
        %v3061 = vrot.slane %v2941, 1
        %v3062 = vsel %vm3015, %v3059, %v3061
        %v3063 = vrot.slane %v2942, 1
        %v3064 = vsel %vm3015, %v3061, %v3063
        %v3065 = vrot.slane %v2943, 1
        %v3066 = vsel %vm3015, %v3063, %v3065
        %v3067 = vrot.slane %v2944, 1
        %v3068 = vsel %vm3015, %v3065, %v3067
        %v3069 = vrot.slane %v2945, 1
        %v3070 = vsel %vm3015, %v3067, %v3069
        %v3071 = vrot.slane %v2946, 1
        %v3072 = vsel %vm3015, %v3069, %v3071
        %v3073 = vrot.slane %v2947, 1
        %v3074 = vsel %vm3015, %v3071, %v3073
        %v3075 = vrot.slane %v2948, 1
        %v3076 = vsel %vm3015, %v3073, %v3075
        %v3077 = vrot.slane %v2949, 1
        %v3078 = vsel %vm3015, %v3075, %v3077
        %v3111 = vmax.f32 %v2918, %v3018
        %v3112 = vmax.f32 %v2919, %v3020
        %v3113 = vmax.f32 %v2920, %v3022
        %v3114 = vmax.f32 %v2921, %v3024
        %v3115 = vmax.f32 %v2922, %v3026
        %v3116 = vmax.f32 %v2923, %v3028
        %v3117 = vmax.f32 %v2924, %v3030
        %v3118 = vmax.f32 %v2925, %v3032
        %v3119 = vmax.f32 %v2926, %v3034
        %v3120 = vmax.f32 %v2927, %v3036
        %v3121 = vmax.f32 %v2928, %v3038
        %v3122 = vmax.f32 %v2929, %v3040
        %v3123 = vmax.f32 %v2930, %v3042
        %v3124 = vmax.f32 %v2931, %v3044
        %v3125 = vmax.f32 %v2932, %v3046
        %v3126 = vmax.f32 %v2933, %v3048
        %v3127 = vmax.f32 %v2934, %v3050
        %v3128 = vmax.f32 %v2935, %v3052
        %v3129 = vmax.f32 %v2936, %v3054
        %v3130 = vmax.f32 %v2937, %v3056
        %v3131 = vmax.f32 %v2938, %v3058
        %v3132 = vmax.f32 %v2939, %v3060
        %v3133 = vmax.f32 %v2940, %v3062
        %v3134 = vmax.f32 %v2941, %v3064
        %v3135 = vmax.f32 %v2942, %v3066
        %v3136 = vmax.f32 %v2943, %v3068
        %v3137 = vmax.f32 %v2944, %v3070
        %v3138 = vmax.f32 %v2945, %v3072
        %v3139 = vmax.f32 %v2946, %v3074
        %v3140 = vmax.f32 %v2947, %v3076
        %v3141 = vmax.f32 %v2948, %v3078
        %v3142 = vmax.f32 %v2949, %v3077
        %3143 = vst.msk [vmem:[#allocation2] sm:$0xff] %vm2950, %v3111
        %3144 = vst.msk [vmem:[#allocation2 + $0x8] sm:$0xff] %vm2950, %v3112
        %3145 = vst.msk [vmem:[#allocation2 + $0x10] sm:$0xff] %vm2950, %v3113
        %3146 = vst.msk [vmem:[#allocation2 + $0x18] sm:$0xff] %vm2950, %v3114
        %3147 = vst.msk [vmem:[#allocation2 + $0x20] sm:$0xff] %vm2950, %v3115
        %3148 = vst.msk [vmem:[#allocation2 + $0x28] sm:$0xff] %vm2950, %v3116
        %3149 = vst.msk [vmem:[#allocation2 + $0x30] sm:$0xff] %vm2950, %v3117
        %3150 = vst.msk [vmem:[#allocation2 + $0x38] sm:$0xff] %vm2950, %v3118
        %3151 = vst.msk [vmem:[#allocation2 + $0x40] sm:$0xff] %vm2950, %v3119
        %3152 = vst.msk [vmem:[#allocation2 + $0x48] sm:$0xff] %vm2950, %v3120
        %3153 = vst.msk [vmem:[#allocation2 + $0x50] sm:$0xff] %vm2950, %v3121
        %3154 = vst.msk [vmem:[#allocation2 + $0x58] sm:$0xff] %vm2950, %v3122
        %3155 = vst.msk [vmem:[#allocation2 + $0x60] sm:$0xff] %vm2950, %v3123
        %3156 = vst.msk [vmem:[#allocation2 + $0x68] sm:$0xff] %vm2950, %v3124
        %3157 = vst.msk [vmem:[#allocation2 + $0x70] sm:$0xff] %vm2950, %v3125
        %3158 = vst.msk [vmem:[#allocation2 + $0x78] sm:$0xff] %vm2950, %v3126
        %3159 = vst.msk [vmem:[#allocation2 + $0x80] sm:$0xff] %vm2950, %v3127
        %3160 = vst.msk [vmem:[#allocation2 + $0x88] sm:$0xff] %vm2950, %v3128
        %3161 = vst.msk [vmem:[#allocation2 + $0x90] sm:$0xff] %vm2950, %v3129
        %3162 = vst.msk [vmem:[#allocation2 + $0x98] sm:$0xff] %vm2950, %v3130
        %3163 = vst.msk [vmem:[#allocation2 + $0xa0] sm:$0xff] %vm2950, %v3131
        %3164 = vst.msk [vmem:[#allocation2 + $0xa8] sm:$0xff] %vm2950, %v3132
        %3165 = vst.msk [vmem:[#allocation2 + $0xb0] sm:$0xff] %vm2950, %v3133
        %3166 = vst.msk [vmem:[#allocation2 + $0xb8] sm:$0xff] %vm2950, %v3134
        %3167 = vst.msk [vmem:[#allocation2 + $0xc0] sm:$0xff] %vm2950, %v3135
        %3168 = vst.msk [vmem:[#allocation2 + $0xc8] sm:$0xff] %vm2950, %v3136
        %3169 = vst.msk [vmem:[#allocation2 + $0xd0] sm:$0xff] %vm2950, %v3137
        %3170 = vst.msk [vmem:[#allocation2 + $0xd8] sm:$0xff] %vm2950, %v3138
        %3171 = vst.msk [vmem:[#allocation2 + $0xe0] sm:$0xff] %vm2950, %v3139
        %3172 = vst.msk [vmem:[#allocation2 + $0xe8] sm:$0xff] %vm2950, %v3140
        %3173 = vst.msk [vmem:[#allocation2 + $0xf0] sm:$0xff] %vm2950, %v3141
        %vm3174 = vcmask 686080
        %3175 = vst.msk [vmem:[#allocation2 + $0xf8] sm:$0x7f] %vm3174, %v3142
        %v3176 = vld [vmem:[#allocation2] sm:$0xff]
        %v3177 = vld [vmem:[#allocation2 + $0x8] sm:$0xff]
        %v3178 = vld [vmem:[#allocation2 + $0x10] sm:$0xff]
        %v3179 = vld [vmem:[#allocation2 + $0x18] sm:$0xff]
        %v3180 = vld [vmem:[#allocation2 + $0x20] sm:$0xff]
        %v3181 = vld [vmem:[#allocation2 + $0x28] sm:$0xff]
        %v3182 = vld [vmem:[#allocation2 + $0x30] sm:$0xff]
        %v3183 = vld [vmem:[#allocation2 + $0x38] sm:$0xff]
        %v3184 = vld [vmem:[#allocation2 + $0x40] sm:$0xff]
        %v3185 = vld [vmem:[#allocation2 + $0x48] sm:$0xff]
        %v3186 = vld [vmem:[#allocation2 + $0x50] sm:$0xff]
        %v3187 = vld [vmem:[#allocation2 + $0x58] sm:$0xff]
        %v3188 = vld [vmem:[#allocation2 + $0x60] sm:$0xff]
        %v3189 = vld [vmem:[#allocation2 + $0x68] sm:$0xff]
        %v3190 = vld [vmem:[#allocation2 + $0x70] sm:$0xff]
        %v3191 = vld [vmem:[#allocation2 + $0x78] sm:$0xff]
        %v3192 = vld [vmem:[#allocation2 + $0x80] sm:$0xff]
        %v3193 = vld [vmem:[#allocation2 + $0x88] sm:$0xff]
        %v3194 = vld [vmem:[#allocation2 + $0x90] sm:$0xff]
        %v3195 = vld [vmem:[#allocation2 + $0x98] sm:$0xff]
        %v3196 = vld [vmem:[#allocation2 + $0xa0] sm:$0xff]
        %v3197 = vld [vmem:[#allocation2 + $0xa8] sm:$0xff]
        %v3198 = vld [vmem:[#allocation2 + $0xb0] sm:$0xff]
        %v3199 = vld [vmem:[#allocation2 + $0xb8] sm:$0xff]
        %v3200 = vld [vmem:[#allocation2 + $0xc0] sm:$0xff]
        %v3201 = vld [vmem:[#allocation2 + $0xc8] sm:$0xff]
        %v3202 = vld [vmem:[#allocation2 + $0xd0] sm:$0xff]
        %v3203 = vld [vmem:[#allocation2 + $0xd8] sm:$0xff]
        %v3204 = vld [vmem:[#allocation2 + $0xe0] sm:$0xff]
        %v3205 = vld [vmem:[#allocation2 + $0xe8] sm:$0xff]
        %v3206 = vld [vmem:[#allocation2 + $0xf0] sm:$0xff]
        %v3207 = vld [vmem:[%s5] sm:$0xff]
        %v3208 = vld [vmem:[%s5 + $0x8] sm:$0xff]
        %v3209 = vld [vmem:[%s5 + $0x10] sm:$0xff]
        %v3210 = vld [vmem:[%s5 + $0x18] sm:$0xff]
        %v3211 = vld [vmem:[%s5 + $0x20] sm:$0xff]
        %v3212 = vld [vmem:[%s5 + $0x28] sm:$0xff]
        %v3213 = vld [vmem:[%s5 + $0x30] sm:$0xff]
        %v3214 = vld [vmem:[%s5 + $0x38] sm:$0xff]
        %v3215 = vld [vmem:[%s5 + $0x40] sm:$0xff]
        %v3216 = vld [vmem:[%s5 + $0x48] sm:$0xff]
        %v3217 = vld [vmem:[%s5 + $0x50] sm:$0xff]
        %v3218 = vld [vmem:[%s5 + $0x58] sm:$0xff]
        %v3219 = vld [vmem:[%s5 + $0x60] sm:$0xff]
        %v3220 = vld [vmem:[%s5 + $0x68] sm:$0xff]
        %v3221 = vld [vmem:[%s5 + $0x70] sm:$0xff]
        %v3222 = vld [vmem:[%s5 + $0x78] sm:$0xff]
        %v3223 = vld [vmem:[%s5 + $0x80] sm:$0xff]
        %v3224 = vld [vmem:[%s5 + $0x88] sm:$0xff]
        %v3225 = vld [vmem:[%s5 + $0x90] sm:$0xff]
        %v3226 = vld [vmem:[%s5 + $0x98] sm:$0xff]
        %v3227 = vld [vmem:[%s5 + $0xa0] sm:$0xf]
        %v3228 = vld [vmem:[%s5 + $0xa8] sm:$0xf]
        %v3229 = vld [vmem:[#allocation2 + $0x2] sm:$0xff]
        %v3230 = vld [vmem:[#allocation2 + $0xa] sm:$0xff]
        %v3231 = vld [vmem:[#allocation2 + $0x12] sm:$0xff]
        %v3232 = vld [vmem:[#allocation2 + $0x1a] sm:$0xff]
        %v3233 = vld [vmem:[#allocation2 + $0x22] sm:$0xff]
        %v3234 = vld [vmem:[#allocation2 + $0x2a] sm:$0xff]
        %v3235 = vld [vmem:[#allocation2 + $0x32] sm:$0xff]
        %v3236 = vld [vmem:[#allocation2 + $0x3a] sm:$0xff]
        %v3237 = vld [vmem:[#allocation2 + $0x42] sm:$0xff]
        %v3238 = vld [vmem:[#allocation2 + $0x4a] sm:$0xff]
        %v3239 = vld [vmem:[#allocation2 + $0x52] sm:$0xff]
        %v3240 = vld [vmem:[#allocation2 + $0x5a] sm:$0xff]
        %v3241 = vld [vmem:[#allocation2 + $0x62] sm:$0xff]
        %v3242 = vld [vmem:[#allocation2 + $0x6a] sm:$0xff]
        %v3243 = vld [vmem:[#allocation2 + $0x72] sm:$0xff]
        %v3244 = vld [vmem:[#allocation2 + $0x7a] sm:$0xff]
        %v3245 = vld [vmem:[#allocation2 + $0x82] sm:$0xff]
        %v3246 = vld [vmem:[#allocation2 + $0x8a] sm:$0xff]
        %v3247 = vld [vmem:[#allocation2 + $0x92] sm:$0xff]
        %v3248 = vld [vmem:[#allocation2 + $0x9a] sm:$0xff]
        %v3249 = vld [vmem:[#allocation2 + $0xa2] sm:$0xff]
        %v3250 = vld [vmem:[#allocation2 + $0xaa] sm:$0xff]
        %v3251 = vld [vmem:[#allocation2 + $0xb2] sm:$0xff]
        %v3252 = vld [vmem:[#allocation2 + $0xba] sm:$0xff]
        %v3253 = vld [vmem:[#allocation2 + $0xc2] sm:$0xff]
        %v3254 = vld [vmem:[#allocation2 + $0xca] sm:$0xff]
        %v3255 = vld [vmem:[#allocation2 + $0xd2] sm:$0xff]
        %v3256 = vld [vmem:[#allocation2 + $0xda] sm:$0xff]
        %v3257 = vld [vmem:[#allocation2 + $0xe2] sm:$0xff]
        %v3258 = vld [vmem:[#allocation2 + $0xea] sm:$0xff]
        %v3259 = vld [vmem:[#allocation2 + $0xf2] sm:$0xff]
        %s3260 = scalar_lea.vmem %s5, 176
        %v3261 = vld [vmem:[%s3260] sm:$0xff]
        %v3262 = vld [vmem:[%s3260 + $0x8] sm:$0xff]
        %v3263 = vld [vmem:[%s3260 + $0x10] sm:$0xff]
        %v3264 = vld [vmem:[%s3260 + $0x18] sm:$0xff]
        %v3265 = vld [vmem:[%s3260 + $0x20] sm:$0xff]
        %v3266 = vld [vmem:[%s3260 + $0x28] sm:$0xff]
        %v3267 = vld [vmem:[%s3260 + $0x30] sm:$0xff]
        %v3268 = vld [vmem:[%s3260 + $0x38] sm:$0xff]
        %v3269 = vld [vmem:[%s3260 + $0x40] sm:$0xff]
        %v3270 = vld [vmem:[%s3260 + $0x48] sm:$0xff]
        %v3271 = vld [vmem:[%s3260 + $0x50] sm:$0xff]
        %v3272 = vld [vmem:[%s3260 + $0x58] sm:$0xff]
        %v3273 = vld [vmem:[%s3260 + $0x60] sm:$0xff]
        %v3274 = vld [vmem:[%s3260 + $0x68] sm:$0xff]
        %v3275 = vld [vmem:[%s3260 + $0x70] sm:$0xff]
        %v3276 = vld [vmem:[%s3260 + $0x78] sm:$0xff]
        %v3277 = vld [vmem:[%s3260 + $0x80] sm:$0xff]
        %v3278 = vld [vmem:[%s3260 + $0x88] sm:$0xff]
        %v3279 = vld [vmem:[%s3260 + $0x90] sm:$0xff]
        %v3280 = vld [vmem:[%s3260 + $0x98] sm:$0xff]
        %v3281 = vld [vmem:[%s3260 + $0xa0] sm:$0xf]
        %v3282 = vld [vmem:[%s3260 + $0xa8] sm:$0xf]
        %v3284 = vsel %vm2950, %v3229, 0
        %v3287 = vsel %vm2950, %v3230, 0
        %v3290 = vsel %vm2950, %v3231, 0
        %v3293 = vsel %vm2950, %v3232, 0
        %v3296 = vsel %vm2950, %v3233, 0
        %v3299 = vsel %vm2950, %v3234, 0
        %v3302 = vsel %vm2950, %v3235, 0
        %v3305 = vsel %vm2950, %v3236, 0
        %v3308 = vsel %vm2950, %v3237, 0
        %v3311 = vsel %vm2950, %v3238, 0
        %v3314 = vsel %vm2950, %v3239, 0
        %v3317 = vsel %vm2950, %v3240, 0
        %v3320 = vsel %vm2950, %v3241, 0
        %v3323 = vsel %vm2950, %v3242, 0
        %v3326 = vsel %vm2950, %v3243, 0
        %v3329 = vsel %vm2950, %v3244, 0
        %v3332 = vsel %vm2950, %v3245, 0
        %v3335 = vsel %vm2950, %v3246, 0
        %v3338 = vsel %vm2950, %v3247, 0
        %v3341 = vsel %vm2950, %v3248, 0
        %v3344 = vsel %vm2950, %v3249, 0
        %v3347 = vsel %vm2950, %v3250, 0
        %v3350 = vsel %vm2950, %v3251, 0
        %v3353 = vsel %vm2950, %v3252, 0
        %v3356 = vsel %vm2950, %v3253, 0
        %v3359 = vsel %vm2950, %v3254, 0
        %v3362 = vsel %vm2950, %v3255, 0
        %v3365 = vsel %vm2950, %v3256, 0
        %v3368 = vsel %vm2950, %v3257, 0
        %v3371 = vsel %vm2950, %v3258, 0
        %v3374 = vsel %vm2950, %v3259, 0
        %vm3376 = vcmask 1043456
        %v3378 = vsel %vm3376, %v3281, 0
        %v3381 = vsel %vm3376, %v3282, 0
        %3383 = vmatpush.msra.mxu0 0.0
        %3384 = vmatpush.msra.mxu0 0.0
        %3385 = vmatpush.msra.mxu0 0.0
        %3386 = vmatpush.msra.mxu0 0.0
        %3387 = vmatpush.msra.mxu0 0.0
        %3388 = vmatpush.msra.mxu0 %v3378
        %3389 = vmatpush.msra.mxu0 %v3279
        %3390 = vmatpush.msra.mxu0 %v3277
        %3391 = vmatpush.msra.mxu0 %v3275
        %3392 = vmatpush.msra.mxu0 %v3273
        %3393 = vmatpush.msra.mxu0 %v3271
        %3394 = vmatpush.msra.mxu0 %v3269
        %3395 = vmatpush.msra.mxu0 %v3267
        %3396 = vmatpush.msra.mxu0 %v3265
        %3397 = vmatpush.msra.mxu0 %v3263
        %3398 = vmatpush.msra.mxu0 %v3261
        %3399 = vmatmul.f32.gmra.mxu0 %v3284
        %v3400 = vpop.f32.mrf.mxu0
        %v3401 = vadd.f32 0.0, %v3400
        %3402 = vmatmul.f32.gmra.mxu0 %v3287
        %v3403 = vpop.f32.mrf.mxu0
        %v3404 = vadd.f32 0.0, %v3403
        %3405 = vmatmul.f32.gmra.mxu0 %v3290
        %v3406 = vpop.f32.mrf.mxu0
        %v3407 = vadd.f32 0.0, %v3406
        %3408 = vmatmul.f32.gmra.mxu0 %v3293
        %v3409 = vpop.f32.mrf.mxu0
        %v3410 = vadd.f32 0.0, %v3409
        %3411 = vmatmul.f32.gmra.mxu0 %v3296
        %v3412 = vpop.f32.mrf.mxu0
        %v3413 = vadd.f32 0.0, %v3412
        %3414 = vmatmul.f32.gmra.mxu0 %v3299
        %v3415 = vpop.f32.mrf.mxu0
        %v3416 = vadd.f32 0.0, %v3415
        %3417 = vmatmul.f32.gmra.mxu0 %v3302
        %v3418 = vpop.f32.mrf.mxu0
        %v3419 = vadd.f32 0.0, %v3418
        %3420 = vmatmul.f32.gmra.mxu0 %v3305
        %v3421 = vpop.f32.mrf.mxu0
        %v3422 = vadd.f32 0.0, %v3421
        %3423 = vmatmul.f32.gmra.mxu0 %v3308
        %v3424 = vpop.f32.mrf.mxu0
        %v3425 = vadd.f32 0.0, %v3424
        %3426 = vmatmul.f32.gmra.mxu0 %v3311
        %v3427 = vpop.f32.mrf.mxu0
        %v3428 = vadd.f32 0.0, %v3427
        %3429 = vmatmul.f32.gmra.mxu0 %v3314
        %v3430 = vpop.f32.mrf.mxu0
        %v3431 = vadd.f32 0.0, %v3430
        %3432 = vmatmul.f32.gmra.mxu0 %v3317
        %v3433 = vpop.f32.mrf.mxu0
        %v3434 = vadd.f32 0.0, %v3433
        %3435 = vmatmul.f32.gmra.mxu0 %v3320
        %v3436 = vpop.f32.mrf.mxu0
        %v3437 = vadd.f32 0.0, %v3436
        %3438 = vmatmul.f32.gmra.mxu0 %v3323
        %v3439 = vpop.f32.mrf.mxu0
        %v3440 = vadd.f32 0.0, %v3439
        %3441 = vmatmul.f32.gmra.mxu0 %v3326
        %v3442 = vpop.f32.mrf.mxu0
        %v3443 = vadd.f32 0.0, %v3442
        %3444 = vmatmul.f32.gmra.mxu0 %v3329
        %v3445 = vpop.f32.mrf.mxu0
        %v3446 = vadd.f32 0.0, %v3445
        %3447 = vmatmul.f32.gmra.mxu0 %v3332
        %v3448 = vpop.f32.mrf.mxu0
        %v3449 = vadd.f32 0.0, %v3448
        %3450 = vmatmul.f32.gmra.mxu0 %v3335
        %v3451 = vpop.f32.mrf.mxu0
        %v3452 = vadd.f32 0.0, %v3451
        %3453 = vmatmul.f32.gmra.mxu0 %v3338
        %v3454 = vpop.f32.mrf.mxu0
        %v3455 = vadd.f32 0.0, %v3454
        %3456 = vmatmul.f32.gmra.mxu0 %v3341
        %v3457 = vpop.f32.mrf.mxu0
        %v3458 = vadd.f32 0.0, %v3457
        %3459 = vmatmul.f32.gmra.mxu0 %v3344
        %v3460 = vpop.f32.mrf.mxu0
        %v3461 = vadd.f32 0.0, %v3460
        %3462 = vmatmul.f32.gmra.mxu0 %v3347
        %v3463 = vpop.f32.mrf.mxu0
        %v3464 = vadd.f32 0.0, %v3463
        %3465 = vmatmul.f32.gmra.mxu0 %v3350
        %v3466 = vpop.f32.mrf.mxu0
        %v3467 = vadd.f32 0.0, %v3466
        %3468 = vmatmul.f32.gmra.mxu0 %v3353
        %v3469 = vpop.f32.mrf.mxu0
        %v3470 = vadd.f32 0.0, %v3469
        %3471 = vmatmul.f32.gmra.mxu0 %v3356
        %v3472 = vpop.f32.mrf.mxu0
        %v3473 = vadd.f32 0.0, %v3472
        %3474 = vmatmul.f32.gmra.mxu0 %v3359
        %v3475 = vpop.f32.mrf.mxu0
        %v3476 = vadd.f32 0.0, %v3475
        %3477 = vmatmul.f32.gmra.mxu0 %v3362
        %v3478 = vpop.f32.mrf.mxu0
        %v3479 = vadd.f32 0.0, %v3478
        %3480 = vmatmul.f32.gmra.mxu0 %v3365
        %v3481 = vpop.f32.mrf.mxu0
        %v3482 = vadd.f32 0.0, %v3481
        %3483 = vmatmul.f32.gmra.mxu0 %v3368
        %v3484 = vpop.f32.mrf.mxu0
        %v3485 = vadd.f32 0.0, %v3484
        %3486 = vmatmul.f32.gmra.mxu0 %v3371
        %v3487 = vpop.f32.mrf.mxu0
        %v3488 = vadd.f32 0.0, %v3487
        %3489 = vmatmul.f32.gmra.mxu0 %v3374
        %v3490 = vpop.f32.mrf.mxu0
        %v3491 = vadd.f32 0.0, %v3490
        %3492 = vdwg.mxu0
        %3493 = vmatpush.msra.mxu0 0.0
        %3494 = vmatpush.msra.mxu0 0.0
        %3495 = vmatpush.msra.mxu0 0.0
        %3496 = vmatpush.msra.mxu0 0.0
        %3497 = vmatpush.msra.mxu0 0.0
        %3498 = vmatpush.msra.mxu0 %v3381
        %3499 = vmatpush.msra.mxu0 %v3280
        %3500 = vmatpush.msra.mxu0 %v3278
        %3501 = vmatpush.msra.mxu0 %v3276
        %3502 = vmatpush.msra.mxu0 %v3274
        %3503 = vmatpush.msra.mxu0 %v3272
        %3504 = vmatpush.msra.mxu0 %v3270
        %3505 = vmatpush.msra.mxu0 %v3268
        %3506 = vmatpush.msra.mxu0 %v3266
        %3507 = vmatpush.msra.mxu0 %v3264
        %3508 = vmatpush.msra.mxu0 %v3262
        %3509 = vmatmul.f32.gmra.mxu0 %v3284
        %v3510 = vpop.f32.mrf.mxu0
        %v3511 = vadd.f32 0.0, %v3510
        %3512 = vmatmul.f32.gmra.mxu0 %v3287
        %v3513 = vpop.f32.mrf.mxu0
        %v3514 = vadd.f32 0.0, %v3513
        %3515 = vmatmul.f32.gmra.mxu0 %v3290
        %v3516 = vpop.f32.mrf.mxu0
        %v3517 = vadd.f32 0.0, %v3516
        %3518 = vmatmul.f32.gmra.mxu0 %v3293
        %v3519 = vpop.f32.mrf.mxu0
        %v3520 = vadd.f32 0.0, %v3519
        %3521 = vmatmul.f32.gmra.mxu0 %v3296
        %v3522 = vpop.f32.mrf.mxu0
        %v3523 = vadd.f32 0.0, %v3522
        %3524 = vmatmul.f32.gmra.mxu0 %v3299
        %v3525 = vpop.f32.mrf.mxu0
        %v3526 = vadd.f32 0.0, %v3525
        %3527 = vmatmul.f32.gmra.mxu0 %v3302
        %v3528 = vpop.f32.mrf.mxu0
        %v3529 = vadd.f32 0.0, %v3528
        %3530 = vmatmul.f32.gmra.mxu0 %v3305
        %v3531 = vpop.f32.mrf.mxu0
        %v3532 = vadd.f32 0.0, %v3531
        %3533 = vmatmul.f32.gmra.mxu0 %v3308
        %v3534 = vpop.f32.mrf.mxu0
        %v3535 = vadd.f32 0.0, %v3534
        %3536 = vmatmul.f32.gmra.mxu0 %v3311
        %v3537 = vpop.f32.mrf.mxu0
        %v3538 = vadd.f32 0.0, %v3537
        %3539 = vmatmul.f32.gmra.mxu0 %v3314
        %v3540 = vpop.f32.mrf.mxu0
        %v3541 = vadd.f32 0.0, %v3540
        %3542 = vmatmul.f32.gmra.mxu0 %v3317
        %v3543 = vpop.f32.mrf.mxu0
        %v3544 = vadd.f32 0.0, %v3543
        %3545 = vmatmul.f32.gmra.mxu0 %v3320
        %v3546 = vpop.f32.mrf.mxu0
        %v3547 = vadd.f32 0.0, %v3546
        %3548 = vmatmul.f32.gmra.mxu0 %v3323
        %v3549 = vpop.f32.mrf.mxu0
        %v3550 = vadd.f32 0.0, %v3549
        %3551 = vmatmul.f32.gmra.mxu0 %v3326
        %v3552 = vpop.f32.mrf.mxu0
        %v3553 = vadd.f32 0.0, %v3552
        %3554 = vmatmul.f32.gmra.mxu0 %v3329
        %v3555 = vpop.f32.mrf.mxu0
        %v3556 = vadd.f32 0.0, %v3555
        %3557 = vmatmul.f32.gmra.mxu0 %v3332
        %v3558 = vpop.f32.mrf.mxu0
        %v3559 = vadd.f32 0.0, %v3558
        %3560 = vmatmul.f32.gmra.mxu0 %v3335
        %v3561 = vpop.f32.mrf.mxu0
        %v3562 = vadd.f32 0.0, %v3561
        %3563 = vmatmul.f32.gmra.mxu0 %v3338
        %v3564 = vpop.f32.mrf.mxu0
        %v3565 = vadd.f32 0.0, %v3564
        %3566 = vmatmul.f32.gmra.mxu0 %v3341
        %v3567 = vpop.f32.mrf.mxu0
        %v3568 = vadd.f32 0.0, %v3567
        %3569 = vmatmul.f32.gmra.mxu0 %v3344
        %v3570 = vpop.f32.mrf.mxu0
        %v3571 = vadd.f32 0.0, %v3570
        %3572 = vmatmul.f32.gmra.mxu0 %v3347
        %v3573 = vpop.f32.mrf.mxu0
        %v3574 = vadd.f32 0.0, %v3573
        %3575 = vmatmul.f32.gmra.mxu0 %v3350
        %v3576 = vpop.f32.mrf.mxu0
        %v3577 = vadd.f32 0.0, %v3576
        %3578 = vmatmul.f32.gmra.mxu0 %v3353
        %v3579 = vpop.f32.mrf.mxu0
        %v3580 = vadd.f32 0.0, %v3579
        %3581 = vmatmul.f32.gmra.mxu0 %v3356
        %v3582 = vpop.f32.mrf.mxu0
        %v3583 = vadd.f32 0.0, %v3582
        %3584 = vmatmul.f32.gmra.mxu0 %v3359
        %v3585 = vpop.f32.mrf.mxu0
        %v3586 = vadd.f32 0.0, %v3585
        %3587 = vmatmul.f32.gmra.mxu0 %v3362
        %v3588 = vpop.f32.mrf.mxu0
        %v3589 = vadd.f32 0.0, %v3588
        %3590 = vmatmul.f32.gmra.mxu0 %v3365
        %v3591 = vpop.f32.mrf.mxu0
        %v3592 = vadd.f32 0.0, %v3591
        %3593 = vmatmul.f32.gmra.mxu0 %v3368
        %v3594 = vpop.f32.mrf.mxu0
        %v3595 = vadd.f32 0.0, %v3594
        %3596 = vmatmul.f32.gmra.mxu0 %v3371
        %v3597 = vpop.f32.mrf.mxu0
        %v3598 = vadd.f32 0.0, %v3597
        %3599 = vmatmul.f32.gmra.mxu0 %v3374
        %v3600 = vpop.f32.mrf.mxu0
        %v3601 = vadd.f32 0.0, %v3600
        %3602 = vdwg.mxu0
        %v3604 = vsel %vm2950, %v3176, 0
        %v3607 = vsel %vm2950, %v3177, 0
        %v3610 = vsel %vm2950, %v3178, 0
        %v3613 = vsel %vm2950, %v3179, 0
        %v3616 = vsel %vm2950, %v3180, 0
        %v3619 = vsel %vm2950, %v3181, 0
        %v3622 = vsel %vm2950, %v3182, 0
        %v3625 = vsel %vm2950, %v3183, 0
        %v3628 = vsel %vm2950, %v3184, 0
        %v3631 = vsel %vm2950, %v3185, 0
        %v3634 = vsel %vm2950, %v3186, 0
        %v3637 = vsel %vm2950, %v3187, 0
        %v3640 = vsel %vm2950, %v3188, 0
        %v3643 = vsel %vm2950, %v3189, 0
        %v3646 = vsel %vm2950, %v3190, 0
        %v3649 = vsel %vm2950, %v3191, 0
        %v3652 = vsel %vm2950, %v3192, 0
        %v3655 = vsel %vm2950, %v3193, 0
        %v3658 = vsel %vm2950, %v3194, 0
        %v3661 = vsel %vm2950, %v3195, 0
        %v3664 = vsel %vm2950, %v3196, 0
        %v3667 = vsel %vm2950, %v3197, 0
        %v3670 = vsel %vm2950, %v3198, 0
        %v3673 = vsel %vm2950, %v3199, 0
        %v3676 = vsel %vm2950, %v3200, 0
        %v3679 = vsel %vm2950, %v3201, 0
        %v3682 = vsel %vm2950, %v3202, 0
        %v3685 = vsel %vm2950, %v3203, 0
        %v3688 = vsel %vm2950, %v3204, 0
        %v3691 = vsel %vm2950, %v3205, 0
        %v3694 = vsel %vm2950, %v3206, 0
        %v3697 = vsel %vm3376, %v3227, 0
        %v3700 = vsel %vm3376, %v3228, 0
        %3702 = vmatpush.msra.mxu0 0.0
        %3703 = vmatpush.msra.mxu0 0.0
        %3704 = vmatpush.msra.mxu0 0.0
        %3705 = vmatpush.msra.mxu0 0.0
        %3706 = vmatpush.msra.mxu0 0.0
        %3707 = vmatpush.msra.mxu0 %v3697
        %3708 = vmatpush.msra.mxu0 %v3225
        %3709 = vmatpush.msra.mxu0 %v3223
        %3710 = vmatpush.msra.mxu0 %v3221
        %3711 = vmatpush.msra.mxu0 %v3219
        %3712 = vmatpush.msra.mxu0 %v3217
        %3713 = vmatpush.msra.mxu0 %v3215
        %3714 = vmatpush.msra.mxu0 %v3213
        %3715 = vmatpush.msra.mxu0 %v3211
        %3716 = vmatpush.msra.mxu0 %v3209
        %3717 = vmatpush.msra.mxu0 %v3207
        %3718 = vmatmul.f32.gmra.mxu0 %v3604
        %v3719 = vpop.f32.mrf.mxu0
        %v3720 = vadd.f32 %v3401, %v3719
        %3721 = vmatmul.f32.gmra.mxu0 %v3607
        %v3722 = vpop.f32.mrf.mxu0
        %v3723 = vadd.f32 %v3404, %v3722
        %3724 = vmatmul.f32.gmra.mxu0 %v3610
        %v3725 = vpop.f32.mrf.mxu0
        %v3726 = vadd.f32 %v3407, %v3725
        %3727 = vmatmul.f32.gmra.mxu0 %v3613
        %v3728 = vpop.f32.mrf.mxu0
        %v3729 = vadd.f32 %v3410, %v3728
        %3730 = vmatmul.f32.gmra.mxu0 %v3616
        %v3731 = vpop.f32.mrf.mxu0
        %v3732 = vadd.f32 %v3413, %v3731
        %3733 = vmatmul.f32.gmra.mxu0 %v3619
        %v3734 = vpop.f32.mrf.mxu0
        %v3735 = vadd.f32 %v3416, %v3734
        %3736 = vmatmul.f32.gmra.mxu0 %v3622
        %v3737 = vpop.f32.mrf.mxu0
        %v3738 = vadd.f32 %v3419, %v3737
        %3739 = vmatmul.f32.gmra.mxu0 %v3625
        %v3740 = vpop.f32.mrf.mxu0
        %v3741 = vadd.f32 %v3422, %v3740
        %3742 = vmatmul.f32.gmra.mxu0 %v3628
        %v3743 = vpop.f32.mrf.mxu0
        %v3744 = vadd.f32 %v3425, %v3743
        %3745 = vmatmul.f32.gmra.mxu0 %v3631
        %v3746 = vpop.f32.mrf.mxu0
        %v3747 = vadd.f32 %v3428, %v3746
        %3748 = vmatmul.f32.gmra.mxu0 %v3634
        %v3749 = vpop.f32.mrf.mxu0
        %v3750 = vadd.f32 %v3431, %v3749
        %3751 = vmatmul.f32.gmra.mxu0 %v3637
        %v3752 = vpop.f32.mrf.mxu0
        %v3753 = vadd.f32 %v3434, %v3752
        %3754 = vmatmul.f32.gmra.mxu0 %v3640
        %v3755 = vpop.f32.mrf.mxu0
        %v3756 = vadd.f32 %v3437, %v3755
        %3757 = vmatmul.f32.gmra.mxu0 %v3643
        %v3758 = vpop.f32.mrf.mxu0
        %v3759 = vadd.f32 %v3440, %v3758
        %3760 = vmatmul.f32.gmra.mxu0 %v3646
        %v3761 = vpop.f32.mrf.mxu0
        %v3762 = vadd.f32 %v3443, %v3761
        %3763 = vmatmul.f32.gmra.mxu0 %v3649
        %v3764 = vpop.f32.mrf.mxu0
        %v3765 = vadd.f32 %v3446, %v3764
        %3766 = vmatmul.f32.gmra.mxu0 %v3652
        %v3767 = vpop.f32.mrf.mxu0
        %v3768 = vadd.f32 %v3449, %v3767
        %3769 = vmatmul.f32.gmra.mxu0 %v3655
        %v3770 = vpop.f32.mrf.mxu0
        %v3771 = vadd.f32 %v3452, %v3770
        %3772 = vmatmul.f32.gmra.mxu0 %v3658
        %v3773 = vpop.f32.mrf.mxu0
        %v3774 = vadd.f32 %v3455, %v3773
        %3775 = vmatmul.f32.gmra.mxu0 %v3661
        %v3776 = vpop.f32.mrf.mxu0
        %v3777 = vadd.f32 %v3458, %v3776
        %3778 = vmatmul.f32.gmra.mxu0 %v3664
        %v3779 = vpop.f32.mrf.mxu0
        %v3780 = vadd.f32 %v3461, %v3779
        %3781 = vmatmul.f32.gmra.mxu0 %v3667
        %v3782 = vpop.f32.mrf.mxu0
        %v3783 = vadd.f32 %v3464, %v3782
        %3784 = vmatmul.f32.gmra.mxu0 %v3670
        %v3785 = vpop.f32.mrf.mxu0
        %v3786 = vadd.f32 %v3467, %v3785
        %3787 = vmatmul.f32.gmra.mxu0 %v3673
        %v3788 = vpop.f32.mrf.mxu0
        %v3789 = vadd.f32 %v3470, %v3788
        %3790 = vmatmul.f32.gmra.mxu0 %v3676
        %v3791 = vpop.f32.mrf.mxu0
        %v3792 = vadd.f32 %v3473, %v3791
        %3793 = vmatmul.f32.gmra.mxu0 %v3679
        %v3794 = vpop.f32.mrf.mxu0
        %v3795 = vadd.f32 %v3476, %v3794
        %3796 = vmatmul.f32.gmra.mxu0 %v3682
        %v3797 = vpop.f32.mrf.mxu0
        %v3798 = vadd.f32 %v3479, %v3797
        %3799 = vmatmul.f32.gmra.mxu0 %v3685
        %v3800 = vpop.f32.mrf.mxu0
        %v3801 = vadd.f32 %v3482, %v3800
        %3802 = vmatmul.f32.gmra.mxu0 %v3688
        %v3803 = vpop.f32.mrf.mxu0
        %v3804 = vadd.f32 %v3485, %v3803
        %3805 = vmatmul.f32.gmra.mxu0 %v3691
        %v3806 = vpop.f32.mrf.mxu0
        %v3807 = vadd.f32 %v3488, %v3806
        %3808 = vmatmul.f32.gmra.mxu0 %v3694
        %v3809 = vpop.f32.mrf.mxu0
        %v3810 = vadd.f32 %v3491, %v3809
        %3811 = vdwg.mxu0
        %3812 = vmatpush.msra.mxu0 0.0
        %3813 = vmatpush.msra.mxu0 0.0
        %3814 = vmatpush.msra.mxu0 0.0
        %3815 = vmatpush.msra.mxu0 0.0
        %3816 = vmatpush.msra.mxu0 0.0
        %3817 = vmatpush.msra.mxu0 %v3700
        %3818 = vmatpush.msra.mxu0 %v3226
        %3819 = vmatpush.msra.mxu0 %v3224
        %3820 = vmatpush.msra.mxu0 %v3222
        %3821 = vmatpush.msra.mxu0 %v3220
        %3822 = vmatpush.msra.mxu0 %v3218
        %3823 = vmatpush.msra.mxu0 %v3216
        %3824 = vmatpush.msra.mxu0 %v3214
        %3825 = vmatpush.msra.mxu0 %v3212
        %3826 = vmatpush.msra.mxu0 %v3210
        %3827 = vmatpush.msra.mxu0 %v3208
        %3828 = vmatmul.f32.gmra.mxu0 %v3604
        %v3829 = vpop.f32.mrf.mxu0
        %v3830 = vadd.f32 %v3511, %v3829
        %3831 = vmatmul.f32.gmra.mxu0 %v3607
        %v3832 = vpop.f32.mrf.mxu0
        %v3833 = vadd.f32 %v3514, %v3832
        %3834 = vmatmul.f32.gmra.mxu0 %v3610
        %v3835 = vpop.f32.mrf.mxu0
        %v3836 = vadd.f32 %v3517, %v3835
        %3837 = vmatmul.f32.gmra.mxu0 %v3613
        %v3838 = vpop.f32.mrf.mxu0
        %v3839 = vadd.f32 %v3520, %v3838
        %3840 = vmatmul.f32.gmra.mxu0 %v3616
        %v3841 = vpop.f32.mrf.mxu0
        %v3842 = vadd.f32 %v3523, %v3841
        %3843 = vmatmul.f32.gmra.mxu0 %v3619
        %v3844 = vpop.f32.mrf.mxu0
        %v3845 = vadd.f32 %v3526, %v3844
        %3846 = vmatmul.f32.gmra.mxu0 %v3622
        %v3847 = vpop.f32.mrf.mxu0
        %v3848 = vadd.f32 %v3529, %v3847
        %3849 = vmatmul.f32.gmra.mxu0 %v3625
        %v3850 = vpop.f32.mrf.mxu0
        %v3851 = vadd.f32 %v3532, %v3850
        %3852 = vmatmul.f32.gmra.mxu0 %v3628
        %v3853 = vpop.f32.mrf.mxu0
        %v3854 = vadd.f32 %v3535, %v3853
        %3855 = vmatmul.f32.gmra.mxu0 %v3631
        %v3856 = vpop.f32.mrf.mxu0
        %v3857 = vadd.f32 %v3538, %v3856
        %3858 = vmatmul.f32.gmra.mxu0 %v3634
        %v3859 = vpop.f32.mrf.mxu0
        %v3860 = vadd.f32 %v3541, %v3859
        %3861 = vmatmul.f32.gmra.mxu0 %v3637
        %v3862 = vpop.f32.mrf.mxu0
        %v3863 = vadd.f32 %v3544, %v3862
        %3864 = vmatmul.f32.gmra.mxu0 %v3640
        %v3865 = vpop.f32.mrf.mxu0
        %v3866 = vadd.f32 %v3547, %v3865
        %3867 = vmatmul.f32.gmra.mxu0 %v3643
        %v3868 = vpop.f32.mrf.mxu0
        %v3869 = vadd.f32 %v3550, %v3868
        %3870 = vmatmul.f32.gmra.mxu0 %v3646
        %v3871 = vpop.f32.mrf.mxu0
        %v3872 = vadd.f32 %v3553, %v3871
        %3873 = vmatmul.f32.gmra.mxu0 %v3649
        %v3874 = vpop.f32.mrf.mxu0
        %v3875 = vadd.f32 %v3556, %v3874
        %3876 = vmatmul.f32.gmra.mxu0 %v3652
        %v3877 = vpop.f32.mrf.mxu0
        %v3878 = vadd.f32 %v3559, %v3877
        %3879 = vmatmul.f32.gmra.mxu0 %v3655
        %v3880 = vpop.f32.mrf.mxu0
        %v3881 = vadd.f32 %v3562, %v3880
        %3882 = vmatmul.f32.gmra.mxu0 %v3658
        %v3883 = vpop.f32.mrf.mxu0
        %v3884 = vadd.f32 %v3565, %v3883
        %3885 = vmatmul.f32.gmra.mxu0 %v3661
        %v3886 = vpop.f32.mrf.mxu0
        %v3887 = vadd.f32 %v3568, %v3886
        %3888 = vmatmul.f32.gmra.mxu0 %v3664
        %v3889 = vpop.f32.mrf.mxu0
        %v3890 = vadd.f32 %v3571, %v3889
        %3891 = vmatmul.f32.gmra.mxu0 %v3667
        %v3892 = vpop.f32.mrf.mxu0
        %v3893 = vadd.f32 %v3574, %v3892
        %3894 = vmatmul.f32.gmra.mxu0 %v3670
        %v3895 = vpop.f32.mrf.mxu0
        %v3896 = vadd.f32 %v3577, %v3895
        %3897 = vmatmul.f32.gmra.mxu0 %v3673
        %v3898 = vpop.f32.mrf.mxu0
        %v3899 = vadd.f32 %v3580, %v3898
        %3900 = vmatmul.f32.gmra.mxu0 %v3676
        %v3901 = vpop.f32.mrf.mxu0
        %v3902 = vadd.f32 %v3583, %v3901
        %3903 = vmatmul.f32.gmra.mxu0 %v3679
        %v3904 = vpop.f32.mrf.mxu0
        %v3905 = vadd.f32 %v3586, %v3904
        %3906 = vmatmul.f32.gmra.mxu0 %v3682
        %v3907 = vpop.f32.mrf.mxu0
        %v3908 = vadd.f32 %v3589, %v3907
        %3909 = vmatmul.f32.gmra.mxu0 %v3685
        %v3910 = vpop.f32.mrf.mxu0
        %v3911 = vadd.f32 %v3592, %v3910
        %3912 = vmatmul.f32.gmra.mxu0 %v3688
        %v3913 = vpop.f32.mrf.mxu0
        %v3914 = vadd.f32 %v3595, %v3913
        %3915 = vmatmul.f32.gmra.mxu0 %v3691
        %v3916 = vpop.f32.mrf.mxu0
        %v3917 = vadd.f32 %v3598, %v3916
        %3918 = vmatmul.f32.gmra.mxu0 %v3694
        %v3919 = vpop.f32.mrf.mxu0
        %v3920 = vadd.f32 %v3601, %v3919
        %3921 = vdwg.mxu0
        %v3922 = vld [vmem:[#allocation2 + $0x4] sm:$0xff]
        %v3923 = vld [vmem:[#allocation2 + $0xc] sm:$0xff]
        %v3924 = vld [vmem:[#allocation2 + $0x14] sm:$0xff]
        %v3925 = vld [vmem:[#allocation2 + $0x1c] sm:$0xff]
        %v3926 = vld [vmem:[#allocation2 + $0x24] sm:$0xff]
        %v3927 = vld [vmem:[#allocation2 + $0x2c] sm:$0xff]
        %v3928 = vld [vmem:[#allocation2 + $0x34] sm:$0xff]
        %v3929 = vld [vmem:[#allocation2 + $0x3c] sm:$0xff]
        %v3930 = vld [vmem:[#allocation2 + $0x44] sm:$0xff]
        %v3931 = vld [vmem:[#allocation2 + $0x4c] sm:$0xff]
        %v3932 = vld [vmem:[#allocation2 + $0x54] sm:$0xff]
        %v3933 = vld [vmem:[#allocation2 + $0x5c] sm:$0xff]
        %v3934 = vld [vmem:[#allocation2 + $0x64] sm:$0xff]
        %v3935 = vld [vmem:[#allocation2 + $0x6c] sm:$0xff]
        %v3936 = vld [vmem:[#allocation2 + $0x74] sm:$0xff]
        %v3937 = vld [vmem:[#allocation2 + $0x7c] sm:$0xff]
        %v3938 = vld [vmem:[#allocation2 + $0x84] sm:$0xff]
        %v3939 = vld [vmem:[#allocation2 + $0x8c] sm:$0xff]
        %v3940 = vld [vmem:[#allocation2 + $0x94] sm:$0xff]
        %v3941 = vld [vmem:[#allocation2 + $0x9c] sm:$0xff]
        %v3942 = vld [vmem:[#allocation2 + $0xa4] sm:$0xff]
        %v3943 = vld [vmem:[#allocation2 + $0xac] sm:$0xff]
        %v3944 = vld [vmem:[#allocation2 + $0xb4] sm:$0xff]
        %v3945 = vld [vmem:[#allocation2 + $0xbc] sm:$0xff]
        %v3946 = vld [vmem:[#allocation2 + $0xc4] sm:$0xff]
        %v3947 = vld [vmem:[#allocation2 + $0xcc] sm:$0xff]
        %v3948 = vld [vmem:[#allocation2 + $0xd4] sm:$0xff]
        %v3949 = vld [vmem:[#allocation2 + $0xdc] sm:$0xff]
        %v3950 = vld [vmem:[#allocation2 + $0xe4] sm:$0xff]
        %v3951 = vld [vmem:[#allocation2 + $0xec] sm:$0xff]
        %v3952 = vld [vmem:[#allocation2 + $0xf4] sm:$0xff]
        %s3953 = scalar_lea.vmem %s5, 352
        %v3954 = vld [vmem:[%s3953] sm:$0xff]
        %v3955 = vld [vmem:[%s3953 + $0x8] sm:$0xff]
        %v3956 = vld [vmem:[%s3953 + $0x10] sm:$0xff]
        %v3957 = vld [vmem:[%s3953 + $0x18] sm:$0xff]
        %v3958 = vld [vmem:[%s3953 + $0x20] sm:$0xff]
        %v3959 = vld [vmem:[%s3953 + $0x28] sm:$0xff]
        %v3960 = vld [vmem:[%s3953 + $0x30] sm:$0xff]
        %v3961 = vld [vmem:[%s3953 + $0x38] sm:$0xff]
        %v3962 = vld [vmem:[%s3953 + $0x40] sm:$0xff]
        %v3963 = vld [vmem:[%s3953 + $0x48] sm:$0xff]
        %v3964 = vld [vmem:[%s3953 + $0x50] sm:$0xff]
        %v3965 = vld [vmem:[%s3953 + $0x58] sm:$0xff]
        %v3966 = vld [vmem:[%s3953 + $0x60] sm:$0xff]
        %v3967 = vld [vmem:[%s3953 + $0x68] sm:$0xff]
        %v3968 = vld [vmem:[%s3953 + $0x70] sm:$0xff]
        %v3969 = vld [vmem:[%s3953 + $0x78] sm:$0xff]
        %v3970 = vld [vmem:[%s3953 + $0x80] sm:$0xff]
        %v3971 = vld [vmem:[%s3953 + $0x88] sm:$0xff]
        %v3972 = vld [vmem:[%s3953 + $0x90] sm:$0xff]
        %v3973 = vld [vmem:[%s3953 + $0x98] sm:$0xff]
        %v3974 = vld [vmem:[%s3953 + $0xa0] sm:$0xf]
        %v3975 = vld [vmem:[%s3953 + $0xa8] sm:$0xf]
        %v3977 = vsel %vm2950, %v3922, 0
        %v3980 = vsel %vm2950, %v3923, 0
        %v3983 = vsel %vm2950, %v3924, 0
        %v3986 = vsel %vm2950, %v3925, 0
        %v3989 = vsel %vm2950, %v3926, 0
        %v3992 = vsel %vm2950, %v3927, 0
        %v3995 = vsel %vm2950, %v3928, 0
        %v3998 = vsel %vm2950, %v3929, 0
        %v4001 = vsel %vm2950, %v3930, 0
        %v4004 = vsel %vm2950, %v3931, 0
        %v4007 = vsel %vm2950, %v3932, 0
        %v4010 = vsel %vm2950, %v3933, 0
        %v4013 = vsel %vm2950, %v3934, 0
        %v4016 = vsel %vm2950, %v3935, 0
        %v4019 = vsel %vm2950, %v3936, 0
        %v4022 = vsel %vm2950, %v3937, 0
        %v4025 = vsel %vm2950, %v3938, 0
        %v4028 = vsel %vm2950, %v3939, 0
        %v4031 = vsel %vm2950, %v3940, 0
        %v4034 = vsel %vm2950, %v3941, 0
        %v4037 = vsel %vm2950, %v3942, 0
        %v4040 = vsel %vm2950, %v3943, 0
        %v4043 = vsel %vm2950, %v3944, 0
        %v4046 = vsel %vm2950, %v3945, 0
        %v4049 = vsel %vm2950, %v3946, 0
        %v4052 = vsel %vm2950, %v3947, 0
        %v4055 = vsel %vm2950, %v3948, 0
        %v4058 = vsel %vm2950, %v3949, 0
        %v4061 = vsel %vm2950, %v3950, 0
        %v4064 = vsel %vm2950, %v3951, 0
        %v4067 = vsel %vm2950, %v3952, 0
        %v4070 = vsel %vm3376, %v3974, 0
        %v4073 = vsel %vm3376, %v3975, 0
        %4075 = vmatpush.msra.mxu0 0.0
        %4076 = vmatpush.msra.mxu0 0.0
        %4077 = vmatpush.msra.mxu0 0.0
        %4078 = vmatpush.msra.mxu0 0.0
        %4079 = vmatpush.msra.mxu0 0.0
        %4080 = vmatpush.msra.mxu0 %v4070
        %4081 = vmatpush.msra.mxu0 %v3972
        %4082 = vmatpush.msra.mxu0 %v3970
        %4083 = vmatpush.msra.mxu0 %v3968
        %4084 = vmatpush.msra.mxu0 %v3966
        %4085 = vmatpush.msra.mxu0 %v3964
        %4086 = vmatpush.msra.mxu0 %v3962
        %4087 = vmatpush.msra.mxu0 %v3960
        %4088 = vmatpush.msra.mxu0 %v3958
        %4089 = vmatpush.msra.mxu0 %v3956
        %4090 = vmatpush.msra.mxu0 %v3954
        %4091 = vmatmul.f32.gmra.mxu0 %v3977
        %v4092 = vpop.f32.mrf.mxu0
        %v4093 = vadd.f32 0.0, %v4092
        %4094 = vmatmul.f32.gmra.mxu0 %v3980
        %v4095 = vpop.f32.mrf.mxu0
        %v4096 = vadd.f32 0.0, %v4095
        %4097 = vmatmul.f32.gmra.mxu0 %v3983
        %v4098 = vpop.f32.mrf.mxu0
        %v4099 = vadd.f32 0.0, %v4098
        %4100 = vmatmul.f32.gmra.mxu0 %v3986
        %v4101 = vpop.f32.mrf.mxu0
        %v4102 = vadd.f32 0.0, %v4101
        %4103 = vmatmul.f32.gmra.mxu0 %v3989
        %v4104 = vpop.f32.mrf.mxu0
        %v4105 = vadd.f32 0.0, %v4104
        %4106 = vmatmul.f32.gmra.mxu0 %v3992
        %v4107 = vpop.f32.mrf.mxu0
        %v4108 = vadd.f32 0.0, %v4107
        %4109 = vmatmul.f32.gmra.mxu0 %v3995
        %v4110 = vpop.f32.mrf.mxu0
        %v4111 = vadd.f32 0.0, %v4110
        %4112 = vmatmul.f32.gmra.mxu0 %v3998
        %v4113 = vpop.f32.mrf.mxu0
        %v4114 = vadd.f32 0.0, %v4113
        %4115 = vmatmul.f32.gmra.mxu0 %v4001
        %v4116 = vpop.f32.mrf.mxu0
        %v4117 = vadd.f32 0.0, %v4116
        %4118 = vmatmul.f32.gmra.mxu0 %v4004
        %v4119 = vpop.f32.mrf.mxu0
        %v4120 = vadd.f32 0.0, %v4119
        %4121 = vmatmul.f32.gmra.mxu0 %v4007
        %v4122 = vpop.f32.mrf.mxu0
        %v4123 = vadd.f32 0.0, %v4122
        %4124 = vmatmul.f32.gmra.mxu0 %v4010
        %v4125 = vpop.f32.mrf.mxu0
        %v4126 = vadd.f32 0.0, %v4125
        %4127 = vmatmul.f32.gmra.mxu0 %v4013
        %v4128 = vpop.f32.mrf.mxu0
        %v4129 = vadd.f32 0.0, %v4128
        %4130 = vmatmul.f32.gmra.mxu0 %v4016
        %v4131 = vpop.f32.mrf.mxu0
        %v4132 = vadd.f32 0.0, %v4131
        %4133 = vmatmul.f32.gmra.mxu0 %v4019
        %v4134 = vpop.f32.mrf.mxu0
        %v4135 = vadd.f32 0.0, %v4134
        %4136 = vmatmul.f32.gmra.mxu0 %v4022
        %v4137 = vpop.f32.mrf.mxu0
        %v4138 = vadd.f32 0.0, %v4137
        %4139 = vmatmul.f32.gmra.mxu0 %v4025
        %v4140 = vpop.f32.mrf.mxu0
        %v4141 = vadd.f32 0.0, %v4140
        %4142 = vmatmul.f32.gmra.mxu0 %v4028
        %v4143 = vpop.f32.mrf.mxu0
        %v4144 = vadd.f32 0.0, %v4143
        %4145 = vmatmul.f32.gmra.mxu0 %v4031
        %v4146 = vpop.f32.mrf.mxu0
        %v4147 = vadd.f32 0.0, %v4146
        %4148 = vmatmul.f32.gmra.mxu0 %v4034
        %v4149 = vpop.f32.mrf.mxu0
        %v4150 = vadd.f32 0.0, %v4149
        %4151 = vmatmul.f32.gmra.mxu0 %v4037
        %v4152 = vpop.f32.mrf.mxu0
        %v4153 = vadd.f32 0.0, %v4152
        %4154 = vmatmul.f32.gmra.mxu0 %v4040
        %v4155 = vpop.f32.mrf.mxu0
        %v4156 = vadd.f32 0.0, %v4155
        %4157 = vmatmul.f32.gmra.mxu0 %v4043
        %v4158 = vpop.f32.mrf.mxu0
        %v4159 = vadd.f32 0.0, %v4158
        %4160 = vmatmul.f32.gmra.mxu0 %v4046
        %v4161 = vpop.f32.mrf.mxu0
        %v4162 = vadd.f32 0.0, %v4161
        %4163 = vmatmul.f32.gmra.mxu0 %v4049
        %v4164 = vpop.f32.mrf.mxu0
        %v4165 = vadd.f32 0.0, %v4164
        %4166 = vmatmul.f32.gmra.mxu0 %v4052
        %v4167 = vpop.f32.mrf.mxu0
        %v4168 = vadd.f32 0.0, %v4167
        %4169 = vmatmul.f32.gmra.mxu0 %v4055
        %v4170 = vpop.f32.mrf.mxu0
        %v4171 = vadd.f32 0.0, %v4170
        %4172 = vmatmul.f32.gmra.mxu0 %v4058
        %v4173 = vpop.f32.mrf.mxu0
        %v4174 = vadd.f32 0.0, %v4173
        %4175 = vmatmul.f32.gmra.mxu0 %v4061
        %v4176 = vpop.f32.mrf.mxu0
        %v4177 = vadd.f32 0.0, %v4176
        %4178 = vmatmul.f32.gmra.mxu0 %v4064
        %v4179 = vpop.f32.mrf.mxu0
        %v4180 = vadd.f32 0.0, %v4179
        %4181 = vmatmul.f32.gmra.mxu0 %v4067
        %v4182 = vpop.f32.mrf.mxu0
        %v4183 = vadd.f32 0.0, %v4182
        %4184 = vdwg.mxu0
        %4185 = vmatpush.msra.mxu0 0.0
        %4186 = vmatpush.msra.mxu0 0.0
        %4187 = vmatpush.msra.mxu0 0.0
        %4188 = vmatpush.msra.mxu0 0.0
        %4189 = vmatpush.msra.mxu0 0.0
        %4190 = vmatpush.msra.mxu0 %v4073
        %4191 = vmatpush.msra.mxu0 %v3973
        %4192 = vmatpush.msra.mxu0 %v3971
        %4193 = vmatpush.msra.mxu0 %v3969
        %4194 = vmatpush.msra.mxu0 %v3967
        %4195 = vmatpush.msra.mxu0 %v3965
        %4196 = vmatpush.msra.mxu0 %v3963
        %4197 = vmatpush.msra.mxu0 %v3961
        %4198 = vmatpush.msra.mxu0 %v3959
        %4199 = vmatpush.msra.mxu0 %v3957
        %4200 = vmatpush.msra.mxu0 %v3955
        %4201 = vmatmul.f32.gmra.mxu0 %v3977
        %v4202 = vpop.f32.mrf.mxu0
        %v4203 = vadd.f32 0.0, %v4202
        %4204 = vmatmul.f32.gmra.mxu0 %v3980
        %v4205 = vpop.f32.mrf.mxu0
        %v4206 = vadd.f32 0.0, %v4205
        %4207 = vmatmul.f32.gmra.mxu0 %v3983
        %v4208 = vpop.f32.mrf.mxu0
        %v4209 = vadd.f32 0.0, %v4208
        %4210 = vmatmul.f32.gmra.mxu0 %v3986
        %v4211 = vpop.f32.mrf.mxu0
        %v4212 = vadd.f32 0.0, %v4211
        %4213 = vmatmul.f32.gmra.mxu0 %v3989
        %v4214 = vpop.f32.mrf.mxu0
        %v4215 = vadd.f32 0.0, %v4214
        %4216 = vmatmul.f32.gmra.mxu0 %v3992
        %v4217 = vpop.f32.mrf.mxu0
        %v4218 = vadd.f32 0.0, %v4217
        %4219 = vmatmul.f32.gmra.mxu0 %v3995
        %v4220 = vpop.f32.mrf.mxu0
        %v4221 = vadd.f32 0.0, %v4220
        %4222 = vmatmul.f32.gmra.mxu0 %v3998
        %v4223 = vpop.f32.mrf.mxu0
        %v4224 = vadd.f32 0.0, %v4223
        %4225 = vmatmul.f32.gmra.mxu0 %v4001
        %v4226 = vpop.f32.mrf.mxu0
        %v4227 = vadd.f32 0.0, %v4226
        %4228 = vmatmul.f32.gmra.mxu0 %v4004
        %v4229 = vpop.f32.mrf.mxu0
        %v4230 = vadd.f32 0.0, %v4229
        %4231 = vmatmul.f32.gmra.mxu0 %v4007
        %v4232 = vpop.f32.mrf.mxu0
        %v4233 = vadd.f32 0.0, %v4232
        %4234 = vmatmul.f32.gmra.mxu0 %v4010
        %v4235 = vpop.f32.mrf.mxu0
        %v4236 = vadd.f32 0.0, %v4235
        %4237 = vmatmul.f32.gmra.mxu0 %v4013
        %v4238 = vpop.f32.mrf.mxu0
        %v4239 = vadd.f32 0.0, %v4238
        %4240 = vmatmul.f32.gmra.mxu0 %v4016
        %v4241 = vpop.f32.mrf.mxu0
        %v4242 = vadd.f32 0.0, %v4241
        %4243 = vmatmul.f32.gmra.mxu0 %v4019
        %v4244 = vpop.f32.mrf.mxu0
        %v4245 = vadd.f32 0.0, %v4244
        %4246 = vmatmul.f32.gmra.mxu0 %v4022
        %v4247 = vpop.f32.mrf.mxu0
        %v4248 = vadd.f32 0.0, %v4247
        %4249 = vmatmul.f32.gmra.mxu0 %v4025
        %v4250 = vpop.f32.mrf.mxu0
        %v4251 = vadd.f32 0.0, %v4250
        %4252 = vmatmul.f32.gmra.mxu0 %v4028
        %v4253 = vpop.f32.mrf.mxu0
        %v4254 = vadd.f32 0.0, %v4253
        %4255 = vmatmul.f32.gmra.mxu0 %v4031
        %v4256 = vpop.f32.mrf.mxu0
        %v4257 = vadd.f32 0.0, %v4256
        %4258 = vmatmul.f32.gmra.mxu0 %v4034
        %v4259 = vpop.f32.mrf.mxu0
        %v4260 = vadd.f32 0.0, %v4259
        %4261 = vmatmul.f32.gmra.mxu0 %v4037
        %v4262 = vpop.f32.mrf.mxu0
        %v4263 = vadd.f32 0.0, %v4262
        %4264 = vmatmul.f32.gmra.mxu0 %v4040
        %v4265 = vpop.f32.mrf.mxu0
        %v4266 = vadd.f32 0.0, %v4265
        %4267 = vmatmul.f32.gmra.mxu0 %v4043
        %v4268 = vpop.f32.mrf.mxu0
        %v4269 = vadd.f32 0.0, %v4268
        %4270 = vmatmul.f32.gmra.mxu0 %v4046
        %v4271 = vpop.f32.mrf.mxu0
        %v4272 = vadd.f32 0.0, %v4271
        %4273 = vmatmul.f32.gmra.mxu0 %v4049
        %v4274 = vpop.f32.mrf.mxu0
        %v4275 = vadd.f32 0.0, %v4274
        %4276 = vmatmul.f32.gmra.mxu0 %v4052
        %v4277 = vpop.f32.mrf.mxu0
        %v4278 = vadd.f32 0.0, %v4277
        %4279 = vmatmul.f32.gmra.mxu0 %v4055
        %v4280 = vpop.f32.mrf.mxu0
        %v4281 = vadd.f32 0.0, %v4280
        %4282 = vmatmul.f32.gmra.mxu0 %v4058
        %v4283 = vpop.f32.mrf.mxu0
        %v4284 = vadd.f32 0.0, %v4283
        %4285 = vmatmul.f32.gmra.mxu0 %v4061
        %v4286 = vpop.f32.mrf.mxu0
        %v4287 = vadd.f32 0.0, %v4286
        %4288 = vmatmul.f32.gmra.mxu0 %v4064
        %v4289 = vpop.f32.mrf.mxu0
        %v4290 = vadd.f32 0.0, %v4289
        %4291 = vmatmul.f32.gmra.mxu0 %v4067
        %v4292 = vpop.f32.mrf.mxu0
        %v4293 = vadd.f32 0.0, %v4292
        %4294 = vdwg.mxu0
        %v4295 = vadd.f32 %v3720, %v4093
        %v4296 = vadd.f32 %v3830, %v4203
        %v4297 = vadd.f32 %v3723, %v4096
        %v4298 = vadd.f32 %v3833, %v4206
        %v4299 = vadd.f32 %v3726, %v4099
        %v4300 = vadd.f32 %v3836, %v4209
        %v4301 = vadd.f32 %v3729, %v4102
        %v4302 = vadd.f32 %v3839, %v4212
        %v4303 = vadd.f32 %v3732, %v4105
        %v4304 = vadd.f32 %v3842, %v4215
        %v4305 = vadd.f32 %v3735, %v4108
        %v4306 = vadd.f32 %v3845, %v4218
        %v4307 = vadd.f32 %v3738, %v4111
        %v4308 = vadd.f32 %v3848, %v4221
        %v4309 = vadd.f32 %v3741, %v4114
        %v4310 = vadd.f32 %v3851, %v4224
        %v4311 = vadd.f32 %v3744, %v4117
        %v4312 = vadd.f32 %v3854, %v4227
        %v4313 = vadd.f32 %v3747, %v4120
        %v4314 = vadd.f32 %v3857, %v4230
        %v4315 = vadd.f32 %v3750, %v4123
        %v4316 = vadd.f32 %v3860, %v4233
        %v4317 = vadd.f32 %v3753, %v4126
        %v4318 = vadd.f32 %v3863, %v4236
        %v4319 = vadd.f32 %v3756, %v4129
        %v4320 = vadd.f32 %v3866, %v4239
        %v4321 = vadd.f32 %v3759, %v4132
        %v4322 = vadd.f32 %v3869, %v4242
        %v4323 = vadd.f32 %v3762, %v4135
        %v4324 = vadd.f32 %v3872, %v4245
        %v4325 = vadd.f32 %v3765, %v4138
        %v4326 = vadd.f32 %v3875, %v4248
        %v4327 = vadd.f32 %v3768, %v4141
        %v4328 = vadd.f32 %v3878, %v4251
        %v4329 = vadd.f32 %v3771, %v4144
        %v4330 = vadd.f32 %v3881, %v4254
        %v4331 = vadd.f32 %v3774, %v4147
        %v4332 = vadd.f32 %v3884, %v4257
        %v4333 = vadd.f32 %v3777, %v4150
        %v4334 = vadd.f32 %v3887, %v4260
        %v4335 = vadd.f32 %v3780, %v4153
        %v4336 = vadd.f32 %v3890, %v4263
        %v4337 = vadd.f32 %v3783, %v4156
        %v4338 = vadd.f32 %v3893, %v4266
        %v4339 = vadd.f32 %v3786, %v4159
        %v4340 = vadd.f32 %v3896, %v4269
        %v4341 = vadd.f32 %v3789, %v4162
        %v4342 = vadd.f32 %v3899, %v4272
        %v4343 = vadd.f32 %v3792, %v4165
        %v4344 = vadd.f32 %v3902, %v4275
        %v4345 = vadd.f32 %v3795, %v4168
        %v4346 = vadd.f32 %v3905, %v4278
        %v4347 = vadd.f32 %v3798, %v4171
        %v4348 = vadd.f32 %v3908, %v4281
        %v4349 = vadd.f32 %v3801, %v4174
        %v4350 = vadd.f32 %v3911, %v4284
        %v4351 = vadd.f32 %v3804, %v4177
        %v4352 = vadd.f32 %v3914, %v4287
        %v4353 = vadd.f32 %v3807, %v4180
        %v4354 = vadd.f32 %v3917, %v4290
        %v4355 = vadd.f32 %v3810, %v4183
        %v4356 = vadd.f32 %v3920, %v4293
        %v4357 = vld [vmem:[#allocation2 + $0x6] sm:$0xff]
        %v4358 = vld [vmem:[#allocation2 + $0xe] sm:$0xff]
        %v4359 = vld [vmem:[#allocation2 + $0x16] sm:$0xff]
        %v4360 = vld [vmem:[#allocation2 + $0x1e] sm:$0xff]
        %v4361 = vld [vmem:[#allocation2 + $0x26] sm:$0xff]
        %v4362 = vld [vmem:[#allocation2 + $0x2e] sm:$0xff]
        %v4363 = vld [vmem:[#allocation2 + $0x36] sm:$0xff]
        %v4364 = vld [vmem:[#allocation2 + $0x3e] sm:$0xff]
        %v4365 = vld [vmem:[#allocation2 + $0x46] sm:$0xff]
        %v4366 = vld [vmem:[#allocation2 + $0x4e] sm:$0xff]
        %v4367 = vld [vmem:[#allocation2 + $0x56] sm:$0xff]
        %v4368 = vld [vmem:[#allocation2 + $0x5e] sm:$0xff]
        %v4369 = vld [vmem:[#allocation2 + $0x66] sm:$0xff]
        %v4370 = vld [vmem:[#allocation2 + $0x6e] sm:$0xff]
        %v4371 = vld [vmem:[#allocation2 + $0x76] sm:$0xff]
        %v4372 = vld [vmem:[#allocation2 + $0x7e] sm:$0xff]
        %v4373 = vld [vmem:[#allocation2 + $0x86] sm:$0xff]
        %v4374 = vld [vmem:[#allocation2 + $0x8e] sm:$0xff]
        %v4375 = vld [vmem:[#allocation2 + $0x96] sm:$0xff]
        %v4376 = vld [vmem:[#allocation2 + $0x9e] sm:$0xff]
        %v4377 = vld [vmem:[#allocation2 + $0xa6] sm:$0xff]
        %v4378 = vld [vmem:[#allocation2 + $0xae] sm:$0xff]
        %v4379 = vld [vmem:[#allocation2 + $0xb6] sm:$0xff]
        %v4380 = vld [vmem:[#allocation2 + $0xbe] sm:$0xff]
        %v4381 = vld [vmem:[#allocation2 + $0xc6] sm:$0xff]
        %v4382 = vld [vmem:[#allocation2 + $0xce] sm:$0xff]
        %v4383 = vld [vmem:[#allocation2 + $0xd6] sm:$0xff]
        %v4384 = vld [vmem:[#allocation2 + $0xde] sm:$0xff]
        %v4385 = vld [vmem:[#allocation2 + $0xe6] sm:$0xff]
        %v4386 = vld [vmem:[#allocation2 + $0xee] sm:$0xff]
        %v4387 = vld [vmem:[#allocation2 + $0xf6] sm:$0xff]
        %s4388 = scalar_lea.vmem %s5, 528
        %v4389 = vld [vmem:[%s4388] sm:$0xff]
        %v4390 = vld [vmem:[%s4388 + $0x8] sm:$0xff]
        %v4391 = vld [vmem:[%s4388 + $0x10] sm:$0xff]
        %v4392 = vld [vmem:[%s4388 + $0x18] sm:$0xff]
        %v4393 = vld [vmem:[%s4388 + $0x20] sm:$0xff]
        %v4394 = vld [vmem:[%s4388 + $0x28] sm:$0xff]
        %v4395 = vld [vmem:[%s4388 + $0x30] sm:$0xff]
        %v4396 = vld [vmem:[%s4388 + $0x38] sm:$0xff]
        %v4397 = vld [vmem:[%s4388 + $0x40] sm:$0xff]
        %v4398 = vld [vmem:[%s4388 + $0x48] sm:$0xff]
        %v4399 = vld [vmem:[%s4388 + $0x50] sm:$0xff]
        %v4400 = vld [vmem:[%s4388 + $0x58] sm:$0xff]
        %v4401 = vld [vmem:[%s4388 + $0x60] sm:$0xff]
        %v4402 = vld [vmem:[%s4388 + $0x68] sm:$0xff]
        %v4403 = vld [vmem:[%s4388 + $0x70] sm:$0xff]
        %v4404 = vld [vmem:[%s4388 + $0x78] sm:$0xff]
        %v4405 = vld [vmem:[%s4388 + $0x80] sm:$0xff]
        %v4406 = vld [vmem:[%s4388 + $0x88] sm:$0xff]
        %v4407 = vld [vmem:[%s4388 + $0x90] sm:$0xff]
        %v4408 = vld [vmem:[%s4388 + $0x98] sm:$0xff]
        %v4409 = vld [vmem:[%s4388 + $0xa0] sm:$0xf]
        %v4410 = vld [vmem:[%s4388 + $0xa8] sm:$0xf]
        %v4412 = vsel %vm2950, %v4357, 0
        %v4415 = vsel %vm2950, %v4358, 0
        %v4418 = vsel %vm2950, %v4359, 0
        %v4421 = vsel %vm2950, %v4360, 0
        %v4424 = vsel %vm2950, %v4361, 0
        %v4427 = vsel %vm2950, %v4362, 0
        %v4430 = vsel %vm2950, %v4363, 0
        %v4433 = vsel %vm2950, %v4364, 0
        %v4436 = vsel %vm2950, %v4365, 0
        %v4439 = vsel %vm2950, %v4366, 0
        %v4442 = vsel %vm2950, %v4367, 0
        %v4445 = vsel %vm2950, %v4368, 0
        %v4448 = vsel %vm2950, %v4369, 0
        %v4451 = vsel %vm2950, %v4370, 0
        %v4454 = vsel %vm2950, %v4371, 0
        %v4457 = vsel %vm2950, %v4372, 0
        %v4460 = vsel %vm2950, %v4373, 0
        %v4463 = vsel %vm2950, %v4374, 0
        %v4466 = vsel %vm2950, %v4375, 0
        %v4469 = vsel %vm2950, %v4376, 0
        %v4472 = vsel %vm2950, %v4377, 0
        %v4475 = vsel %vm2950, %v4378, 0
        %v4478 = vsel %vm2950, %v4379, 0
        %v4481 = vsel %vm2950, %v4380, 0
        %v4484 = vsel %vm2950, %v4381, 0
        %v4487 = vsel %vm2950, %v4382, 0
        %v4490 = vsel %vm2950, %v4383, 0
        %v4493 = vsel %vm2950, %v4384, 0
        %v4496 = vsel %vm2950, %v4385, 0
        %v4499 = vsel %vm2950, %v4386, 0
        %v4502 = vsel %vm2950, %v4387, 0
        %v4505 = vsel %vm3376, %v4409, 0
        %v4508 = vsel %vm3376, %v4410, 0
        %4510 = vmatpush.msra.mxu0 0.0
        %4511 = vmatpush.msra.mxu0 0.0
        %4512 = vmatpush.msra.mxu0 0.0
        %4513 = vmatpush.msra.mxu0 0.0
        %4514 = vmatpush.msra.mxu0 0.0
        %4515 = vmatpush.msra.mxu0 %v4505
        %4516 = vmatpush.msra.mxu0 %v4407
        %4517 = vmatpush.msra.mxu0 %v4405
        %4518 = vmatpush.msra.mxu0 %v4403
        %4519 = vmatpush.msra.mxu0 %v4401
        %4520 = vmatpush.msra.mxu0 %v4399
        %4521 = vmatpush.msra.mxu0 %v4397
        %4522 = vmatpush.msra.mxu0 %v4395
        %4523 = vmatpush.msra.mxu0 %v4393
        %4524 = vmatpush.msra.mxu0 %v4391
        %4525 = vmatpush.msra.mxu0 %v4389
        %4526 = vmatmul.f32.gmra.mxu0 %v4412
        %v4527 = vpop.f32.mrf.mxu0
        %v4528 = vadd.f32 0.0, %v4527
        %4529 = vmatmul.f32.gmra.mxu0 %v4415
        %v4530 = vpop.f32.mrf.mxu0
        %v4531 = vadd.f32 0.0, %v4530
        %4532 = vmatmul.f32.gmra.mxu0 %v4418
        %v4533 = vpop.f32.mrf.mxu0
        %v4534 = vadd.f32 0.0, %v4533
        %4535 = vmatmul.f32.gmra.mxu0 %v4421
        %v4536 = vpop.f32.mrf.mxu0
        %v4537 = vadd.f32 0.0, %v4536
        %4538 = vmatmul.f32.gmra.mxu0 %v4424
        %v4539 = vpop.f32.mrf.mxu0
        %v4540 = vadd.f32 0.0, %v4539
        %4541 = vmatmul.f32.gmra.mxu0 %v4427
        %v4542 = vpop.f32.mrf.mxu0
        %v4543 = vadd.f32 0.0, %v4542
        %4544 = vmatmul.f32.gmra.mxu0 %v4430
        %v4545 = vpop.f32.mrf.mxu0
        %v4546 = vadd.f32 0.0, %v4545
        %4547 = vmatmul.f32.gmra.mxu0 %v4433
        %v4548 = vpop.f32.mrf.mxu0
        %v4549 = vadd.f32 0.0, %v4548
        %4550 = vmatmul.f32.gmra.mxu0 %v4436
        %v4551 = vpop.f32.mrf.mxu0
        %v4552 = vadd.f32 0.0, %v4551
        %4553 = vmatmul.f32.gmra.mxu0 %v4439
        %v4554 = vpop.f32.mrf.mxu0
        %v4555 = vadd.f32 0.0, %v4554
        %4556 = vmatmul.f32.gmra.mxu0 %v4442
        %v4557 = vpop.f32.mrf.mxu0
        %v4558 = vadd.f32 0.0, %v4557
        %4559 = vmatmul.f32.gmra.mxu0 %v4445
        %v4560 = vpop.f32.mrf.mxu0
        %v4561 = vadd.f32 0.0, %v4560
        %4562 = vmatmul.f32.gmra.mxu0 %v4448
        %v4563 = vpop.f32.mrf.mxu0
        %v4564 = vadd.f32 0.0, %v4563
        %4565 = vmatmul.f32.gmra.mxu0 %v4451
        %v4566 = vpop.f32.mrf.mxu0
        %v4567 = vadd.f32 0.0, %v4566
        %4568 = vmatmul.f32.gmra.mxu0 %v4454
        %v4569 = vpop.f32.mrf.mxu0
        %v4570 = vadd.f32 0.0, %v4569
        %4571 = vmatmul.f32.gmra.mxu0 %v4457
        %v4572 = vpop.f32.mrf.mxu0
        %v4573 = vadd.f32 0.0, %v4572
        %4574 = vmatmul.f32.gmra.mxu0 %v4460
        %v4575 = vpop.f32.mrf.mxu0
        %v4576 = vadd.f32 0.0, %v4575
        %4577 = vmatmul.f32.gmra.mxu0 %v4463
        %v4578 = vpop.f32.mrf.mxu0
        %v4579 = vadd.f32 0.0, %v4578
        %4580 = vmatmul.f32.gmra.mxu0 %v4466
        %v4581 = vpop.f32.mrf.mxu0
        %v4582 = vadd.f32 0.0, %v4581
        %4583 = vmatmul.f32.gmra.mxu0 %v4469
        %v4584 = vpop.f32.mrf.mxu0
        %v4585 = vadd.f32 0.0, %v4584
        %4586 = vmatmul.f32.gmra.mxu0 %v4472
        %v4587 = vpop.f32.mrf.mxu0
        %v4588 = vadd.f32 0.0, %v4587
        %4589 = vmatmul.f32.gmra.mxu0 %v4475
        %v4590 = vpop.f32.mrf.mxu0
        %v4591 = vadd.f32 0.0, %v4590
        %4592 = vmatmul.f32.gmra.mxu0 %v4478
        %v4593 = vpop.f32.mrf.mxu0
        %v4594 = vadd.f32 0.0, %v4593
        %4595 = vmatmul.f32.gmra.mxu0 %v4481
        %v4596 = vpop.f32.mrf.mxu0
        %v4597 = vadd.f32 0.0, %v4596
        %4598 = vmatmul.f32.gmra.mxu0 %v4484
        %v4599 = vpop.f32.mrf.mxu0
        %v4600 = vadd.f32 0.0, %v4599
        %4601 = vmatmul.f32.gmra.mxu0 %v4487
        %v4602 = vpop.f32.mrf.mxu0
        %v4603 = vadd.f32 0.0, %v4602
        %4604 = vmatmul.f32.gmra.mxu0 %v4490
        %v4605 = vpop.f32.mrf.mxu0
        %v4606 = vadd.f32 0.0, %v4605
        %4607 = vmatmul.f32.gmra.mxu0 %v4493
        %v4608 = vpop.f32.mrf.mxu0
        %v4609 = vadd.f32 0.0, %v4608
        %4610 = vmatmul.f32.gmra.mxu0 %v4496
        %v4611 = vpop.f32.mrf.mxu0
        %v4612 = vadd.f32 0.0, %v4611
        %4613 = vmatmul.f32.gmra.mxu0 %v4499
        %v4614 = vpop.f32.mrf.mxu0
        %v4615 = vadd.f32 0.0, %v4614
        %4616 = vmatmul.f32.gmra.mxu0 %v4502
        %v4617 = vpop.f32.mrf.mxu0
        %v4618 = vadd.f32 0.0, %v4617
        %4619 = vdwg.mxu0
        %4620 = vmatpush.msra.mxu0 0.0
        %4621 = vmatpush.msra.mxu0 0.0
        %4622 = vmatpush.msra.mxu0 0.0
        %4623 = vmatpush.msra.mxu0 0.0
        %4624 = vmatpush.msra.mxu0 0.0
        %4625 = vmatpush.msra.mxu0 %v4508
        %4626 = vmatpush.msra.mxu0 %v4408
        %4627 = vmatpush.msra.mxu0 %v4406
        %4628 = vmatpush.msra.mxu0 %v4404
        %4629 = vmatpush.msra.mxu0 %v4402
        %4630 = vmatpush.msra.mxu0 %v4400
        %4631 = vmatpush.msra.mxu0 %v4398
        %4632 = vmatpush.msra.mxu0 %v4396
        %4633 = vmatpush.msra.mxu0 %v4394
        %4634 = vmatpush.msra.mxu0 %v4392
        %4635 = vmatpush.msra.mxu0 %v4390
        %4636 = vmatmul.f32.gmra.mxu0 %v4412
        %v4637 = vpop.f32.mrf.mxu0
        %v4638 = vadd.f32 0.0, %v4637
        %4639 = vmatmul.f32.gmra.mxu0 %v4415
        %v4640 = vpop.f32.mrf.mxu0
        %v4641 = vadd.f32 0.0, %v4640
        %4642 = vmatmul.f32.gmra.mxu0 %v4418
        %v4643 = vpop.f32.mrf.mxu0
        %v4644 = vadd.f32 0.0, %v4643
        %4645 = vmatmul.f32.gmra.mxu0 %v4421
        %v4646 = vpop.f32.mrf.mxu0
        %v4647 = vadd.f32 0.0, %v4646
        %4648 = vmatmul.f32.gmra.mxu0 %v4424
        %v4649 = vpop.f32.mrf.mxu0
        %v4650 = vadd.f32 0.0, %v4649
        %4651 = vmatmul.f32.gmra.mxu0 %v4427
        %v4652 = vpop.f32.mrf.mxu0
        %v4653 = vadd.f32 0.0, %v4652
        %4654 = vmatmul.f32.gmra.mxu0 %v4430
        %v4655 = vpop.f32.mrf.mxu0
        %v4656 = vadd.f32 0.0, %v4655
        %4657 = vmatmul.f32.gmra.mxu0 %v4433
        %v4658 = vpop.f32.mrf.mxu0
        %v4659 = vadd.f32 0.0, %v4658
        %4660 = vmatmul.f32.gmra.mxu0 %v4436
        %v4661 = vpop.f32.mrf.mxu0
        %v4662 = vadd.f32 0.0, %v4661
        %4663 = vmatmul.f32.gmra.mxu0 %v4439
        %v4664 = vpop.f32.mrf.mxu0
        %v4665 = vadd.f32 0.0, %v4664
        %4666 = vmatmul.f32.gmra.mxu0 %v4442
        %v4667 = vpop.f32.mrf.mxu0
        %v4668 = vadd.f32 0.0, %v4667
        %4669 = vmatmul.f32.gmra.mxu0 %v4445
        %v4670 = vpop.f32.mrf.mxu0
        %v4671 = vadd.f32 0.0, %v4670
        %4672 = vmatmul.f32.gmra.mxu0 %v4448
        %v4673 = vpop.f32.mrf.mxu0
        %v4674 = vadd.f32 0.0, %v4673
        %4675 = vmatmul.f32.gmra.mxu0 %v4451
        %v4676 = vpop.f32.mrf.mxu0
        %v4677 = vadd.f32 0.0, %v4676
        %4678 = vmatmul.f32.gmra.mxu0 %v4454
        %v4679 = vpop.f32.mrf.mxu0
        %v4680 = vadd.f32 0.0, %v4679
        %4681 = vmatmul.f32.gmra.mxu0 %v4457
        %v4682 = vpop.f32.mrf.mxu0
        %v4683 = vadd.f32 0.0, %v4682
        %4684 = vmatmul.f32.gmra.mxu0 %v4460
        %v4685 = vpop.f32.mrf.mxu0
        %v4686 = vadd.f32 0.0, %v4685
        %4687 = vmatmul.f32.gmra.mxu0 %v4463
        %v4688 = vpop.f32.mrf.mxu0
        %v4689 = vadd.f32 0.0, %v4688
        %4690 = vmatmul.f32.gmra.mxu0 %v4466
        %v4691 = vpop.f32.mrf.mxu0
        %v4692 = vadd.f32 0.0, %v4691
        %4693 = vmatmul.f32.gmra.mxu0 %v4469
        %v4694 = vpop.f32.mrf.mxu0
        %v4695 = vadd.f32 0.0, %v4694
        %4696 = vmatmul.f32.gmra.mxu0 %v4472
        %v4697 = vpop.f32.mrf.mxu0
        %v4698 = vadd.f32 0.0, %v4697
        %4699 = vmatmul.f32.gmra.mxu0 %v4475
        %v4700 = vpop.f32.mrf.mxu0
        %v4701 = vadd.f32 0.0, %v4700
        %4702 = vmatmul.f32.gmra.mxu0 %v4478
        %v4703 = vpop.f32.mrf.mxu0
        %v4704 = vadd.f32 0.0, %v4703
        %4705 = vmatmul.f32.gmra.mxu0 %v4481
        %v4706 = vpop.f32.mrf.mxu0
        %v4707 = vadd.f32 0.0, %v4706
        %4708 = vmatmul.f32.gmra.mxu0 %v4484
        %v4709 = vpop.f32.mrf.mxu0
        %v4710 = vadd.f32 0.0, %v4709
        %4711 = vmatmul.f32.gmra.mxu0 %v4487
        %v4712 = vpop.f32.mrf.mxu0
        %v4713 = vadd.f32 0.0, %v4712
        %4714 = vmatmul.f32.gmra.mxu0 %v4490
        %v4715 = vpop.f32.mrf.mxu0
        %v4716 = vadd.f32 0.0, %v4715
        %4717 = vmatmul.f32.gmra.mxu0 %v4493
        %v4718 = vpop.f32.mrf.mxu0
        %v4719 = vadd.f32 0.0, %v4718
        %4720 = vmatmul.f32.gmra.mxu0 %v4496
        %v4721 = vpop.f32.mrf.mxu0
        %v4722 = vadd.f32 0.0, %v4721
        %4723 = vmatmul.f32.gmra.mxu0 %v4499
        %v4724 = vpop.f32.mrf.mxu0
        %v4725 = vadd.f32 0.0, %v4724
        %4726 = vmatmul.f32.gmra.mxu0 %v4502
        %v4727 = vpop.f32.mrf.mxu0
        %v4728 = vadd.f32 0.0, %v4727
        %4729 = vdwg.mxu0
        %v4730 = vadd.f32 %v4295, %v4528
        %v4731 = vadd.f32 %v4296, %v4638
        %v4732 = vadd.f32 %v4297, %v4531
        %v4733 = vadd.f32 %v4298, %v4641
        %v4734 = vadd.f32 %v4299, %v4534
        %v4735 = vadd.f32 %v4300, %v4644
        %v4736 = vadd.f32 %v4301, %v4537
        %v4737 = vadd.f32 %v4302, %v4647
        %v4738 = vadd.f32 %v4303, %v4540
        %v4739 = vadd.f32 %v4304, %v4650
        %v4740 = vadd.f32 %v4305, %v4543
        %v4741 = vadd.f32 %v4306, %v4653
        %v4742 = vadd.f32 %v4307, %v4546
        %v4743 = vadd.f32 %v4308, %v4656
        %v4744 = vadd.f32 %v4309, %v4549
        %v4745 = vadd.f32 %v4310, %v4659
        %v4746 = vadd.f32 %v4311, %v4552
        %v4747 = vadd.f32 %v4312, %v4662
        %v4748 = vadd.f32 %v4313, %v4555
        %v4749 = vadd.f32 %v4314, %v4665
        %v4750 = vadd.f32 %v4315, %v4558
        %v4751 = vadd.f32 %v4316, %v4668
        %v4752 = vadd.f32 %v4317, %v4561
        %v4753 = vadd.f32 %v4318, %v4671
        %v4754 = vadd.f32 %v4319, %v4564
        %v4755 = vadd.f32 %v4320, %v4674
        %v4756 = vadd.f32 %v4321, %v4567
        %v4757 = vadd.f32 %v4322, %v4677
        %v4758 = vadd.f32 %v4323, %v4570
        %v4759 = vadd.f32 %v4324, %v4680
        %v4760 = vadd.f32 %v4325, %v4573
        %v4761 = vadd.f32 %v4326, %v4683
        %v4762 = vadd.f32 %v4327, %v4576
        %v4763 = vadd.f32 %v4328, %v4686
        %v4764 = vadd.f32 %v4329, %v4579
        %v4765 = vadd.f32 %v4330, %v4689
        %v4766 = vadd.f32 %v4331, %v4582
        %v4767 = vadd.f32 %v4332, %v4692
        %v4768 = vadd.f32 %v4333, %v4585
        %v4769 = vadd.f32 %v4334, %v4695
        %v4770 = vadd.f32 %v4335, %v4588
        %v4771 = vadd.f32 %v4336, %v4698
        %v4772 = vadd.f32 %v4337, %v4591
        %v4773 = vadd.f32 %v4338, %v4701
        %v4774 = vadd.f32 %v4339, %v4594
        %v4775 = vadd.f32 %v4340, %v4704
        %v4776 = vadd.f32 %v4341, %v4597
        %v4777 = vadd.f32 %v4342, %v4707
        %v4778 = vadd.f32 %v4343, %v4600
        %v4779 = vadd.f32 %v4344, %v4710
        %v4780 = vadd.f32 %v4345, %v4603
        %v4781 = vadd.f32 %v4346, %v4713
        %v4782 = vadd.f32 %v4347, %v4606
        %v4783 = vadd.f32 %v4348, %v4716
        %v4784 = vadd.f32 %v4349, %v4609
        %v4785 = vadd.f32 %v4350, %v4719
        %v4786 = vadd.f32 %v4351, %v4612
        %v4787 = vadd.f32 %v4352, %v4722
        %v4788 = vadd.f32 %v4353, %v4615
        %v4789 = vadd.f32 %v4354, %v4725
        %v4790 = vadd.f32 %v4355, %v4618
        %v4791 = vadd.f32 %v4356, %v4728
        %v4792 = vld [vmem:[#allocation2 + $0x8] sm:$0xff]
        %v4793 = vld [vmem:[#allocation2 + $0x10] sm:$0xff]
        %v4794 = vld [vmem:[#allocation2 + $0x18] sm:$0xff]
        %v4795 = vld [vmem:[#allocation2 + $0x20] sm:$0xff]
        %v4796 = vld [vmem:[#allocation2 + $0x28] sm:$0xff]
        %v4797 = vld [vmem:[#allocation2 + $0x30] sm:$0xff]
        %v4798 = vld [vmem:[#allocation2 + $0x38] sm:$0xff]
        %v4799 = vld [vmem:[#allocation2 + $0x40] sm:$0xff]
        %v4800 = vld [vmem:[#allocation2 + $0x48] sm:$0xff]
        %v4801 = vld [vmem:[#allocation2 + $0x50] sm:$0xff]
        %v4802 = vld [vmem:[#allocation2 + $0x58] sm:$0xff]
        %v4803 = vld [vmem:[#allocation2 + $0x60] sm:$0xff]
        %v4804 = vld [vmem:[#allocation2 + $0x68] sm:$0xff]
        %v4805 = vld [vmem:[#allocation2 + $0x70] sm:$0xff]
        %v4806 = vld [vmem:[#allocation2 + $0x78] sm:$0xff]
        %v4807 = vld [vmem:[#allocation2 + $0x80] sm:$0xff]
        %v4808 = vld [vmem:[#allocation2 + $0x88] sm:$0xff]
        %v4809 = vld [vmem:[#allocation2 + $0x90] sm:$0xff]
        %v4810 = vld [vmem:[#allocation2 + $0x98] sm:$0xff]
        %v4811 = vld [vmem:[#allocation2 + $0xa0] sm:$0xff]
        %v4812 = vld [vmem:[#allocation2 + $0xa8] sm:$0xff]
        %v4813 = vld [vmem:[#allocation2 + $0xb0] sm:$0xff]
        %v4814 = vld [vmem:[#allocation2 + $0xb8] sm:$0xff]
        %v4815 = vld [vmem:[#allocation2 + $0xc0] sm:$0xff]
        %v4816 = vld [vmem:[#allocation2 + $0xc8] sm:$0xff]
        %v4817 = vld [vmem:[#allocation2 + $0xd0] sm:$0xff]
        %v4818 = vld [vmem:[#allocation2 + $0xd8] sm:$0xff]
        %v4819 = vld [vmem:[#allocation2 + $0xe0] sm:$0xff]
        %v4820 = vld [vmem:[#allocation2 + $0xe8] sm:$0xff]
        %v4821 = vld [vmem:[#allocation2 + $0xf0] sm:$0xff]
        %v4822 = vld [vmem:[#allocation2 + $0xf8] sm:$0xff]
        %s4823 = scalar_lea.vmem %s5, 704
        %v4824 = vld [vmem:[%s4823] sm:$0xff]
        %v4825 = vld [vmem:[%s4823 + $0x8] sm:$0xff]
        %v4826 = vld [vmem:[%s4823 + $0x10] sm:$0xff]
        %v4827 = vld [vmem:[%s4823 + $0x18] sm:$0xff]
        %v4828 = vld [vmem:[%s4823 + $0x20] sm:$0xff]
        %v4829 = vld [vmem:[%s4823 + $0x28] sm:$0xff]
        %v4830 = vld [vmem:[%s4823 + $0x30] sm:$0xff]
        %v4831 = vld [vmem:[%s4823 + $0x38] sm:$0xff]
        %v4832 = vld [vmem:[%s4823 + $0x40] sm:$0xff]
        %v4833 = vld [vmem:[%s4823 + $0x48] sm:$0xff]
        %v4834 = vld [vmem:[%s4823 + $0x50] sm:$0xff]
        %v4835 = vld [vmem:[%s4823 + $0x58] sm:$0xff]
        %v4836 = vld [vmem:[%s4823 + $0x60] sm:$0xff]
        %v4837 = vld [vmem:[%s4823 + $0x68] sm:$0xff]
        %v4838 = vld [vmem:[%s4823 + $0x70] sm:$0xff]
        %v4839 = vld [vmem:[%s4823 + $0x78] sm:$0xff]
        %v4840 = vld [vmem:[%s4823 + $0x80] sm:$0xff]
        %v4841 = vld [vmem:[%s4823 + $0x88] sm:$0xff]
        %v4842 = vld [vmem:[%s4823 + $0x90] sm:$0xff]
        %v4843 = vld [vmem:[%s4823 + $0x98] sm:$0xff]
        %v4844 = vld [vmem:[%s4823 + $0xa0] sm:$0xf]
        %v4845 = vld [vmem:[%s4823 + $0xa8] sm:$0xf]
        %v4847 = vsel %vm2950, %v4792, 0
        %v4850 = vsel %vm2950, %v4793, 0
        %v4853 = vsel %vm2950, %v4794, 0
        %v4856 = vsel %vm2950, %v4795, 0
        %v4859 = vsel %vm2950, %v4796, 0
        %v4862 = vsel %vm2950, %v4797, 0
        %v4865 = vsel %vm2950, %v4798, 0
        %v4868 = vsel %vm2950, %v4799, 0
        %v4871 = vsel %vm2950, %v4800, 0
        %v4874 = vsel %vm2950, %v4801, 0
        %v4877 = vsel %vm2950, %v4802, 0
        %v4880 = vsel %vm2950, %v4803, 0
        %v4883 = vsel %vm2950, %v4804, 0
        %v4886 = vsel %vm2950, %v4805, 0
        %v4889 = vsel %vm2950, %v4806, 0
        %v4892 = vsel %vm2950, %v4807, 0
        %v4895 = vsel %vm2950, %v4808, 0
        %v4898 = vsel %vm2950, %v4809, 0
        %v4901 = vsel %vm2950, %v4810, 0
        %v4904 = vsel %vm2950, %v4811, 0
        %v4907 = vsel %vm2950, %v4812, 0
        %v4910 = vsel %vm2950, %v4813, 0
        %v4913 = vsel %vm2950, %v4814, 0
        %v4916 = vsel %vm2950, %v4815, 0
        %v4919 = vsel %vm2950, %v4816, 0
        %v4922 = vsel %vm2950, %v4817, 0
        %v4925 = vsel %vm2950, %v4818, 0
        %v4928 = vsel %vm2950, %v4819, 0
        %v4931 = vsel %vm2950, %v4820, 0
        %v4934 = vsel %vm2950, %v4821, 0
        %v4937 = vsel %vm2950, %v4822, 0
        %v4940 = vsel %vm3376, %v4844, 0
        %v4943 = vsel %vm3376, %v4845, 0
        %4945 = vmatpush.msra.mxu0 0.0
        %4946 = vmatpush.msra.mxu0 0.0
        %4947 = vmatpush.msra.mxu0 0.0
        %4948 = vmatpush.msra.mxu0 0.0
        %4949 = vmatpush.msra.mxu0 0.0
        %4950 = vmatpush.msra.mxu0 %v4940
        %4951 = vmatpush.msra.mxu0 %v4842
        %4952 = vmatpush.msra.mxu0 %v4840
        %4953 = vmatpush.msra.mxu0 %v4838
        %4954 = vmatpush.msra.mxu0 %v4836
        %4955 = vmatpush.msra.mxu0 %v4834
        %4956 = vmatpush.msra.mxu0 %v4832
        %4957 = vmatpush.msra.mxu0 %v4830
        %4958 = vmatpush.msra.mxu0 %v4828
        %4959 = vmatpush.msra.mxu0 %v4826
        %4960 = vmatpush.msra.mxu0 %v4824
        %4961 = vmatmul.f32.gmra.mxu0 %v4847
        %v4962 = vpop.f32.mrf.mxu0
        %v4963 = vadd.f32 0.0, %v4962
        %4964 = vmatmul.f32.gmra.mxu0 %v4850
        %v4965 = vpop.f32.mrf.mxu0
        %v4966 = vadd.f32 0.0, %v4965
        %4967 = vmatmul.f32.gmra.mxu0 %v4853
        %v4968 = vpop.f32.mrf.mxu0
        %v4969 = vadd.f32 0.0, %v4968
        %4970 = vmatmul.f32.gmra.mxu0 %v4856
        %v4971 = vpop.f32.mrf.mxu0
        %v4972 = vadd.f32 0.0, %v4971
        %4973 = vmatmul.f32.gmra.mxu0 %v4859
        %v4974 = vpop.f32.mrf.mxu0
        %v4975 = vadd.f32 0.0, %v4974
        %4976 = vmatmul.f32.gmra.mxu0 %v4862
        %v4977 = vpop.f32.mrf.mxu0
        %v4978 = vadd.f32 0.0, %v4977
        %4979 = vmatmul.f32.gmra.mxu0 %v4865
        %v4980 = vpop.f32.mrf.mxu0
        %v4981 = vadd.f32 0.0, %v4980
        %4982 = vmatmul.f32.gmra.mxu0 %v4868
        %v4983 = vpop.f32.mrf.mxu0
        %v4984 = vadd.f32 0.0, %v4983
        %4985 = vmatmul.f32.gmra.mxu0 %v4871
        %v4986 = vpop.f32.mrf.mxu0
        %v4987 = vadd.f32 0.0, %v4986
        %4988 = vmatmul.f32.gmra.mxu0 %v4874
        %v4989 = vpop.f32.mrf.mxu0
        %v4990 = vadd.f32 0.0, %v4989
        %4991 = vmatmul.f32.gmra.mxu0 %v4877
        %v4992 = vpop.f32.mrf.mxu0
        %v4993 = vadd.f32 0.0, %v4992
        %4994 = vmatmul.f32.gmra.mxu0 %v4880
        %v4995 = vpop.f32.mrf.mxu0
        %v4996 = vadd.f32 0.0, %v4995
        %4997 = vmatmul.f32.gmra.mxu0 %v4883
        %v4998 = vpop.f32.mrf.mxu0
        %v4999 = vadd.f32 0.0, %v4998
        %5000 = vmatmul.f32.gmra.mxu0 %v4886
        %v5001 = vpop.f32.mrf.mxu0
        %v5002 = vadd.f32 0.0, %v5001
        %5003 = vmatmul.f32.gmra.mxu0 %v4889
        %v5004 = vpop.f32.mrf.mxu0
        %v5005 = vadd.f32 0.0, %v5004
        %5006 = vmatmul.f32.gmra.mxu0 %v4892
        %v5007 = vpop.f32.mrf.mxu0
        %v5008 = vadd.f32 0.0, %v5007
        %5009 = vmatmul.f32.gmra.mxu0 %v4895
        %v5010 = vpop.f32.mrf.mxu0
        %v5011 = vadd.f32 0.0, %v5010
        %5012 = vmatmul.f32.gmra.mxu0 %v4898
        %v5013 = vpop.f32.mrf.mxu0
        %v5014 = vadd.f32 0.0, %v5013
        %5015 = vmatmul.f32.gmra.mxu0 %v4901
        %v5016 = vpop.f32.mrf.mxu0
        %v5017 = vadd.f32 0.0, %v5016
        %5018 = vmatmul.f32.gmra.mxu0 %v4904
        %v5019 = vpop.f32.mrf.mxu0
        %v5020 = vadd.f32 0.0, %v5019
        %5021 = vmatmul.f32.gmra.mxu0 %v4907
        %v5022 = vpop.f32.mrf.mxu0
        %v5023 = vadd.f32 0.0, %v5022
        %5024 = vmatmul.f32.gmra.mxu0 %v4910
        %v5025 = vpop.f32.mrf.mxu0
        %v5026 = vadd.f32 0.0, %v5025
        %5027 = vmatmul.f32.gmra.mxu0 %v4913
        %v5028 = vpop.f32.mrf.mxu0
        %v5029 = vadd.f32 0.0, %v5028
        %5030 = vmatmul.f32.gmra.mxu0 %v4916
        %v5031 = vpop.f32.mrf.mxu0
        %v5032 = vadd.f32 0.0, %v5031
        %5033 = vmatmul.f32.gmra.mxu0 %v4919
        %v5034 = vpop.f32.mrf.mxu0
        %v5035 = vadd.f32 0.0, %v5034
        %5036 = vmatmul.f32.gmra.mxu0 %v4922
        %v5037 = vpop.f32.mrf.mxu0
        %v5038 = vadd.f32 0.0, %v5037
        %5039 = vmatmul.f32.gmra.mxu0 %v4925
        %v5040 = vpop.f32.mrf.mxu0
        %v5041 = vadd.f32 0.0, %v5040
        %5042 = vmatmul.f32.gmra.mxu0 %v4928
        %v5043 = vpop.f32.mrf.mxu0
        %v5044 = vadd.f32 0.0, %v5043
        %5045 = vmatmul.f32.gmra.mxu0 %v4931
        %v5046 = vpop.f32.mrf.mxu0
        %v5047 = vadd.f32 0.0, %v5046
        %5048 = vmatmul.f32.gmra.mxu0 %v4934
        %v5049 = vpop.f32.mrf.mxu0
        %v5050 = vadd.f32 0.0, %v5049
        %5051 = vmatmul.f32.gmra.mxu0 %v4937
        %v5052 = vpop.f32.mrf.mxu0
        %v5053 = vadd.f32 0.0, %v5052
        %5054 = vdwg.mxu0
        %5055 = vmatpush.msra.mxu0 0.0
        %5056 = vmatpush.msra.mxu0 0.0
        %5057 = vmatpush.msra.mxu0 0.0
        %5058 = vmatpush.msra.mxu0 0.0
        %5059 = vmatpush.msra.mxu0 0.0
        %5060 = vmatpush.msra.mxu0 %v4943
        %5061 = vmatpush.msra.mxu0 %v4843
        %5062 = vmatpush.msra.mxu0 %v4841
        %5063 = vmatpush.msra.mxu0 %v4839
        %5064 = vmatpush.msra.mxu0 %v4837
        %5065 = vmatpush.msra.mxu0 %v4835
        %5066 = vmatpush.msra.mxu0 %v4833
        %5067 = vmatpush.msra.mxu0 %v4831
        %5068 = vmatpush.msra.mxu0 %v4829
        %5069 = vmatpush.msra.mxu0 %v4827
        %5070 = vmatpush.msra.mxu0 %v4825
        %5071 = vmatmul.f32.gmra.mxu0 %v4847
        %v5072 = vpop.f32.mrf.mxu0
        %v5073 = vadd.f32 0.0, %v5072
        %5074 = vmatmul.f32.gmra.mxu0 %v4850
        %v5075 = vpop.f32.mrf.mxu0
        %v5076 = vadd.f32 0.0, %v5075
        %5077 = vmatmul.f32.gmra.mxu0 %v4853
        %v5078 = vpop.f32.mrf.mxu0
        %v5079 = vadd.f32 0.0, %v5078
        %5080 = vmatmul.f32.gmra.mxu0 %v4856
        %v5081 = vpop.f32.mrf.mxu0
        %v5082 = vadd.f32 0.0, %v5081
        %5083 = vmatmul.f32.gmra.mxu0 %v4859
        %v5084 = vpop.f32.mrf.mxu0
        %v5085 = vadd.f32 0.0, %v5084
        %5086 = vmatmul.f32.gmra.mxu0 %v4862
        %v5087 = vpop.f32.mrf.mxu0
        %v5088 = vadd.f32 0.0, %v5087
        %5089 = vmatmul.f32.gmra.mxu0 %v4865
        %v5090 = vpop.f32.mrf.mxu0
        %v5091 = vadd.f32 0.0, %v5090
        %5092 = vmatmul.f32.gmra.mxu0 %v4868
        %v5093 = vpop.f32.mrf.mxu0
        %v5094 = vadd.f32 0.0, %v5093
        %5095 = vmatmul.f32.gmra.mxu0 %v4871
        %v5096 = vpop.f32.mrf.mxu0
        %v5097 = vadd.f32 0.0, %v5096
        %5098 = vmatmul.f32.gmra.mxu0 %v4874
        %v5099 = vpop.f32.mrf.mxu0
        %v5100 = vadd.f32 0.0, %v5099
        %5101 = vmatmul.f32.gmra.mxu0 %v4877
        %v5102 = vpop.f32.mrf.mxu0
        %v5103 = vadd.f32 0.0, %v5102
        %5104 = vmatmul.f32.gmra.mxu0 %v4880
        %v5105 = vpop.f32.mrf.mxu0
        %v5106 = vadd.f32 0.0, %v5105
        %5107 = vmatmul.f32.gmra.mxu0 %v4883
        %v5108 = vpop.f32.mrf.mxu0
        %v5109 = vadd.f32 0.0, %v5108
        %5110 = vmatmul.f32.gmra.mxu0 %v4886
        %v5111 = vpop.f32.mrf.mxu0
        %v5112 = vadd.f32 0.0, %v5111
        %5113 = vmatmul.f32.gmra.mxu0 %v4889
        %v5114 = vpop.f32.mrf.mxu0
        %v5115 = vadd.f32 0.0, %v5114
        %5116 = vmatmul.f32.gmra.mxu0 %v4892
        %v5117 = vpop.f32.mrf.mxu0
        %v5118 = vadd.f32 0.0, %v5117
        %5119 = vmatmul.f32.gmra.mxu0 %v4895
        %v5120 = vpop.f32.mrf.mxu0
        %v5121 = vadd.f32 0.0, %v5120
        %5122 = vmatmul.f32.gmra.mxu0 %v4898
        %v5123 = vpop.f32.mrf.mxu0
        %v5124 = vadd.f32 0.0, %v5123
        %5125 = vmatmul.f32.gmra.mxu0 %v4901
        %v5126 = vpop.f32.mrf.mxu0
        %v5127 = vadd.f32 0.0, %v5126
        %5128 = vmatmul.f32.gmra.mxu0 %v4904
        %v5129 = vpop.f32.mrf.mxu0
        %v5130 = vadd.f32 0.0, %v5129
        %5131 = vmatmul.f32.gmra.mxu0 %v4907
        %v5132 = vpop.f32.mrf.mxu0
        %v5133 = vadd.f32 0.0, %v5132
        %5134 = vmatmul.f32.gmra.mxu0 %v4910
        %v5135 = vpop.f32.mrf.mxu0
        %v5136 = vadd.f32 0.0, %v5135
        %5137 = vmatmul.f32.gmra.mxu0 %v4913
        %v5138 = vpop.f32.mrf.mxu0
        %v5139 = vadd.f32 0.0, %v5138
        %5140 = vmatmul.f32.gmra.mxu0 %v4916
        %v5141 = vpop.f32.mrf.mxu0
        %v5142 = vadd.f32 0.0, %v5141
        %5143 = vmatmul.f32.gmra.mxu0 %v4919
        %v5144 = vpop.f32.mrf.mxu0
        %v5145 = vadd.f32 0.0, %v5144
        %5146 = vmatmul.f32.gmra.mxu0 %v4922
        %v5147 = vpop.f32.mrf.mxu0
        %v5148 = vadd.f32 0.0, %v5147
        %5149 = vmatmul.f32.gmra.mxu0 %v4925
        %v5150 = vpop.f32.mrf.mxu0
        %v5151 = vadd.f32 0.0, %v5150
        %5152 = vmatmul.f32.gmra.mxu0 %v4928
        %v5153 = vpop.f32.mrf.mxu0
        %v5154 = vadd.f32 0.0, %v5153
        %5155 = vmatmul.f32.gmra.mxu0 %v4931
        %v5156 = vpop.f32.mrf.mxu0
        %v5157 = vadd.f32 0.0, %v5156
        %5158 = vmatmul.f32.gmra.mxu0 %v4934
        %v5159 = vpop.f32.mrf.mxu0
        %v5160 = vadd.f32 0.0, %v5159
        %5161 = vmatmul.f32.gmra.mxu0 %v4937
        %v5162 = vpop.f32.mrf.mxu0
        %v5163 = vadd.f32 0.0, %v5162
        %5164 = vdwg.mxu0
        %v5165 = vadd.f32 %v4730, %v4963
        %v5166 = vadd.f32 %v4731, %v5073
        %v5167 = vadd.f32 %v4732, %v4966
        %v5168 = vadd.f32 %v4733, %v5076
        %v5169 = vadd.f32 %v4734, %v4969
        %v5170 = vadd.f32 %v4735, %v5079
        %v5171 = vadd.f32 %v4736, %v4972
        %v5172 = vadd.f32 %v4737, %v5082
        %v5173 = vadd.f32 %v4738, %v4975
        %v5174 = vadd.f32 %v4739, %v5085
        %v5175 = vadd.f32 %v4740, %v4978
        %v5176 = vadd.f32 %v4741, %v5088
        %v5177 = vadd.f32 %v4742, %v4981
        %v5178 = vadd.f32 %v4743, %v5091
        %v5179 = vadd.f32 %v4744, %v4984
        %v5180 = vadd.f32 %v4745, %v5094
        %v5181 = vadd.f32 %v4746, %v4987
        %v5182 = vadd.f32 %v4747, %v5097
        %v5183 = vadd.f32 %v4748, %v4990
        %v5184 = vadd.f32 %v4749, %v5100
        %v5185 = vadd.f32 %v4750, %v4993
        %v5186 = vadd.f32 %v4751, %v5103
        %v5187 = vadd.f32 %v4752, %v4996
        %v5188 = vadd.f32 %v4753, %v5106
        %v5189 = vadd.f32 %v4754, %v4999
        %v5190 = vadd.f32 %v4755, %v5109
        %v5191 = vadd.f32 %v4756, %v5002
        %v5192 = vadd.f32 %v4757, %v5112
        %v5193 = vadd.f32 %v4758, %v5005
        %v5194 = vadd.f32 %v4759, %v5115
        %v5195 = vadd.f32 %v4760, %v5008
        %v5196 = vadd.f32 %v4761, %v5118
        %v5197 = vadd.f32 %v4762, %v5011
        %v5198 = vadd.f32 %v4763, %v5121
        %v5199 = vadd.f32 %v4764, %v5014
        %v5200 = vadd.f32 %v4765, %v5124
        %v5201 = vadd.f32 %v4766, %v5017
        %v5202 = vadd.f32 %v4767, %v5127
        %v5203 = vadd.f32 %v4768, %v5020
        %v5204 = vadd.f32 %v4769, %v5130
        %v5205 = vadd.f32 %v4770, %v5023
        %v5206 = vadd.f32 %v4771, %v5133
        %v5207 = vadd.f32 %v4772, %v5026
        %v5208 = vadd.f32 %v4773, %v5136
        %v5209 = vadd.f32 %v4774, %v5029
        %v5210 = vadd.f32 %v4775, %v5139
        %v5211 = vadd.f32 %v4776, %v5032
        %v5212 = vadd.f32 %v4777, %v5142
        %v5213 = vadd.f32 %v4778, %v5035
        %v5214 = vadd.f32 %v4779, %v5145
        %v5215 = vadd.f32 %v4780, %v5038
        %v5216 = vadd.f32 %v4781, %v5148
        %v5217 = vadd.f32 %v4782, %v5041
        %v5218 = vadd.f32 %v4783, %v5151
        %v5219 = vadd.f32 %v4784, %v5044
        %v5220 = vadd.f32 %v4785, %v5154
        %v5221 = vadd.f32 %v4786, %v5047
        %v5222 = vadd.f32 %v4787, %v5157
        %v5223 = vadd.f32 %v4788, %v5050
        %v5224 = vadd.f32 %v4789, %v5160
        %v5225 = vadd.f32 %v4790, %v5053
        %v5226 = vadd.f32 %v4791, %v5163
        %v5227 = vld [vmem:[%s6] sm:$0x3]
        %v5229 = vperm.slane %v5227, 0
        %v5230 = vperm.slane %v5227, 1
        %v5233 = vadd.f32 %v5165, %v5229
        %v5234 = vadd.f32 %v5166, %v5230
        %v5235 = vadd.f32 %v5167, %v5229
        %v5236 = vadd.f32 %v5168, %v5230
        %v5237 = vadd.f32 %v5169, %v5229
        %v5238 = vadd.f32 %v5170, %v5230
        %v5239 = vadd.f32 %v5171, %v5229
        %v5240 = vadd.f32 %v5172, %v5230
        %v5241 = vadd.f32 %v5173, %v5229
        %v5242 = vadd.f32 %v5174, %v5230
        %v5243 = vadd.f32 %v5175, %v5229
        %v5244 = vadd.f32 %v5176, %v5230
        %v5245 = vadd.f32 %v5177, %v5229
        %v5246 = vadd.f32 %v5178, %v5230
        %v5247 = vadd.f32 %v5179, %v5229
        %v5248 = vadd.f32 %v5180, %v5230
        %v5249 = vadd.f32 %v5181, %v5229
        %v5250 = vadd.f32 %v5182, %v5230
        %v5251 = vadd.f32 %v5183, %v5229
        %v5252 = vadd.f32 %v5184, %v5230
        %v5253 = vadd.f32 %v5185, %v5229
        %v5254 = vadd.f32 %v5186, %v5230
        %v5255 = vadd.f32 %v5187, %v5229
        %v5256 = vadd.f32 %v5188, %v5230
        %v5257 = vadd.f32 %v5189, %v5229
        %v5258 = vadd.f32 %v5190, %v5230
        %v5259 = vadd.f32 %v5191, %v5229
        %v5260 = vadd.f32 %v5192, %v5230
        %v5261 = vadd.f32 %v5193, %v5229
        %v5262 = vadd.f32 %v5194, %v5230
        %v5263 = vadd.f32 %v5195, %v5229
        %v5264 = vadd.f32 %v5196, %v5230
        %v5265 = vadd.f32 %v5197, %v5229
        %v5266 = vadd.f32 %v5198, %v5230
        %v5267 = vadd.f32 %v5199, %v5229
        %v5268 = vadd.f32 %v5200, %v5230
        %v5269 = vadd.f32 %v5201, %v5229
        %v5270 = vadd.f32 %v5202, %v5230
        %v5271 = vadd.f32 %v5203, %v5229
        %v5272 = vadd.f32 %v5204, %v5230
        %v5273 = vadd.f32 %v5205, %v5229
        %v5274 = vadd.f32 %v5206, %v5230
        %v5275 = vadd.f32 %v5207, %v5229
        %v5276 = vadd.f32 %v5208, %v5230
        %v5277 = vadd.f32 %v5209, %v5229
        %v5278 = vadd.f32 %v5210, %v5230
        %v5279 = vadd.f32 %v5211, %v5229
        %v5280 = vadd.f32 %v5212, %v5230
        %v5281 = vadd.f32 %v5213, %v5229
        %v5282 = vadd.f32 %v5214, %v5230
        %v5283 = vadd.f32 %v5215, %v5229
        %v5284 = vadd.f32 %v5216, %v5230
        %v5285 = vadd.f32 %v5217, %v5229
        %v5286 = vadd.f32 %v5218, %v5230
        %v5287 = vadd.f32 %v5219, %v5229
        %v5288 = vadd.f32 %v5220, %v5230
        %v5289 = vadd.f32 %v5221, %v5229
        %v5290 = vadd.f32 %v5222, %v5230
        %v5291 = vadd.f32 %v5223, %v5229
        %v5292 = vadd.f32 %v5224, %v5230
        %v5293 = vadd.f32 %v5225, %v5229
        %v5294 = vadd.f32 %v5226, %v5230
        %v5295 = vmax.f32 %v5233, 0.0
        %v5296 = vmax.f32 %v5234, 0.0
        %v5297 = vmax.f32 %v5235, 0.0
        %v5298 = vmax.f32 %v5236, 0.0
        %v5299 = vmax.f32 %v5237, 0.0
        %v5300 = vmax.f32 %v5238, 0.0
        %v5301 = vmax.f32 %v5239, 0.0
        %v5302 = vmax.f32 %v5240, 0.0
        %v5303 = vmax.f32 %v5241, 0.0
        %v5304 = vmax.f32 %v5242, 0.0
        %v5305 = vmax.f32 %v5243, 0.0
        %v5306 = vmax.f32 %v5244, 0.0
        %v5307 = vmax.f32 %v5245, 0.0
        %v5308 = vmax.f32 %v5246, 0.0
        %v5309 = vmax.f32 %v5247, 0.0
        %v5310 = vmax.f32 %v5248, 0.0
        %v5311 = vmax.f32 %v5249, 0.0
        %v5312 = vmax.f32 %v5250, 0.0
        %v5313 = vmax.f32 %v5251, 0.0
        %v5314 = vmax.f32 %v5252, 0.0
        %v5315 = vmax.f32 %v5253, 0.0
        %v5316 = vmax.f32 %v5254, 0.0
        %v5317 = vmax.f32 %v5255, 0.0
        %v5318 = vmax.f32 %v5256, 0.0
        %v5319 = vmax.f32 %v5257, 0.0
        %v5320 = vmax.f32 %v5258, 0.0
        %v5321 = vmax.f32 %v5259, 0.0
        %v5322 = vmax.f32 %v5260, 0.0
        %v5323 = vmax.f32 %v5261, 0.0
        %v5324 = vmax.f32 %v5262, 0.0
        %v5325 = vmax.f32 %v5263, 0.0
        %v5326 = vmax.f32 %v5264, 0.0
        %v5327 = vmax.f32 %v5265, 0.0
        %v5328 = vmax.f32 %v5266, 0.0
        %v5329 = vmax.f32 %v5267, 0.0
        %v5330 = vmax.f32 %v5268, 0.0
        %v5331 = vmax.f32 %v5269, 0.0
        %v5332 = vmax.f32 %v5270, 0.0
        %v5333 = vmax.f32 %v5271, 0.0
        %v5334 = vmax.f32 %v5272, 0.0
        %v5335 = vmax.f32 %v5273, 0.0
        %v5336 = vmax.f32 %v5274, 0.0
        %v5337 = vmax.f32 %v5275, 0.0
        %v5338 = vmax.f32 %v5276, 0.0
        %v5339 = vmax.f32 %v5277, 0.0
        %v5340 = vmax.f32 %v5278, 0.0
        %v5341 = vmax.f32 %v5279, 0.0
        %v5342 = vmax.f32 %v5280, 0.0
        %v5343 = vmax.f32 %v5281, 0.0
        %v5344 = vmax.f32 %v5282, 0.0
        %v5345 = vmax.f32 %v5283, 0.0
        %v5346 = vmax.f32 %v5284, 0.0
        %v5347 = vmax.f32 %v5285, 0.0
        %v5348 = vmax.f32 %v5286, 0.0
        %v5349 = vmax.f32 %v5287, 0.0
        %v5350 = vmax.f32 %v5288, 0.0
        %v5351 = vmax.f32 %v5289, 0.0
        %v5352 = vmax.f32 %v5290, 0.0
        %v5353 = vmax.f32 %v5291, 0.0
        %v5354 = vmax.f32 %v5292, 0.0
        %v5355 = vmax.f32 %v5293, 0.0
        %v5356 = vmax.f32 %v5294, 0.0
        %v5357 = vld [vmem:[%s7] sm:$0xff]
        %v5358 = vld [vmem:[%s7 + $0x8] sm:$0xff]
        %v5359 = vld [vmem:[%s7 + $0x10] sm:$0xff]
        %v5360 = vld [vmem:[%s7 + $0x18] sm:$0xff]
        %v5361 = vld [vmem:[%s7 + $0x20] sm:$0xff]
        %v5362 = vld [vmem:[%s7 + $0x28] sm:$0xff]
        %v5363 = vld [vmem:[%s7 + $0x30] sm:$0xff]
        %v5364 = vld [vmem:[%s7 + $0x38] sm:$0xff]
        %v5365 = vld [vmem:[%s7 + $0x40] sm:$0xff]
        %v5366 = vld [vmem:[%s7 + $0x48] sm:$0xff]
        %v5367 = vld [vmem:[%s7 + $0x50] sm:$0xff]
        %v5368 = vld [vmem:[%s7 + $0x58] sm:$0xff]
        %v5369 = vld [vmem:[%s7 + $0x60] sm:$0xff]
        %v5370 = vld [vmem:[%s7 + $0x68] sm:$0xff]
        %v5371 = vld [vmem:[%s7 + $0x70] sm:$0xff]
        %v5372 = vld [vmem:[%s7 + $0x78] sm:$0xff]
        %v5373 = vld [vmem:[%s7 + $0x80] sm:$0xff]
        %v5374 = vld [vmem:[%s7 + $0x88] sm:$0xff]
        %v5375 = vld [vmem:[%s7 + $0x90] sm:$0xff]
        %v5376 = vld [vmem:[%s7 + $0x98] sm:$0xff]
        %vm5377 = vcmask 261120
        %v5379 = vsel %vm5377, %v5296, 0
        %v5382 = vsel %vm5377, %v5298, 0
        %v5385 = vsel %vm5377, %v5300, 0
        %v5388 = vsel %vm5377, %v5302, 0
        %v5391 = vsel %vm5377, %v5304, 0
        %v5394 = vsel %vm5377, %v5306, 0
        %v5397 = vsel %vm5377, %v5308, 0
        %v5400 = vsel %vm5377, %v5310, 0
        %v5403 = vsel %vm5377, %v5312, 0
        %v5406 = vsel %vm5377, %v5314, 0
        %v5409 = vsel %vm5377, %v5316, 0
        %v5412 = vsel %vm5377, %v5318, 0
        %v5415 = vsel %vm5377, %v5320, 0
        %v5418 = vsel %vm5377, %v5322, 0
        %v5421 = vsel %vm5377, %v5324, 0
        %v5424 = vsel %vm5377, %v5326, 0
        %v5427 = vsel %vm5377, %v5328, 0
        %v5430 = vsel %vm5377, %v5330, 0
        %v5433 = vsel %vm5377, %v5332, 0
        %v5436 = vsel %vm5377, %v5334, 0
        %v5439 = vsel %vm5377, %v5336, 0
        %v5442 = vsel %vm5377, %v5338, 0
        %v5445 = vsel %vm5377, %v5340, 0
        %v5448 = vsel %vm5377, %v5342, 0
        %v5451 = vsel %vm5377, %v5344, 0
        %v5454 = vsel %vm5377, %v5346, 0
        %v5457 = vsel %vm5377, %v5348, 0
        %v5460 = vsel %vm5377, %v5350, 0
        %v5463 = vsel %vm5377, %v5352, 0
        %v5466 = vsel %vm5377, %v5354, 0
        %v5469 = vsel %vm5377, %v5356, 0
        %5471 = vmatpush.msra.mxu0 %v5372
        %5472 = vmatpush.msra.mxu0 %v5371
        %5473 = vmatpush.msra.mxu0 %v5370
        %5474 = vmatpush.msra.mxu0 %v5369
        %5475 = vmatpush.msra.mxu0 %v5368
        %5476 = vmatpush.msra.mxu0 %v5367
        %5477 = vmatpush.msra.mxu0 %v5366
        %5478 = vmatpush.msra.mxu0 %v5365
        %5479 = vmatpush.msra.mxu0 %v5364
        %5480 = vmatpush.msra.mxu0 %v5363
        %5481 = vmatpush.msra.mxu0 %v5362
        %5482 = vmatpush.msra.mxu0 %v5361
        %5483 = vmatpush.msra.mxu0 %v5360
        %5484 = vmatpush.msra.mxu0 %v5359
        %5485 = vmatpush.msra.mxu0 %v5358
        %5486 = vmatpush.msra.mxu0 %v5357
        %5487 = vmatmul.f32.gmra.mxu0 %v5295
        %v5488 = vpop.f32.mrf.mxu0
        %v5489 = vadd.f32 0.0, %v5488
        %5490 = vmatmul.f32.gmra.mxu0 %v5297
        %v5491 = vpop.f32.mrf.mxu0
        %v5492 = vadd.f32 0.0, %v5491
        %5493 = vmatmul.f32.gmra.mxu0 %v5299
        %v5494 = vpop.f32.mrf.mxu0
        %v5495 = vadd.f32 0.0, %v5494
        %5496 = vmatmul.f32.gmra.mxu0 %v5301
        %v5497 = vpop.f32.mrf.mxu0
        %v5498 = vadd.f32 0.0, %v5497
        %5499 = vmatmul.f32.gmra.mxu0 %v5303
        %v5500 = vpop.f32.mrf.mxu0
        %v5501 = vadd.f32 0.0, %v5500
        %5502 = vmatmul.f32.gmra.mxu0 %v5305
        %v5503 = vpop.f32.mrf.mxu0
        %v5504 = vadd.f32 0.0, %v5503
        %5505 = vmatmul.f32.gmra.mxu0 %v5307
        %v5506 = vpop.f32.mrf.mxu0
        %v5507 = vadd.f32 0.0, %v5506
        %5508 = vmatmul.f32.gmra.mxu0 %v5309
        %v5509 = vpop.f32.mrf.mxu0
        %v5510 = vadd.f32 0.0, %v5509
        %5511 = vmatmul.f32.gmra.mxu0 %v5311
        %v5512 = vpop.f32.mrf.mxu0
        %v5513 = vadd.f32 0.0, %v5512
        %5514 = vmatmul.f32.gmra.mxu0 %v5313
        %v5515 = vpop.f32.mrf.mxu0
        %v5516 = vadd.f32 0.0, %v5515
        %5517 = vmatmul.f32.gmra.mxu0 %v5315
        %v5518 = vpop.f32.mrf.mxu0
        %v5519 = vadd.f32 0.0, %v5518
        %5520 = vmatmul.f32.gmra.mxu0 %v5317
        %v5521 = vpop.f32.mrf.mxu0
        %v5522 = vadd.f32 0.0, %v5521
        %5523 = vmatmul.f32.gmra.mxu0 %v5319
        %v5524 = vpop.f32.mrf.mxu0
        %v5525 = vadd.f32 0.0, %v5524
        %5526 = vmatmul.f32.gmra.mxu0 %v5321
        %v5527 = vpop.f32.mrf.mxu0
        %v5528 = vadd.f32 0.0, %v5527
        %5529 = vmatmul.f32.gmra.mxu0 %v5323
        %v5530 = vpop.f32.mrf.mxu0
        %v5531 = vadd.f32 0.0, %v5530
        %5532 = vmatmul.f32.gmra.mxu0 %v5325
        %v5533 = vpop.f32.mrf.mxu0
        %v5534 = vadd.f32 0.0, %v5533
        %5535 = vmatmul.f32.gmra.mxu0 %v5327
        %v5536 = vpop.f32.mrf.mxu0
        %v5537 = vadd.f32 0.0, %v5536
        %5538 = vmatmul.f32.gmra.mxu0 %v5329
        %v5539 = vpop.f32.mrf.mxu0
        %v5540 = vadd.f32 0.0, %v5539
        %5541 = vmatmul.f32.gmra.mxu0 %v5331
        %v5542 = vpop.f32.mrf.mxu0
        %v5543 = vadd.f32 0.0, %v5542
        %5544 = vmatmul.f32.gmra.mxu0 %v5333
        %v5545 = vpop.f32.mrf.mxu0
        %v5546 = vadd.f32 0.0, %v5545
        %5547 = vmatmul.f32.gmra.mxu0 %v5335
        %v5548 = vpop.f32.mrf.mxu0
        %v5549 = vadd.f32 0.0, %v5548
        %5550 = vmatmul.f32.gmra.mxu0 %v5337
        %v5551 = vpop.f32.mrf.mxu0
        %v5552 = vadd.f32 0.0, %v5551
        %5553 = vmatmul.f32.gmra.mxu0 %v5339
        %v5554 = vpop.f32.mrf.mxu0
        %v5555 = vadd.f32 0.0, %v5554
        %5556 = vmatmul.f32.gmra.mxu0 %v5341
        %v5557 = vpop.f32.mrf.mxu0
        %v5558 = vadd.f32 0.0, %v5557
        %5559 = vmatmul.f32.gmra.mxu0 %v5343
        %v5560 = vpop.f32.mrf.mxu0
        %v5561 = vadd.f32 0.0, %v5560
        %5562 = vmatmul.f32.gmra.mxu0 %v5345
        %v5563 = vpop.f32.mrf.mxu0
        %v5564 = vadd.f32 0.0, %v5563
        %5565 = vmatmul.f32.gmra.mxu0 %v5347
        %v5566 = vpop.f32.mrf.mxu0
        %v5567 = vadd.f32 0.0, %v5566
        %5568 = vmatmul.f32.gmra.mxu0 %v5349
        %v5569 = vpop.f32.mrf.mxu0
        %v5570 = vadd.f32 0.0, %v5569
        %5571 = vmatmul.f32.gmra.mxu0 %v5351
        %v5572 = vpop.f32.mrf.mxu0
        %v5573 = vadd.f32 0.0, %v5572
        %5574 = vmatmul.f32.gmra.mxu0 %v5353
        %v5575 = vpop.f32.mrf.mxu0
        %v5576 = vadd.f32 0.0, %v5575
        %5577 = vmatmul.f32.gmra.mxu0 %v5355
        %v5578 = vpop.f32.mrf.mxu0
        %v5579 = vadd.f32 0.0, %v5578
        %5580 = vdwg.mxu0
        %5581 = vmatpush.msra.mxu0 0.0
        %5582 = vmatpush.msra.mxu0 0.0
        %5583 = vmatpush.msra.mxu0 0.0
        %5584 = vmatpush.msra.mxu0 0.0
        %5585 = vmatpush.msra.mxu0 0.0
        %5586 = vmatpush.msra.mxu0 0.0
        %5587 = vmatpush.msra.mxu0 0.0
        %5588 = vmatpush.msra.mxu0 0.0
        %5589 = vmatpush.msra.mxu0 0.0
        %5590 = vmatpush.msra.mxu0 0.0
        %5591 = vmatpush.msra.mxu0 0.0
        %5592 = vmatpush.msra.mxu0 0.0
        %5593 = vmatpush.msra.mxu0 %v5376
        %5594 = vmatpush.msra.mxu0 %v5375
        %5595 = vmatpush.msra.mxu0 %v5374
        %5596 = vmatpush.msra.mxu0 %v5373
        %5597 = vmatmul.f32.gmra.mxu0 %v5379
        %v5598 = vpop.f32.mrf.mxu0
        %v5599 = vadd.f32 %v5489, %v5598
        %5600 = vmatmul.f32.gmra.mxu0 %v5382
        %v5601 = vpop.f32.mrf.mxu0
        %v5602 = vadd.f32 %v5492, %v5601
        %5603 = vmatmul.f32.gmra.mxu0 %v5385
        %v5604 = vpop.f32.mrf.mxu0
        %v5605 = vadd.f32 %v5495, %v5604
        %5606 = vmatmul.f32.gmra.mxu0 %v5388
        %v5607 = vpop.f32.mrf.mxu0
        %v5608 = vadd.f32 %v5498, %v5607
        %5609 = vmatmul.f32.gmra.mxu0 %v5391
        %v5610 = vpop.f32.mrf.mxu0
        %v5611 = vadd.f32 %v5501, %v5610
        %5612 = vmatmul.f32.gmra.mxu0 %v5394
        %v5613 = vpop.f32.mrf.mxu0
        %v5614 = vadd.f32 %v5504, %v5613
        %5615 = vmatmul.f32.gmra.mxu0 %v5397
        %v5616 = vpop.f32.mrf.mxu0
        %v5617 = vadd.f32 %v5507, %v5616
        %5618 = vmatmul.f32.gmra.mxu0 %v5400
        %v5619 = vpop.f32.mrf.mxu0
        %v5620 = vadd.f32 %v5510, %v5619
        %5621 = vmatmul.f32.gmra.mxu0 %v5403
        %v5622 = vpop.f32.mrf.mxu0
        %v5623 = vadd.f32 %v5513, %v5622
        %5624 = vmatmul.f32.gmra.mxu0 %v5406
        %v5625 = vpop.f32.mrf.mxu0
        %v5626 = vadd.f32 %v5516, %v5625
        %5627 = vmatmul.f32.gmra.mxu0 %v5409
        %v5628 = vpop.f32.mrf.mxu0
        %v5629 = vadd.f32 %v5519, %v5628
        %5630 = vmatmul.f32.gmra.mxu0 %v5412
        %v5631 = vpop.f32.mrf.mxu0
        %v5632 = vadd.f32 %v5522, %v5631
        %5633 = vmatmul.f32.gmra.mxu0 %v5415
        %v5634 = vpop.f32.mrf.mxu0
        %v5635 = vadd.f32 %v5525, %v5634
        %5636 = vmatmul.f32.gmra.mxu0 %v5418
        %v5637 = vpop.f32.mrf.mxu0
        %v5638 = vadd.f32 %v5528, %v5637
        %5639 = vmatmul.f32.gmra.mxu0 %v5421
        %v5640 = vpop.f32.mrf.mxu0
        %v5641 = vadd.f32 %v5531, %v5640
        %5642 = vmatmul.f32.gmra.mxu0 %v5424
        %v5643 = vpop.f32.mrf.mxu0
        %v5644 = vadd.f32 %v5534, %v5643
        %5645 = vmatmul.f32.gmra.mxu0 %v5427
        %v5646 = vpop.f32.mrf.mxu0
        %v5647 = vadd.f32 %v5537, %v5646
        %5648 = vmatmul.f32.gmra.mxu0 %v5430
        %v5649 = vpop.f32.mrf.mxu0
        %v5650 = vadd.f32 %v5540, %v5649
        %5651 = vmatmul.f32.gmra.mxu0 %v5433
        %v5652 = vpop.f32.mrf.mxu0
        %v5653 = vadd.f32 %v5543, %v5652
        %5654 = vmatmul.f32.gmra.mxu0 %v5436
        %v5655 = vpop.f32.mrf.mxu0
        %v5656 = vadd.f32 %v5546, %v5655
        %5657 = vmatmul.f32.gmra.mxu0 %v5439
        %v5658 = vpop.f32.mrf.mxu0
        %v5659 = vadd.f32 %v5549, %v5658
        %5660 = vmatmul.f32.gmra.mxu0 %v5442
        %v5661 = vpop.f32.mrf.mxu0
        %v5662 = vadd.f32 %v5552, %v5661
        %5663 = vmatmul.f32.gmra.mxu0 %v5445
        %v5664 = vpop.f32.mrf.mxu0
        %v5665 = vadd.f32 %v5555, %v5664
        %5666 = vmatmul.f32.gmra.mxu0 %v5448
        %v5667 = vpop.f32.mrf.mxu0
        %v5668 = vadd.f32 %v5558, %v5667
        %5669 = vmatmul.f32.gmra.mxu0 %v5451
        %v5670 = vpop.f32.mrf.mxu0
        %v5671 = vadd.f32 %v5561, %v5670
        %5672 = vmatmul.f32.gmra.mxu0 %v5454
        %v5673 = vpop.f32.mrf.mxu0
        %v5674 = vadd.f32 %v5564, %v5673
        %5675 = vmatmul.f32.gmra.mxu0 %v5457
        %v5676 = vpop.f32.mrf.mxu0
        %v5677 = vadd.f32 %v5567, %v5676
        %5678 = vmatmul.f32.gmra.mxu0 %v5460
        %v5679 = vpop.f32.mrf.mxu0
        %v5680 = vadd.f32 %v5570, %v5679
        %5681 = vmatmul.f32.gmra.mxu0 %v5463
        %v5682 = vpop.f32.mrf.mxu0
        %v5683 = vadd.f32 %v5573, %v5682
        %5684 = vmatmul.f32.gmra.mxu0 %v5466
        %v5685 = vpop.f32.mrf.mxu0
        %v5686 = vadd.f32 %v5576, %v5685
        %5687 = vmatmul.f32.gmra.mxu0 %v5469
        %v5688 = vpop.f32.mrf.mxu0
        %v5689 = vadd.f32 %v5579, %v5688
        %5690 = vdwg.mxu0
        %v5691 = vld [vmem:[%s8] sm:$0xff]
        %v5692 = vld [vmem:[%s8 + $0x8] sm:$0xff]
        %v5693 = vld [vmem:[%s8 + $0x10] sm:$0xff]
        %v5694 = vld [vmem:[%s8 + $0x18] sm:$0xff]
        %v5695 = vld [vmem:[%s8 + $0x20] sm:$0xff]
        %v5696 = vld [vmem:[%s8 + $0x28] sm:$0xff]
        %v5697 = vld [vmem:[%s8 + $0x30] sm:$0xff]
        %v5698 = vld [vmem:[%s8 + $0x38] sm:$0xff]
        %v5699 = vld [vmem:[%s8 + $0x40] sm:$0xff]
        %v5700 = vld [vmem:[%s8 + $0x48] sm:$0xff]
        %v5701 = vld [vmem:[%s8 + $0x50] sm:$0xff]
        %v5702 = vld [vmem:[%s8 + $0x58] sm:$0xff]
        %v5703 = vld [vmem:[%s8 + $0x60] sm:$0xff]
        %v5704 = vld [vmem:[%s8 + $0x68] sm:$0xff]
        %v5705 = vld [vmem:[%s8 + $0x70] sm:$0xff]
        %v5706 = vld [vmem:[%s8 + $0x78] sm:$0xff]
        %v5707 = vld [vmem:[%s8 + $0x80] sm:$0xff]
        %v5708 = vld [vmem:[%s8 + $0x88] sm:$0xff]
        %v5709 = vld [vmem:[%s8 + $0x90] sm:$0xff]
        %v5710 = vld [vmem:[%s8 + $0x98] sm:$0xff]
        %5711 = vmatpush.msra.mxu0 %v5706
        %5712 = vmatpush.msra.mxu0 %v5705
        %5713 = vmatpush.msra.mxu0 %v5704
        %5714 = vmatpush.msra.mxu0 %v5703
        %5715 = vmatpush.msra.mxu0 %v5702
        %5716 = vmatpush.msra.mxu0 %v5701
        %5717 = vmatpush.msra.mxu0 %v5700
        %5718 = vmatpush.msra.mxu0 %v5699
        %5719 = vmatpush.msra.mxu0 %v5698
        %5720 = vmatpush.msra.mxu0 %v5697
        %5721 = vmatpush.msra.mxu0 %v5696
        %5722 = vmatpush.msra.mxu0 %v5695
        %5723 = vmatpush.msra.mxu0 %v5694
        %5724 = vmatpush.msra.mxu0 %v5693
        %5725 = vmatpush.msra.mxu0 %v5692
        %5726 = vmatpush.msra.mxu0 %v5691
        %5727 = vmatmul.f32.gmra.mxu0 %v5295
        %v5728 = vpop.f32.mrf.mxu0
        %v5729 = vadd.f32 0.0, %v5728
        %5730 = vmatmul.f32.gmra.mxu0 %v5297
        %v5731 = vpop.f32.mrf.mxu0
        %v5732 = vadd.f32 0.0, %v5731
        %5733 = vmatmul.f32.gmra.mxu0 %v5299
        %v5734 = vpop.f32.mrf.mxu0
        %v5735 = vadd.f32 0.0, %v5734
        %5736 = vmatmul.f32.gmra.mxu0 %v5301
        %v5737 = vpop.f32.mrf.mxu0
        %v5738 = vadd.f32 0.0, %v5737
        %5739 = vmatmul.f32.gmra.mxu0 %v5303
        %v5740 = vpop.f32.mrf.mxu0
        %v5741 = vadd.f32 0.0, %v5740
        %5742 = vmatmul.f32.gmra.mxu0 %v5305
        %v5743 = vpop.f32.mrf.mxu0
        %v5744 = vadd.f32 0.0, %v5743
        %5745 = vmatmul.f32.gmra.mxu0 %v5307
        %v5746 = vpop.f32.mrf.mxu0
        %v5747 = vadd.f32 0.0, %v5746
        %5748 = vmatmul.f32.gmra.mxu0 %v5309
        %v5749 = vpop.f32.mrf.mxu0
        %v5750 = vadd.f32 0.0, %v5749
        %5751 = vmatmul.f32.gmra.mxu0 %v5311
        %v5752 = vpop.f32.mrf.mxu0
        %v5753 = vadd.f32 0.0, %v5752
        %5754 = vmatmul.f32.gmra.mxu0 %v5313
        %v5755 = vpop.f32.mrf.mxu0
        %v5756 = vadd.f32 0.0, %v5755
        %5757 = vmatmul.f32.gmra.mxu0 %v5315
        %v5758 = vpop.f32.mrf.mxu0
        %v5759 = vadd.f32 0.0, %v5758
        %5760 = vmatmul.f32.gmra.mxu0 %v5317
        %v5761 = vpop.f32.mrf.mxu0
        %v5762 = vadd.f32 0.0, %v5761
        %5763 = vmatmul.f32.gmra.mxu0 %v5319
        %v5764 = vpop.f32.mrf.mxu0
        %v5765 = vadd.f32 0.0, %v5764
        %5766 = vmatmul.f32.gmra.mxu0 %v5321
        %v5767 = vpop.f32.mrf.mxu0
        %v5768 = vadd.f32 0.0, %v5767
        %5769 = vmatmul.f32.gmra.mxu0 %v5323
        %v5770 = vpop.f32.mrf.mxu0
        %v5771 = vadd.f32 0.0, %v5770
        %5772 = vmatmul.f32.gmra.mxu0 %v5325
        %v5773 = vpop.f32.mrf.mxu0
        %v5774 = vadd.f32 0.0, %v5773
        %5775 = vmatmul.f32.gmra.mxu0 %v5327
        %v5776 = vpop.f32.mrf.mxu0
        %v5777 = vadd.f32 0.0, %v5776
        %5778 = vmatmul.f32.gmra.mxu0 %v5329
        %v5779 = vpop.f32.mrf.mxu0
        %v5780 = vadd.f32 0.0, %v5779
        %5781 = vmatmul.f32.gmra.mxu0 %v5331
        %v5782 = vpop.f32.mrf.mxu0
        %v5783 = vadd.f32 0.0, %v5782
        %5784 = vmatmul.f32.gmra.mxu0 %v5333
        %v5785 = vpop.f32.mrf.mxu0
        %v5786 = vadd.f32 0.0, %v5785
        %5787 = vmatmul.f32.gmra.mxu0 %v5335
        %v5788 = vpop.f32.mrf.mxu0
        %v5789 = vadd.f32 0.0, %v5788
        %5790 = vmatmul.f32.gmra.mxu0 %v5337
        %v5791 = vpop.f32.mrf.mxu0
        %v5792 = vadd.f32 0.0, %v5791
        %5793 = vmatmul.f32.gmra.mxu0 %v5339
        %v5794 = vpop.f32.mrf.mxu0
        %v5795 = vadd.f32 0.0, %v5794
        %5796 = vmatmul.f32.gmra.mxu0 %v5341
        %v5797 = vpop.f32.mrf.mxu0
        %v5798 = vadd.f32 0.0, %v5797
        %5799 = vmatmul.f32.gmra.mxu0 %v5343
        %v5800 = vpop.f32.mrf.mxu0
        %v5801 = vadd.f32 0.0, %v5800
        %5802 = vmatmul.f32.gmra.mxu0 %v5345
        %v5803 = vpop.f32.mrf.mxu0
        %v5804 = vadd.f32 0.0, %v5803
        %5805 = vmatmul.f32.gmra.mxu0 %v5347
        %v5806 = vpop.f32.mrf.mxu0
        %v5807 = vadd.f32 0.0, %v5806
        %5808 = vmatmul.f32.gmra.mxu0 %v5349
        %v5809 = vpop.f32.mrf.mxu0
        %v5810 = vadd.f32 0.0, %v5809
        %5811 = vmatmul.f32.gmra.mxu0 %v5351
        %v5812 = vpop.f32.mrf.mxu0
        %v5813 = vadd.f32 0.0, %v5812
        %5814 = vmatmul.f32.gmra.mxu0 %v5353
        %v5815 = vpop.f32.mrf.mxu0
        %v5816 = vadd.f32 0.0, %v5815
        %5817 = vmatmul.f32.gmra.mxu0 %v5355
        %v5818 = vpop.f32.mrf.mxu0
        %v5819 = vadd.f32 0.0, %v5818
        %5820 = vdwg.mxu0
        %5821 = vmatpush.msra.mxu0 0.0
        %5822 = vmatpush.msra.mxu0 0.0
        %5823 = vmatpush.msra.mxu0 0.0
        %5824 = vmatpush.msra.mxu0 0.0
        %5825 = vmatpush.msra.mxu0 0.0
        %5826 = vmatpush.msra.mxu0 0.0
        %5827 = vmatpush.msra.mxu0 0.0
        %5828 = vmatpush.msra.mxu0 0.0
        %5829 = vmatpush.msra.mxu0 0.0
        %5830 = vmatpush.msra.mxu0 0.0
        %5831 = vmatpush.msra.mxu0 0.0
        %5832 = vmatpush.msra.mxu0 0.0
        %5833 = vmatpush.msra.mxu0 %v5710
        %5834 = vmatpush.msra.mxu0 %v5709
        %5835 = vmatpush.msra.mxu0 %v5708
        %5836 = vmatpush.msra.mxu0 %v5707
        %5837 = vmatmul.f32.gmra.mxu0 %v5379
        %v5838 = vpop.f32.mrf.mxu0
        %v5839 = vadd.f32 %v5729, %v5838
        %5840 = vmatmul.f32.gmra.mxu0 %v5382
        %v5841 = vpop.f32.mrf.mxu0
        %v5842 = vadd.f32 %v5732, %v5841
        %5843 = vmatmul.f32.gmra.mxu0 %v5385
        %v5844 = vpop.f32.mrf.mxu0
        %v5845 = vadd.f32 %v5735, %v5844
        %5846 = vmatmul.f32.gmra.mxu0 %v5388
        %v5847 = vpop.f32.mrf.mxu0
        %v5848 = vadd.f32 %v5738, %v5847
        %5849 = vmatmul.f32.gmra.mxu0 %v5391
        %v5850 = vpop.f32.mrf.mxu0
        %v5851 = vadd.f32 %v5741, %v5850
        %5852 = vmatmul.f32.gmra.mxu0 %v5394
        %v5853 = vpop.f32.mrf.mxu0
        %v5854 = vadd.f32 %v5744, %v5853
        %5855 = vmatmul.f32.gmra.mxu0 %v5397
        %v5856 = vpop.f32.mrf.mxu0
        %v5857 = vadd.f32 %v5747, %v5856
        %5858 = vmatmul.f32.gmra.mxu0 %v5400
        %v5859 = vpop.f32.mrf.mxu0
        %v5860 = vadd.f32 %v5750, %v5859
        %5861 = vmatmul.f32.gmra.mxu0 %v5403
        %v5862 = vpop.f32.mrf.mxu0
        %v5863 = vadd.f32 %v5753, %v5862
        %5864 = vmatmul.f32.gmra.mxu0 %v5406
        %v5865 = vpop.f32.mrf.mxu0
        %v5866 = vadd.f32 %v5756, %v5865
        %5867 = vmatmul.f32.gmra.mxu0 %v5409
        %v5868 = vpop.f32.mrf.mxu0
        %v5869 = vadd.f32 %v5759, %v5868
        %5870 = vmatmul.f32.gmra.mxu0 %v5412
        %v5871 = vpop.f32.mrf.mxu0
        %v5872 = vadd.f32 %v5762, %v5871
        %5873 = vmatmul.f32.gmra.mxu0 %v5415
        %v5874 = vpop.f32.mrf.mxu0
        %v5875 = vadd.f32 %v5765, %v5874
        %5876 = vmatmul.f32.gmra.mxu0 %v5418
        %v5877 = vpop.f32.mrf.mxu0
        %v5878 = vadd.f32 %v5768, %v5877
        %5879 = vmatmul.f32.gmra.mxu0 %v5421
        %v5880 = vpop.f32.mrf.mxu0
        %v5881 = vadd.f32 %v5771, %v5880
        %5882 = vmatmul.f32.gmra.mxu0 %v5424
        %v5883 = vpop.f32.mrf.mxu0
        %v5884 = vadd.f32 %v5774, %v5883
        %5885 = vmatmul.f32.gmra.mxu0 %v5427
        %v5886 = vpop.f32.mrf.mxu0
        %v5887 = vadd.f32 %v5777, %v5886
        %5888 = vmatmul.f32.gmra.mxu0 %v5430
        %v5889 = vpop.f32.mrf.mxu0
        %v5890 = vadd.f32 %v5780, %v5889
        %5891 = vmatmul.f32.gmra.mxu0 %v5433
        %v5892 = vpop.f32.mrf.mxu0
        %v5893 = vadd.f32 %v5783, %v5892
        %5894 = vmatmul.f32.gmra.mxu0 %v5436
        %v5895 = vpop.f32.mrf.mxu0
        %v5896 = vadd.f32 %v5786, %v5895
        %5897 = vmatmul.f32.gmra.mxu0 %v5439
        %v5898 = vpop.f32.mrf.mxu0
        %v5899 = vadd.f32 %v5789, %v5898
        %5900 = vmatmul.f32.gmra.mxu0 %v5442
        %v5901 = vpop.f32.mrf.mxu0
        %v5902 = vadd.f32 %v5792, %v5901
        %5903 = vmatmul.f32.gmra.mxu0 %v5445
        %v5904 = vpop.f32.mrf.mxu0
        %v5905 = vadd.f32 %v5795, %v5904
        %5906 = vmatmul.f32.gmra.mxu0 %v5448
        %v5907 = vpop.f32.mrf.mxu0
        %v5908 = vadd.f32 %v5798, %v5907
        %5909 = vmatmul.f32.gmra.mxu0 %v5451
        %v5910 = vpop.f32.mrf.mxu0
        %v5911 = vadd.f32 %v5801, %v5910
        %5912 = vmatmul.f32.gmra.mxu0 %v5454
        %v5913 = vpop.f32.mrf.mxu0
        %v5914 = vadd.f32 %v5804, %v5913
        %5915 = vmatmul.f32.gmra.mxu0 %v5457
        %v5916 = vpop.f32.mrf.mxu0
        %v5917 = vadd.f32 %v5807, %v5916
        %5918 = vmatmul.f32.gmra.mxu0 %v5460
        %v5919 = vpop.f32.mrf.mxu0
        %v5920 = vadd.f32 %v5810, %v5919
        %5921 = vmatmul.f32.gmra.mxu0 %v5463
        %v5922 = vpop.f32.mrf.mxu0
        %v5923 = vadd.f32 %v5813, %v5922
        %5924 = vmatmul.f32.gmra.mxu0 %v5466
        %v5925 = vpop.f32.mrf.mxu0
        %v5926 = vadd.f32 %v5816, %v5925
        %5927 = vmatmul.f32.gmra.mxu0 %v5469
        %v5928 = vpop.f32.mrf.mxu0
        %v5929 = vadd.f32 %v5819, %v5928
        %5930 = vdwg.mxu0
        %v5931 = vmax.f32 %v5599, %v5839
        %v5932 = vmax.f32 %v5602, %v5842
        %v5933 = vmax.f32 %v5605, %v5845
        %v5934 = vmax.f32 %v5608, %v5848
        %v5935 = vmax.f32 %v5611, %v5851
        %v5936 = vmax.f32 %v5614, %v5854
        %v5937 = vmax.f32 %v5617, %v5857
        %v5938 = vmax.f32 %v5620, %v5860
        %v5939 = vmax.f32 %v5623, %v5863
        %v5940 = vmax.f32 %v5626, %v5866
        %v5941 = vmax.f32 %v5629, %v5869
        %v5942 = vmax.f32 %v5632, %v5872
        %v5943 = vmax.f32 %v5635, %v5875
        %v5944 = vmax.f32 %v5638, %v5878
        %v5945 = vmax.f32 %v5641, %v5881
        %v5946 = vmax.f32 %v5644, %v5884
        %v5947 = vmax.f32 %v5647, %v5887
        %v5948 = vmax.f32 %v5650, %v5890
        %v5949 = vmax.f32 %v5653, %v5893
        %v5950 = vmax.f32 %v5656, %v5896
        %v5951 = vmax.f32 %v5659, %v5899
        %v5952 = vmax.f32 %v5662, %v5902
        %v5953 = vmax.f32 %v5665, %v5905
        %v5954 = vmax.f32 %v5668, %v5908
        %v5955 = vmax.f32 %v5671, %v5911
        %v5956 = vmax.f32 %v5674, %v5914
        %v5957 = vmax.f32 %v5677, %v5917
        %v5958 = vmax.f32 %v5680, %v5920
        %v5959 = vmax.f32 %v5683, %v5923
        %v5960 = vmax.f32 %v5686, %v5926
        %v5961 = vmax.f32 %v5689, %v5929
        %v5962 = vld [vmem:[%s9] sm:$0xff]
        %v5963 = vld [vmem:[%s9 + $0x8] sm:$0xff]
        %v5964 = vld [vmem:[%s9 + $0x10] sm:$0xff]
        %v5965 = vld [vmem:[%s9 + $0x18] sm:$0xff]
        %v5966 = vld [vmem:[%s9 + $0x20] sm:$0xff]
        %v5967 = vld [vmem:[%s9 + $0x28] sm:$0xff]
        %v5968 = vld [vmem:[%s9 + $0x30] sm:$0xff]
        %v5969 = vld [vmem:[%s9 + $0x38] sm:$0xff]
        %v5970 = vld [vmem:[%s9 + $0x40] sm:$0xff]
        %v5971 = vld [vmem:[%s9 + $0x48] sm:$0xff]
        %vm5972 = vcmask 982016
        %v5974 = vsel %vm5972, %v5963, 0
        %v5977 = vsel %vm5972, %v5965, 0
        %v5980 = vsel %vm5972, %v5967, 0
        %v5983 = vsel %vm5972, %v5969, 0
        %v5986 = vsel %vm5972, %v5971, 0
        %5988 = vmatpush.msra.mxu0 %v5946
        %5989 = vmatpush.msra.mxu0 %v5945
        %5990 = vmatpush.msra.mxu0 %v5944
        %5991 = vmatpush.msra.mxu0 %v5943
        %5992 = vmatpush.msra.mxu0 %v5942
        %5993 = vmatpush.msra.mxu0 %v5941
        %5994 = vmatpush.msra.mxu0 %v5940
        %5995 = vmatpush.msra.mxu0 %v5939
        %5996 = vmatpush.msra.mxu0 %v5938
        %5997 = vmatpush.msra.mxu0 %v5937
        %5998 = vmatpush.msra.mxu0 %v5936
        %5999 = vmatpush.msra.mxu0 %v5935
        %6000 = vmatpush.msra.mxu0 %v5934
        %6001 = vmatpush.msra.mxu0 %v5933
        %6002 = vmatpush.msra.mxu0 %v5932
        %6003 = vmatpush.msra.mxu0 %v5931
        %6004 = vmatmul.f32.gmra.mxu0 %v5962
        %v6005 = vpop.f32.mrf.mxu0
        %v6006 = vadd.f32 0.0, %v6005
        %6007 = vmatmul.f32.gmra.mxu0 %v5964
        %v6008 = vpop.f32.mrf.mxu0
        %v6009 = vadd.f32 0.0, %v6008
        %6010 = vmatmul.f32.gmra.mxu0 %v5966
        %v6011 = vpop.f32.mrf.mxu0
        %v6012 = vadd.f32 0.0, %v6011
        %6013 = vmatmul.f32.gmra.mxu0 %v5968
        %v6014 = vpop.f32.mrf.mxu0
        %v6015 = vadd.f32 0.0, %v6014
        %6016 = vmatmul.f32.gmra.mxu0 %v5970
        %v6017 = vpop.f32.mrf.mxu0
        %v6018 = vadd.f32 0.0, %v6017
        %6019 = vdwg.mxu0
        %6020 = vmatpush.msra.mxu0 0.0
        %6021 = vmatpush.msra.mxu0 %v5961
        %6022 = vmatpush.msra.mxu0 %v5960
        %6023 = vmatpush.msra.mxu0 %v5959
        %6024 = vmatpush.msra.mxu0 %v5958
        %6025 = vmatpush.msra.mxu0 %v5957
        %6026 = vmatpush.msra.mxu0 %v5956
        %6027 = vmatpush.msra.mxu0 %v5955
        %6028 = vmatpush.msra.mxu0 %v5954
        %6029 = vmatpush.msra.mxu0 %v5953
        %6030 = vmatpush.msra.mxu0 %v5952
        %6031 = vmatpush.msra.mxu0 %v5951
        %6032 = vmatpush.msra.mxu0 %v5950
        %6033 = vmatpush.msra.mxu0 %v5949
        %6034 = vmatpush.msra.mxu0 %v5948
        %6035 = vmatpush.msra.mxu0 %v5947
        %6036 = vmatmul.f32.gmra.mxu0 %v5974
        %v6037 = vpop.f32.mrf.mxu0
        %v6038 = vadd.f32 %v6006, %v6037
        %6039 = vmatmul.f32.gmra.mxu0 %v5977
        %v6040 = vpop.f32.mrf.mxu0
        %v6041 = vadd.f32 %v6009, %v6040
        %6042 = vmatmul.f32.gmra.mxu0 %v5980
        %v6043 = vpop.f32.mrf.mxu0
        %v6044 = vadd.f32 %v6012, %v6043
        %6045 = vmatmul.f32.gmra.mxu0 %v5983
        %v6046 = vpop.f32.mrf.mxu0
        %v6047 = vadd.f32 %v6015, %v6046
        %6048 = vmatmul.f32.gmra.mxu0 %v5986
        %v6049 = vpop.f32.mrf.mxu0
        %v6050 = vadd.f32 %v6018, %v6049
        %6051 = vdwg.mxu0
        %v6052 = vld [vmem:[%s10] sm:$0xff]
        %v6053 = vld [vmem:[%s10 + $0x8] sm:$0xff]
        %v6054 = vld [vmem:[%s10 + $0x10] sm:$0xff]
        %v6055 = vld [vmem:[%s10 + $0x18] sm:$0xff]
        %v6056 = vld [vmem:[%s10 + $0x20] sm:$0xff]
        %v6057 = vld [vmem:[%s10 + $0x28] sm:$0xff]
        %v6058 = vld [vmem:[%s10 + $0x30] sm:$0xff]
        %v6059 = vld [vmem:[%s10 + $0x38] sm:$0xff]
        %v6060 = vld [vmem:[%s10 + $0x40] sm:$0xff]
        %v6061 = vld [vmem:[%s10 + $0x48] sm:$0xff]
        %v6063 = vsel %vm5972, %v6053, 0
        %v6066 = vsel %vm5972, %v6055, 0
        %v6069 = vsel %vm5972, %v6057, 0
        %v6072 = vsel %vm5972, %v6059, 0
        %v6075 = vsel %vm5972, %v6061, 0
        %6077 = vmatpush.msra.mxu0 %v5946
        %6078 = vmatpush.msra.mxu0 %v5945
        %6079 = vmatpush.msra.mxu0 %v5944
        %6080 = vmatpush.msra.mxu0 %v5943
        %6081 = vmatpush.msra.mxu0 %v5942
        %6082 = vmatpush.msra.mxu0 %v5941
        %6083 = vmatpush.msra.mxu0 %v5940
        %6084 = vmatpush.msra.mxu0 %v5939
        %6085 = vmatpush.msra.mxu0 %v5938
        %6086 = vmatpush.msra.mxu0 %v5937
        %6087 = vmatpush.msra.mxu0 %v5936
        %6088 = vmatpush.msra.mxu0 %v5935
        %6089 = vmatpush.msra.mxu0 %v5934
        %6090 = vmatpush.msra.mxu0 %v5933
        %6091 = vmatpush.msra.mxu0 %v5932
        %6092 = vmatpush.msra.mxu0 %v5931
        %6093 = vmatmul.f32.gmra.mxu0 %v6052
        %v6094 = vpop.f32.mrf.mxu0
        %v6095 = vadd.f32 0.0, %v6094
        %6096 = vmatmul.f32.gmra.mxu0 %v6054
        %v6097 = vpop.f32.mrf.mxu0
        %v6098 = vadd.f32 0.0, %v6097
        %6099 = vmatmul.f32.gmra.mxu0 %v6056
        %v6100 = vpop.f32.mrf.mxu0
        %v6101 = vadd.f32 0.0, %v6100
        %6102 = vmatmul.f32.gmra.mxu0 %v6058
        %v6103 = vpop.f32.mrf.mxu0
        %v6104 = vadd.f32 0.0, %v6103
        %6105 = vmatmul.f32.gmra.mxu0 %v6060
        %v6106 = vpop.f32.mrf.mxu0
        %v6107 = vadd.f32 0.0, %v6106
        %6108 = vdwg.mxu0
        %6109 = vmatpush.msra.mxu0 0.0
        %6110 = vmatpush.msra.mxu0 %v5961
        %6111 = vmatpush.msra.mxu0 %v5960
        %6112 = vmatpush.msra.mxu0 %v5959
        %6113 = vmatpush.msra.mxu0 %v5958
        %6114 = vmatpush.msra.mxu0 %v5957
        %6115 = vmatpush.msra.mxu0 %v5956
        %6116 = vmatpush.msra.mxu0 %v5955
        %6117 = vmatpush.msra.mxu0 %v5954
        %6118 = vmatpush.msra.mxu0 %v5953
        %6119 = vmatpush.msra.mxu0 %v5952
        %6120 = vmatpush.msra.mxu0 %v5951
        %6121 = vmatpush.msra.mxu0 %v5950
        %6122 = vmatpush.msra.mxu0 %v5949
        %6123 = vmatpush.msra.mxu0 %v5948
        %6124 = vmatpush.msra.mxu0 %v5947
        %6125 = vmatmul.f32.gmra.mxu0 %v6063
        %v6126 = vpop.f32.mrf.mxu0
        %v6127 = vadd.f32 %v6095, %v6126
        %6128 = vmatmul.f32.gmra.mxu0 %v6066
        %v6129 = vpop.f32.mrf.mxu0
        %v6130 = vadd.f32 %v6098, %v6129
        %6131 = vmatmul.f32.gmra.mxu0 %v6069
        %v6132 = vpop.f32.mrf.mxu0
        %v6133 = vadd.f32 %v6101, %v6132
        %6134 = vmatmul.f32.gmra.mxu0 %v6072
        %v6135 = vpop.f32.mrf.mxu0
        %v6136 = vadd.f32 %v6104, %v6135
        %6137 = vmatmul.f32.gmra.mxu0 %v6075
        %v6138 = vpop.f32.mrf.mxu0
        %v6139 = vadd.f32 %v6107, %v6138
        %6140 = vdwg.mxu0
        %v6141 = vmax.f32 %v6038, %v6127
        %v6142 = vmax.f32 %v6041, %v6130
        %v6143 = vmax.f32 %v6044, %v6133
        %v6144 = vmax.f32 %v6047, %v6136
        %v6145 = vmax.f32 %v6050, %v6139
        %v6146 = vld [vmem:[%s12] sm:$0x1]
        %v6148 = vperm.slane %v6146, 0
        %v6150 = vadd.f32 %v6148, 0.0
        %v6151 = vld [vmem:[%s11] sm:$0xff]
        %v6152 = vld [vmem:[%s11 + $0x8] sm:$0xff]
        %v6153 = vld [vmem:[%s11 + $0x10] sm:$0xff]
        %v6154 = vld [vmem:[%s11 + $0x18] sm:$0xff]
        %v6155 = vld [vmem:[%s11 + $0x20] sm:$0xff]
        %v6156 = vld [vmem:[%s11 + $0x28] sm:$0xff]
        %v6157 = vld [vmem:[%s11 + $0x30] sm:$0xff]
        %v6158 = vld [vmem:[%s11 + $0x38] sm:$0xff]
        %v6159 = vld [vmem:[%s11 + $0x40] sm:$0xff]
        %v6160 = vld [vmem:[%s11 + $0x48] sm:$0xff]
        %vm6161 = vcmask 654336
        %v6163 = vsel %vm6161, %v6141, 0
        %6165 = vmatpush.msra.mxu0 0.0
        %6166 = vmatpush.msra.mxu0 0.0
        %6167 = vmatpush.msra.mxu0 0.0
        %6168 = vmatpush.msra.mxu0 0.0
        %6169 = vmatpush.msra.mxu0 0.0
        %6170 = vmatpush.msra.mxu0 0.0
        %6171 = vmatpush.msra.mxu0 %v6160
        %6172 = vmatpush.msra.mxu0 %v6159
        %6173 = vmatpush.msra.mxu0 %v6158
        %6174 = vmatpush.msra.mxu0 %v6157
        %6175 = vmatpush.msra.mxu0 %v6156
        %6176 = vmatpush.msra.mxu0 %v6155
        %6177 = vmatpush.msra.mxu0 %v6154
        %6178 = vmatpush.msra.mxu0 %v6153
        %6179 = vmatpush.msra.mxu0 %v6152
        %6180 = vmatpush.msra.mxu0 %v6151
        %6181 = vmatmul.f32.gmra.mxu0 %v6163
        %v6182 = vpop.f32.mrf.mxu0
        %v6183 = vadd.f32 0.0, %v6182
        %6184 = vdwg.mxu0
        %v6185 = vadd.f32 %v6150, %v6183
        %s6186 = scalar_lea.vmem %s11, 80
        %v6187 = vld [vmem:[%s6186] sm:$0xff]
        %v6188 = vld [vmem:[%s6186 + $0x8] sm:$0xff]
        %v6189 = vld [vmem:[%s6186 + $0x10] sm:$0xff]
        %v6190 = vld [vmem:[%s6186 + $0x18] sm:$0xff]
        %v6191 = vld [vmem:[%s6186 + $0x20] sm:$0xff]
        %v6192 = vld [vmem:[%s6186 + $0x28] sm:$0xff]
        %v6193 = vld [vmem:[%s6186 + $0x30] sm:$0xff]
        %v6194 = vld [vmem:[%s6186 + $0x38] sm:$0xff]
        %v6195 = vld [vmem:[%s6186 + $0x40] sm:$0xff]
        %v6196 = vld [vmem:[%s6186 + $0x48] sm:$0xff]
        %v6198 = vsel %vm6161, %v6142, 0
        %6200 = vmatpush.msra.mxu0 0.0
        %6201 = vmatpush.msra.mxu0 0.0
        %6202 = vmatpush.msra.mxu0 0.0
        %6203 = vmatpush.msra.mxu0 0.0
        %6204 = vmatpush.msra.mxu0 0.0
        %6205 = vmatpush.msra.mxu0 0.0
        %6206 = vmatpush.msra.mxu0 %v6196
        %6207 = vmatpush.msra.mxu0 %v6195
        %6208 = vmatpush.msra.mxu0 %v6194
        %6209 = vmatpush.msra.mxu0 %v6193
        %6210 = vmatpush.msra.mxu0 %v6192
        %6211 = vmatpush.msra.mxu0 %v6191
        %6212 = vmatpush.msra.mxu0 %v6190
        %6213 = vmatpush.msra.mxu0 %v6189
        %6214 = vmatpush.msra.mxu0 %v6188
        %6215 = vmatpush.msra.mxu0 %v6187
        %6216 = vmatmul.f32.gmra.mxu0 %v6198
        %v6217 = vpop.f32.mrf.mxu0
        %v6218 = vadd.f32 0.0, %v6217
        %6219 = vdwg.mxu0
        %v6220 = vadd.f32 %v6185, %v6218
        %s6221 = scalar_lea.vmem %s11, 160
        %v6222 = vld [vmem:[%s6221] sm:$0xff]
        %v6223 = vld [vmem:[%s6221 + $0x8] sm:$0xff]
        %v6224 = vld [vmem:[%s6221 + $0x10] sm:$0xff]
        %v6225 = vld [vmem:[%s6221 + $0x18] sm:$0xff]
        %v6226 = vld [vmem:[%s6221 + $0x20] sm:$0xff]
        %v6227 = vld [vmem:[%s6221 + $0x28] sm:$0xff]
        %v6228 = vld [vmem:[%s6221 + $0x30] sm:$0xff]
        %v6229 = vld [vmem:[%s6221 + $0x38] sm:$0xff]
        %v6230 = vld [vmem:[%s6221 + $0x40] sm:$0xff]
        %v6231 = vld [vmem:[%s6221 + $0x48] sm:$0xff]
        %v6233 = vsel %vm6161, %v6143, 0
        %6235 = vmatpush.msra.mxu0 0.0
        %6236 = vmatpush.msra.mxu0 0.0
        %6237 = vmatpush.msra.mxu0 0.0
        %6238 = vmatpush.msra.mxu0 0.0
        %6239 = vmatpush.msra.mxu0 0.0
        %6240 = vmatpush.msra.mxu0 0.0
        %6241 = vmatpush.msra.mxu0 %v6231
        %6242 = vmatpush.msra.mxu0 %v6230
        %6243 = vmatpush.msra.mxu0 %v6229
        %6244 = vmatpush.msra.mxu0 %v6228
        %6245 = vmatpush.msra.mxu0 %v6227
        %6246 = vmatpush.msra.mxu0 %v6226
        %6247 = vmatpush.msra.mxu0 %v6225
        %6248 = vmatpush.msra.mxu0 %v6224
        %6249 = vmatpush.msra.mxu0 %v6223
        %6250 = vmatpush.msra.mxu0 %v6222
        %6251 = vmatmul.f32.gmra.mxu0 %v6233
        %v6252 = vpop.f32.mrf.mxu0
        %v6253 = vadd.f32 0.0, %v6252
        %6254 = vdwg.mxu0
        %v6255 = vadd.f32 %v6220, %v6253
        %s6256 = scalar_lea.vmem %s11, 240
        %v6257 = vld [vmem:[%s6256] sm:$0xff]
        %v6258 = vld [vmem:[%s6256 + $0x8] sm:$0xff]
        %v6259 = vld [vmem:[%s6256 + $0x10] sm:$0xff]
        %v6260 = vld [vmem:[%s6256 + $0x18] sm:$0xff]
        %v6261 = vld [vmem:[%s6256 + $0x20] sm:$0xff]
        %v6262 = vld [vmem:[%s6256 + $0x28] sm:$0xff]
        %v6263 = vld [vmem:[%s6256 + $0x30] sm:$0xff]
        %v6264 = vld [vmem:[%s6256 + $0x38] sm:$0xff]
        %v6265 = vld [vmem:[%s6256 + $0x40] sm:$0xff]
        %v6266 = vld [vmem:[%s6256 + $0x48] sm:$0xff]
        %v6268 = vsel %vm6161, %v6144, 0
        %6270 = vmatpush.msra.mxu0 0.0
        %6271 = vmatpush.msra.mxu0 0.0
        %6272 = vmatpush.msra.mxu0 0.0
        %6273 = vmatpush.msra.mxu0 0.0
        %6274 = vmatpush.msra.mxu0 0.0
        %6275 = vmatpush.msra.mxu0 0.0
        %6276 = vmatpush.msra.mxu0 %v6266
        %6277 = vmatpush.msra.mxu0 %v6265
        %6278 = vmatpush.msra.mxu0 %v6264
        %6279 = vmatpush.msra.mxu0 %v6263
        %6280 = vmatpush.msra.mxu0 %v6262
        %6281 = vmatpush.msra.mxu0 %v6261
        %6282 = vmatpush.msra.mxu0 %v6260
        %6283 = vmatpush.msra.mxu0 %v6259
        %6284 = vmatpush.msra.mxu0 %v6258
        %6285 = vmatpush.msra.mxu0 %v6257
        %6286 = vmatmul.f32.gmra.mxu0 %v6268
        %v6287 = vpop.f32.mrf.mxu0
        %v6288 = vadd.f32 0.0, %v6287
        %6289 = vdwg.mxu0
        %v6290 = vadd.f32 %v6255, %v6288
        %s6291 = scalar_lea.vmem %s11, 320
        %v6292 = vld [vmem:[%s6291] sm:$0xff]
        %v6293 = vld [vmem:[%s6291 + $0x8] sm:$0xff]
        %v6294 = vld [vmem:[%s6291 + $0x10] sm:$0xff]
        %v6295 = vld [vmem:[%s6291 + $0x18] sm:$0xff]
        %v6296 = vld [vmem:[%s6291 + $0x20] sm:$0xff]
        %v6297 = vld [vmem:[%s6291 + $0x28] sm:$0xff]
        %v6298 = vld [vmem:[%s6291 + $0x30] sm:$0xff]
        %v6299 = vld [vmem:[%s6291 + $0x38] sm:$0xff]
        %v6300 = vld [vmem:[%s6291 + $0x40] sm:$0xff]
        %v6301 = vld [vmem:[%s6291 + $0x48] sm:$0xff]
        %v6303 = vsel %vm6161, %v6145, 0
        %6305 = vmatpush.msra.mxu0 0.0
        %6306 = vmatpush.msra.mxu0 0.0
        %6307 = vmatpush.msra.mxu0 0.0
        %6308 = vmatpush.msra.mxu0 0.0
        %6309 = vmatpush.msra.mxu0 0.0
        %6310 = vmatpush.msra.mxu0 0.0
        %6311 = vmatpush.msra.mxu0 %v6301
        %6312 = vmatpush.msra.mxu0 %v6300
        %6313 = vmatpush.msra.mxu0 %v6299
        %6314 = vmatpush.msra.mxu0 %v6298
        %6315 = vmatpush.msra.mxu0 %v6297
        %6316 = vmatpush.msra.mxu0 %v6296
        %6317 = vmatpush.msra.mxu0 %v6295
        %6318 = vmatpush.msra.mxu0 %v6294
        %6319 = vmatpush.msra.mxu0 %v6293
        %6320 = vmatpush.msra.mxu0 %v6292
        %6321 = vmatmul.f32.gmra.mxu0 %v6303
        %v6322 = vpop.f32.mrf.mxu0
        %v6323 = vadd.f32 0.0, %v6322
        %6324 = vdwg.mxu0
        %v6325 = vadd.f32 %v6290, %v6323
        %v6326 = vmax.f32 %v6325, 0.0
        %v6327 = vld [vmem:[%s13] sm:$0xff]
        %v6328 = vld [vmem:[%s13 + $0x8] sm:$0xff]
        %v6329 = vld [vmem:[%s13 + $0x10] sm:$0xff]
        %v6330 = vld [vmem:[%s13 + $0x18] sm:$0xff]
        %v6331 = vld [vmem:[%s13 + $0x20] sm:$0xff]
        %v6332 = vld [vmem:[%s13 + $0x28] sm:$0xff]
        %v6333 = vld [vmem:[%s13 + $0x30] sm:$0xff]
        %v6334 = vld [vmem:[%s13 + $0x38] sm:$0xff]
        %v6335 = vld [vmem:[%s13 + $0x40] sm:$0xff]
        %v6336 = vld [vmem:[%s13 + $0x48] sm:$0xff]
        %v6337 = vld [vmem:[%s13 + $0x50] sm:$0xff]
        %v6338 = vld [vmem:[%s13 + $0x58] sm:$0xff]
        %v6339 = vld [vmem:[%s13 + $0x60] sm:$0xff]
        %v6340 = vld [vmem:[%s13 + $0x68] sm:$0xff]
        %v6341 = vld [vmem:[%s13 + $0x70] sm:$0xff]
        %v6342 = vld [vmem:[%s13 + $0x78] sm:$0xff]
        %v6343 = vld [vmem:[%s14] sm:$0x1]
        %v6345 = vperm.slane %v6343, 0
        %6347 = vmatpush.msra.mxu0 %v6342
        %6348 = vmatpush.msra.mxu0 %v6341
        %6349 = vmatpush.msra.mxu0 %v6340
        %6350 = vmatpush.msra.mxu0 %v6339
        %6351 = vmatpush.msra.mxu0 %v6338
        %6352 = vmatpush.msra.mxu0 %v6337
        %6353 = vmatpush.msra.mxu0 %v6336
        %6354 = vmatpush.msra.mxu0 %v6335
        %6355 = vmatpush.msra.mxu0 %v6334
        %6356 = vmatpush.msra.mxu0 %v6333
        %6357 = vmatpush.msra.mxu0 %v6332
        %6358 = vmatpush.msra.mxu0 %v6331
        %6359 = vmatpush.msra.mxu0 %v6330
        %6360 = vmatpush.msra.mxu0 %v6329
        %6361 = vmatpush.msra.mxu0 %v6328
        %6362 = vmatpush.msra.mxu0 %v6327
        %6363 = vmatmul.f32.gmra.mxu0 %v6326
        %v6364 = vpop.f32.mrf.mxu0
        %v6365 = vadd.f32 %v6345, %v6364
        %6366 = vdwg.mxu0
        %v6367 = vmax.f32 %v6365, 0.0
        %v6368 = vld [vmem:[%s15] sm:$0xff]
        %v6369 = vld [vmem:[%s15 + $0x8] sm:$0xff]
        %v6370 = vld [vmem:[%s15 + $0x10] sm:$0xff]
        %v6371 = vld [vmem:[%s15 + $0x18] sm:$0xff]
        %v6372 = vld [vmem:[%s15 + $0x20] sm:$0xff]
        %v6373 = vld [vmem:[%s15 + $0x28] sm:$0xff]
        %v6374 = vld [vmem:[%s15 + $0x30] sm:$0xff]
        %v6375 = vld [vmem:[%s15 + $0x38] sm:$0xff]
        %v6376 = vld [vmem:[%s15 + $0x40] sm:$0xff]
        %v6377 = vld [vmem:[%s15 + $0x48] sm:$0xff]
        %v6378 = vld [vmem:[%s15 + $0x50] sm:$0xff]
        %v6379 = vld [vmem:[%s15 + $0x58] sm:$0xff]
        %v6380 = vld [vmem:[%s15 + $0x60] sm:$0xff]
        %v6381 = vld [vmem:[%s15 + $0x68] sm:$0xff]
        %v6382 = vld [vmem:[%s15 + $0x70] sm:$0xff]
        %v6383 = vld [vmem:[%s15 + $0x78] sm:$0xff]
        %v6384 = vld [vmem:[%s16] sm:$0x1]
        %v6386 = vperm.slane %v6384, 0
        %6388 = vmatpush.msra.mxu0 %v6383
        %6389 = vmatpush.msra.mxu0 %v6382
        %6390 = vmatpush.msra.mxu0 %v6381
        %6391 = vmatpush.msra.mxu0 %v6380
        %6392 = vmatpush.msra.mxu0 %v6379
        %6393 = vmatpush.msra.mxu0 %v6378
        %6394 = vmatpush.msra.mxu0 %v6377
        %6395 = vmatpush.msra.mxu0 %v6376
        %6396 = vmatpush.msra.mxu0 %v6375
        %6397 = vmatpush.msra.mxu0 %v6374
        %6398 = vmatpush.msra.mxu0 %v6373
        %6399 = vmatpush.msra.mxu0 %v6372
        %6400 = vmatpush.msra.mxu0 %v6371
        %6401 = vmatpush.msra.mxu0 %v6370
        %6402 = vmatpush.msra.mxu0 %v6369
        %6403 = vmatpush.msra.mxu0 %v6368
        %6404 = vmatmul.f32.gmra.mxu0 %v6367
        %v6405 = vpop.f32.mrf.mxu0
        %v6406 = vadd.f32 %v6386, %v6405
        %6407 = vdwg.mxu0
        %6408 = vmax.xlane.f32.xlu0 %v6406
        %v6409 = vpop.xlane.xlu0 %6408
        %v6410 = vsub.f32 %v6406, %v6409
        %v6411 = vmul.f32 %v6410, 1.442695
        %v6412 = vpow.pop %v6411
        %6413 = vadd.xlane.f32.xlu0 %v6412
        %v6414 = vpop.xlane.xlu0 %6413
        %v6415 = vlog2.pop %v6414
        %v6416 = vmul.f32 %v6415, 0.6931472
        %v6417 = vsub.f32 %v6410, %v6416
        %6418 = vst [vmem:[%s541] sm:$0xff] %v6417
        %s6419 = sand.u32 %s401, 1
        %s6420 = scalar_lea.sflag [#allocation4], %s6419
        %s6421 = sand.u32 %s401, 1
        %s6422 = smul.addr %s6421, 8
        %s6423 = scalar_lea.vmem [#allocation3], %s6422
        // Predicated region
        $region89: #{lenet_forward.1} parent=87 // pred_check
          %p6424 = pneg %p411
        $region90: #{lenet_forward.1} parent=87 // pred_check_branch
          %6426 = sbr.rel (%p6424) target = $region92
        $region91: #{lenet_forward.1} parent=87 // pred_region
          %6428 = vsyncadd %s6420, 0
          %s6429 = smul.addr %s31, 8
          %s6430 = scalar_lea.hbm %s17, %s6429
          %s6432 = sshll.u32 %s6423, 4
          %s6433 = int_to_ptr.vmem [resolvable:$true] %s6432
          %s6434 = sshll.u32 %s6430, 4
          %s6435 = int_to_ptr.hbm [resolvable:$true] %s6434
          %6437 = dma.vmem_to_hbm [thread:$0]  %s6433, 128, %s6435, %s6420
        $region92: #{lenet_forward.1} parent=87 // pred_fallthru
          _
      $region88: #{lenet_forward.1} parent=5 // pred_fallthru
        _
      %p6438 = scmp.le.s32.totalorder 2, %s26
      // Predicated region
      $region93: #{lenet_forward.1} parent=5 // pred_check
        %p6439 = pneg %p6438
      $region94: #{lenet_forward.1} parent=5 // pred_check_branch
        %6441 = sbr.rel (%p6439) target = $region96
      $region95: #{lenet_forward.1} parent=5 // pred_region
        %s6442 = ssub.s32 %s26, 2
        // Predicated region
        $region97: #{lenet_forward.1} parent=95 // pred_check
          %p6443 = pneg %p417
        $region98: #{lenet_forward.1} parent=95 // pred_check_branch
          %6445 = sbr.rel (%p6443) target = $region100
        $region99: #{lenet_forward.1} parent=95 // pred_region
          %s6446 = sand.u32 %s402, 1
          %s6447 = scalar_lea.sflag [#allocation4], %s6446
          %s6448 = sand.u32 %s402, 1
          %s6449 = smul.addr %s6448, 8
          %s6450 = scalar_lea.vmem [#allocation3], %s6449
          %6452 = dma.done %s6447, 128
        $region100: #{lenet_forward.1} parent=95 // pred_fallthru
          _
      $region96: #{lenet_forward.1} parent=5 // pred_fallthru
        _
    $region6: #{lenet_forward.1} parent=1 // loop_footer
      %s30 = sadd.s32 1, %s26
    $region7: #{lenet_forward.1} parent=1 // loop_footer_branch
      %25 = sbr.rel target = $region3
    $region8: #{lenet_forward.1} parent=1 // loop_exit
      _
    %6453 = vsyncpa [#allocation4], 1
    %s6454 = scalar_lea.sflag [#allocation4], 1
    %6455 = vsyncpa %s6454, 1

</llo_original>
